<compile_context>
chip_gen: v6e
topology: v6e:2x2x1
jax: 0.10.0
libtpu: 0.0.40
codegen_flags: <defaults>
</compile_context>

<pallas_src>
import functools

import jax
import jax.numpy as jnp
from jax.experimental import pallas as pl
from jax.experimental.pallas import tpu as pltpu

COMPUTE_DTYPE = jnp.bfloat16  # MXU-input / intermediate-activation dtype (f32 accumulate)


def _vmem_spec():
    return pl.BlockSpec(memory_space=pltpu.MemorySpace.VMEM)


# ---------------------------------------------------------------------------
# Pallas kernels
# ---------------------------------------------------------------------------
def _matmul_bias_act_kernel(w_ref, x_ref, b_ref, o_ref, *, relu):
    """out = relu(W @ X + b);  W:(OC,K) bf16, X:(K,M) bf16, b:(OC,1) f32."""
    x = x_ref[...].astype(w_ref.dtype)
    acc = jnp.dot(w_ref[...], x, preferred_element_type=jnp.float32)
    acc = acc + b_ref[...]
    if relu:
        acc = jnp.maximum(acc, 0.0)
    o_ref[...] = acc.astype(o_ref.dtype)


def matmul_bias_act(w, x, b, *, relu=True, out_dtype=COMPUTE_DTYPE):
    """Single whole-array-block Pallas matmul: (OC,K) @ (K,M) + (OC,1) -> (OC,M)."""
    OC = w.shape[0]
    M = x.shape[1]
    return pl.pallas_call(
        functools.partial(_matmul_bias_act_kernel, relu=relu),
        out_shape=jax.ShapeDtypeStruct((OC, M), out_dtype),
        in_specs=[_vmem_spec(), _vmem_spec(), _vmem_spec()],
        out_specs=_vmem_spec(),
    )(w, x, b)


def _latent_kernel(feat_ref, wml_ref, bml_ref, eps_ref, wdec_ref, bdec_ref,
                   mu_ref, lv_ref, d_ref, *, n_latent):
    """Fused fc_mu + fc_logvar (one concatenated weight) + reparametrize + fc_dec.

    All operands are transposed: feat (256, N), mu/logvar (L, N), d (256, N).
    """
    feat = feat_ref[...].astype(wml_ref.dtype)
    ml = jnp.dot(wml_ref[...], feat, preferred_element_type=jnp.float32) + bml_ref[...]
    mu = ml[:n_latent, :]
    lv = ml[n_latent:, :]
    z = mu + eps_ref[...] * jnp.exp(0.5 * lv)
    d = jnp.dot(wdec_ref[...], z.astype(wdec_ref.dtype),
                preferred_element_type=jnp.float32) + bdec_ref[...]
    mu_ref[...] = mu
    lv_ref[...] = lv
    d_ref[...] = d.astype(d_ref.dtype)


def latent_fused(feat_t, wml, bml, eps, wdec, bdec, *, n_latent):
    N = feat_t.shape[1]
    D = wdec.shape[0]
    return pl.pallas_call(
        functools.partial(_latent_kernel, n_latent=n_latent),
        out_shape=(jax.ShapeDtypeStruct((n_latent, N), jnp.float32),
                   jax.ShapeDtypeStruct((n_latent, N), jnp.float32),
                   jax.ShapeDtypeStruct((D, N), COMPUTE_DTYPE)),
        in_specs=[_vmem_spec()] * 6,
        out_specs=(_vmem_spec(), _vmem_spec(), _vmem_spec()),
    )(feat_t, wml, bml, eps, wdec, bdec)


# ---------------------------------------------------------------------------
# Conv layers.  Activations are channel-major: (C, H, W, N).
# XLA glue only does data movement (slices / concat / reshape / transpose);
# the matmul + bias + ReLU runs in Pallas.
# ---------------------------------------------------------------------------
def conv2d_s2_k4_cm(x_cm, w, b, *, out_dtype=COMPUTE_DTYPE):
    """Conv2d(k=4, s=2, p=0) + ReLU in channel-major layout.

    x_cm: (C, H, W, N);  w: (OC, 16*C), columns ordered (kh, kw, c);  b: (OC, 1).
    Returns (OC, OH, OW, N).
    """
    C, H, W, N = x_cm.shape
    OH = (H - 4) // 2 + 1
    OW = (W - 4) // 2 + 1
    taps = [x_cm[:, kh:kh + 2 * OH:2, kw:kw + 2 * OW:2, :]
            for kh in range(4) for kw in range(4)]
    patches = (jnp.concatenate(taps, axis=0)
               .reshape(16 * C, OH * OW * N).astype(COMPUTE_DTYPE))
    out = matmul_bias_act(w, patches, b, relu=True, out_dtype=out_dtype)  # (OC, OH*OW*N)
    return out.reshape(-1, OH, OW, N)


def conv_transpose2d_s2_k4_cm(x_cm, w, bias4, bias_vec, *, output_padding=0,
                              out_dtype=COMPUTE_DTYPE, assemble=True):
    """ConvTranspose2d(k=4, s=2, p=0, output_padding=op) + ReLU, sub-pixel form.

    x_cm:     (C, H, W, N) channel-major input
    w:        (4*OC, 4*C)  rows (r, s, oc), cols (a, b, c)
    bias4:    (4*OC, 1)    bias tiled over the 4 output parities
    bias_vec: (OC,)        raw bias (output_padding border = relu(bias))
    If assemble=False, returns the parity-planar kernel output (4*OC, (H+1)*(W+1)*N)
    for the caller to pixel-shuffle once (used for the last layer).
    """
    C, H, W, N = x_cm.shape
    OC = w.shape[0] // 4
    BH, BW = H + 1, W + 1
    xp = jnp.pad(x_cm, ((0, 0), (1, 1), (1, 1), (0, 0)))
    taps = [xp[:, a:a + BH, b:b + BW, :] for a in range(2) for b in range(2)]
    patches = (jnp.concatenate(taps, axis=0)
               .reshape(4 * C, BH * BW * N).astype(COMPUTE_DTYPE))
    out = matmul_bias_act(w, patches, bias4, relu=True, out_dtype=out_dtype)  # (4*OC, BH*BW*N)
    if not assemble:
        return out

    # parity-planar -> full resolution (pure data movement, fused by XLA with the
    # next layer's patch glue).
    out6 = out.reshape(2, 2, OC, BH, BW, N)                        # [r, s, oc, y, x, n]
    full = jnp.transpose(out6, (2, 3, 0, 4, 1, 5)).reshape(OC, 2 * BH, 2 * BW, N)

    if output_padding:
        pv = jnp.maximum(bias_vec, 0.0).astype(full.dtype).reshape(OC, 1, 1, 1)
        row = jnp.broadcast_to(pv, (OC, output_padding, 2 * BW, N))
        full = jnp.concatenate([full, row], axis=1)
        col = jnp.broadcast_to(pv, (OC, 2 * BH + output_padding, output_padding, N))
        full = jnp.concatenate([full, col], axis=2)
    return full


# ---------------------------------------------------------------------------
# Parameters: PyTorch-layout init, matmul-ready preprocessing hoisted to init
# ---------------------------------------------------------------------------
def init_params(key, n_latent=10, img_channels=1):
    keys = jax.random.split(key, 11)

    def kaiming(k, shape, fan_in):
        return jax.random.normal(k, shape, jnp.float32) * jnp.sqrt(2.0 / fan_in)

    p = {}

    # Encoder Conv2d weights (PyTorch layout [OC, IC, 4, 4]) ->
    # (OC, 16*IC) with columns ordered (kh, kw, c).
    conv_io = [(32, img_channels), (32, 32), (64, 32), (64, 64)]
    for i, (oc, ic) in enumerate(conv_io, start=1):
        w = kaiming(keys[i - 1], (oc, ic, 4, 4), ic * 16)
        p[f"conv{i}_w"] = (jnp.transpose(w, (0, 2, 3, 1))
                           .reshape(oc, 16 * ic).astype(COMPUTE_DTYPE))
        p[f"conv{i}_b"] = jnp.zeros((oc, 1), jnp.float32)

    # fc layers (PyTorch Linear layout (out, in)); channel-major features are already
    # ordered (c, h, w), matching PyTorch's NCHW .view(-1, 256) -> no permutation.
    wmu = kaiming(keys[4], (n_latent, 256), 256)
    wlv = kaiming(keys[5], (n_latent, 256), 256)
    wdec = kaiming(keys[6], (256, n_latent), n_latent)
    p["fc_ml_w"] = jnp.concatenate([wmu, wlv], axis=0).astype(COMPUTE_DTYPE)   # (2L, 256)
    p["fc_ml_b"] = jnp.zeros((2 * n_latent, 1), jnp.float32)
    p["fc_dec_w"] = wdec.astype(COMPUTE_DTYPE)                                  # (256, L)
    p["fc_dec_b"] = jnp.zeros((256, 1), jnp.float32)

    # Decoder ConvTranspose2d weights (PyTorch layout [IC, OC, 4, 4]) ->
    # fused sub-pixel weight (4*OC, 4*IC): rows (r, s, oc), cols (a, b, c), where
    # W2[(r,s,oc),(a,b,c)] = w_pt[c, oc, 2*(1-a)+r, 2*(1-b)+s].
    convT_io = [("convT4", 64, 64), ("convT3", 64, 32), ("convT2", 32, 32),
                ("convT1", 32, img_channels)]
    for k, (name, ic, oc) in enumerate(convT_io):
        wT = kaiming(keys[7 + k], (ic, oc, 4, 4), ic * 16)
        b = jnp.zeros((oc,), jnp.float32)
        w6 = wT.reshape(ic, oc, 2, 2, 2, 2)           # [c, oc, ah, r, bw, s]
        w6 = w6[:, :, ::-1, :, ::-1, :]               # a = 1 - ah, b = 1 - bw
        w2 = jnp.transpose(w6, (3, 5, 1, 2, 4, 0)).reshape(4 * oc, 4 * ic)
        p[f"{name}_w"] = w2.astype(COMPUTE_DTYPE)
        p[f"{name}_b4"] = jnp.tile(b, 4).reshape(4 * oc, 1)
        p[f"{name}_b"] = b
    return p


# ---------------------------------------------------------------------------
# Forward pass (matches dynamicVAE64.forward: recon, mu, logvar)
# ---------------------------------------------------------------------------
@jax.jit
def forward(params, x_nchw, eps):
    N = x_nchw.shape[0]
    x_cm = jnp.transpose(x_nchw, (1, 2, 3, 0))                           # (C, 64, 64, N)

    # encoder: 64 -> 31 -> 14 -> 6 -> 2
    h = conv2d_s2_k4_cm(x_cm, params["conv1_w"], params["conv1_b"])      # (32, 31, 31, N)
    h = conv2d_s2_k4_cm(h, params["conv2_w"], params["conv2_b"])         # (32, 14, 14, N)
    h = conv2d_s2_k4_cm(h, params["conv3_w"], params["conv3_b"])         # (64, 6, 6, N)
    h = conv2d_s2_k4_cm(h, params["conv4_w"], params["conv4_b"])         # (64, 2, 2, N)

    # (c, h, w)-ordered features == PyTorch's NCHW .view(-1, 256), transposed.
    feat_t = h.reshape(256, N)
    n_latent = params["fc_ml_w"].shape[0] // 2
    mu_t, lv_t, d_t = latent_fused(
        feat_t, params["fc_ml_w"], params["fc_ml_b"], eps,
        params["fc_dec_w"], params["fc_dec_b"], n_latent=n_latent)

    # decoder: 2 -> 6 -> 14 -> (30 + output_padding 1 = 31) -> 64
    g = d_t.reshape(64, 2, 2, N)                                         # fc_dec .view(-1,64,2,2)
    g = conv_transpose2d_s2_k4_cm(g, params["convT4_w"], params["convT4_b4"],
                                  params["convT4_b"])                    # (64, 6, 6, N)
    g = conv_transpose2d_s2_k4_cm(g, params["convT3_w"], params["convT3_b4"],
                                  params["convT3_b"])                    # (32, 14, 14, N)
    g = conv_transpose2d_s2_k4_cm(g, params["convT2_w"], params["convT2_b4"],
                                  params["convT2_b"], output_padding=1)  # (32, 31, 31, N)
    out = conv_transpose2d_s2_k4_cm(g, params["convT1_w"], params["convT1_b4"],
                                    params["convT1_b"], out_dtype=jnp.float32,
                                    assemble=False)                      # (4*OC, 32*32*N)

    # single final pixel-shuffle back to NCHW
    OC = params["convT1_b"].shape[0]
    BH, BW = g.shape[1] + 1, g.shape[2] + 1
    o6 = out.reshape(2, 2, OC, BH, BW, N)                                # [r, s, oc, y, x, n]
    recon = jnp.transpose(o6, (5, 2, 3, 0, 4, 1)).reshape(N, OC, 2 * BH, 2 * BW)
    return recon, mu_t.T, lv_t.T


if __name__ == "__main__":
    key = jax.random.PRNGKey(0)
    k_params, k_x, k_eps = jax.random.split(key, 3)

    n_latent, img_channels, batch = 10, 1, 2
    params = init_params(k_params, n_latent=n_latent, img_channels=img_channels)
    # Spatial size is architecturally fixed to 64x64 by the module.
    x = jax.random.normal(k_x, (batch, img_channels, 64, 64), jnp.float32)
    # Standard-normal eps for reparametrize (transposed layout (L, N)).
    eps = jax.random.normal(k_eps, (n_latent, batch), jnp.float32)

    recon, mu, logvar = forward(params, x, eps)
    jax.block_until_ready((recon, mu, logvar))

    assert recon.shape == (batch, img_channels, 64, 64), recon.shape
    assert mu.shape == (batch, n_latent), mu.shape
    assert logvar.shape == (batch, n_latent), logvar.shape
    assert bool(jnp.isfinite(recon).all())
    assert bool(jnp.isfinite(mu).all()) and bool(jnp.isfinite(logvar).all())
    print("KERNEL_OK")
</pallas_src>

<mosaic_0001>
module attributes {stable_mosaic.version = 11 : i64} {
  func.func @_matmul_bias_act_kernel(%arg0: memref<32x16xbf16, #tpu.memory_space<vmem>>, %arg1: memref<16x1922xbf16, #tpu.memory_space<vmem>>, %arg2: memref<32x1xf32, #tpu.memory_space<vmem>>, %arg3: memref<32x1922xbf16, #tpu.memory_space<vmem>>) attributes {dimension_semantics = [], scalar_prefetch = 0 : i64, scratch_operands = 0 : i64, tpu.core_type = #tpu.core_type<tc>} {
    %c0 = arith.constant 0 : index
    %c0_0 = arith.constant 0 : index
    %0 = vector.load %arg1[%c0, %c0_0] : memref<16x1922xbf16, #tpu.memory_space<vmem>>, vector<16x1922xbf16>
    %c0_1 = arith.constant 0 : index
    %c0_2 = arith.constant 0 : index
    %1 = vector.load %arg0[%c0_1, %c0_2] : memref<32x16xbf16, #tpu.memory_space<vmem>>, vector<32x16xbf16>
    %cst = arith.constant dense<0.000000e+00> : vector<32x1922xf32>
    %2 = tpu.matmul %1, %0, %cst {dimension_numbers = #tpu.dot_dimension_numbers<[1], [0], [0], [1], [0, 0, 1, 1], [], []>} : vector<32x16xbf16>, vector<16x1922xbf16>, vector<32x1922xf32> -> vector<32x1922xf32>
    %c0_3 = arith.constant 0 : index
    %c0_4 = arith.constant 0 : index
    %3 = vector.load %arg2[%c0_3, %c0_4] : memref<32x1xf32, #tpu.memory_space<vmem>>, vector<32x1xf32>
    %4 = vector.broadcast %3 : vector<32x1xf32> to vector<32x1922xf32>
    %5 = arith.addf %2, %4 : vector<32x1922xf32>
    %cst_5 = arith.constant 0.000000e+00 : f32
    %6 = vector.broadcast %cst_5 : f32 to vector<32x1922xf32>
    %7 = arith.maximumf %5, %6 : vector<32x1922xf32>
    %8 = arith.truncf %7 : vector<32x1922xf32> to vector<32x1922xbf16>
    %c0_6 = arith.constant 0 : index
    %c0_7 = arith.constant 0 : index
    %9 = vector.load %arg3[%c0_6, %c0_7] : memref<32x1922xbf16, #tpu.memory_space<vmem>>, vector<32x1922xbf16>
    tpu.vector_store %arg3[%c0_6, %c0_7], %8 {strides = array<i32>} : memref<32x1922xbf16, #tpu.memory_space<vmem>>, vector<32x1922xbf16>,
    return
  }
}

module attributes {stable_mosaic.version = 11 : i64} {
  func.func @_matmul_bias_act_kernel(%arg0: memref<32x512xbf16, #tpu.memory_space<vmem>>, %arg1: memref<512x392xbf16, #tpu.memory_space<vmem>>, %arg2: memref<32x1xf32, #tpu.memory_space<vmem>>, %arg3: memref<32x392xbf16, #tpu.memory_space<vmem>>) attributes {dimension_semantics = [], scalar_prefetch = 0 : i64, scratch_operands = 0 : i64, tpu.core_type = #tpu.core_type<tc>} {
    %c0 = arith.constant 0 : index
    %c0_0 = arith.constant 0 : index
    %0 = vector.load %arg1[%c0, %c0_0] : memref<512x392xbf16, #tpu.memory_space<vmem>>, vector<512x392xbf16>
    %c0_1 = arith.constant 0 : index
    %c0_2 = arith.constant 0 : index
    %1 = vector.load %arg0[%c0_1, %c0_2] : memref<32x512xbf16, #tpu.memory_space<vmem>>, vector<32x512xbf16>
    %cst = arith.constant dense<0.000000e+00> : vector<32x392xf32>
    %2 = tpu.matmul %1, %0, %cst {dimension_numbers = #tpu.dot_dimension_numbers<[1], [0], [0], [1], [0, 0, 1, 1], [], []>} : vector<32x512xbf16>, vector<512x392xbf16>, vector<32x392xf32> -> vector<32x392xf32>
    %c0_3 = arith.constant 0 : index
    %c0_4 = arith.constant 0 : index
    %3 = vector.load %arg2[%c0_3, %c0_4] : memref<32x1xf32, #tpu.memory_space<vmem>>, vector<32x1xf32>
    %4 = vector.broadcast %3 : vector<32x1xf32> to vector<32x392xf32>
    %5 = arith.addf %2, %4 : vector<32x392xf32>
    %cst_5 = arith.constant 0.000000e+00 : f32
    %6 = vector.broadcast %cst_5 : f32 to vector<32x392xf32>
    %7 = arith.maximumf %5, %6 : vector<32x392xf32>
    %8 = arith.truncf %7 : vector<32x392xf32> to vector<32x392xbf16>
    %c0_6 = arith.constant 0 : index
    %c0_7 = arith.constant 0 : index
    %9 = vector.load %arg3[%c0_6, %c0_7] : memref<32x392xbf16, #tpu.memory_space<vmem>>, vector<32x392xbf16>
    tpu.vector_store %arg3[%c0_6, %c0_7], %8 {strides = array<i32>} : memref<32x392xbf16, #tpu.memory_space<vmem>>, vector<32x392xbf16>,
    return
  }
}

module attributes {stable_mosaic.version = 11 : i64} {
  func.func @_matmul_bias_act_kernel(%arg0: memref<64x512xbf16, #tpu.memory_space<vmem>>, %arg1: memref<512x72xbf16, #tpu.memory_space<vmem>>, %arg2: memref<64x1xf32, #tpu.memory_space<vmem>>, %arg3: memref<64x72xbf16, #tpu.memory_space<vmem>>) attributes {dimension_semantics = [], scalar_prefetch = 0 : i64, scratch_operands = 0 : i64, tpu.core_type = #tpu.core_type<tc>} {
    %c0 = arith.constant 0 : index
    %c0_0 = arith.constant 0 : index
    %0 = vector.load %arg1[%c0, %c0_0] : memref<512x72xbf16, #tpu.memory_space<vmem>>, vector<512x72xbf16>
    %c0_1 = arith.constant 0 : index
    %c0_2 = arith.constant 0 : index
    %1 = vector.load %arg0[%c0_1, %c0_2] : memref<64x512xbf16, #tpu.memory_space<vmem>>, vector<64x512xbf16>
    %cst = arith.constant dense<0.000000e+00> : vector<64x72xf32>
    %2 = tpu.matmul %1, %0, %cst {dimension_numbers = #tpu.dot_dimension_numbers<[1], [0], [0], [1], [0, 0, 1, 1], [], []>} : vector<64x512xbf16>, vector<512x72xbf16>, vector<64x72xf32> -> vector<64x72xf32>
    %c0_3 = arith.constant 0 : index
    %c0_4 = arith.constant 0 : index
    %3 = vector.load %arg2[%c0_3, %c0_4] : memref<64x1xf32, #tpu.memory_space<vmem>>, vector<64x1xf32>
    %4 = vector.broadcast %3 : vector<64x1xf32> to vector<64x72xf32>
    %5 = arith.addf %2, %4 : vector<64x72xf32>
    %cst_5 = arith.constant 0.000000e+00 : f32
    %6 = vector.broadcast %cst_5 : f32 to vector<64x72xf32>
    %7 = arith.maximumf %5, %6 : vector<64x72xf32>
    %8 = arith.truncf %7 : vector<64x72xf32> to vector<64x72xbf16>
    %c0_6 = arith.constant 0 : index
    %c0_7 = arith.constant 0 : index
    %9 = vector.load %arg3[%c0_6, %c0_7] : memref<64x72xbf16, #tpu.memory_space<vmem>>, vector<64x72xbf16>
    tpu.vector_store %arg3[%c0_6, %c0_7], %8 {strides = array<i32>} : memref<64x72xbf16, #tpu.memory_space<vmem>>, vector<64x72xbf16>,
    return
  }
}

module attributes {stable_mosaic.version = 11 : i64} {
  func.func @_matmul_bias_act_kernel(%arg0: memref<64x1024xbf16, #tpu.memory_space<vmem>>, %arg1: memref<1024x8xbf16, #tpu.memory_space<vmem>>, %arg2: memref<64x1xf32, #tpu.memory_space<vmem>>, %arg3: memref<64x8xbf16, #tpu.memory_space<vmem>>) attributes {dimension_semantics = [], scalar_prefetch = 0 : i64, scratch_operands = 0 : i64, tpu.core_type = #tpu.core_type<tc>} {
    %c0 = arith.constant 0 : index
    %c0_0 = arith.constant 0 : index
    %0 = vector.load %arg1[%c0, %c0_0] : memref<1024x8xbf16, #tpu.memory_space<vmem>>, vector<1024x8xbf16>
    %c0_1 = arith.constant 0 : index
    %c0_2 = arith.constant 0 : index
    %1 = vector.load %arg0[%c0_1, %c0_2] : memref<64x1024xbf16, #tpu.memory_space<vmem>>, vector<64x1024xbf16>
    %cst = arith.constant dense<0.000000e+00> : vector<64x8xf32>
    %2 = tpu.matmul %1, %0, %cst {dimension_numbers = #tpu.dot_dimension_numbers<[1], [0], [0], [1], [0, 0, 1, 1], [], []>} : vector<64x1024xbf16>, vector<1024x8xbf16>, vector<64x8xf32> -> vector<64x8xf32>
    %c0_3 = arith.constant 0 : index
    %c0_4 = arith.constant 0 : index
    %3 = vector.load %arg2[%c0_3, %c0_4] : memref<64x1xf32, #tpu.memory_space<vmem>>, vector<64x1xf32>
    %4 = vector.broadcast %3 : vector<64x1xf32> to vector<64x8xf32>
    %5 = arith.addf %2, %4 : vector<64x8xf32>
    %cst_5 = arith.constant 0.000000e+00 : f32
    %6 = vector.broadcast %cst_5 : f32 to vector<64x8xf32>
    %7 = arith.maximumf %5, %6 : vector<64x8xf32>
    %8 = arith.truncf %7 : vector<64x8xf32> to vector<64x8xbf16>
    %c0_6 = arith.constant 0 : index
    %c0_7 = arith.constant 0 : index
    %9 = vector.load %arg3[%c0_6, %c0_7] : memref<64x8xbf16, #tpu.memory_space<vmem>>, vector<64x8xbf16>
    tpu.vector_store %arg3[%c0_6, %c0_7], %8 {strides = array<i32>} : memref<64x8xbf16, #tpu.memory_space<vmem>>, vector<64x8xbf16>,
    return
  }
}

module attributes {stable_mosaic.version = 11 : i64} {
  func.func @_latent_kernel(%arg0: memref<256x2xbf16, #tpu.memory_space<vmem>>, %arg1: memref<20x256xbf16, #tpu.memory_space<vmem>>, %arg2: memref<20x1xf32, #tpu.memory_space<vmem>>, %arg3: memref<10x2xf32, #tpu.memory_space<vmem>>, %arg4: memref<256x10xbf16, #tpu.memory_space<vmem>>, %arg5: memref<256x1xf32, #tpu.memory_space<vmem>>, %arg6: memref<10x2xf32, #tpu.memory_space<vmem>>, %arg7: memref<10x2xf32, #tpu.memory_space<vmem>>, %arg8: memref<256x2xbf16, #tpu.memory_space<vmem>>) attributes {dimension_semantics = [], scalar_prefetch = 0 : i64, scratch_operands = 0 : i64, tpu.core_type = #tpu.core_type<tc>} {
    %c0 = arith.constant 0 : index
    %c0_0 = arith.constant 0 : index
    %0 = vector.load %arg0[%c0, %c0_0] : memref<256x2xbf16, #tpu.memory_space<vmem>>, vector<256x2xbf16>
    %c0_1 = arith.constant 0 : index
    %c0_2 = arith.constant 0 : index
    %1 = vector.load %arg1[%c0_1, %c0_2] : memref<20x256xbf16, #tpu.memory_space<vmem>>, vector<20x256xbf16>
    %cst = arith.constant dense<0.000000e+00> : vector<20x2xf32>
    %2 = tpu.matmul %1, %0, %cst {dimension_numbers = #tpu.dot_dimension_numbers<[1], [0], [0], [1], [0, 0, 1, 1], [], []>} : vector<20x256xbf16>, vector<256x2xbf16>, vector<20x2xf32> -> vector<20x2xf32>
    %c0_3 = arith.constant 0 : index
    %c0_4 = arith.constant 0 : index
    %3 = vector.load %arg2[%c0_3, %c0_4] : memref<20x1xf32, #tpu.memory_space<vmem>>, vector<20x1xf32>
    %4 = vector.broadcast %3 : vector<20x1xf32> to vector<20x2xf32>
    %5 = arith.addf %2, %4 : vector<20x2xf32>
    %6 = vector.extract_strided_slice %5 {offsets = [0, 0], sizes = [10, 2], strides = [1, 1]} : vector<20x2xf32> to vector<10x2xf32>
    %7 = vector.extract_strided_slice %5 {offsets = [10, 0], sizes = [10, 2], strides = [1, 1]} : vector<20x2xf32> to vector<10x2xf32>
    %c0_5 = arith.constant 0 : index
    %c0_6 = arith.constant 0 : index
    %8 = vector.load %arg3[%c0_5, %c0_6] : memref<10x2xf32, #tpu.memory_space<vmem>>, vector<10x2xf32>
    %cst_7 = arith.constant 5.000000e-01 : f32
    %9 = vector.broadcast %cst_7 : f32 to vector<10x2xf32>
    %10 = arith.mulf %9, %7 : vector<10x2xf32>
    %11 = math.exp %10 : vector<10x2xf32>
    %12 = arith.mulf %8, %11 : vector<10x2xf32>
    %13 = arith.addf %6, %12 : vector<10x2xf32>
    %c0_8 = arith.constant 0 : index
    %c0_9 = arith.constant 0 : index
    %14 = vector.load %arg4[%c0_8, %c0_9] : memref<256x10xbf16, #tpu.memory_space<vmem>>, vector<256x10xbf16>
    %15 = arith.truncf %13 : vector<10x2xf32> to vector<10x2xbf16>
    %cst_10 = arith.constant dense<0.000000e+00> : vector<256x2xf32>
    %16 = tpu.matmul %14, %15, %cst_10 {dimension_numbers = #tpu.dot_dimension_numbers<[1], [0], [0], [1], [0, 0, 1, 1], [], []>} : vector<256x10xbf16>, vector<10x2xbf16>, vector<256x2xf32> -> vector<256x2xf32>
    %c0_11 = arith.constant 0 : index
    %c0_12 = arith.constant 0 : index
    %17 = vector.load %arg5[%c0_11, %c0_12] : memref<256x1xf32, #tpu.memory_space<vmem>>, vector<256x1xf32>
    %18 = vector.broadcast %17 : vector<256x1xf32> to vector<256x2xf32>
    %19 = arith.addf %16, %18 : vector<256x2xf32>
    %c0_13 = arith.constant 0 : index
    %c0_14 = arith.constant 0 : index
    %20 = vector.load %arg6[%c0_13, %c0_14] : memref<10x2xf32, #tpu.memory_space<vmem>>, vector<10x2xf32>
    tpu.vector_store %arg6[%c0_13, %c0_14], %6 {strides = array<i32>} : memref<10x2xf32, #tpu.memory_space<vmem>>, vector<10x2xf32>,
    %c0_15 = arith.constant 0 : index
    %c0_16 = arith.constant 0 : index
    %21 = vector.load %arg7[%c0_15, %c0_16] : memref<10x2xf32, #tpu.memory_space<vmem>>, vector<10x2xf32>
    tpu.vector_store %arg7[%c0_15, %c0_16], %7 {strides = array<i32>} : memref<10x2xf32, #tpu.memory_space<vmem>>, vector<10x2xf32>,
    %22 = arith.truncf %19 : vector<256x2xf32> to vector<256x2xbf16>
    %c0_17 = arith.constant 0 : index
    %c0_18 = arith.constant 0 : index
    %23 = vector.load %arg8[%c0_17, %c0_18] : memref<256x2xbf16, #tpu.memory_space<vmem>>, vector<256x2xbf16>
    tpu.vector_store %arg8[%c0_17, %c0_18], %22 {strides = array<i32>} : memref<256x2xbf16, #tpu.memory_space<vmem>>, vector<256x2xbf16>,
    return
  }
}

module attributes {stable_mosaic.version = 11 : i64} {
  func.func @_matmul_bias_act_kernel(%arg0: memref<256x256xbf16, #tpu.memory_space<vmem>>, %arg1: memref<256x18xbf16, #tpu.memory_space<vmem>>, %arg2: memref<256x1xf32, #tpu.memory_space<vmem>>, %arg3: memref<256x18xbf16, #tpu.memory_space<vmem>>) attributes {dimension_semantics = [], scalar_prefetch = 0 : i64, scratch_operands = 0 : i64, tpu.core_type = #tpu.core_type<tc>} {
    %c0 = arith.constant 0 : index
    %c0_0 = arith.constant 0 : index
    %0 = vector.load %arg1[%c0, %c0_0] : memref<256x18xbf16, #tpu.memory_space<vmem>>, vector<256x18xbf16>
    %c0_1 = arith.constant 0 : index
    %c0_2 = arith.constant 0 : index
    %1 = vector.load %arg0[%c0_1, %c0_2] : memref<256x256xbf16, #tpu.memory_space<vmem>>, vector<256x256xbf16>
    %cst = arith.constant dense<0.000000e+00> : vector<256x18xf32>
    %2 = tpu.matmul %1, %0, %cst {dimension_numbers = #tpu.dot_dimension_numbers<[1], [0], [0], [1], [0, 0, 1, 1], [], []>} : vector<256x256xbf16>, vector<256x18xbf16>, vector<256x18xf32> -> vector<256x18xf32>
    %c0_3 = arith.constant 0 : index
    %c0_4 = arith.constant 0 : index
    %3 = vector.load %arg2[%c0_3, %c0_4] : memref<256x1xf32, #tpu.memory_space<vmem>>, vector<256x1xf32>
    %4 = vector.broadcast %3 : vector<256x1xf32> to vector<256x18xf32>
    %5 = arith.addf %2, %4 : vector<256x18xf32>
    %cst_5 = arith.constant 0.000000e+00 : f32
    %6 = vector.broadcast %cst_5 : f32 to vector<256x18xf32>
    %7 = arith.maximumf %5, %6 : vector<256x18xf32>
    %8 = arith.truncf %7 : vector<256x18xf32> to vector<256x18xbf16>
    %c0_6 = arith.constant 0 : index
    %c0_7 = arith.constant 0 : index
    %9 = vector.load %arg3[%c0_6, %c0_7] : memref<256x18xbf16, #tpu.memory_space<vmem>>, vector<256x18xbf16>
    tpu.vector_store %arg3[%c0_6, %c0_7], %8 {strides = array<i32>} : memref<256x18xbf16, #tpu.memory_space<vmem>>, vector<256x18xbf16>,
    return
  }
}

module attributes {stable_mosaic.version = 11 : i64} {
  func.func @_matmul_bias_act_kernel(%arg0: memref<128x256xbf16, #tpu.memory_space<vmem>>, %arg1: memref<256x98xbf16, #tpu.memory_space<vmem>>, %arg2: memref<128x1xf32, #tpu.memory_space<vmem>>, %arg3: memref<128x98xbf16, #tpu.memory_space<vmem>>) attributes {dimension_semantics = [], scalar_prefetch = 0 : i64, scratch_operands = 0 : i64, tpu.core_type = #tpu.core_type<tc>} {
    %c0 = arith.constant 0 : index
    %c0_0 = arith.constant 0 : index
    %0 = vector.load %arg1[%c0, %c0_0] : memref<256x98xbf16, #tpu.memory_space<vmem>>, vector<256x98xbf16>
    %c0_1 = arith.constant 0 : index
    %c0_2 = arith.constant 0 : index
    %1 = vector.load %arg0[%c0_1, %c0_2] : memref<128x256xbf16, #tpu.memory_space<vmem>>, vector<128x256xbf16>
    %cst = arith.constant dense<0.000000e+00> : vector<128x98xf32>
    %2 = tpu.matmul %1, %0, %cst {dimension_numbers = #tpu.dot_dimension_numbers<[1], [0], [0], [1], [0, 0, 1, 1], [], []>} : vector<128x256xbf16>, vector<256x98xbf16>, vector<128x98xf32> -> vector<128x98xf32>
    %c0_3 = arith.constant 0 : index
    %c0_4 = arith.constant 0 : index
    %3 = vector.load %arg2[%c0_3, %c0_4] : memref<128x1xf32, #tpu.memory_space<vmem>>, vector<128x1xf32>
    %4 = vector.broadcast %3 : vector<128x1xf32> to vector<128x98xf32>
    %5 = arith.addf %2, %4 : vector<128x98xf32>
    %cst_5 = arith.constant 0.000000e+00 : f32
    %6 = vector.broadcast %cst_5 : f32 to vector<128x98xf32>
    %7 = arith.maximumf %5, %6 : vector<128x98xf32>
    %8 = arith.truncf %7 : vector<128x98xf32> to vector<128x98xbf16>
    %c0_6 = arith.constant 0 : index
    %c0_7 = arith.constant 0 : index
    %9 = vector.load %arg3[%c0_6, %c0_7] : memref<128x98xbf16, #tpu.memory_space<vmem>>, vector<128x98xbf16>
    tpu.vector_store %arg3[%c0_6, %c0_7], %8 {strides = array<i32>} : memref<128x98xbf16, #tpu.memory_space<vmem>>, vector<128x98xbf16>,
    return
  }
}

module attributes {stable_mosaic.version = 11 : i64} {
  func.func @_matmul_bias_act_kernel(%arg0: memref<128x128xbf16, #tpu.memory_space<vmem>>, %arg1: memref<128x450xbf16, #tpu.memory_space<vmem>>, %arg2: memref<128x1xf32, #tpu.memory_space<vmem>>, %arg3: memref<128x450xbf16, #tpu.memory_space<vmem>>) attributes {dimension_semantics = [], scalar_prefetch = 0 : i64, scratch_operands = 0 : i64, tpu.core_type = #tpu.core_type<tc>} {
    %c0 = arith.constant 0 : index
    %c0_0 = arith.constant 0 : index
    %0 = vector.load %arg1[%c0, %c0_0] : memref<128x450xbf16, #tpu.memory_space<vmem>>, vector<128x450xbf16>
    %c0_1 = arith.constant 0 : index
    %c0_2 = arith.constant 0 : index
    %1 = vector.load %arg0[%c0_1, %c0_2] : memref<128x128xbf16, #tpu.memory_space<vmem>>, vector<128x128xbf16>
    %cst = arith.constant dense<0.000000e+00> : vector<128x450xf32>
    %2 = tpu.matmul %1, %0, %cst {dimension_numbers = #tpu.dot_dimension_numbers<[1], [0], [0], [1], [0, 0, 1, 1], [], []>} : vector<128x128xbf16>, vector<128x450xbf16>, vector<128x450xf32> -> vector<128x450xf32>
    %c0_3 = arith.constant 0 : index
    %c0_4 = arith.constant 0 : index
    %3 = vector.load %arg2[%c0_3, %c0_4] : memref<128x1xf32, #tpu.memory_space<vmem>>, vector<128x1xf32>
    %4 = vector.broadcast %3 : vector<128x1xf32> to vector<128x450xf32>
    %5 = arith.addf %2, %4 : vector<128x450xf32>
    %cst_5 = arith.constant 0.000000e+00 : f32
    %6 = vector.broadcast %cst_5 : f32 to vector<128x450xf32>
    %7 = arith.maximumf %5, %6 : vector<128x450xf32>
    %8 = arith.truncf %7 : vector<128x450xf32> to vector<128x450xbf16>
    %c0_6 = arith.constant 0 : index
    %c0_7 = arith.constant 0 : index
    %9 = vector.load %arg3[%c0_6, %c0_7] : memref<128x450xbf16, #tpu.memory_space<vmem>>, vector<128x450xbf16>
    tpu.vector_store %arg3[%c0_6, %c0_7], %8 {strides = array<i32>} : memref<128x450xbf16, #tpu.memory_space<vmem>>, vector<128x450xbf16>,
    return
  }
}

module attributes {stable_mosaic.version = 11 : i64} {
  func.func @_matmul_bias_act_kernel(%arg0: memref<4x128xbf16, #tpu.memory_space<vmem>>, %arg1: memref<128x2048xbf16, #tpu.memory_space<vmem>>, %arg2: memref<4x1xf32, #tpu.memory_space<vmem>>, %arg3: memref<4x2048xf32, #tpu.memory_space<vmem>>) attributes {dimension_semantics = [], scalar_prefetch = 0 : i64, scratch_operands = 0 : i64, tpu.core_type = #tpu.core_type<tc>} {
    %c0 = arith.constant 0 : index
    %c0_0 = arith.constant 0 : index
    %0 = vector.load %arg1[%c0, %c0_0] : memref<128x2048xbf16, #tpu.memory_space<vmem>>, vector<128x2048xbf16>
    %c0_1 = arith.constant 0 : index
    %c0_2 = arith.constant 0 : index
    %1 = vector.load %arg0[%c0_1, %c0_2] : memref<4x128xbf16, #tpu.memory_space<vmem>>, vector<4x128xbf16>
    %cst = arith.constant dense<0.000000e+00> : vector<4x2048xf32>
    %2 = tpu.matmul %1, %0, %cst {dimension_numbers = #tpu.dot_dimension_numbers<[1], [0], [0], [1], [0, 0, 1, 1], [], []>} : vector<4x128xbf16>, vector<128x2048xbf16>, vector<4x2048xf32> -> vector<4x2048xf32>
    %c0_3 = arith.constant 0 : index
    %c0_4 = arith.constant 0 : index
    %3 = vector.load %arg2[%c0_3, %c0_4] : memref<4x1xf32, #tpu.memory_space<vmem>>, vector<4x1xf32>
    %4 = vector.broadcast %3 : vector<4x1xf32> to vector<4x2048xf32>
    %5 = arith.addf %2, %4 : vector<4x2048xf32>
    %cst_5 = arith.constant 0.000000e+00 : f32
    %6 = vector.broadcast %cst_5 : f32 to vector<4x2048xf32>
    %7 = arith.maximumf %5, %6 : vector<4x2048xf32>
    %c0_6 = arith.constant 0 : index
    %c0_7 = arith.constant 0 : index
    %8 = vector.load %arg3[%c0_6, %c0_7] : memref<4x2048xf32, #tpu.memory_space<vmem>>, vector<4x2048xf32>
    tpu.vector_store %arg3[%c0_6, %c0_7], %7 {strides = array<i32>} : memref<4x2048xf32, #tpu.memory_space<vmem>>, vector<4x2048xf32>,
    return
  }
}

</mosaic_0001>

<llo_original>
// kernel: forward.9
$region0: #{forward.9}
  #allocation0 [shape = 'u32[]', space=smem, size = 0x4, offset = 0x4, fixed_abs, tag = 'smem constant byte address 0x4 - core index']
  #allocation1 [shape = 'u32[144,128]{1,0:T(1,128)}', space=vmem, size = 0x12000, scoped, tag = 'internal scratch']
  %s0 = inlined_call_operand.vmem [shape: bf16[32,16], index: 0, kind: input, shape index: {}]
  %s1 = inlined_call_operand.vmem [shape: bf16[16,1922], index: 1, kind: input, shape index: {}]
  %s2 = inlined_call_operand.vmem [shape: f32[32,1], index: 2, kind: input, shape index: {}]
  %s3 = inlined_call_operand.vmem [shape: bf16[32,1922], index: 3, kind: output, shape index: {}]
  %s4 = sld [smem:[#allocation0]]
  $region22: #{forward.9} parent=0
    _
  %s6 = ssub.s32 1, %s4
  %s7 = scalar_select 0, %s6, %s4
  // Predicated region
  $region2: #{forward.9} parent=0 // pred_check
    _
  $region3: #{forward.9} parent=0 // pred_check_branch
    %9 = sbr.rel (0) target = $region5
  $region4: #{forward.9} parent=0 // pred_region
    _
  $region5: #{forward.9} parent=0 // pred_fallthru
    _
  // Predicated region
  $region6: #{forward.9} parent=0 // pred_check
    _
  $region7: #{forward.9} parent=0 // pred_check_branch
    %11 = sbr.rel (0) target = $region9
  $region8: #{forward.9} parent=0 // pred_region
    _
  $region9: #{forward.9} parent=0 // pred_fallthru
    _
  // Predicated region
  $region10: #{forward.9} parent=0 // pred_check
    _
  $region11: #{forward.9} parent=0 // pred_check_branch
    %13 = sbr.rel (0) target = $region13
  $region12: #{forward.9} parent=0 // pred_region
    _
  $region13: #{forward.9} parent=0 // pred_fallthru
    _
  %v15 = vld [vmem:[%s1] sm:$0xff]
  %v16 = vld [vmem:[%s1 + $0x8] sm:$0xff]
  %v17 = vld [vmem:[%s1 + $0x10] sm:$0xff]
  %v18 = vld [vmem:[%s1 + $0x18] sm:$0xff]
  %v19 = vld [vmem:[%s1 + $0x20] sm:$0xff]
  %v20 = vld [vmem:[%s1 + $0x28] sm:$0xff]
  %v21 = vld [vmem:[%s1 + $0x30] sm:$0xff]
  %v22 = vld [vmem:[%s1 + $0x38] sm:$0xff]
  %v23 = vld [vmem:[%s1 + $0x40] sm:$0xff]
  %v24 = vld [vmem:[%s1 + $0x48] sm:$0xff]
  %v25 = vld [vmem:[%s1 + $0x50] sm:$0xff]
  %v26 = vld [vmem:[%s1 + $0x58] sm:$0xff]
  %v27 = vld [vmem:[%s1 + $0x60] sm:$0xff]
  %v28 = vld [vmem:[%s1 + $0x68] sm:$0xff]
  %v29 = vld [vmem:[%s1 + $0x70] sm:$0xff]
  %v30 = vld [vmem:[%s1 + $0x78] sm:$0xff]
  %v31 = vld [vmem:[%s0] sm:$0xf]
  %v32 = vld [vmem:[%s0 + $0x4] sm:$0xf]
  %v33 = vld [vmem:[%s0 + $0x8] sm:$0xf]
  %v34 = vld [vmem:[%s0 + $0xc] sm:$0xf]
  %v35 = vld [vmem:[%s2] sm:$0xff]
  %v36 = vld [vmem:[%s2 + $0x8] sm:$0xff]
  %v37 = vld [vmem:[%s2 + $0x10] sm:$0xff]
  %v38 = vld [vmem:[%s2 + $0x18] sm:$0xff]
  %40 = vset.pattern.permute.xlu0 0
  %41 = vperm.xlu0 %40, %v35
  %v42 = vpop.permute.xlu0 %41
  %45 = vset.pattern.permute.xlu0 0
  %46 = vperm.xlu0 %45, %v36
  %v47 = vpop.permute.xlu0 %46
  %50 = vset.pattern.permute.xlu0 0
  %51 = vperm.xlu0 %50, %v37
  %v52 = vpop.permute.xlu0 %51
  %55 = vset.pattern.permute.xlu0 0
  %56 = vperm.xlu0 %55, %v38
  %v57 = vpop.permute.xlu0 %56
  %v63 = vunpack.c.l.b16 %v31
  %v64 = vunpack.c.l.b16 %v32
  %v65 = vunpack.c.l.b16 %v33
  %v66 = vunpack.c.l.b16 %v34
  %v67 = vpack.c.b16 %v64, %v63
  %v68 = vpack.c.b16 %v66, %v65
  %v85 = vunpack.c.l.b16 %v15
  %v86 = vunpack.c.h.b16 %v15
  %v87 = vunpack.c.l.b16 %v16
  %v88 = vunpack.c.h.b16 %v16
  %v89 = vunpack.c.l.b16 %v17
  %v90 = vunpack.c.h.b16 %v17
  %v91 = vunpack.c.l.b16 %v18
  %v92 = vunpack.c.h.b16 %v18
  %v93 = vunpack.c.l.b16 %v19
  %v94 = vunpack.c.h.b16 %v19
  %v95 = vunpack.c.l.b16 %v20
  %v96 = vunpack.c.h.b16 %v20
  %v97 = vunpack.c.l.b16 %v21
  %v98 = vunpack.c.h.b16 %v21
  %v99 = vunpack.c.l.b16 %v22
  %v100 = vunpack.c.h.b16 %v22
  %v101 = vunpack.c.l.b16 %v23
  %v102 = vunpack.c.h.b16 %v23
  %v103 = vunpack.c.l.b16 %v24
  %v104 = vunpack.c.h.b16 %v24
  %v105 = vunpack.c.l.b16 %v25
  %v106 = vunpack.c.h.b16 %v25
  %v107 = vunpack.c.l.b16 %v26
  %v108 = vunpack.c.h.b16 %v26
  %v109 = vunpack.c.l.b16 %v27
  %v110 = vunpack.c.h.b16 %v27
  %v111 = vunpack.c.l.b16 %v28
  %v112 = vunpack.c.h.b16 %v28
  %v113 = vunpack.c.l.b16 %v29
  %v114 = vunpack.c.h.b16 %v29
  %v115 = vunpack.c.l.b16 %v30
  %v116 = vunpack.c.h.b16 %v30
  %v117 = vpack.c.b16 %v101, %v85
  %v118 = vpack.c.b16 %v102, %v86
  %v119 = vpack.c.b16 %v103, %v87
  %v120 = vpack.c.b16 %v104, %v88
  %v121 = vpack.c.b16 %v105, %v89
  %v122 = vpack.c.b16 %v106, %v90
  %v123 = vpack.c.b16 %v107, %v91
  %v124 = vpack.c.b16 %v108, %v92
  %v125 = vpack.c.b16 %v109, %v93
  %v126 = vpack.c.b16 %v110, %v94
  %v127 = vpack.c.b16 %v111, %v95
  %v128 = vpack.c.b16 %v112, %v96
  %v129 = vpack.c.b16 %v113, %v97
  %v130 = vpack.c.b16 %v114, %v98
  %v131 = vpack.c.b16 %v115, %v99
  %v132 = vpack.c.b16 %v116, %v100
  %vm149 = vcmask 130048
  %v151 = vsel %vm149, %v67, 0
  %v154 = vsel %vm149, %v68, 0
  %156 = vmatprep.subr.bf16.mxu0 0
  %157 = vmatpush1.bf16.msra.mxu0 0
  %158 = vmatprep.subr.bf16.mxu0 0
  %159 = vmatpush1.bf16.msra.mxu0 0
  %160 = vmatprep.subr.bf16.mxu0 0
  %161 = vmatpush1.bf16.msra.mxu0 0
  %162 = vmatprep.subr.bf16.mxu0 0
  %163 = vmatpush1.bf16.msra.mxu0 0
  %164 = vmatprep.subr.bf16.mxu0 0
  %165 = vmatpush1.bf16.msra.mxu0 0
  %166 = vmatprep.subr.bf16.mxu0 0
  %167 = vmatpush1.bf16.msra.mxu0 0
  %168 = vmatprep.subr.bf16.mxu0 0
  %169 = vmatpush1.bf16.msra.mxu0 0
  %170 = vmatprep.subr.bf16.mxu0 %v118
  %171 = vmatpush1.bf16.msra.mxu0 %v117
  %172 = vmatprep.subr.bf16.mxu0 0
  %173 = vmatpush2.bf16.msra.mxu0 0
  %174 = vmatprep.subr.bf16.mxu0 0
  %175 = vmatpush2.bf16.msra.mxu0 0
  %176 = vmatprep.subr.bf16.mxu0 0
  %177 = vmatpush2.bf16.msra.mxu0 0
  %178 = vmatprep.subr.bf16.mxu0 0
  %179 = vmatpush2.bf16.msra.mxu0 0
  %180 = vmatprep.subr.bf16.mxu0 0
  %181 = vmatpush2.bf16.msra.mxu0 0
  %182 = vmatprep.subr.bf16.mxu0 0
  %183 = vmatpush2.bf16.msra.mxu0 0
  %184 = vmatprep.subr.bf16.mxu0 0
  %185 = vmatpush2.bf16.msra.mxu0 0
  %186 = vmatprep.subr.bf16.mxu0 0
  %187 = vmatpush2.bf16.msra.mxu0 0
  %188 = vmatprep.mubr.bf16.mxu0 0
  %189 = vmatmul.mubr.bf16.gmra.mxu0 %v151
  %v190 = vpop.f32.mrf.mxu0
  %v191 = vadd.f32 %v42, %v190
  %v192 = vpop.f32.mrf.mxu0
  %v193 = vadd.f32 %v42, %v192
  %v194 = vpop.f32.mrf.mxu0
  %v195 = vadd.f32 %v47, %v194
  %v196 = vpop.f32.mrf.mxu0
  %v197 = vadd.f32 %v47, %v196
  %198 = vmatprep.mubr.bf16.mxu0 0
  %199 = vmatmul.mubr.bf16.gmra.mxu0 %v154
  %v200 = vpop.f32.mrf.mxu0
  %v201 = vadd.f32 %v52, %v200
  %v202 = vpop.f32.mrf.mxu0
  %v203 = vadd.f32 %v52, %v202
  %v204 = vpop.f32.mrf.mxu0
  %v205 = vadd.f32 %v57, %v204
  %v206 = vpop.f32.mrf.mxu0
  %v207 = vadd.f32 %v57, %v206
  %208 = vdwg.mxu0
  %209 = vmatprep.subr.bf16.mxu0 0
  %210 = vmatpush1.bf16.msra.mxu0 0
  %211 = vmatprep.subr.bf16.mxu0 0
  %212 = vmatpush1.bf16.msra.mxu0 0
  %213 = vmatprep.subr.bf16.mxu0 0
  %214 = vmatpush1.bf16.msra.mxu0 0
  %215 = vmatprep.subr.bf16.mxu0 0
  %216 = vmatpush1.bf16.msra.mxu0 0
  %217 = vmatprep.subr.bf16.mxu0 0
  %218 = vmatpush1.bf16.msra.mxu0 0
  %219 = vmatprep.subr.bf16.mxu0 0
  %220 = vmatpush1.bf16.msra.mxu0 0
  %221 = vmatprep.subr.bf16.mxu0 0
  %222 = vmatpush1.bf16.msra.mxu0 0
  %223 = vmatprep.subr.bf16.mxu0 %v120
  %224 = vmatpush1.bf16.msra.mxu0 %v119
  %225 = vmatprep.subr.bf16.mxu0 0
  %226 = vmatpush2.bf16.msra.mxu0 0
  %227 = vmatprep.subr.bf16.mxu0 0
  %228 = vmatpush2.bf16.msra.mxu0 0
  %229 = vmatprep.subr.bf16.mxu0 0
  %230 = vmatpush2.bf16.msra.mxu0 0
  %231 = vmatprep.subr.bf16.mxu0 0
  %232 = vmatpush2.bf16.msra.mxu0 0
  %233 = vmatprep.subr.bf16.mxu0 0
  %234 = vmatpush2.bf16.msra.mxu0 0
  %235 = vmatprep.subr.bf16.mxu0 0
  %236 = vmatpush2.bf16.msra.mxu0 0
  %237 = vmatprep.subr.bf16.mxu0 0
  %238 = vmatpush2.bf16.msra.mxu0 0
  %239 = vmatprep.subr.bf16.mxu0 0
  %240 = vmatpush2.bf16.msra.mxu0 0
  %241 = vmatprep.mubr.bf16.mxu0 0
  %242 = vmatmul.mubr.bf16.gmra.mxu0 %v151
  %v243 = vpop.f32.mrf.mxu0
  %v244 = vadd.f32 %v42, %v243
  %v245 = vpop.f32.mrf.mxu0
  %v246 = vadd.f32 %v42, %v245
  %v247 = vpop.f32.mrf.mxu0
  %v248 = vadd.f32 %v47, %v247
  %v249 = vpop.f32.mrf.mxu0
  %v250 = vadd.f32 %v47, %v249
  %251 = vmatprep.mubr.bf16.mxu0 0
  %252 = vmatmul.mubr.bf16.gmra.mxu0 %v154
  %v253 = vpop.f32.mrf.mxu0
  %v254 = vadd.f32 %v52, %v253
  %v255 = vpop.f32.mrf.mxu0
  %v256 = vadd.f32 %v52, %v255
  %v257 = vpop.f32.mrf.mxu0
  %v258 = vadd.f32 %v57, %v257
  %v259 = vpop.f32.mrf.mxu0
  %v260 = vadd.f32 %v57, %v259
  %261 = vdwg.mxu0
  %262 = vmatprep.subr.bf16.mxu0 0
  %263 = vmatpush1.bf16.msra.mxu0 0
  %264 = vmatprep.subr.bf16.mxu0 0
  %265 = vmatpush1.bf16.msra.mxu0 0
  %266 = vmatprep.subr.bf16.mxu0 0
  %267 = vmatpush1.bf16.msra.mxu0 0
  %268 = vmatprep.subr.bf16.mxu0 0
  %269 = vmatpush1.bf16.msra.mxu0 0
  %270 = vmatprep.subr.bf16.mxu0 0
  %271 = vmatpush1.bf16.msra.mxu0 0
  %272 = vmatprep.subr.bf16.mxu0 0
  %273 = vmatpush1.bf16.msra.mxu0 0
  %274 = vmatprep.subr.bf16.mxu0 0
  %275 = vmatpush1.bf16.msra.mxu0 0
  %276 = vmatprep.subr.bf16.mxu0 %v122
  %277 = vmatpush1.bf16.msra.mxu0 %v121
  %278 = vmatprep.subr.bf16.mxu0 0
  %279 = vmatpush2.bf16.msra.mxu0 0
  %280 = vmatprep.subr.bf16.mxu0 0
  %281 = vmatpush2.bf16.msra.mxu0 0
  %282 = vmatprep.subr.bf16.mxu0 0
  %283 = vmatpush2.bf16.msra.mxu0 0
  %284 = vmatprep.subr.bf16.mxu0 0
  %285 = vmatpush2.bf16.msra.mxu0 0
  %286 = vmatprep.subr.bf16.mxu0 0
  %287 = vmatpush2.bf16.msra.mxu0 0
  %288 = vmatprep.subr.bf16.mxu0 0
  %289 = vmatpush2.bf16.msra.mxu0 0
  %290 = vmatprep.subr.bf16.mxu0 0
  %291 = vmatpush2.bf16.msra.mxu0 0
  %292 = vmatprep.subr.bf16.mxu0 0
  %293 = vmatpush2.bf16.msra.mxu0 0
  %294 = vmatprep.mubr.bf16.mxu0 0
  %295 = vmatmul.mubr.bf16.gmra.mxu0 %v151
  %v296 = vpop.f32.mrf.mxu0
  %v297 = vadd.f32 %v42, %v296
  %v298 = vpop.f32.mrf.mxu0
  %v299 = vadd.f32 %v42, %v298
  %v300 = vpop.f32.mrf.mxu0
  %v301 = vadd.f32 %v47, %v300
  %v302 = vpop.f32.mrf.mxu0
  %v303 = vadd.f32 %v47, %v302
  %304 = vmatprep.mubr.bf16.mxu0 0
  %305 = vmatmul.mubr.bf16.gmra.mxu0 %v154
  %v306 = vpop.f32.mrf.mxu0
  %v307 = vadd.f32 %v52, %v306
  %v308 = vpop.f32.mrf.mxu0
  %v309 = vadd.f32 %v52, %v308
  %v310 = vpop.f32.mrf.mxu0
  %v311 = vadd.f32 %v57, %v310
  %v312 = vpop.f32.mrf.mxu0
  %v313 = vadd.f32 %v57, %v312
  %314 = vdwg.mxu0
  %315 = vmatprep.subr.bf16.mxu0 0
  %316 = vmatpush1.bf16.msra.mxu0 0
  %317 = vmatprep.subr.bf16.mxu0 0
  %318 = vmatpush1.bf16.msra.mxu0 0
  %319 = vmatprep.subr.bf16.mxu0 0
  %320 = vmatpush1.bf16.msra.mxu0 0
  %321 = vmatprep.subr.bf16.mxu0 0
  %322 = vmatpush1.bf16.msra.mxu0 0
  %323 = vmatprep.subr.bf16.mxu0 0
  %324 = vmatpush1.bf16.msra.mxu0 0
  %325 = vmatprep.subr.bf16.mxu0 0
  %326 = vmatpush1.bf16.msra.mxu0 0
  %327 = vmatprep.subr.bf16.mxu0 0
  %328 = vmatpush1.bf16.msra.mxu0 0
  %329 = vmatprep.subr.bf16.mxu0 %v124
  %330 = vmatpush1.bf16.msra.mxu0 %v123
  %331 = vmatprep.subr.bf16.mxu0 0
  %332 = vmatpush2.bf16.msra.mxu0 0
  %333 = vmatprep.subr.bf16.mxu0 0
  %334 = vmatpush2.bf16.msra.mxu0 0
  %335 = vmatprep.subr.bf16.mxu0 0
  %336 = vmatpush2.bf16.msra.mxu0 0
  %337 = vmatprep.subr.bf16.mxu0 0
  %338 = vmatpush2.bf16.msra.mxu0 0
  %339 = vmatprep.subr.bf16.mxu0 0
  %340 = vmatpush2.bf16.msra.mxu0 0
  %341 = vmatprep.subr.bf16.mxu0 0
  %342 = vmatpush2.bf16.msra.mxu0 0
  %343 = vmatprep.subr.bf16.mxu0 0
  %344 = vmatpush2.bf16.msra.mxu0 0
  %345 = vmatprep.subr.bf16.mxu0 0
  %346 = vmatpush2.bf16.msra.mxu0 0
  %347 = vmatprep.mubr.bf16.mxu0 0
  %348 = vmatmul.mubr.bf16.gmra.mxu0 %v151
  %v349 = vpop.f32.mrf.mxu0
  %v350 = vadd.f32 %v42, %v349
  %v351 = vpop.f32.mrf.mxu0
  %v352 = vadd.f32 %v42, %v351
  %v353 = vpop.f32.mrf.mxu0
  %v354 = vadd.f32 %v47, %v353
  %v355 = vpop.f32.mrf.mxu0
  %v356 = vadd.f32 %v47, %v355
  %357 = vmatprep.mubr.bf16.mxu0 0
  %358 = vmatmul.mubr.bf16.gmra.mxu0 %v154
  %v359 = vpop.f32.mrf.mxu0
  %v360 = vadd.f32 %v52, %v359
  %v361 = vpop.f32.mrf.mxu0
  %v362 = vadd.f32 %v52, %v361
  %v363 = vpop.f32.mrf.mxu0
  %v364 = vadd.f32 %v57, %v363
  %v365 = vpop.f32.mrf.mxu0
  %v366 = vadd.f32 %v57, %v365
  %367 = vdwg.mxu0
  %368 = vmatprep.subr.bf16.mxu0 0
  %369 = vmatpush1.bf16.msra.mxu0 0
  %370 = vmatprep.subr.bf16.mxu0 0
  %371 = vmatpush1.bf16.msra.mxu0 0
  %372 = vmatprep.subr.bf16.mxu0 0
  %373 = vmatpush1.bf16.msra.mxu0 0
  %374 = vmatprep.subr.bf16.mxu0 0
  %375 = vmatpush1.bf16.msra.mxu0 0
  %376 = vmatprep.subr.bf16.mxu0 0
  %377 = vmatpush1.bf16.msra.mxu0 0
  %378 = vmatprep.subr.bf16.mxu0 0
  %379 = vmatpush1.bf16.msra.mxu0 0
  %380 = vmatprep.subr.bf16.mxu0 0
  %381 = vmatpush1.bf16.msra.mxu0 0
  %382 = vmatprep.subr.bf16.mxu0 %v126
  %383 = vmatpush1.bf16.msra.mxu0 %v125
  %384 = vmatprep.subr.bf16.mxu0 0
  %385 = vmatpush2.bf16.msra.mxu0 0
  %386 = vmatprep.subr.bf16.mxu0 0
  %387 = vmatpush2.bf16.msra.mxu0 0
  %388 = vmatprep.subr.bf16.mxu0 0
  %389 = vmatpush2.bf16.msra.mxu0 0
  %390 = vmatprep.subr.bf16.mxu0 0
  %391 = vmatpush2.bf16.msra.mxu0 0
  %392 = vmatprep.subr.bf16.mxu0 0
  %393 = vmatpush2.bf16.msra.mxu0 0
  %394 = vmatprep.subr.bf16.mxu0 0
  %395 = vmatpush2.bf16.msra.mxu0 0
  %396 = vmatprep.subr.bf16.mxu0 0
  %397 = vmatpush2.bf16.msra.mxu0 0
  %398 = vmatprep.subr.bf16.mxu0 0
  %399 = vmatpush2.bf16.msra.mxu0 0
  %400 = vmatprep.mubr.bf16.mxu0 0
  %401 = vmatmul.mubr.bf16.gmra.mxu0 %v151
  %v402 = vpop.f32.mrf.mxu0
  %v403 = vadd.f32 %v42, %v402
  %v404 = vpop.f32.mrf.mxu0
  %v405 = vadd.f32 %v42, %v404
  %v406 = vpop.f32.mrf.mxu0
  %v407 = vadd.f32 %v47, %v406
  %v408 = vpop.f32.mrf.mxu0
  %v409 = vadd.f32 %v47, %v408
  %410 = vmatprep.mubr.bf16.mxu0 0
  %411 = vmatmul.mubr.bf16.gmra.mxu0 %v154
  %v412 = vpop.f32.mrf.mxu0
  %v413 = vadd.f32 %v52, %v412
  %v414 = vpop.f32.mrf.mxu0
  %v415 = vadd.f32 %v52, %v414
  %v416 = vpop.f32.mrf.mxu0
  %v417 = vadd.f32 %v57, %v416
  %v418 = vpop.f32.mrf.mxu0
  %v419 = vadd.f32 %v57, %v418
  %420 = vdwg.mxu0
  %421 = vmatprep.subr.bf16.mxu0 0
  %422 = vmatpush1.bf16.msra.mxu0 0
  %423 = vmatprep.subr.bf16.mxu0 0
  %424 = vmatpush1.bf16.msra.mxu0 0
  %425 = vmatprep.subr.bf16.mxu0 0
  %426 = vmatpush1.bf16.msra.mxu0 0
  %427 = vmatprep.subr.bf16.mxu0 0
  %428 = vmatpush1.bf16.msra.mxu0 0
  %429 = vmatprep.subr.bf16.mxu0 0
  %430 = vmatpush1.bf16.msra.mxu0 0
  %431 = vmatprep.subr.bf16.mxu0 0
  %432 = vmatpush1.bf16.msra.mxu0 0
  %433 = vmatprep.subr.bf16.mxu0 0
  %434 = vmatpush1.bf16.msra.mxu0 0
  %435 = vmatprep.subr.bf16.mxu0 %v128
  %436 = vmatpush1.bf16.msra.mxu0 %v127
  %437 = vmatprep.subr.bf16.mxu0 0
  %438 = vmatpush2.bf16.msra.mxu0 0
  %439 = vmatprep.subr.bf16.mxu0 0
  %440 = vmatpush2.bf16.msra.mxu0 0
  %441 = vmatprep.subr.bf16.mxu0 0
  %442 = vmatpush2.bf16.msra.mxu0 0
  %443 = vmatprep.subr.bf16.mxu0 0
  %444 = vmatpush2.bf16.msra.mxu0 0
  %445 = vmatprep.subr.bf16.mxu0 0
  %446 = vmatpush2.bf16.msra.mxu0 0
  %447 = vmatprep.subr.bf16.mxu0 0
  %448 = vmatpush2.bf16.msra.mxu0 0
  %449 = vmatprep.subr.bf16.mxu0 0
  %450 = vmatpush2.bf16.msra.mxu0 0
  %451 = vmatprep.subr.bf16.mxu0 0
  %452 = vmatpush2.bf16.msra.mxu0 0
  %453 = vmatprep.mubr.bf16.mxu0 0
  %454 = vmatmul.mubr.bf16.gmra.mxu0 %v151
  %v455 = vpop.f32.mrf.mxu0
  %v456 = vadd.f32 %v42, %v455
  %v457 = vpop.f32.mrf.mxu0
  %v458 = vadd.f32 %v42, %v457
  %v459 = vpop.f32.mrf.mxu0
  %v460 = vadd.f32 %v47, %v459
  %v461 = vpop.f32.mrf.mxu0
  %v462 = vadd.f32 %v47, %v461
  %463 = vmatprep.mubr.bf16.mxu0 0
  %464 = vmatmul.mubr.bf16.gmra.mxu0 %v154
  %v465 = vpop.f32.mrf.mxu0
  %v466 = vadd.f32 %v52, %v465
  %v467 = vpop.f32.mrf.mxu0
  %v468 = vadd.f32 %v52, %v467
  %v469 = vpop.f32.mrf.mxu0
  %v470 = vadd.f32 %v57, %v469
  %v471 = vpop.f32.mrf.mxu0
  %v472 = vadd.f32 %v57, %v471
  %473 = vdwg.mxu0
  %474 = vmatprep.subr.bf16.mxu0 0
  %475 = vmatpush1.bf16.msra.mxu0 0
  %476 = vmatprep.subr.bf16.mxu0 0
  %477 = vmatpush1.bf16.msra.mxu0 0
  %478 = vmatprep.subr.bf16.mxu0 0
  %479 = vmatpush1.bf16.msra.mxu0 0
  %480 = vmatprep.subr.bf16.mxu0 0
  %481 = vmatpush1.bf16.msra.mxu0 0
  %482 = vmatprep.subr.bf16.mxu0 0
  %483 = vmatpush1.bf16.msra.mxu0 0
  %484 = vmatprep.subr.bf16.mxu0 0
  %485 = vmatpush1.bf16.msra.mxu0 0
  %486 = vmatprep.subr.bf16.mxu0 0
  %487 = vmatpush1.bf16.msra.mxu0 0
  %488 = vmatprep.subr.bf16.mxu0 %v130
  %489 = vmatpush1.bf16.msra.mxu0 %v129
  %490 = vmatprep.subr.bf16.mxu0 0
  %491 = vmatpush2.bf16.msra.mxu0 0
  %492 = vmatprep.subr.bf16.mxu0 0
  %493 = vmatpush2.bf16.msra.mxu0 0
  %494 = vmatprep.subr.bf16.mxu0 0
  %495 = vmatpush2.bf16.msra.mxu0 0
  %496 = vmatprep.subr.bf16.mxu0 0
  %497 = vmatpush2.bf16.msra.mxu0 0
  %498 = vmatprep.subr.bf16.mxu0 0
  %499 = vmatpush2.bf16.msra.mxu0 0
  %500 = vmatprep.subr.bf16.mxu0 0
  %501 = vmatpush2.bf16.msra.mxu0 0
  %502 = vmatprep.subr.bf16.mxu0 0
  %503 = vmatpush2.bf16.msra.mxu0 0
  %504 = vmatprep.subr.bf16.mxu0 0
  %505 = vmatpush2.bf16.msra.mxu0 0
  %506 = vmatprep.mubr.bf16.mxu0 0
  %507 = vmatmul.mubr.bf16.gmra.mxu0 %v151
  %v508 = vpop.f32.mrf.mxu0
  %v509 = vadd.f32 %v42, %v508
  %v510 = vpop.f32.mrf.mxu0
  %v511 = vadd.f32 %v42, %v510
  %v512 = vpop.f32.mrf.mxu0
  %v513 = vadd.f32 %v47, %v512
  %v514 = vpop.f32.mrf.mxu0
  %v515 = vadd.f32 %v47, %v514
  %516 = vmatprep.mubr.bf16.mxu0 0
  %517 = vmatmul.mubr.bf16.gmra.mxu0 %v154
  %v518 = vpop.f32.mrf.mxu0
  %v519 = vadd.f32 %v52, %v518
  %v520 = vpop.f32.mrf.mxu0
  %v521 = vadd.f32 %v52, %v520
  %v522 = vpop.f32.mrf.mxu0
  %v523 = vadd.f32 %v57, %v522
  %v524 = vpop.f32.mrf.mxu0
  %v525 = vadd.f32 %v57, %v524
  %526 = vdwg.mxu0
  %527 = vmatprep.subr.bf16.mxu0 0
  %528 = vmatpush1.bf16.msra.mxu0 0
  %529 = vmatprep.subr.bf16.mxu0 0
  %530 = vmatpush1.bf16.msra.mxu0 0
  %531 = vmatprep.subr.bf16.mxu0 0
  %532 = vmatpush1.bf16.msra.mxu0 0
  %533 = vmatprep.subr.bf16.mxu0 0
  %534 = vmatpush1.bf16.msra.mxu0 0
  %535 = vmatprep.subr.bf16.mxu0 0
  %536 = vmatpush1.bf16.msra.mxu0 0
  %537 = vmatprep.subr.bf16.mxu0 0
  %538 = vmatpush1.bf16.msra.mxu0 0
  %539 = vmatprep.subr.bf16.mxu0 0
  %540 = vmatpush1.bf16.msra.mxu0 0
  %541 = vmatprep.subr.bf16.mxu0 %v132
  %542 = vmatpush1.bf16.msra.mxu0 %v131
  %543 = vmatprep.subr.bf16.mxu0 0
  %544 = vmatpush2.bf16.msra.mxu0 0
  %545 = vmatprep.subr.bf16.mxu0 0
  %546 = vmatpush2.bf16.msra.mxu0 0
  %547 = vmatprep.subr.bf16.mxu0 0
  %548 = vmatpush2.bf16.msra.mxu0 0
  %549 = vmatprep.subr.bf16.mxu0 0
  %550 = vmatpush2.bf16.msra.mxu0 0
  %551 = vmatprep.subr.bf16.mxu0 0
  %552 = vmatpush2.bf16.msra.mxu0 0
  %553 = vmatprep.subr.bf16.mxu0 0
  %554 = vmatpush2.bf16.msra.mxu0 0
  %555 = vmatprep.subr.bf16.mxu0 0
  %556 = vmatpush2.bf16.msra.mxu0 0
  %557 = vmatprep.subr.bf16.mxu0 0
  %558 = vmatpush2.bf16.msra.mxu0 0
  %559 = vmatprep.mubr.bf16.mxu0 0
  %560 = vmatmul.mubr.bf16.gmra.mxu0 %v151
  %v561 = vpop.f32.mrf.mxu0
  %v562 = vadd.f32 %v42, %v561
  %v563 = vpop.f32.mrf.mxu0
  %v564 = vadd.f32 %v42, %v563
  %v565 = vpop.f32.mrf.mxu0
  %v566 = vadd.f32 %v47, %v565
  %v567 = vpop.f32.mrf.mxu0
  %v568 = vadd.f32 %v47, %v567
  %569 = vmatprep.mubr.bf16.mxu0 0
  %570 = vmatmul.mubr.bf16.gmra.mxu0 %v154
  %v571 = vpop.f32.mrf.mxu0
  %v572 = vadd.f32 %v52, %v571
  %v573 = vpop.f32.mrf.mxu0
  %v574 = vadd.f32 %v52, %v573
  %v575 = vpop.f32.mrf.mxu0
  %v576 = vadd.f32 %v57, %v575
  %v577 = vpop.f32.mrf.mxu0
  %v578 = vadd.f32 %v57, %v577
  %579 = vdwg.mxu0
  %v580 = vmax.f32 %v191, 0.0
  %v581 = vmax.f32 %v193, 0.0
  %v582 = vmax.f32 %v244, 0.0
  %v583 = vmax.f32 %v246, 0.0
  %v584 = vmax.f32 %v297, 0.0
  %v585 = vmax.f32 %v299, 0.0
  %v586 = vmax.f32 %v350, 0.0
  %v587 = vmax.f32 %v352, 0.0
  %v588 = vmax.f32 %v403, 0.0
  %v589 = vmax.f32 %v405, 0.0
  %v590 = vmax.f32 %v456, 0.0
  %v591 = vmax.f32 %v458, 0.0
  %v592 = vmax.f32 %v509, 0.0
  %v593 = vmax.f32 %v511, 0.0
  %v594 = vmax.f32 %v562, 0.0
  %v595 = vmax.f32 %v564, 0.0
  %v596 = vmax.f32 %v195, 0.0
  %v597 = vmax.f32 %v197, 0.0
  %v598 = vmax.f32 %v248, 0.0
  %v599 = vmax.f32 %v250, 0.0
  %v600 = vmax.f32 %v301, 0.0
  %v601 = vmax.f32 %v303, 0.0
  %v602 = vmax.f32 %v354, 0.0
  %v603 = vmax.f32 %v356, 0.0
  %v604 = vmax.f32 %v407, 0.0
  %v605 = vmax.f32 %v409, 0.0
  %v606 = vmax.f32 %v460, 0.0
  %v607 = vmax.f32 %v462, 0.0
  %v608 = vmax.f32 %v513, 0.0
  %v609 = vmax.f32 %v515, 0.0
  %v610 = vmax.f32 %v566, 0.0
  %v611 = vmax.f32 %v568, 0.0
  %v612 = vmax.f32 %v201, 0.0
  %v613 = vmax.f32 %v203, 0.0
  %v614 = vmax.f32 %v254, 0.0
  %v615 = vmax.f32 %v256, 0.0
  %v616 = vmax.f32 %v307, 0.0
  %v617 = vmax.f32 %v309, 0.0
  %v618 = vmax.f32 %v360, 0.0
  %v619 = vmax.f32 %v362, 0.0
  %v620 = vmax.f32 %v413, 0.0
  %v621 = vmax.f32 %v415, 0.0
  %v622 = vmax.f32 %v466, 0.0
  %v623 = vmax.f32 %v468, 0.0
  %v624 = vmax.f32 %v519, 0.0
  %v625 = vmax.f32 %v521, 0.0
  %v626 = vmax.f32 %v572, 0.0
  %v627 = vmax.f32 %v574, 0.0
  %v628 = vmax.f32 %v205, 0.0
  %v629 = vmax.f32 %v207, 0.0
  %v630 = vmax.f32 %v258, 0.0
  %v631 = vmax.f32 %v260, 0.0
  %v632 = vmax.f32 %v311, 0.0
  %v633 = vmax.f32 %v313, 0.0
  %v634 = vmax.f32 %v364, 0.0
  %v635 = vmax.f32 %v366, 0.0
  %v636 = vmax.f32 %v417, 0.0
  %v637 = vmax.f32 %v419, 0.0
  %v638 = vmax.f32 %v470, 0.0
  %v639 = vmax.f32 %v472, 0.0
  %v640 = vmax.f32 %v523, 0.0
  %v641 = vmax.f32 %v525, 0.0
  %v642 = vmax.f32 %v576, 0.0
  %v643 = vmax.f32 %v578, 0.0
  %v644 = vpack.c.bf16 %v596, %v580
  %v645 = vpack.c.bf16 %v597, %v581
  %v646 = vpack.c.bf16 %v598, %v582
  %v647 = vpack.c.bf16 %v599, %v583
  %v648 = vpack.c.bf16 %v600, %v584
  %v649 = vpack.c.bf16 %v601, %v585
  %v650 = vpack.c.bf16 %v602, %v586
  %v651 = vpack.c.bf16 %v603, %v587
  %v652 = vpack.c.bf16 %v604, %v588
  %v653 = vpack.c.bf16 %v605, %v589
  %v654 = vpack.c.bf16 %v606, %v590
  %v655 = vpack.c.bf16 %v607, %v591
  %v656 = vpack.c.bf16 %v608, %v592
  %v657 = vpack.c.bf16 %v609, %v593
  %v658 = vpack.c.bf16 %v610, %v594
  %v659 = vpack.c.bf16 %v611, %v595
  %v660 = vpack.c.bf16 %v628, %v612
  %v661 = vpack.c.bf16 %v629, %v613
  %v662 = vpack.c.bf16 %v630, %v614
  %v663 = vpack.c.bf16 %v631, %v615
  %v664 = vpack.c.bf16 %v632, %v616
  %v665 = vpack.c.bf16 %v633, %v617
  %v666 = vpack.c.bf16 %v634, %v618
  %v667 = vpack.c.bf16 %v635, %v619
  %v668 = vpack.c.bf16 %v636, %v620
  %v669 = vpack.c.bf16 %v637, %v621
  %v670 = vpack.c.bf16 %v638, %v622
  %v671 = vpack.c.bf16 %v639, %v623
  %v672 = vpack.c.bf16 %v640, %v624
  %v673 = vpack.c.bf16 %v641, %v625
  %v674 = vpack.c.bf16 %v642, %v626
  %v675 = vpack.c.bf16 %v643, %v627
  %v708 = vunpack.c.l.b16 %v644
  %v709 = vunpack.c.l.b16 %v645
  %v710 = vunpack.c.l.b16 %v646
  %v711 = vunpack.c.l.b16 %v647
  %v712 = vunpack.c.l.b16 %v648
  %v713 = vunpack.c.l.b16 %v649
  %v714 = vunpack.c.l.b16 %v650
  %v715 = vunpack.c.l.b16 %v651
  %v716 = vunpack.c.l.b16 %v652
  %v717 = vunpack.c.l.b16 %v653
  %v718 = vunpack.c.l.b16 %v654
  %v719 = vunpack.c.l.b16 %v655
  %v720 = vunpack.c.l.b16 %v656
  %v721 = vunpack.c.l.b16 %v657
  %v722 = vunpack.c.l.b16 %v658
  %v723 = vunpack.c.l.b16 %v659
  %v724 = vunpack.c.h.b16 %v644
  %v725 = vunpack.c.h.b16 %v645
  %v726 = vunpack.c.h.b16 %v646
  %v727 = vunpack.c.h.b16 %v647
  %v728 = vunpack.c.h.b16 %v648
  %v729 = vunpack.c.h.b16 %v649
  %v730 = vunpack.c.h.b16 %v650
  %v731 = vunpack.c.h.b16 %v651
  %v732 = vunpack.c.h.b16 %v652
  %v733 = vunpack.c.h.b16 %v653
  %v734 = vunpack.c.h.b16 %v654
  %v735 = vunpack.c.h.b16 %v655
  %v736 = vunpack.c.h.b16 %v656
  %v737 = vunpack.c.h.b16 %v657
  %v738 = vunpack.c.h.b16 %v658
  %v739 = vunpack.c.h.b16 %v659
  %v740 = vunpack.c.l.b16 %v660
  %v741 = vunpack.c.l.b16 %v661
  %v742 = vunpack.c.l.b16 %v662
  %v743 = vunpack.c.l.b16 %v663
  %v744 = vunpack.c.l.b16 %v664
  %v745 = vunpack.c.l.b16 %v665
  %v746 = vunpack.c.l.b16 %v666
  %v747 = vunpack.c.l.b16 %v667
  %v748 = vunpack.c.l.b16 %v668
  %v749 = vunpack.c.l.b16 %v669
  %v750 = vunpack.c.l.b16 %v670
  %v751 = vunpack.c.l.b16 %v671
  %v752 = vunpack.c.l.b16 %v672
  %v753 = vunpack.c.l.b16 %v673
  %v754 = vunpack.c.l.b16 %v674
  %v755 = vunpack.c.l.b16 %v675
  %v756 = vunpack.c.h.b16 %v660
  %v757 = vunpack.c.h.b16 %v661
  %v758 = vunpack.c.h.b16 %v662
  %v759 = vunpack.c.h.b16 %v663
  %v760 = vunpack.c.h.b16 %v664
  %v761 = vunpack.c.h.b16 %v665
  %v762 = vunpack.c.h.b16 %v666
  %v763 = vunpack.c.h.b16 %v667
  %v764 = vunpack.c.h.b16 %v668
  %v765 = vunpack.c.h.b16 %v669
  %v766 = vunpack.c.h.b16 %v670
  %v767 = vunpack.c.h.b16 %v671
  %v768 = vunpack.c.h.b16 %v672
  %v769 = vunpack.c.h.b16 %v673
  %v770 = vunpack.c.h.b16 %v674
  %v771 = vunpack.c.h.b16 %v675
  %v772 = vpack.c.b16 %v709, %v708
  %v773 = vpack.c.b16 %v711, %v710
  %v774 = vpack.c.b16 %v713, %v712
  %v775 = vpack.c.b16 %v715, %v714
  %v776 = vpack.c.b16 %v717, %v716
  %v777 = vpack.c.b16 %v719, %v718
  %v778 = vpack.c.b16 %v721, %v720
  %v779 = vpack.c.b16 %v723, %v722
  %v780 = vpack.c.b16 %v725, %v724
  %v781 = vpack.c.b16 %v727, %v726
  %v782 = vpack.c.b16 %v729, %v728
  %v783 = vpack.c.b16 %v731, %v730
  %v784 = vpack.c.b16 %v733, %v732
  %v785 = vpack.c.b16 %v735, %v734
  %v786 = vpack.c.b16 %v737, %v736
  %v787 = vpack.c.b16 %v739, %v738
  %v788 = vpack.c.b16 %v741, %v740
  %v789 = vpack.c.b16 %v743, %v742
  %v790 = vpack.c.b16 %v745, %v744
  %v791 = vpack.c.b16 %v747, %v746
  %v792 = vpack.c.b16 %v749, %v748
  %v793 = vpack.c.b16 %v751, %v750
  %v794 = vpack.c.b16 %v753, %v752
  %v795 = vpack.c.b16 %v755, %v754
  %v796 = vpack.c.b16 %v757, %v756
  %v797 = vpack.c.b16 %v759, %v758
  %v798 = vpack.c.b16 %v761, %v760
  %v799 = vpack.c.b16 %v763, %v762
  %v800 = vpack.c.b16 %v765, %v764
  %v801 = vpack.c.b16 %v767, %v766
  %v802 = vpack.c.b16 %v769, %v768
  %v803 = vpack.c.b16 %v771, %v770
  %836 = vst [vmem:[%s3] sm:$0xff] %v772
  %837 = vst [vmem:[%s3 + $0x8] sm:$0xff] %v773
  %838 = vst [vmem:[%s3 + $0x10] sm:$0xff] %v774
  %839 = vst [vmem:[%s3 + $0x18] sm:$0xff] %v775
  %840 = vst [vmem:[%s3 + $0x20] sm:$0xff] %v776
  %841 = vst [vmem:[%s3 + $0x28] sm:$0xff] %v777
  %842 = vst [vmem:[%s3 + $0x30] sm:$0xff] %v778
  %vm843 = vcmask 1043456
  %vm844 = vcmask 15364
  %vm845 = vmor %vm844, %vm843
  %846 = vst.msk [vmem:[%s3 + $0x38] sm:$0xff] %vm845, %v779
  %847 = vst [vmem:[%s3 + $0x40] sm:$0xff] %v780
  %848 = vst [vmem:[%s3 + $0x48] sm:$0xff] %v781
  %849 = vst [vmem:[%s3 + $0x50] sm:$0xff] %v782
  %850 = vst [vmem:[%s3 + $0x58] sm:$0xff] %v783
  %851 = vst [vmem:[%s3 + $0x60] sm:$0xff] %v784
  %852 = vst [vmem:[%s3 + $0x68] sm:$0xff] %v785
  %853 = vst [vmem:[%s3 + $0x70] sm:$0xff] %v786
  %854 = vst.msk [vmem:[%s3 + $0x78] sm:$0xff] %vm845, %v787
  %855 = vst [vmem:[%s3 + $0x80] sm:$0xff] %v788
  %856 = vst [vmem:[%s3 + $0x88] sm:$0xff] %v789
  %857 = vst [vmem:[%s3 + $0x90] sm:$0xff] %v790
  %858 = vst [vmem:[%s3 + $0x98] sm:$0xff] %v791
  %859 = vst [vmem:[%s3 + $0xa0] sm:$0xff] %v792
  %860 = vst [vmem:[%s3 + $0xa8] sm:$0xff] %v793
  %861 = vst [vmem:[%s3 + $0xb0] sm:$0xff] %v794
  %862 = vst.msk [vmem:[%s3 + $0xb8] sm:$0xff] %vm845, %v795
  %863 = vst [vmem:[%s3 + $0xc0] sm:$0xff] %v796
  %864 = vst [vmem:[%s3 + $0xc8] sm:$0xff] %v797
  %865 = vst [vmem:[%s3 + $0xd0] sm:$0xff] %v798
  %866 = vst [vmem:[%s3 + $0xd8] sm:$0xff] %v799
  %867 = vst [vmem:[%s3 + $0xe0] sm:$0xff] %v800
  %868 = vst [vmem:[%s3 + $0xe8] sm:$0xff] %v801
  %869 = vst [vmem:[%s3 + $0xf0] sm:$0xff] %v802
  %870 = vst.msk [vmem:[%s3 + $0xf8] sm:$0xff] %vm845, %v803
  // Predicated region
  $region14: #{forward.9} parent=0 // pred_check
    _
  $region15: #{forward.9} parent=0 // pred_check_branch
    %872 = sbr.rel (0) target = $region17
  $region16: #{forward.9} parent=0 // pred_region
    _
  $region17: #{forward.9} parent=0 // pred_fallthru
    _
  // Predicated region
  $region18: #{forward.9} parent=0 // pred_check
    _
  $region19: #{forward.9} parent=0 // pred_check_branch
    %874 = sbr.rel (0) target = $region21
  $region20: #{forward.9} parent=0 // pred_region
    _
  $region21: #{forward.9} parent=0 // pred_fallthru
    _

// kernel: forward.10
$region0: #{forward.10}
  #allocation0 [shape = 'u32[]', space=smem, size = 0x4, offset = 0x4, fixed_abs, tag = 'smem constant byte address 0x4 - core index']
  #allocation1 [shape = 'u32[144,128]{1,0:T(1,128)}', space=vmem, size = 0x12000, scoped, tag = 'internal scratch']
  %s0 = inlined_call_operand.vmem [shape: bf16[32,512], index: 0, kind: input, shape index: {}]
  %s1 = inlined_call_operand.vmem [shape: bf16[512,392], index: 1, kind: input, shape index: {}]
  %s2 = inlined_call_operand.vmem [shape: f32[32,1], index: 2, kind: input, shape index: {}]
  %s3 = inlined_call_operand.vmem [shape: bf16[32,392], index: 3, kind: output, shape index: {}]
  %s4 = sld [smem:[#allocation0]]
  $region22: #{forward.10} parent=0
    _
  %s6 = ssub.s32 1, %s4
  %s7 = scalar_select 0, %s6, %s4
  // Predicated region
  $region2: #{forward.10} parent=0 // pred_check
    _
  $region3: #{forward.10} parent=0 // pred_check_branch
    %9 = sbr.rel (0) target = $region5
  $region4: #{forward.10} parent=0 // pred_region
    _
  $region5: #{forward.10} parent=0 // pred_fallthru
    _
  // Predicated region
  $region6: #{forward.10} parent=0 // pred_check
    _
  $region7: #{forward.10} parent=0 // pred_check_branch
    %11 = sbr.rel (0) target = $region9
  $region8: #{forward.10} parent=0 // pred_region
    _
  $region9: #{forward.10} parent=0 // pred_fallthru
    _
  // Predicated region
  $region10: #{forward.10} parent=0 // pred_check
    _
  $region11: #{forward.10} parent=0 // pred_check_branch
    %13 = sbr.rel (0) target = $region13
  $region12: #{forward.10} parent=0 // pred_region
    _
  $region13: #{forward.10} parent=0 // pred_fallthru
    _
  %v14 = vld [vmem:[%s1] sm:$0xff]
  %v15 = vld [vmem:[%s1 + $0x8] sm:$0xff]
  %v16 = vld [vmem:[%s1 + $0x10] sm:$0xff]
  %v17 = vld [vmem:[%s1 + $0x18] sm:$0xff]
  %v18 = vld [vmem:[%s1 + $0x20] sm:$0xff]
  %v19 = vld [vmem:[%s1 + $0x28] sm:$0xff]
  %v20 = vld [vmem:[%s1 + $0x30] sm:$0xff]
  %v21 = vld [vmem:[%s1 + $0x38] sm:$0xff]
  %v22 = vld [vmem:[%s1 + $0x40] sm:$0xff]
  %v23 = vld [vmem:[%s1 + $0x48] sm:$0xff]
  %v24 = vld [vmem:[%s1 + $0x50] sm:$0xff]
  %v25 = vld [vmem:[%s1 + $0x58] sm:$0xff]
  %v26 = vld [vmem:[%s1 + $0x60] sm:$0xff]
  %v27 = vld [vmem:[%s1 + $0x68] sm:$0xff]
  %v28 = vld [vmem:[%s1 + $0x70] sm:$0xff]
  %v29 = vld [vmem:[%s1 + $0x78] sm:$0xff]
  %v30 = vld [vmem:[%s1 + $0x80] sm:$0xff]
  %v31 = vld [vmem:[%s1 + $0x88] sm:$0xff]
  %v32 = vld [vmem:[%s1 + $0x90] sm:$0xff]
  %v33 = vld [vmem:[%s1 + $0x98] sm:$0xff]
  %v34 = vld [vmem:[%s1 + $0xa0] sm:$0xff]
  %v35 = vld [vmem:[%s1 + $0xa8] sm:$0xff]
  %v36 = vld [vmem:[%s1 + $0xb0] sm:$0xff]
  %v37 = vld [vmem:[%s1 + $0xb8] sm:$0xff]
  %v38 = vld [vmem:[%s1 + $0xc0] sm:$0xff]
  %v39 = vld [vmem:[%s1 + $0xc8] sm:$0xff]
  %v40 = vld [vmem:[%s1 + $0xd0] sm:$0xff]
  %v41 = vld [vmem:[%s1 + $0xd8] sm:$0xff]
  %v42 = vld [vmem:[%s1 + $0xe0] sm:$0xff]
  %v43 = vld [vmem:[%s1 + $0xe8] sm:$0xff]
  %v44 = vld [vmem:[%s1 + $0xf0] sm:$0xff]
  %v45 = vld [vmem:[%s1 + $0xf8] sm:$0xff]
  %v46 = vld [vmem:[%s1 + $0x100] sm:$0xff]
  %v47 = vld [vmem:[%s1 + $0x108] sm:$0xff]
  %v48 = vld [vmem:[%s1 + $0x110] sm:$0xff]
  %v49 = vld [vmem:[%s1 + $0x118] sm:$0xff]
  %v50 = vld [vmem:[%s1 + $0x120] sm:$0xff]
  %v51 = vld [vmem:[%s1 + $0x128] sm:$0xff]
  %v52 = vld [vmem:[%s1 + $0x130] sm:$0xff]
  %v53 = vld [vmem:[%s1 + $0x138] sm:$0xff]
  %v54 = vld [vmem:[%s1 + $0x140] sm:$0xff]
  %v55 = vld [vmem:[%s1 + $0x148] sm:$0xff]
  %v56 = vld [vmem:[%s1 + $0x150] sm:$0xff]
  %v57 = vld [vmem:[%s1 + $0x158] sm:$0xff]
  %v58 = vld [vmem:[%s1 + $0x160] sm:$0xff]
  %v59 = vld [vmem:[%s1 + $0x168] sm:$0xff]
  %v60 = vld [vmem:[%s1 + $0x170] sm:$0xff]
  %v61 = vld [vmem:[%s1 + $0x178] sm:$0xff]
  %v62 = vld [vmem:[%s1 + $0x180] sm:$0xff]
  %v63 = vld [vmem:[%s1 + $0x188] sm:$0xff]
  %v64 = vld [vmem:[%s1 + $0x190] sm:$0xff]
  %v65 = vld [vmem:[%s1 + $0x198] sm:$0xff]
  %v66 = vld [vmem:[%s1 + $0x1a0] sm:$0xff]
  %v67 = vld [vmem:[%s1 + $0x1a8] sm:$0xff]
  %v68 = vld [vmem:[%s1 + $0x1b0] sm:$0xff]
  %v69 = vld [vmem:[%s1 + $0x1b8] sm:$0xff]
  %v70 = vld [vmem:[%s1 + $0x1c0] sm:$0xff]
  %v71 = vld [vmem:[%s1 + $0x1c8] sm:$0xff]
  %v72 = vld [vmem:[%s1 + $0x1d0] sm:$0xff]
  %v73 = vld [vmem:[%s1 + $0x1d8] sm:$0xff]
  %v74 = vld [vmem:[%s1 + $0x1e0] sm:$0xff]
  %v75 = vld [vmem:[%s1 + $0x1e8] sm:$0xff]
  %v76 = vld [vmem:[%s1 + $0x1f0] sm:$0xff]
  %v77 = vld [vmem:[%s1 + $0x1f8] sm:$0xff]
  %v78 = vld [vmem:[%s1 + $0x200] sm:$0xff]
  %v79 = vld [vmem:[%s1 + $0x208] sm:$0xff]
  %v80 = vld [vmem:[%s1 + $0x210] sm:$0xff]
  %v81 = vld [vmem:[%s1 + $0x218] sm:$0xff]
  %v82 = vld [vmem:[%s1 + $0x220] sm:$0xff]
  %v83 = vld [vmem:[%s1 + $0x228] sm:$0xff]
  %v84 = vld [vmem:[%s1 + $0x230] sm:$0xff]
  %v85 = vld [vmem:[%s1 + $0x238] sm:$0xff]
  %v86 = vld [vmem:[%s1 + $0x240] sm:$0xff]
  %v87 = vld [vmem:[%s1 + $0x248] sm:$0xff]
  %v88 = vld [vmem:[%s1 + $0x250] sm:$0xff]
  %v89 = vld [vmem:[%s1 + $0x258] sm:$0xff]
  %v90 = vld [vmem:[%s1 + $0x260] sm:$0xff]
  %v91 = vld [vmem:[%s1 + $0x268] sm:$0xff]
  %v92 = vld [vmem:[%s1 + $0x270] sm:$0xff]
  %v93 = vld [vmem:[%s1 + $0x278] sm:$0xff]
  %v94 = vld [vmem:[%s1 + $0x280] sm:$0xff]
  %v95 = vld [vmem:[%s1 + $0x288] sm:$0xff]
  %v96 = vld [vmem:[%s1 + $0x290] sm:$0xff]
  %v97 = vld [vmem:[%s1 + $0x298] sm:$0xff]
  %v98 = vld [vmem:[%s1 + $0x2a0] sm:$0xff]
  %v99 = vld [vmem:[%s1 + $0x2a8] sm:$0xff]
  %v100 = vld [vmem:[%s1 + $0x2b0] sm:$0xff]
  %v101 = vld [vmem:[%s1 + $0x2b8] sm:$0xff]
  %v102 = vld [vmem:[%s1 + $0x2c0] sm:$0xff]
  %v103 = vld [vmem:[%s1 + $0x2c8] sm:$0xff]
  %v104 = vld [vmem:[%s1 + $0x2d0] sm:$0xff]
  %v105 = vld [vmem:[%s1 + $0x2d8] sm:$0xff]
  %v106 = vld [vmem:[%s1 + $0x2e0] sm:$0xff]
  %v107 = vld [vmem:[%s1 + $0x2e8] sm:$0xff]
  %v108 = vld [vmem:[%s1 + $0x2f0] sm:$0xff]
  %v109 = vld [vmem:[%s1 + $0x2f8] sm:$0xff]
  %v110 = vld [vmem:[%s1 + $0x300] sm:$0xff]
  %v111 = vld [vmem:[%s1 + $0x308] sm:$0xff]
  %v112 = vld [vmem:[%s1 + $0x310] sm:$0xff]
  %v113 = vld [vmem:[%s1 + $0x318] sm:$0xff]
  %v114 = vld [vmem:[%s1 + $0x320] sm:$0xff]
  %v115 = vld [vmem:[%s1 + $0x328] sm:$0xff]
  %v116 = vld [vmem:[%s1 + $0x330] sm:$0xff]
  %v117 = vld [vmem:[%s1 + $0x338] sm:$0xff]
  %v118 = vld [vmem:[%s1 + $0x340] sm:$0xff]
  %v119 = vld [vmem:[%s1 + $0x348] sm:$0xff]
  %v120 = vld [vmem:[%s1 + $0x350] sm:$0xff]
  %v121 = vld [vmem:[%s1 + $0x358] sm:$0xff]
  %v122 = vld [vmem:[%s1 + $0x360] sm:$0xff]
  %v123 = vld [vmem:[%s1 + $0x368] sm:$0xff]
  %v124 = vld [vmem:[%s1 + $0x370] sm:$0xff]
  %v125 = vld [vmem:[%s1 + $0x378] sm:$0xff]
  %v126 = vld [vmem:[%s1 + $0x380] sm:$0xff]
  %v127 = vld [vmem:[%s1 + $0x388] sm:$0xff]
  %v128 = vld [vmem:[%s1 + $0x390] sm:$0xff]
  %v129 = vld [vmem:[%s1 + $0x398] sm:$0xff]
  %v130 = vld [vmem:[%s1 + $0x3a0] sm:$0xff]
  %v131 = vld [vmem:[%s1 + $0x3a8] sm:$0xff]
  %v132 = vld [vmem:[%s1 + $0x3b0] sm:$0xff]
  %v133 = vld [vmem:[%s1 + $0x3b8] sm:$0xff]
  %v134 = vld [vmem:[%s1 + $0x3c0] sm:$0xff]
  %v135 = vld [vmem:[%s1 + $0x3c8] sm:$0xff]
  %v136 = vld [vmem:[%s1 + $0x3d0] sm:$0xff]
  %v137 = vld [vmem:[%s1 + $0x3d8] sm:$0xff]
  %v138 = vld [vmem:[%s1 + $0x3e0] sm:$0xff]
  %v139 = vld [vmem:[%s1 + $0x3e8] sm:$0xff]
  %v140 = vld [vmem:[%s1 + $0x3f0] sm:$0xff]
  %v141 = vld [vmem:[%s1 + $0x3f8] sm:$0xff]
  %v142 = vld [vmem:[%s0] sm:$0xff]
  %v143 = vld [vmem:[%s0 + $0x8] sm:$0xff]
  %v144 = vld [vmem:[%s0 + $0x10] sm:$0xff]
  %v145 = vld [vmem:[%s0 + $0x18] sm:$0xff]
  %v146 = vld [vmem:[%s0 + $0x20] sm:$0xff]
  %v147 = vld [vmem:[%s0 + $0x28] sm:$0xff]
  %v148 = vld [vmem:[%s0 + $0x30] sm:$0xff]
  %v149 = vld [vmem:[%s0 + $0x38] sm:$0xff]
  %v150 = vld [vmem:[%s2] sm:$0xff]
  %v151 = vld [vmem:[%s2 + $0x8] sm:$0xff]
  %v152 = vld [vmem:[%s2 + $0x10] sm:$0xff]
  %v153 = vld [vmem:[%s2 + $0x18] sm:$0xff]
  %155 = vset.pattern.permute.xlu0 0
  %156 = vperm.xlu0 %155, %v150
  %v157 = vpop.permute.xlu0 %156
  %160 = vset.pattern.permute.xlu0 0
  %161 = vperm.xlu0 %160, %v151
  %v162 = vpop.permute.xlu0 %161
  %165 = vset.pattern.permute.xlu0 0
  %166 = vperm.xlu0 %165, %v152
  %v167 = vpop.permute.xlu0 %166
  %170 = vset.pattern.permute.xlu0 0
  %171 = vperm.xlu0 %170, %v153
  %v172 = vpop.permute.xlu0 %171
  %v182 = vunpack.c.l.b16 %v142
  %v183 = vunpack.c.h.b16 %v142
  %v184 = vunpack.c.l.b16 %v143
  %v185 = vunpack.c.h.b16 %v143
  %v186 = vunpack.c.l.b16 %v144
  %v187 = vunpack.c.h.b16 %v144
  %v188 = vunpack.c.l.b16 %v145
  %v189 = vunpack.c.h.b16 %v145
  %v190 = vunpack.c.l.b16 %v146
  %v191 = vunpack.c.h.b16 %v146
  %v192 = vunpack.c.l.b16 %v147
  %v193 = vunpack.c.h.b16 %v147
  %v194 = vunpack.c.l.b16 %v148
  %v195 = vunpack.c.h.b16 %v148
  %v196 = vunpack.c.l.b16 %v149
  %v197 = vunpack.c.h.b16 %v149
  %v198 = vpack.c.b16 %v186, %v182
  %v199 = vpack.c.b16 %v187, %v183
  %v200 = vpack.c.b16 %v188, %v184
  %v201 = vpack.c.b16 %v189, %v185
  %v202 = vpack.c.b16 %v194, %v190
  %v203 = vpack.c.b16 %v195, %v191
  %v204 = vpack.c.b16 %v196, %v192
  %v205 = vpack.c.b16 %v197, %v193
  %v342 = vunpack.c.l.b16 %v14
  %v343 = vunpack.c.h.b16 %v14
  %v344 = vunpack.c.l.b16 %v15
  %v345 = vunpack.c.h.b16 %v15
  %v346 = vunpack.c.l.b16 %v16
  %v347 = vunpack.c.h.b16 %v16
  %v348 = vunpack.c.l.b16 %v17
  %v349 = vunpack.c.h.b16 %v17
  %v350 = vunpack.c.l.b16 %v18
  %v351 = vunpack.c.h.b16 %v18
  %v352 = vunpack.c.l.b16 %v19
  %v353 = vunpack.c.h.b16 %v19
  %v354 = vunpack.c.l.b16 %v20
  %v355 = vunpack.c.h.b16 %v20
  %v356 = vunpack.c.l.b16 %v21
  %v357 = vunpack.c.h.b16 %v21
  %v358 = vunpack.c.l.b16 %v22
  %v359 = vunpack.c.h.b16 %v22
  %v360 = vunpack.c.l.b16 %v23
  %v361 = vunpack.c.h.b16 %v23
  %v362 = vunpack.c.l.b16 %v24
  %v363 = vunpack.c.h.b16 %v24
  %v364 = vunpack.c.l.b16 %v25
  %v365 = vunpack.c.h.b16 %v25
  %v366 = vunpack.c.l.b16 %v26
  %v367 = vunpack.c.h.b16 %v26
  %v368 = vunpack.c.l.b16 %v27
  %v369 = vunpack.c.h.b16 %v27
  %v370 = vunpack.c.l.b16 %v28
  %v371 = vunpack.c.h.b16 %v28
  %v372 = vunpack.c.l.b16 %v29
  %v373 = vunpack.c.h.b16 %v29
  %v374 = vunpack.c.l.b16 %v30
  %v375 = vunpack.c.h.b16 %v30
  %v376 = vunpack.c.l.b16 %v31
  %v377 = vunpack.c.h.b16 %v31
  %v378 = vunpack.c.l.b16 %v32
  %v379 = vunpack.c.h.b16 %v32
  %v380 = vunpack.c.l.b16 %v33
  %v381 = vunpack.c.h.b16 %v33
  %v382 = vunpack.c.l.b16 %v34
  %v383 = vunpack.c.h.b16 %v34
  %v384 = vunpack.c.l.b16 %v35
  %v385 = vunpack.c.h.b16 %v35
  %v386 = vunpack.c.l.b16 %v36
  %v387 = vunpack.c.h.b16 %v36
  %v388 = vunpack.c.l.b16 %v37
  %v389 = vunpack.c.h.b16 %v37
  %v390 = vunpack.c.l.b16 %v38
  %v391 = vunpack.c.h.b16 %v38
  %v392 = vunpack.c.l.b16 %v39
  %v393 = vunpack.c.h.b16 %v39
  %v394 = vunpack.c.l.b16 %v40
  %v395 = vunpack.c.h.b16 %v40
  %v396 = vunpack.c.l.b16 %v41
  %v397 = vunpack.c.h.b16 %v41
  %v398 = vunpack.c.l.b16 %v42
  %v399 = vunpack.c.h.b16 %v42
  %v400 = vunpack.c.l.b16 %v43
  %v401 = vunpack.c.h.b16 %v43
  %v402 = vunpack.c.l.b16 %v44
  %v403 = vunpack.c.h.b16 %v44
  %v404 = vunpack.c.l.b16 %v45
  %v405 = vunpack.c.h.b16 %v45
  %v406 = vunpack.c.l.b16 %v46
  %v407 = vunpack.c.h.b16 %v46
  %v408 = vunpack.c.l.b16 %v47
  %v409 = vunpack.c.h.b16 %v47
  %v410 = vunpack.c.l.b16 %v48
  %v411 = vunpack.c.h.b16 %v48
  %v412 = vunpack.c.l.b16 %v49
  %v413 = vunpack.c.h.b16 %v49
  %v414 = vunpack.c.l.b16 %v50
  %v415 = vunpack.c.h.b16 %v50
  %v416 = vunpack.c.l.b16 %v51
  %v417 = vunpack.c.h.b16 %v51
  %v418 = vunpack.c.l.b16 %v52
  %v419 = vunpack.c.h.b16 %v52
  %v420 = vunpack.c.l.b16 %v53
  %v421 = vunpack.c.h.b16 %v53
  %v422 = vunpack.c.l.b16 %v54
  %v423 = vunpack.c.h.b16 %v54
  %v424 = vunpack.c.l.b16 %v55
  %v425 = vunpack.c.h.b16 %v55
  %v426 = vunpack.c.l.b16 %v56
  %v427 = vunpack.c.h.b16 %v56
  %v428 = vunpack.c.l.b16 %v57
  %v429 = vunpack.c.h.b16 %v57
  %v430 = vunpack.c.l.b16 %v58
  %v431 = vunpack.c.h.b16 %v58
  %v432 = vunpack.c.l.b16 %v59
  %v433 = vunpack.c.h.b16 %v59
  %v434 = vunpack.c.l.b16 %v60
  %v435 = vunpack.c.h.b16 %v60
  %v436 = vunpack.c.l.b16 %v61
  %v437 = vunpack.c.h.b16 %v61
  %v438 = vunpack.c.l.b16 %v62
  %v439 = vunpack.c.h.b16 %v62
  %v440 = vunpack.c.l.b16 %v63
  %v441 = vunpack.c.h.b16 %v63
  %v442 = vunpack.c.l.b16 %v64
  %v443 = vunpack.c.h.b16 %v64
  %v444 = vunpack.c.l.b16 %v65
  %v445 = vunpack.c.h.b16 %v65
  %v446 = vunpack.c.l.b16 %v66
  %v447 = vunpack.c.h.b16 %v66
  %v448 = vunpack.c.l.b16 %v67
  %v449 = vunpack.c.h.b16 %v67
  %v450 = vunpack.c.l.b16 %v68
  %v451 = vunpack.c.h.b16 %v68
  %v452 = vunpack.c.l.b16 %v69
  %v453 = vunpack.c.h.b16 %v69
  %v454 = vunpack.c.l.b16 %v70
  %v455 = vunpack.c.h.b16 %v70
  %v456 = vunpack.c.l.b16 %v71
  %v457 = vunpack.c.h.b16 %v71
  %v458 = vunpack.c.l.b16 %v72
  %v459 = vunpack.c.h.b16 %v72
  %v460 = vunpack.c.l.b16 %v73
  %v461 = vunpack.c.h.b16 %v73
  %v462 = vunpack.c.l.b16 %v74
  %v463 = vunpack.c.h.b16 %v74
  %v464 = vunpack.c.l.b16 %v75
  %v465 = vunpack.c.h.b16 %v75
  %v466 = vunpack.c.l.b16 %v76
  %v467 = vunpack.c.h.b16 %v76
  %v468 = vunpack.c.l.b16 %v77
  %v469 = vunpack.c.h.b16 %v77
  %v470 = vunpack.c.l.b16 %v78
  %v471 = vunpack.c.h.b16 %v78
  %v472 = vunpack.c.l.b16 %v79
  %v473 = vunpack.c.h.b16 %v79
  %v474 = vunpack.c.l.b16 %v80
  %v475 = vunpack.c.h.b16 %v80
  %v476 = vunpack.c.l.b16 %v81
  %v477 = vunpack.c.h.b16 %v81
  %v478 = vunpack.c.l.b16 %v82
  %v479 = vunpack.c.h.b16 %v82
  %v480 = vunpack.c.l.b16 %v83
  %v481 = vunpack.c.h.b16 %v83
  %v482 = vunpack.c.l.b16 %v84
  %v483 = vunpack.c.h.b16 %v84
  %v484 = vunpack.c.l.b16 %v85
  %v485 = vunpack.c.h.b16 %v85
  %v486 = vunpack.c.l.b16 %v86
  %v487 = vunpack.c.h.b16 %v86
  %v488 = vunpack.c.l.b16 %v87
  %v489 = vunpack.c.h.b16 %v87
  %v490 = vunpack.c.l.b16 %v88
  %v491 = vunpack.c.h.b16 %v88
  %v492 = vunpack.c.l.b16 %v89
  %v493 = vunpack.c.h.b16 %v89
  %v494 = vunpack.c.l.b16 %v90
  %v495 = vunpack.c.h.b16 %v90
  %v496 = vunpack.c.l.b16 %v91
  %v497 = vunpack.c.h.b16 %v91
  %v498 = vunpack.c.l.b16 %v92
  %v499 = vunpack.c.h.b16 %v92
  %v500 = vunpack.c.l.b16 %v93
  %v501 = vunpack.c.h.b16 %v93
  %v502 = vunpack.c.l.b16 %v94
  %v503 = vunpack.c.h.b16 %v94
  %v504 = vunpack.c.l.b16 %v95
  %v505 = vunpack.c.h.b16 %v95
  %v506 = vunpack.c.l.b16 %v96
  %v507 = vunpack.c.h.b16 %v96
  %v508 = vunpack.c.l.b16 %v97
  %v509 = vunpack.c.h.b16 %v97
  %v510 = vunpack.c.l.b16 %v98
  %v511 = vunpack.c.h.b16 %v98
  %v512 = vunpack.c.l.b16 %v99
  %v513 = vunpack.c.h.b16 %v99
  %v514 = vunpack.c.l.b16 %v100
  %v515 = vunpack.c.h.b16 %v100
  %v516 = vunpack.c.l.b16 %v101
  %v517 = vunpack.c.h.b16 %v101
  %v518 = vunpack.c.l.b16 %v102
  %v519 = vunpack.c.h.b16 %v102
  %v520 = vunpack.c.l.b16 %v103
  %v521 = vunpack.c.h.b16 %v103
  %v522 = vunpack.c.l.b16 %v104
  %v523 = vunpack.c.h.b16 %v104
  %v524 = vunpack.c.l.b16 %v105
  %v525 = vunpack.c.h.b16 %v105
  %v526 = vunpack.c.l.b16 %v106
  %v527 = vunpack.c.h.b16 %v106
  %v528 = vunpack.c.l.b16 %v107
  %v529 = vunpack.c.h.b16 %v107
  %v530 = vunpack.c.l.b16 %v108
  %v531 = vunpack.c.h.b16 %v108
  %v532 = vunpack.c.l.b16 %v109
  %v533 = vunpack.c.h.b16 %v109
  %v534 = vunpack.c.l.b16 %v110
  %v535 = vunpack.c.h.b16 %v110
  %v536 = vunpack.c.l.b16 %v111
  %v537 = vunpack.c.h.b16 %v111
  %v538 = vunpack.c.l.b16 %v112
  %v539 = vunpack.c.h.b16 %v112
  %v540 = vunpack.c.l.b16 %v113
  %v541 = vunpack.c.h.b16 %v113
  %v542 = vunpack.c.l.b16 %v114
  %v543 = vunpack.c.h.b16 %v114
  %v544 = vunpack.c.l.b16 %v115
  %v545 = vunpack.c.h.b16 %v115
  %v546 = vunpack.c.l.b16 %v116
  %v547 = vunpack.c.h.b16 %v116
  %v548 = vunpack.c.l.b16 %v117
  %v549 = vunpack.c.h.b16 %v117
  %v550 = vunpack.c.l.b16 %v118
  %v551 = vunpack.c.h.b16 %v118
  %v552 = vunpack.c.l.b16 %v119
  %v553 = vunpack.c.h.b16 %v119
  %v554 = vunpack.c.l.b16 %v120
  %v555 = vunpack.c.h.b16 %v120
  %v556 = vunpack.c.l.b16 %v121
  %v557 = vunpack.c.h.b16 %v121
  %v558 = vunpack.c.l.b16 %v122
  %v559 = vunpack.c.h.b16 %v122
  %v560 = vunpack.c.l.b16 %v123
  %v561 = vunpack.c.h.b16 %v123
  %v562 = vunpack.c.l.b16 %v124
  %v563 = vunpack.c.h.b16 %v124
  %v564 = vunpack.c.l.b16 %v125
  %v565 = vunpack.c.h.b16 %v125
  %v566 = vunpack.c.l.b16 %v126
  %v567 = vunpack.c.h.b16 %v126
  %v568 = vunpack.c.l.b16 %v127
  %v569 = vunpack.c.h.b16 %v127
  %v570 = vunpack.c.l.b16 %v128
  %v571 = vunpack.c.h.b16 %v128
  %v572 = vunpack.c.l.b16 %v129
  %v573 = vunpack.c.h.b16 %v129
  %v574 = vunpack.c.l.b16 %v130
  %v575 = vunpack.c.h.b16 %v130
  %v576 = vunpack.c.l.b16 %v131
  %v577 = vunpack.c.h.b16 %v131
  %v578 = vunpack.c.l.b16 %v132
  %v579 = vunpack.c.h.b16 %v132
  %v580 = vunpack.c.l.b16 %v133
  %v581 = vunpack.c.h.b16 %v133
  %v582 = vunpack.c.l.b16 %v134
  %v583 = vunpack.c.h.b16 %v134
  %v584 = vunpack.c.l.b16 %v135
  %v585 = vunpack.c.h.b16 %v135
  %v586 = vunpack.c.l.b16 %v136
  %v587 = vunpack.c.h.b16 %v136
  %v588 = vunpack.c.l.b16 %v137
  %v589 = vunpack.c.h.b16 %v137
  %v590 = vunpack.c.l.b16 %v138
  %v591 = vunpack.c.h.b16 %v138
  %v592 = vunpack.c.l.b16 %v139
  %v593 = vunpack.c.h.b16 %v139
  %v594 = vunpack.c.l.b16 %v140
  %v595 = vunpack.c.h.b16 %v140
  %v596 = vunpack.c.l.b16 %v141
  %v597 = vunpack.c.h.b16 %v141
  %v598 = vpack.c.b16 %v346, %v342
  %v599 = vpack.c.b16 %v347, %v343
  %v600 = vpack.c.b16 %v348, %v344
  %v601 = vpack.c.b16 %v349, %v345
  %v602 = vpack.c.b16 %v354, %v350
  %v603 = vpack.c.b16 %v355, %v351
  %v604 = vpack.c.b16 %v356, %v352
  %v605 = vpack.c.b16 %v357, %v353
  %v606 = vpack.c.b16 %v362, %v358
  %v607 = vpack.c.b16 %v363, %v359
  %v608 = vpack.c.b16 %v364, %v360
  %v609 = vpack.c.b16 %v365, %v361
  %v610 = vpack.c.b16 %v370, %v366
  %v611 = vpack.c.b16 %v371, %v367
  %v612 = vpack.c.b16 %v372, %v368
  %v613 = vpack.c.b16 %v373, %v369
  %v614 = vpack.c.b16 %v378, %v374
  %v615 = vpack.c.b16 %v379, %v375
  %v616 = vpack.c.b16 %v380, %v376
  %v617 = vpack.c.b16 %v381, %v377
  %v618 = vpack.c.b16 %v386, %v382
  %v619 = vpack.c.b16 %v387, %v383
  %v620 = vpack.c.b16 %v388, %v384
  %v621 = vpack.c.b16 %v389, %v385
  %v622 = vpack.c.b16 %v394, %v390
  %v623 = vpack.c.b16 %v395, %v391
  %v624 = vpack.c.b16 %v396, %v392
  %v625 = vpack.c.b16 %v397, %v393
  %v626 = vpack.c.b16 %v402, %v398
  %v627 = vpack.c.b16 %v403, %v399
  %v628 = vpack.c.b16 %v404, %v400
  %v629 = vpack.c.b16 %v405, %v401
  %v630 = vpack.c.b16 %v410, %v406
  %v631 = vpack.c.b16 %v411, %v407
  %v632 = vpack.c.b16 %v412, %v408
  %v633 = vpack.c.b16 %v413, %v409
  %v634 = vpack.c.b16 %v418, %v414
  %v635 = vpack.c.b16 %v419, %v415
  %v636 = vpack.c.b16 %v420, %v416
  %v637 = vpack.c.b16 %v421, %v417
  %v638 = vpack.c.b16 %v426, %v422
  %v639 = vpack.c.b16 %v427, %v423
  %v640 = vpack.c.b16 %v428, %v424
  %v641 = vpack.c.b16 %v429, %v425
  %v642 = vpack.c.b16 %v434, %v430
  %v643 = vpack.c.b16 %v435, %v431
  %v644 = vpack.c.b16 %v436, %v432
  %v645 = vpack.c.b16 %v437, %v433
  %v646 = vpack.c.b16 %v442, %v438
  %v647 = vpack.c.b16 %v443, %v439
  %v648 = vpack.c.b16 %v444, %v440
  %v649 = vpack.c.b16 %v445, %v441
  %v650 = vpack.c.b16 %v450, %v446
  %v651 = vpack.c.b16 %v451, %v447
  %v652 = vpack.c.b16 %v452, %v448
  %v653 = vpack.c.b16 %v453, %v449
  %v654 = vpack.c.b16 %v458, %v454
  %v655 = vpack.c.b16 %v459, %v455
  %v656 = vpack.c.b16 %v460, %v456
  %v657 = vpack.c.b16 %v461, %v457
  %v658 = vpack.c.b16 %v466, %v462
  %v659 = vpack.c.b16 %v467, %v463
  %v660 = vpack.c.b16 %v468, %v464
  %v661 = vpack.c.b16 %v469, %v465
  %v662 = vpack.c.b16 %v474, %v470
  %v663 = vpack.c.b16 %v475, %v471
  %v664 = vpack.c.b16 %v476, %v472
  %v665 = vpack.c.b16 %v477, %v473
  %v666 = vpack.c.b16 %v482, %v478
  %v667 = vpack.c.b16 %v483, %v479
  %v668 = vpack.c.b16 %v484, %v480
  %v669 = vpack.c.b16 %v485, %v481
  %v670 = vpack.c.b16 %v490, %v486
  %v671 = vpack.c.b16 %v491, %v487
  %v672 = vpack.c.b16 %v492, %v488
  %v673 = vpack.c.b16 %v493, %v489
  %v674 = vpack.c.b16 %v498, %v494
  %v675 = vpack.c.b16 %v499, %v495
  %v676 = vpack.c.b16 %v500, %v496
  %v677 = vpack.c.b16 %v501, %v497
  %v678 = vpack.c.b16 %v506, %v502
  %v679 = vpack.c.b16 %v507, %v503
  %v680 = vpack.c.b16 %v508, %v504
  %v681 = vpack.c.b16 %v509, %v505
  %v682 = vpack.c.b16 %v514, %v510
  %v683 = vpack.c.b16 %v515, %v511
  %v684 = vpack.c.b16 %v516, %v512
  %v685 = vpack.c.b16 %v517, %v513
  %v686 = vpack.c.b16 %v522, %v518
  %v687 = vpack.c.b16 %v523, %v519
  %v688 = vpack.c.b16 %v524, %v520
  %v689 = vpack.c.b16 %v525, %v521
  %v690 = vpack.c.b16 %v530, %v526
  %v691 = vpack.c.b16 %v531, %v527
  %v692 = vpack.c.b16 %v532, %v528
  %v693 = vpack.c.b16 %v533, %v529
  %v694 = vpack.c.b16 %v538, %v534
  %v695 = vpack.c.b16 %v539, %v535
  %v696 = vpack.c.b16 %v540, %v536
  %v697 = vpack.c.b16 %v541, %v537
  %v698 = vpack.c.b16 %v546, %v542
  %v699 = vpack.c.b16 %v547, %v543
  %v700 = vpack.c.b16 %v548, %v544
  %v701 = vpack.c.b16 %v549, %v545
  %v702 = vpack.c.b16 %v554, %v550
  %v703 = vpack.c.b16 %v555, %v551
  %v704 = vpack.c.b16 %v556, %v552
  %v705 = vpack.c.b16 %v557, %v553
  %v706 = vpack.c.b16 %v562, %v558
  %v707 = vpack.c.b16 %v563, %v559
  %v708 = vpack.c.b16 %v564, %v560
  %v709 = vpack.c.b16 %v565, %v561
  %v710 = vpack.c.b16 %v570, %v566
  %v711 = vpack.c.b16 %v571, %v567
  %v712 = vpack.c.b16 %v572, %v568
  %v713 = vpack.c.b16 %v573, %v569
  %v714 = vpack.c.b16 %v578, %v574
  %v715 = vpack.c.b16 %v579, %v575
  %v716 = vpack.c.b16 %v580, %v576
  %v717 = vpack.c.b16 %v581, %v577
  %v718 = vpack.c.b16 %v586, %v582
  %v719 = vpack.c.b16 %v587, %v583
  %v720 = vpack.c.b16 %v588, %v584
  %v721 = vpack.c.b16 %v589, %v585
  %v722 = vpack.c.b16 %v594, %v590
  %v723 = vpack.c.b16 %v595, %v591
  %v724 = vpack.c.b16 %v596, %v592
  %v725 = vpack.c.b16 %v597, %v593
  %854 = vmatprep.subr.bf16.mxu0 %v627
  %855 = vmatpush1.bf16.msra.mxu0 %v626
  %856 = vmatprep.subr.bf16.mxu0 %v623
  %857 = vmatpush1.bf16.msra.mxu0 %v622
  %858 = vmatprep.subr.bf16.mxu0 %v619
  %859 = vmatpush1.bf16.msra.mxu0 %v618
  %860 = vmatprep.subr.bf16.mxu0 %v615
  %861 = vmatpush1.bf16.msra.mxu0 %v614
  %862 = vmatprep.subr.bf16.mxu0 %v611
  %863 = vmatpush1.bf16.msra.mxu0 %v610
  %864 = vmatprep.subr.bf16.mxu0 %v607
  %865 = vmatpush1.bf16.msra.mxu0 %v606
  %866 = vmatprep.subr.bf16.mxu0 %v603
  %867 = vmatpush1.bf16.msra.mxu0 %v602
  %868 = vmatprep.subr.bf16.mxu0 %v599
  %869 = vmatpush1.bf16.msra.mxu0 %v598
  %870 = vmatprep.subr.bf16.mxu0 %v659
  %871 = vmatpush2.bf16.msra.mxu0 %v658
  %872 = vmatprep.subr.bf16.mxu0 %v655
  %873 = vmatpush2.bf16.msra.mxu0 %v654
  %874 = vmatprep.subr.bf16.mxu0 %v651
  %875 = vmatpush2.bf16.msra.mxu0 %v650
  %876 = vmatprep.subr.bf16.mxu0 %v647
  %877 = vmatpush2.bf16.msra.mxu0 %v646
  %878 = vmatprep.subr.bf16.mxu0 %v643
  %879 = vmatpush2.bf16.msra.mxu0 %v642
  %880 = vmatprep.subr.bf16.mxu0 %v639
  %881 = vmatpush2.bf16.msra.mxu0 %v638
  %882 = vmatprep.subr.bf16.mxu0 %v635
  %883 = vmatpush2.bf16.msra.mxu0 %v634
  %884 = vmatprep.subr.bf16.mxu0 %v631
  %885 = vmatpush2.bf16.msra.mxu0 %v630
  %886 = vmatprep.mubr.bf16.mxu0 %v199
  %887 = vmatmul.mubr.bf16.gmra.mxu0 %v198
  %v888 = vpop.f32.mrf.mxu0
  %v889 = vadd.f32 %v157, %v888
  %v890 = vpop.f32.mrf.mxu0
  %v891 = vadd.f32 %v157, %v890
  %v892 = vpop.f32.mrf.mxu0
  %v893 = vadd.f32 %v162, %v892
  %v894 = vpop.f32.mrf.mxu0
  %v895 = vadd.f32 %v162, %v894
  %896 = vmatprep.mubr.bf16.mxu0 %v203
  %897 = vmatmul.mubr.bf16.gmra.mxu0 %v202
  %v898 = vpop.f32.mrf.mxu0
  %v899 = vadd.f32 %v167, %v898
  %v900 = vpop.f32.mrf.mxu0
  %v901 = vadd.f32 %v167, %v900
  %v902 = vpop.f32.mrf.mxu0
  %v903 = vadd.f32 %v172, %v902
  %v904 = vpop.f32.mrf.mxu0
  %v905 = vadd.f32 %v172, %v904
  %906 = vdwg.mxu0
  %907 = vmatprep.subr.bf16.mxu0 %v691
  %908 = vmatpush1.bf16.msra.mxu0 %v690
  %909 = vmatprep.subr.bf16.mxu0 %v687
  %910 = vmatpush1.bf16.msra.mxu0 %v686
  %911 = vmatprep.subr.bf16.mxu0 %v683
  %912 = vmatpush1.bf16.msra.mxu0 %v682
  %913 = vmatprep.subr.bf16.mxu0 %v679
  %914 = vmatpush1.bf16.msra.mxu0 %v678
  %915 = vmatprep.subr.bf16.mxu0 %v675
  %916 = vmatpush1.bf16.msra.mxu0 %v674
  %917 = vmatprep.subr.bf16.mxu0 %v671
  %918 = vmatpush1.bf16.msra.mxu0 %v670
  %919 = vmatprep.subr.bf16.mxu0 %v667
  %920 = vmatpush1.bf16.msra.mxu0 %v666
  %921 = vmatprep.subr.bf16.mxu0 %v663
  %922 = vmatpush1.bf16.msra.mxu0 %v662
  %923 = vmatprep.subr.bf16.mxu0 %v723
  %924 = vmatpush2.bf16.msra.mxu0 %v722
  %925 = vmatprep.subr.bf16.mxu0 %v719
  %926 = vmatpush2.bf16.msra.mxu0 %v718
  %927 = vmatprep.subr.bf16.mxu0 %v715
  %928 = vmatpush2.bf16.msra.mxu0 %v714
  %929 = vmatprep.subr.bf16.mxu0 %v711
  %930 = vmatpush2.bf16.msra.mxu0 %v710
  %931 = vmatprep.subr.bf16.mxu0 %v707
  %932 = vmatpush2.bf16.msra.mxu0 %v706
  %933 = vmatprep.subr.bf16.mxu0 %v703
  %934 = vmatpush2.bf16.msra.mxu0 %v702
  %935 = vmatprep.subr.bf16.mxu0 %v699
  %936 = vmatpush2.bf16.msra.mxu0 %v698
  %937 = vmatprep.subr.bf16.mxu0 %v695
  %938 = vmatpush2.bf16.msra.mxu0 %v694
  %939 = vmatprep.mubr.bf16.mxu0 %v201
  %940 = vmatmul.mubr.bf16.gmra.mxu0 %v200
  %v941 = vpop.f32.mrf.mxu0
  %v942 = vadd.f32 %v889, %v941
  %v943 = vpop.f32.mrf.mxu0
  %v944 = vadd.f32 %v891, %v943
  %v945 = vpop.f32.mrf.mxu0
  %v946 = vadd.f32 %v893, %v945
  %v947 = vpop.f32.mrf.mxu0
  %v948 = vadd.f32 %v895, %v947
  %949 = vmatprep.mubr.bf16.mxu0 %v205
  %950 = vmatmul.mubr.bf16.gmra.mxu0 %v204
  %v951 = vpop.f32.mrf.mxu0
  %v952 = vadd.f32 %v899, %v951
  %v953 = vpop.f32.mrf.mxu0
  %v954 = vadd.f32 %v901, %v953
  %v955 = vpop.f32.mrf.mxu0
  %v956 = vadd.f32 %v903, %v955
  %v957 = vpop.f32.mrf.mxu0
  %v958 = vadd.f32 %v905, %v957
  %959 = vdwg.mxu0
  %960 = vmatprep.subr.bf16.mxu0 %v629
  %961 = vmatpush1.bf16.msra.mxu0 %v628
  %962 = vmatprep.subr.bf16.mxu0 %v625
  %963 = vmatpush1.bf16.msra.mxu0 %v624
  %964 = vmatprep.subr.bf16.mxu0 %v621
  %965 = vmatpush1.bf16.msra.mxu0 %v620
  %966 = vmatprep.subr.bf16.mxu0 %v617
  %967 = vmatpush1.bf16.msra.mxu0 %v616
  %968 = vmatprep.subr.bf16.mxu0 %v613
  %969 = vmatpush1.bf16.msra.mxu0 %v612
  %970 = vmatprep.subr.bf16.mxu0 %v609
  %971 = vmatpush1.bf16.msra.mxu0 %v608
  %972 = vmatprep.subr.bf16.mxu0 %v605
  %973 = vmatpush1.bf16.msra.mxu0 %v604
  %974 = vmatprep.subr.bf16.mxu0 %v601
  %975 = vmatpush1.bf16.msra.mxu0 %v600
  %976 = vmatprep.subr.bf16.mxu0 %v661
  %977 = vmatpush2.bf16.msra.mxu0 %v660
  %978 = vmatprep.subr.bf16.mxu0 %v657
  %979 = vmatpush2.bf16.msra.mxu0 %v656
  %980 = vmatprep.subr.bf16.mxu0 %v653
  %981 = vmatpush2.bf16.msra.mxu0 %v652
  %982 = vmatprep.subr.bf16.mxu0 %v649
  %983 = vmatpush2.bf16.msra.mxu0 %v648
  %984 = vmatprep.subr.bf16.mxu0 %v645
  %985 = vmatpush2.bf16.msra.mxu0 %v644
  %986 = vmatprep.subr.bf16.mxu0 %v641
  %987 = vmatpush2.bf16.msra.mxu0 %v640
  %988 = vmatprep.subr.bf16.mxu0 %v637
  %989 = vmatpush2.bf16.msra.mxu0 %v636
  %990 = vmatprep.subr.bf16.mxu0 %v633
  %991 = vmatpush2.bf16.msra.mxu0 %v632
  %992 = vmatprep.mubr.bf16.mxu0 %v199
  %993 = vmatmul.mubr.bf16.gmra.mxu0 %v198
  %v994 = vpop.f32.mrf.mxu0
  %v995 = vadd.f32 %v157, %v994
  %v996 = vpop.f32.mrf.mxu0
  %v997 = vadd.f32 %v157, %v996
  %v998 = vpop.f32.mrf.mxu0
  %v999 = vadd.f32 %v162, %v998
  %v1000 = vpop.f32.mrf.mxu0
  %v1001 = vadd.f32 %v162, %v1000
  %1002 = vmatprep.mubr.bf16.mxu0 %v203
  %1003 = vmatmul.mubr.bf16.gmra.mxu0 %v202
  %v1004 = vpop.f32.mrf.mxu0
  %v1005 = vadd.f32 %v167, %v1004
  %v1006 = vpop.f32.mrf.mxu0
  %v1007 = vadd.f32 %v167, %v1006
  %v1008 = vpop.f32.mrf.mxu0
  %v1009 = vadd.f32 %v172, %v1008
  %v1010 = vpop.f32.mrf.mxu0
  %v1011 = vadd.f32 %v172, %v1010
  %1012 = vdwg.mxu0
  %1013 = vmatprep.subr.bf16.mxu0 %v693
  %1014 = vmatpush1.bf16.msra.mxu0 %v692
  %1015 = vmatprep.subr.bf16.mxu0 %v689
  %1016 = vmatpush1.bf16.msra.mxu0 %v688
  %1017 = vmatprep.subr.bf16.mxu0 %v685
  %1018 = vmatpush1.bf16.msra.mxu0 %v684
  %1019 = vmatprep.subr.bf16.mxu0 %v681
  %1020 = vmatpush1.bf16.msra.mxu0 %v680
  %1021 = vmatprep.subr.bf16.mxu0 %v677
  %1022 = vmatpush1.bf16.msra.mxu0 %v676
  %1023 = vmatprep.subr.bf16.mxu0 %v673
  %1024 = vmatpush1.bf16.msra.mxu0 %v672
  %1025 = vmatprep.subr.bf16.mxu0 %v669
  %1026 = vmatpush1.bf16.msra.mxu0 %v668
  %1027 = vmatprep.subr.bf16.mxu0 %v665
  %1028 = vmatpush1.bf16.msra.mxu0 %v664
  %1029 = vmatprep.subr.bf16.mxu0 %v725
  %1030 = vmatpush2.bf16.msra.mxu0 %v724
  %1031 = vmatprep.subr.bf16.mxu0 %v721
  %1032 = vmatpush2.bf16.msra.mxu0 %v720
  %1033 = vmatprep.subr.bf16.mxu0 %v717
  %1034 = vmatpush2.bf16.msra.mxu0 %v716
  %1035 = vmatprep.subr.bf16.mxu0 %v713
  %1036 = vmatpush2.bf16.msra.mxu0 %v712
  %1037 = vmatprep.subr.bf16.mxu0 %v709
  %1038 = vmatpush2.bf16.msra.mxu0 %v708
  %1039 = vmatprep.subr.bf16.mxu0 %v705
  %1040 = vmatpush2.bf16.msra.mxu0 %v704
  %1041 = vmatprep.subr.bf16.mxu0 %v701
  %1042 = vmatpush2.bf16.msra.mxu0 %v700
  %1043 = vmatprep.subr.bf16.mxu0 %v697
  %1044 = vmatpush2.bf16.msra.mxu0 %v696
  %1045 = vmatprep.mubr.bf16.mxu0 %v201
  %1046 = vmatmul.mubr.bf16.gmra.mxu0 %v200
  %v1047 = vpop.f32.mrf.mxu0
  %v1048 = vadd.f32 %v995, %v1047
  %v1049 = vpop.f32.mrf.mxu0
  %v1050 = vadd.f32 %v997, %v1049
  %v1051 = vpop.f32.mrf.mxu0
  %v1052 = vadd.f32 %v999, %v1051
  %v1053 = vpop.f32.mrf.mxu0
  %v1054 = vadd.f32 %v1001, %v1053
  %1055 = vmatprep.mubr.bf16.mxu0 %v205
  %1056 = vmatmul.mubr.bf16.gmra.mxu0 %v204
  %v1057 = vpop.f32.mrf.mxu0
  %v1058 = vadd.f32 %v1005, %v1057
  %v1059 = vpop.f32.mrf.mxu0
  %v1060 = vadd.f32 %v1007, %v1059
  %v1061 = vpop.f32.mrf.mxu0
  %v1062 = vadd.f32 %v1009, %v1061
  %v1063 = vpop.f32.mrf.mxu0
  %v1064 = vadd.f32 %v1011, %v1063
  %1065 = vdwg.mxu0
  %v1066 = vmax.f32 %v942, 0.0
  %v1067 = vmax.f32 %v944, 0.0
  %v1068 = vmax.f32 %v1048, 0.0
  %v1069 = vmax.f32 %v1050, 0.0
  %v1070 = vmax.f32 %v946, 0.0
  %v1071 = vmax.f32 %v948, 0.0
  %v1072 = vmax.f32 %v1052, 0.0
  %v1073 = vmax.f32 %v1054, 0.0
  %v1074 = vmax.f32 %v952, 0.0
  %v1075 = vmax.f32 %v954, 0.0
  %v1076 = vmax.f32 %v1058, 0.0
  %v1077 = vmax.f32 %v1060, 0.0
  %v1078 = vmax.f32 %v956, 0.0
  %v1079 = vmax.f32 %v958, 0.0
  %v1080 = vmax.f32 %v1062, 0.0
  %v1081 = vmax.f32 %v1064, 0.0
  %v1082 = vpack.c.bf16 %v1070, %v1066
  %v1083 = vpack.c.bf16 %v1071, %v1067
  %v1084 = vpack.c.bf16 %v1072, %v1068
  %v1085 = vpack.c.bf16 %v1073, %v1069
  %v1086 = vpack.c.bf16 %v1078, %v1074
  %v1087 = vpack.c.bf16 %v1079, %v1075
  %v1088 = vpack.c.bf16 %v1080, %v1076
  %v1089 = vpack.c.bf16 %v1081, %v1077
  %v1098 = vunpack.c.l.b16 %v1082
  %v1099 = vunpack.c.l.b16 %v1083
  %v1100 = vunpack.c.l.b16 %v1084
  %v1101 = vunpack.c.l.b16 %v1085
  %v1102 = vunpack.c.h.b16 %v1082
  %v1103 = vunpack.c.h.b16 %v1083
  %v1104 = vunpack.c.h.b16 %v1084
  %v1105 = vunpack.c.h.b16 %v1085
  %v1106 = vunpack.c.l.b16 %v1086
  %v1107 = vunpack.c.l.b16 %v1087
  %v1108 = vunpack.c.l.b16 %v1088
  %v1109 = vunpack.c.l.b16 %v1089
  %v1110 = vunpack.c.h.b16 %v1086
  %v1111 = vunpack.c.h.b16 %v1087
  %v1112 = vunpack.c.h.b16 %v1088
  %v1113 = vunpack.c.h.b16 %v1089
  %v1114 = vpack.c.b16 %v1099, %v1098
  %v1115 = vpack.c.b16 %v1101, %v1100
  %v1116 = vpack.c.b16 %v1103, %v1102
  %v1117 = vpack.c.b16 %v1105, %v1104
  %v1118 = vpack.c.b16 %v1107, %v1106
  %v1119 = vpack.c.b16 %v1109, %v1108
  %v1120 = vpack.c.b16 %v1111, %v1110
  %v1121 = vpack.c.b16 %v1113, %v1112
  %1130 = vst [vmem:[%s3] sm:$0xff] %v1114
  %vm1131 = vcmask 1043456
  %vm1132 = vcmask 64516
  %vm1133 = vmor %vm1132, %vm1131
  %1134 = vst.msk [vmem:[%s3 + $0x8] sm:$0xff] %vm1133, %v1115
  %1135 = vst [vmem:[%s3 + $0x10] sm:$0xff] %v1116
  %1136 = vst.msk [vmem:[%s3 + $0x18] sm:$0xff] %vm1133, %v1117
  %1137 = vst [vmem:[%s3 + $0x20] sm:$0xff] %v1118
  %1138 = vst.msk [vmem:[%s3 + $0x28] sm:$0xff] %vm1133, %v1119
  %1139 = vst [vmem:[%s3 + $0x30] sm:$0xff] %v1120
  %1140 = vst.msk [vmem:[%s3 + $0x38] sm:$0xff] %vm1133, %v1121
  // Predicated region
  $region14: #{forward.10} parent=0 // pred_check
    _
  $region15: #{forward.10} parent=0 // pred_check_branch
    %1142 = sbr.rel (0) target = $region17
  $region16: #{forward.10} parent=0 // pred_region
    _
  $region17: #{forward.10} parent=0 // pred_fallthru
    _
  // Predicated region
  $region18: #{forward.10} parent=0 // pred_check
    _
  $region19: #{forward.10} parent=0 // pred_check_branch
    %1144 = sbr.rel (0) target = $region21
  $region20: #{forward.10} parent=0 // pred_region
    _
  $region21: #{forward.10} parent=0 // pred_fallthru
    _

// kernel: forward.11
$region0: #{forward.11}
  #allocation0 [shape = 'u32[]', space=smem, size = 0x4, offset = 0x4, fixed_abs, tag = 'smem constant byte address 0x4 - core index']
  #allocation1 [shape = 'u32[144,128]{1,0:T(1,128)}', space=vmem, size = 0x12000, scoped, tag = 'internal scratch']
  %s0 = inlined_call_operand.vmem [shape: bf16[64,512], index: 0, kind: input, shape index: {}]
  %s1 = inlined_call_operand.vmem [shape: bf16[512,72], index: 1, kind: input, shape index: {}]
  %s2 = inlined_call_operand.vmem [shape: f32[64,1], index: 2, kind: input, shape index: {}]
  %s3 = inlined_call_operand.vmem [shape: bf16[64,72], index: 3, kind: output, shape index: {}]
  %s4 = sld [smem:[#allocation0]]
  $region22: #{forward.11} parent=0
    _
  %s6 = ssub.s32 1, %s4
  %s7 = scalar_select 0, %s6, %s4
  // Predicated region
  $region2: #{forward.11} parent=0 // pred_check
    _
  $region3: #{forward.11} parent=0 // pred_check_branch
    %9 = sbr.rel (0) target = $region5
  $region4: #{forward.11} parent=0 // pred_region
    _
  $region5: #{forward.11} parent=0 // pred_fallthru
    _
  // Predicated region
  $region6: #{forward.11} parent=0 // pred_check
    _
  $region7: #{forward.11} parent=0 // pred_check_branch
    %11 = sbr.rel (0) target = $region9
  $region8: #{forward.11} parent=0 // pred_region
    _
  $region9: #{forward.11} parent=0 // pred_fallthru
    _
  // Predicated region
  $region10: #{forward.11} parent=0 // pred_check
    _
  $region11: #{forward.11} parent=0 // pred_check_branch
    %13 = sbr.rel (0) target = $region13
  $region12: #{forward.11} parent=0 // pred_region
    _
  $region13: #{forward.11} parent=0 // pred_fallthru
    _
  %v15 = vld [vmem:[%s1] sm:$0xf]
  %v16 = vld [vmem:[%s1 + $0x4] sm:$0xf]
  %v17 = vld [vmem:[%s1 + $0x8] sm:$0xf]
  %v18 = vld [vmem:[%s1 + $0xc] sm:$0xf]
  %v19 = vld [vmem:[%s1 + $0x10] sm:$0xf]
  %v20 = vld [vmem:[%s1 + $0x14] sm:$0xf]
  %v21 = vld [vmem:[%s1 + $0x18] sm:$0xf]
  %v22 = vld [vmem:[%s1 + $0x1c] sm:$0xf]
  %v23 = vld [vmem:[%s1 + $0x20] sm:$0xf]
  %v24 = vld [vmem:[%s1 + $0x24] sm:$0xf]
  %v25 = vld [vmem:[%s1 + $0x28] sm:$0xf]
  %v26 = vld [vmem:[%s1 + $0x2c] sm:$0xf]
  %v27 = vld [vmem:[%s1 + $0x30] sm:$0xf]
  %v28 = vld [vmem:[%s1 + $0x34] sm:$0xf]
  %v29 = vld [vmem:[%s1 + $0x38] sm:$0xf]
  %v30 = vld [vmem:[%s1 + $0x3c] sm:$0xf]
  %v31 = vld [vmem:[%s1 + $0x40] sm:$0xf]
  %v32 = vld [vmem:[%s1 + $0x44] sm:$0xf]
  %v33 = vld [vmem:[%s1 + $0x48] sm:$0xf]
  %v34 = vld [vmem:[%s1 + $0x4c] sm:$0xf]
  %v35 = vld [vmem:[%s1 + $0x50] sm:$0xf]
  %v36 = vld [vmem:[%s1 + $0x54] sm:$0xf]
  %v37 = vld [vmem:[%s1 + $0x58] sm:$0xf]
  %v38 = vld [vmem:[%s1 + $0x5c] sm:$0xf]
  %v39 = vld [vmem:[%s1 + $0x60] sm:$0xf]
  %v40 = vld [vmem:[%s1 + $0x64] sm:$0xf]
  %v41 = vld [vmem:[%s1 + $0x68] sm:$0xf]
  %v42 = vld [vmem:[%s1 + $0x6c] sm:$0xf]
  %v43 = vld [vmem:[%s1 + $0x70] sm:$0xf]
  %v44 = vld [vmem:[%s1 + $0x74] sm:$0xf]
  %v45 = vld [vmem:[%s1 + $0x78] sm:$0xf]
  %v46 = vld [vmem:[%s1 + $0x7c] sm:$0xf]
  %v47 = vld [vmem:[%s1 + $0x80] sm:$0xf]
  %v48 = vld [vmem:[%s1 + $0x84] sm:$0xf]
  %v49 = vld [vmem:[%s1 + $0x88] sm:$0xf]
  %v50 = vld [vmem:[%s1 + $0x8c] sm:$0xf]
  %v51 = vld [vmem:[%s1 + $0x90] sm:$0xf]
  %v52 = vld [vmem:[%s1 + $0x94] sm:$0xf]
  %v53 = vld [vmem:[%s1 + $0x98] sm:$0xf]
  %v54 = vld [vmem:[%s1 + $0x9c] sm:$0xf]
  %v55 = vld [vmem:[%s1 + $0xa0] sm:$0xf]
  %v56 = vld [vmem:[%s1 + $0xa4] sm:$0xf]
  %v57 = vld [vmem:[%s1 + $0xa8] sm:$0xf]
  %v58 = vld [vmem:[%s1 + $0xac] sm:$0xf]
  %v59 = vld [vmem:[%s1 + $0xb0] sm:$0xf]
  %v60 = vld [vmem:[%s1 + $0xb4] sm:$0xf]
  %v61 = vld [vmem:[%s1 + $0xb8] sm:$0xf]
  %v62 = vld [vmem:[%s1 + $0xbc] sm:$0xf]
  %v63 = vld [vmem:[%s1 + $0xc0] sm:$0xf]
  %v64 = vld [vmem:[%s1 + $0xc4] sm:$0xf]
  %v65 = vld [vmem:[%s1 + $0xc8] sm:$0xf]
  %v66 = vld [vmem:[%s1 + $0xcc] sm:$0xf]
  %v67 = vld [vmem:[%s1 + $0xd0] sm:$0xf]
  %v68 = vld [vmem:[%s1 + $0xd4] sm:$0xf]
  %v69 = vld [vmem:[%s1 + $0xd8] sm:$0xf]
  %v70 = vld [vmem:[%s1 + $0xdc] sm:$0xf]
  %v71 = vld [vmem:[%s1 + $0xe0] sm:$0xf]
  %v72 = vld [vmem:[%s1 + $0xe4] sm:$0xf]
  %v73 = vld [vmem:[%s1 + $0xe8] sm:$0xf]
  %v74 = vld [vmem:[%s1 + $0xec] sm:$0xf]
  %v75 = vld [vmem:[%s1 + $0xf0] sm:$0xf]
  %v76 = vld [vmem:[%s1 + $0xf4] sm:$0xf]
  %v77 = vld [vmem:[%s1 + $0xf8] sm:$0xf]
  %v78 = vld [vmem:[%s1 + $0xfc] sm:$0xf]
  %v79 = vld [vmem:[%s0] sm:$0xff]
  %v80 = vld [vmem:[%s0 + $0x8] sm:$0xff]
  %v81 = vld [vmem:[%s0 + $0x10] sm:$0xff]
  %v82 = vld [vmem:[%s0 + $0x18] sm:$0xff]
  %v83 = vld [vmem:[%s0 + $0x20] sm:$0xff]
  %v84 = vld [vmem:[%s0 + $0x28] sm:$0xff]
  %v85 = vld [vmem:[%s0 + $0x30] sm:$0xff]
  %v86 = vld [vmem:[%s0 + $0x38] sm:$0xff]
  %v87 = vld [vmem:[%s0 + $0x40] sm:$0xff]
  %v88 = vld [vmem:[%s0 + $0x48] sm:$0xff]
  %v89 = vld [vmem:[%s0 + $0x50] sm:$0xff]
  %v90 = vld [vmem:[%s0 + $0x58] sm:$0xff]
  %v91 = vld [vmem:[%s0 + $0x60] sm:$0xff]
  %v92 = vld [vmem:[%s0 + $0x68] sm:$0xff]
  %v93 = vld [vmem:[%s0 + $0x70] sm:$0xff]
  %v94 = vld [vmem:[%s0 + $0x78] sm:$0xff]
  %v95 = vld [vmem:[%s2] sm:$0xff]
  %v96 = vld [vmem:[%s2 + $0x8] sm:$0xff]
  %v97 = vld [vmem:[%s2 + $0x10] sm:$0xff]
  %v98 = vld [vmem:[%s2 + $0x18] sm:$0xff]
  %v99 = vld [vmem:[%s2 + $0x20] sm:$0xff]
  %v100 = vld [vmem:[%s2 + $0x28] sm:$0xff]
  %v101 = vld [vmem:[%s2 + $0x30] sm:$0xff]
  %v102 = vld [vmem:[%s2 + $0x38] sm:$0xff]
  %104 = vset.pattern.permute.xlu0 0
  %105 = vperm.xlu0 %104, %v95
  %v106 = vpop.permute.xlu0 %105
  %109 = vset.pattern.permute.xlu0 0
  %110 = vperm.xlu0 %109, %v96
  %v111 = vpop.permute.xlu0 %110
  %114 = vset.pattern.permute.xlu0 0
  %115 = vperm.xlu0 %114, %v97
  %v116 = vpop.permute.xlu0 %115
  %119 = vset.pattern.permute.xlu0 0
  %120 = vperm.xlu0 %119, %v98
  %v121 = vpop.permute.xlu0 %120
  %124 = vset.pattern.permute.xlu0 0
  %125 = vperm.xlu0 %124, %v99
  %v126 = vpop.permute.xlu0 %125
  %129 = vset.pattern.permute.xlu0 0
  %130 = vperm.xlu0 %129, %v100
  %v131 = vpop.permute.xlu0 %130
  %134 = vset.pattern.permute.xlu0 0
  %135 = vperm.xlu0 %134, %v101
  %v136 = vpop.permute.xlu0 %135
  %139 = vset.pattern.permute.xlu0 0
  %140 = vperm.xlu0 %139, %v102
  %v141 = vpop.permute.xlu0 %140
  %v159 = vunpack.c.l.b16 %v79
  %v160 = vunpack.c.h.b16 %v79
  %v161 = vunpack.c.l.b16 %v80
  %v162 = vunpack.c.h.b16 %v80
  %v163 = vunpack.c.l.b16 %v81
  %v164 = vunpack.c.h.b16 %v81
  %v165 = vunpack.c.l.b16 %v82
  %v166 = vunpack.c.h.b16 %v82
  %v167 = vunpack.c.l.b16 %v83
  %v168 = vunpack.c.h.b16 %v83
  %v169 = vunpack.c.l.b16 %v84
  %v170 = vunpack.c.h.b16 %v84
  %v171 = vunpack.c.l.b16 %v85
  %v172 = vunpack.c.h.b16 %v85
  %v173 = vunpack.c.l.b16 %v86
  %v174 = vunpack.c.h.b16 %v86
  %v175 = vunpack.c.l.b16 %v87
  %v176 = vunpack.c.h.b16 %v87
  %v177 = vunpack.c.l.b16 %v88
  %v178 = vunpack.c.h.b16 %v88
  %v179 = vunpack.c.l.b16 %v89
  %v180 = vunpack.c.h.b16 %v89
  %v181 = vunpack.c.l.b16 %v90
  %v182 = vunpack.c.h.b16 %v90
  %v183 = vunpack.c.l.b16 %v91
  %v184 = vunpack.c.h.b16 %v91
  %v185 = vunpack.c.l.b16 %v92
  %v186 = vunpack.c.h.b16 %v92
  %v187 = vunpack.c.l.b16 %v93
  %v188 = vunpack.c.h.b16 %v93
  %v189 = vunpack.c.l.b16 %v94
  %v190 = vunpack.c.h.b16 %v94
  %v191 = vpack.c.b16 %v163, %v159
  %v192 = vpack.c.b16 %v164, %v160
  %v193 = vpack.c.b16 %v165, %v161
  %v194 = vpack.c.b16 %v166, %v162
  %v195 = vpack.c.b16 %v171, %v167
  %v196 = vpack.c.b16 %v172, %v168
  %v197 = vpack.c.b16 %v173, %v169
  %v198 = vpack.c.b16 %v174, %v170
  %v199 = vpack.c.b16 %v179, %v175
  %v200 = vpack.c.b16 %v180, %v176
  %v201 = vpack.c.b16 %v181, %v177
  %v202 = vpack.c.b16 %v182, %v178
  %v203 = vpack.c.b16 %v187, %v183
  %v204 = vpack.c.b16 %v188, %v184
  %v205 = vpack.c.b16 %v189, %v185
  %v206 = vpack.c.b16 %v190, %v186
  %v287 = vunpack.c.l.b16 %v15
  %v288 = vunpack.c.l.b16 %v16
  %v289 = vunpack.c.l.b16 %v17
  %v290 = vunpack.c.l.b16 %v18
  %v291 = vunpack.c.l.b16 %v19
  %v292 = vunpack.c.l.b16 %v20
  %v293 = vunpack.c.l.b16 %v21
  %v294 = vunpack.c.l.b16 %v22
  %v295 = vunpack.c.l.b16 %v23
  %v296 = vunpack.c.l.b16 %v24
  %v297 = vunpack.c.l.b16 %v25
  %v298 = vunpack.c.l.b16 %v26
  %v299 = vunpack.c.l.b16 %v27
  %v300 = vunpack.c.l.b16 %v28
  %v301 = vunpack.c.l.b16 %v29
  %v302 = vunpack.c.l.b16 %v30
  %v303 = vunpack.c.l.b16 %v31
  %v304 = vunpack.c.l.b16 %v32
  %v305 = vunpack.c.l.b16 %v33
  %v306 = vunpack.c.l.b16 %v34
  %v307 = vunpack.c.l.b16 %v35
  %v308 = vunpack.c.l.b16 %v36
  %v309 = vunpack.c.l.b16 %v37
  %v310 = vunpack.c.l.b16 %v38
  %v311 = vunpack.c.l.b16 %v39
  %v312 = vunpack.c.l.b16 %v40
  %v313 = vunpack.c.l.b16 %v41
  %v314 = vunpack.c.l.b16 %v42
  %v315 = vunpack.c.l.b16 %v43
  %v316 = vunpack.c.l.b16 %v44
  %v317 = vunpack.c.l.b16 %v45
  %v318 = vunpack.c.l.b16 %v46
  %v319 = vunpack.c.l.b16 %v47
  %v320 = vunpack.c.l.b16 %v48
  %v321 = vunpack.c.l.b16 %v49
  %v322 = vunpack.c.l.b16 %v50
  %v323 = vunpack.c.l.b16 %v51
  %v324 = vunpack.c.l.b16 %v52
  %v325 = vunpack.c.l.b16 %v53
  %v326 = vunpack.c.l.b16 %v54
  %v327 = vunpack.c.l.b16 %v55
  %v328 = vunpack.c.l.b16 %v56
  %v329 = vunpack.c.l.b16 %v57
  %v330 = vunpack.c.l.b16 %v58
  %v331 = vunpack.c.l.b16 %v59
  %v332 = vunpack.c.l.b16 %v60
  %v333 = vunpack.c.l.b16 %v61
  %v334 = vunpack.c.l.b16 %v62
  %v335 = vunpack.c.l.b16 %v63
  %v336 = vunpack.c.l.b16 %v64
  %v337 = vunpack.c.l.b16 %v65
  %v338 = vunpack.c.l.b16 %v66
  %v339 = vunpack.c.l.b16 %v67
  %v340 = vunpack.c.l.b16 %v68
  %v341 = vunpack.c.l.b16 %v69
  %v342 = vunpack.c.l.b16 %v70
  %v343 = vunpack.c.l.b16 %v71
  %v344 = vunpack.c.l.b16 %v72
  %v345 = vunpack.c.l.b16 %v73
  %v346 = vunpack.c.l.b16 %v74
  %v347 = vunpack.c.l.b16 %v75
  %v348 = vunpack.c.l.b16 %v76
  %v349 = vunpack.c.l.b16 %v77
  %v350 = vunpack.c.l.b16 %v78
  %v351 = vpack.c.b16 %v288, %v287
  %v352 = vpack.c.b16 %v290, %v289
  %v353 = vpack.c.b16 %v292, %v291
  %v354 = vpack.c.b16 %v294, %v293
  %v355 = vpack.c.b16 %v296, %v295
  %v356 = vpack.c.b16 %v298, %v297
  %v357 = vpack.c.b16 %v300, %v299
  %v358 = vpack.c.b16 %v302, %v301
  %v359 = vpack.c.b16 %v304, %v303
  %v360 = vpack.c.b16 %v306, %v305
  %v361 = vpack.c.b16 %v308, %v307
  %v362 = vpack.c.b16 %v310, %v309
  %v363 = vpack.c.b16 %v312, %v311
  %v364 = vpack.c.b16 %v314, %v313
  %v365 = vpack.c.b16 %v316, %v315
  %v366 = vpack.c.b16 %v318, %v317
  %v367 = vpack.c.b16 %v320, %v319
  %v368 = vpack.c.b16 %v322, %v321
  %v369 = vpack.c.b16 %v324, %v323
  %v370 = vpack.c.b16 %v326, %v325
  %v371 = vpack.c.b16 %v328, %v327
  %v372 = vpack.c.b16 %v330, %v329
  %v373 = vpack.c.b16 %v332, %v331
  %v374 = vpack.c.b16 %v334, %v333
  %v375 = vpack.c.b16 %v336, %v335
  %v376 = vpack.c.b16 %v338, %v337
  %v377 = vpack.c.b16 %v340, %v339
  %v378 = vpack.c.b16 %v342, %v341
  %v379 = vpack.c.b16 %v344, %v343
  %v380 = vpack.c.b16 %v346, %v345
  %v381 = vpack.c.b16 %v348, %v347
  %v382 = vpack.c.b16 %v350, %v349
  %415 = vmatprep.subr.bf16.mxu0 0
  %416 = vmatpush1.bf16.msra.mxu0 %v358
  %417 = vmatprep.subr.bf16.mxu0 0
  %418 = vmatpush1.bf16.msra.mxu0 %v357
  %419 = vmatprep.subr.bf16.mxu0 0
  %420 = vmatpush1.bf16.msra.mxu0 %v356
  %421 = vmatprep.subr.bf16.mxu0 0
  %422 = vmatpush1.bf16.msra.mxu0 %v355
  %423 = vmatprep.subr.bf16.mxu0 0
  %424 = vmatpush1.bf16.msra.mxu0 %v354
  %425 = vmatprep.subr.bf16.mxu0 0
  %426 = vmatpush1.bf16.msra.mxu0 %v353
  %427 = vmatprep.subr.bf16.mxu0 0
  %428 = vmatpush1.bf16.msra.mxu0 %v352
  %429 = vmatprep.subr.bf16.mxu0 0
  %430 = vmatpush1.bf16.msra.mxu0 %v351
  %431 = vmatprep.subr.bf16.mxu0 0
  %432 = vmatpush2.bf16.msra.mxu0 %v366
  %433 = vmatprep.subr.bf16.mxu0 0
  %434 = vmatpush2.bf16.msra.mxu0 %v365
  %435 = vmatprep.subr.bf16.mxu0 0
  %436 = vmatpush2.bf16.msra.mxu0 %v364
  %437 = vmatprep.subr.bf16.mxu0 0
  %438 = vmatpush2.bf16.msra.mxu0 %v363
  %439 = vmatprep.subr.bf16.mxu0 0
  %440 = vmatpush2.bf16.msra.mxu0 %v362
  %441 = vmatprep.subr.bf16.mxu0 0
  %442 = vmatpush2.bf16.msra.mxu0 %v361
  %443 = vmatprep.subr.bf16.mxu0 0
  %444 = vmatpush2.bf16.msra.mxu0 %v360
  %445 = vmatprep.subr.bf16.mxu0 0
  %446 = vmatpush2.bf16.msra.mxu0 %v359
  %447 = vmatprep.mubr.bf16.mxu0 %v192
  %448 = vmatmul.mubr.bf16.gmra.mxu0 %v191
  %v449 = vpop.f32.mrf.mxu0
  %v450 = vadd.f32 %v106, %v449
  %v451 = vpop.f32.mrf.mxu0
  %v452 = vpop.f32.mrf.mxu0
  %v453 = vadd.f32 %v111, %v452
  %v454 = vpop.f32.mrf.mxu0
  %455 = vmatprep.mubr.bf16.mxu0 %v196
  %456 = vmatmul.mubr.bf16.gmra.mxu0 %v195
  %v457 = vpop.f32.mrf.mxu0
  %v458 = vadd.f32 %v116, %v457
  %v459 = vpop.f32.mrf.mxu0
  %v460 = vpop.f32.mrf.mxu0
  %v461 = vadd.f32 %v121, %v460
  %v462 = vpop.f32.mrf.mxu0
  %463 = vmatprep.mubr.bf16.mxu0 %v200
  %464 = vmatmul.mubr.bf16.gmra.mxu0 %v199
  %v465 = vpop.f32.mrf.mxu0
  %v466 = vadd.f32 %v126, %v465
  %v467 = vpop.f32.mrf.mxu0
  %v468 = vpop.f32.mrf.mxu0
  %v469 = vadd.f32 %v131, %v468
  %v470 = vpop.f32.mrf.mxu0
  %471 = vmatprep.mubr.bf16.mxu0 %v204
  %472 = vmatmul.mubr.bf16.gmra.mxu0 %v203
  %v473 = vpop.f32.mrf.mxu0
  %v474 = vadd.f32 %v136, %v473
  %v475 = vpop.f32.mrf.mxu0
  %v476 = vpop.f32.mrf.mxu0
  %v477 = vadd.f32 %v141, %v476
  %v478 = vpop.f32.mrf.mxu0
  %479 = vdwg.mxu0
  %480 = vmatprep.subr.bf16.mxu0 0
  %481 = vmatpush1.bf16.msra.mxu0 %v374
  %482 = vmatprep.subr.bf16.mxu0 0
  %483 = vmatpush1.bf16.msra.mxu0 %v373
  %484 = vmatprep.subr.bf16.mxu0 0
  %485 = vmatpush1.bf16.msra.mxu0 %v372
  %486 = vmatprep.subr.bf16.mxu0 0
  %487 = vmatpush1.bf16.msra.mxu0 %v371
  %488 = vmatprep.subr.bf16.mxu0 0
  %489 = vmatpush1.bf16.msra.mxu0 %v370
  %490 = vmatprep.subr.bf16.mxu0 0
  %491 = vmatpush1.bf16.msra.mxu0 %v369
  %492 = vmatprep.subr.bf16.mxu0 0
  %493 = vmatpush1.bf16.msra.mxu0 %v368
  %494 = vmatprep.subr.bf16.mxu0 0
  %495 = vmatpush1.bf16.msra.mxu0 %v367
  %496 = vmatprep.subr.bf16.mxu0 0
  %497 = vmatpush2.bf16.msra.mxu0 %v382
  %498 = vmatprep.subr.bf16.mxu0 0
  %499 = vmatpush2.bf16.msra.mxu0 %v381
  %500 = vmatprep.subr.bf16.mxu0 0
  %501 = vmatpush2.bf16.msra.mxu0 %v380
  %502 = vmatprep.subr.bf16.mxu0 0
  %503 = vmatpush2.bf16.msra.mxu0 %v379
  %504 = vmatprep.subr.bf16.mxu0 0
  %505 = vmatpush2.bf16.msra.mxu0 %v378
  %506 = vmatprep.subr.bf16.mxu0 0
  %507 = vmatpush2.bf16.msra.mxu0 %v377
  %508 = vmatprep.subr.bf16.mxu0 0
  %509 = vmatpush2.bf16.msra.mxu0 %v376
  %510 = vmatprep.subr.bf16.mxu0 0
  %511 = vmatpush2.bf16.msra.mxu0 %v375
  %512 = vmatprep.mubr.bf16.mxu0 %v194
  %513 = vmatmul.mubr.bf16.gmra.mxu0 %v193
  %v514 = vpop.f32.mrf.mxu0
  %v515 = vadd.f32 %v450, %v514
  %v516 = vpop.f32.mrf.mxu0
  %v517 = vpop.f32.mrf.mxu0
  %v518 = vadd.f32 %v453, %v517
  %v519 = vpop.f32.mrf.mxu0
  %520 = vmatprep.mubr.bf16.mxu0 %v198
  %521 = vmatmul.mubr.bf16.gmra.mxu0 %v197
  %v522 = vpop.f32.mrf.mxu0
  %v523 = vadd.f32 %v458, %v522
  %v524 = vpop.f32.mrf.mxu0
  %v525 = vpop.f32.mrf.mxu0
  %v526 = vadd.f32 %v461, %v525
  %v527 = vpop.f32.mrf.mxu0
  %528 = vmatprep.mubr.bf16.mxu0 %v202
  %529 = vmatmul.mubr.bf16.gmra.mxu0 %v201
  %v530 = vpop.f32.mrf.mxu0
  %v531 = vadd.f32 %v466, %v530
  %v532 = vpop.f32.mrf.mxu0
  %v533 = vpop.f32.mrf.mxu0
  %v534 = vadd.f32 %v469, %v533
  %v535 = vpop.f32.mrf.mxu0
  %536 = vmatprep.mubr.bf16.mxu0 %v206
  %537 = vmatmul.mubr.bf16.gmra.mxu0 %v205
  %v538 = vpop.f32.mrf.mxu0
  %v539 = vadd.f32 %v474, %v538
  %v540 = vpop.f32.mrf.mxu0
  %v541 = vpop.f32.mrf.mxu0
  %v542 = vadd.f32 %v477, %v541
  %v543 = vpop.f32.mrf.mxu0
  %544 = vdwg.mxu0
  %v545 = vmax.f32 %v515, 0.0
  %v546 = vmax.f32 %v518, 0.0
  %v547 = vmax.f32 %v523, 0.0
  %v548 = vmax.f32 %v526, 0.0
  %v549 = vmax.f32 %v531, 0.0
  %v550 = vmax.f32 %v534, 0.0
  %v551 = vmax.f32 %v539, 0.0
  %v552 = vmax.f32 %v542, 0.0
  %v553 = vpack.c.bf16 %v546, %v545
  %v554 = vpack.c.bf16 %v548, %v547
  %v555 = vpack.c.bf16 %v550, %v549
  %v556 = vpack.c.bf16 %v552, %v551
  %v561 = vunpack.c.l.b16 %v553
  %v562 = vunpack.c.h.b16 %v553
  %v563 = vunpack.c.l.b16 %v554
  %v564 = vunpack.c.h.b16 %v554
  %v565 = vunpack.c.l.b16 %v555
  %v566 = vunpack.c.h.b16 %v555
  %v567 = vunpack.c.l.b16 %v556
  %v568 = vunpack.c.h.b16 %v556
  %v569 = vpack.c.b16 %v561, %v561
  %v570 = vpack.c.b16 %v562, %v562
  %v571 = vpack.c.b16 %v563, %v563
  %v572 = vpack.c.b16 %v564, %v564
  %v573 = vpack.c.b16 %v565, %v565
  %v574 = vpack.c.b16 %v566, %v566
  %v575 = vpack.c.b16 %v567, %v567
  %v576 = vpack.c.b16 %v568, %v568
  %vm585 = vcmask 584704
  %586 = vst.msk [vmem:[%s3] sm:$0xf] %vm585, %v569
  %587 = vst.msk [vmem:[%s3 + $0x4] sm:$0xf] %vm585, %v570
  %588 = vst.msk [vmem:[%s3 + $0x8] sm:$0xf] %vm585, %v571
  %589 = vst.msk [vmem:[%s3 + $0xc] sm:$0xf] %vm585, %v572
  %590 = vst.msk [vmem:[%s3 + $0x10] sm:$0xf] %vm585, %v573
  %591 = vst.msk [vmem:[%s3 + $0x14] sm:$0xf] %vm585, %v574
  %592 = vst.msk [vmem:[%s3 + $0x18] sm:$0xf] %vm585, %v575
  %593 = vst.msk [vmem:[%s3 + $0x1c] sm:$0xf] %vm585, %v576
  // Predicated region
  $region14: #{forward.11} parent=0 // pred_check
    _
  $region15: #{forward.11} parent=0 // pred_check_branch
    %595 = sbr.rel (0) target = $region17
  $region16: #{forward.11} parent=0 // pred_region
    _
  $region17: #{forward.11} parent=0 // pred_fallthru
    _
  // Predicated region
  $region18: #{forward.11} parent=0 // pred_check
    _
  $region19: #{forward.11} parent=0 // pred_check_branch
    %597 = sbr.rel (0) target = $region21
  $region20: #{forward.11} parent=0 // pred_region
    _
  $region21: #{forward.11} parent=0 // pred_fallthru
    _

// kernel: forward.12
$region0: #{forward.12}
  #allocation0 [shape = 'u32[]', space=smem, size = 0x4, offset = 0x4, fixed_abs, tag = 'smem constant byte address 0x4 - core index']
  #allocation1 [shape = 'u32[144,128]{1,0:T(1,128)}', space=vmem, size = 0x12000, scoped, tag = 'internal scratch']
  %s0 = inlined_call_operand.vmem [shape: bf16[64,1024], index: 0, kind: input, shape index: {}]
  %s1 = inlined_call_operand.vmem [shape: bf16[1024,8], index: 1, kind: input, shape index: {}]
  %s2 = inlined_call_operand.vmem [shape: f32[64,1], index: 2, kind: input, shape index: {}]
  %s3 = inlined_call_operand.vmem [shape: bf16[64,8], index: 3, kind: output, shape index: {}]
  %s4 = sld [smem:[#allocation0]]
  $region22: #{forward.12} parent=0
    _
  %s6 = ssub.s32 1, %s4
  %s7 = scalar_select 0, %s6, %s4
  // Predicated region
  $region2: #{forward.12} parent=0 // pred_check
    _
  $region3: #{forward.12} parent=0 // pred_check_branch
    %9 = sbr.rel (0) target = $region5
  $region4: #{forward.12} parent=0 // pred_region
    _
  $region5: #{forward.12} parent=0 // pred_fallthru
    _
  // Predicated region
  $region6: #{forward.12} parent=0 // pred_check
    _
  $region7: #{forward.12} parent=0 // pred_check_branch
    %11 = sbr.rel (0) target = $region9
  $region8: #{forward.12} parent=0 // pred_region
    _
  $region9: #{forward.12} parent=0 // pred_fallthru
    _
  // Predicated region
  $region10: #{forward.12} parent=0 // pred_check
    _
  $region11: #{forward.12} parent=0 // pred_check_branch
    %13 = sbr.rel (0) target = $region13
  $region12: #{forward.12} parent=0 // pred_region
    _
  $region13: #{forward.12} parent=0 // pred_fallthru
    _
  %v15 = vld [vmem:[%s1] sm:$0xf]
  %v16 = vld [vmem:[%s1 + $0x4] sm:$0xf]
  %v17 = vld [vmem:[%s1 + $0x8] sm:$0xf]
  %v18 = vld [vmem:[%s1 + $0xc] sm:$0xf]
  %v19 = vld [vmem:[%s1 + $0x10] sm:$0xf]
  %v20 = vld [vmem:[%s1 + $0x14] sm:$0xf]
  %v21 = vld [vmem:[%s1 + $0x18] sm:$0xf]
  %v22 = vld [vmem:[%s1 + $0x1c] sm:$0xf]
  %v23 = vld [vmem:[%s1 + $0x20] sm:$0xf]
  %v24 = vld [vmem:[%s1 + $0x24] sm:$0xf]
  %v25 = vld [vmem:[%s1 + $0x28] sm:$0xf]
  %v26 = vld [vmem:[%s1 + $0x2c] sm:$0xf]
  %v27 = vld [vmem:[%s1 + $0x30] sm:$0xf]
  %v28 = vld [vmem:[%s1 + $0x34] sm:$0xf]
  %v29 = vld [vmem:[%s1 + $0x38] sm:$0xf]
  %v30 = vld [vmem:[%s1 + $0x3c] sm:$0xf]
  %v31 = vld [vmem:[%s1 + $0x40] sm:$0xf]
  %v32 = vld [vmem:[%s1 + $0x44] sm:$0xf]
  %v33 = vld [vmem:[%s1 + $0x48] sm:$0xf]
  %v34 = vld [vmem:[%s1 + $0x4c] sm:$0xf]
  %v35 = vld [vmem:[%s1 + $0x50] sm:$0xf]
  %v36 = vld [vmem:[%s1 + $0x54] sm:$0xf]
  %v37 = vld [vmem:[%s1 + $0x58] sm:$0xf]
  %v38 = vld [vmem:[%s1 + $0x5c] sm:$0xf]
  %v39 = vld [vmem:[%s1 + $0x60] sm:$0xf]
  %v40 = vld [vmem:[%s1 + $0x64] sm:$0xf]
  %v41 = vld [vmem:[%s1 + $0x68] sm:$0xf]
  %v42 = vld [vmem:[%s1 + $0x6c] sm:$0xf]
  %v43 = vld [vmem:[%s1 + $0x70] sm:$0xf]
  %v44 = vld [vmem:[%s1 + $0x74] sm:$0xf]
  %v45 = vld [vmem:[%s1 + $0x78] sm:$0xf]
  %v46 = vld [vmem:[%s1 + $0x7c] sm:$0xf]
  %v47 = vld [vmem:[%s1 + $0x80] sm:$0xf]
  %v48 = vld [vmem:[%s1 + $0x84] sm:$0xf]
  %v49 = vld [vmem:[%s1 + $0x88] sm:$0xf]
  %v50 = vld [vmem:[%s1 + $0x8c] sm:$0xf]
  %v51 = vld [vmem:[%s1 + $0x90] sm:$0xf]
  %v52 = vld [vmem:[%s1 + $0x94] sm:$0xf]
  %v53 = vld [vmem:[%s1 + $0x98] sm:$0xf]
  %v54 = vld [vmem:[%s1 + $0x9c] sm:$0xf]
  %v55 = vld [vmem:[%s1 + $0xa0] sm:$0xf]
  %v56 = vld [vmem:[%s1 + $0xa4] sm:$0xf]
  %v57 = vld [vmem:[%s1 + $0xa8] sm:$0xf]
  %v58 = vld [vmem:[%s1 + $0xac] sm:$0xf]
  %v59 = vld [vmem:[%s1 + $0xb0] sm:$0xf]
  %v60 = vld [vmem:[%s1 + $0xb4] sm:$0xf]
  %v61 = vld [vmem:[%s1 + $0xb8] sm:$0xf]
  %v62 = vld [vmem:[%s1 + $0xbc] sm:$0xf]
  %v63 = vld [vmem:[%s1 + $0xc0] sm:$0xf]
  %v64 = vld [vmem:[%s1 + $0xc4] sm:$0xf]
  %v65 = vld [vmem:[%s1 + $0xc8] sm:$0xf]
  %v66 = vld [vmem:[%s1 + $0xcc] sm:$0xf]
  %v67 = vld [vmem:[%s1 + $0xd0] sm:$0xf]
  %v68 = vld [vmem:[%s1 + $0xd4] sm:$0xf]
  %v69 = vld [vmem:[%s1 + $0xd8] sm:$0xf]
  %v70 = vld [vmem:[%s1 + $0xdc] sm:$0xf]
  %v71 = vld [vmem:[%s1 + $0xe0] sm:$0xf]
  %v72 = vld [vmem:[%s1 + $0xe4] sm:$0xf]
  %v73 = vld [vmem:[%s1 + $0xe8] sm:$0xf]
  %v74 = vld [vmem:[%s1 + $0xec] sm:$0xf]
  %v75 = vld [vmem:[%s1 + $0xf0] sm:$0xf]
  %v76 = vld [vmem:[%s1 + $0xf4] sm:$0xf]
  %v77 = vld [vmem:[%s1 + $0xf8] sm:$0xf]
  %v78 = vld [vmem:[%s1 + $0xfc] sm:$0xf]
  %v79 = vld [vmem:[%s1 + $0x100] sm:$0xf]
  %v80 = vld [vmem:[%s1 + $0x104] sm:$0xf]
  %v81 = vld [vmem:[%s1 + $0x108] sm:$0xf]
  %v82 = vld [vmem:[%s1 + $0x10c] sm:$0xf]
  %v83 = vld [vmem:[%s1 + $0x110] sm:$0xf]
  %v84 = vld [vmem:[%s1 + $0x114] sm:$0xf]
  %v85 = vld [vmem:[%s1 + $0x118] sm:$0xf]
  %v86 = vld [vmem:[%s1 + $0x11c] sm:$0xf]
  %v87 = vld [vmem:[%s1 + $0x120] sm:$0xf]
  %v88 = vld [vmem:[%s1 + $0x124] sm:$0xf]
  %v89 = vld [vmem:[%s1 + $0x128] sm:$0xf]
  %v90 = vld [vmem:[%s1 + $0x12c] sm:$0xf]
  %v91 = vld [vmem:[%s1 + $0x130] sm:$0xf]
  %v92 = vld [vmem:[%s1 + $0x134] sm:$0xf]
  %v93 = vld [vmem:[%s1 + $0x138] sm:$0xf]
  %v94 = vld [vmem:[%s1 + $0x13c] sm:$0xf]
  %v95 = vld [vmem:[%s1 + $0x140] sm:$0xf]
  %v96 = vld [vmem:[%s1 + $0x144] sm:$0xf]
  %v97 = vld [vmem:[%s1 + $0x148] sm:$0xf]
  %v98 = vld [vmem:[%s1 + $0x14c] sm:$0xf]
  %v99 = vld [vmem:[%s1 + $0x150] sm:$0xf]
  %v100 = vld [vmem:[%s1 + $0x154] sm:$0xf]
  %v101 = vld [vmem:[%s1 + $0x158] sm:$0xf]
  %v102 = vld [vmem:[%s1 + $0x15c] sm:$0xf]
  %v103 = vld [vmem:[%s1 + $0x160] sm:$0xf]
  %v104 = vld [vmem:[%s1 + $0x164] sm:$0xf]
  %v105 = vld [vmem:[%s1 + $0x168] sm:$0xf]
  %v106 = vld [vmem:[%s1 + $0x16c] sm:$0xf]
  %v107 = vld [vmem:[%s1 + $0x170] sm:$0xf]
  %v108 = vld [vmem:[%s1 + $0x174] sm:$0xf]
  %v109 = vld [vmem:[%s1 + $0x178] sm:$0xf]
  %v110 = vld [vmem:[%s1 + $0x17c] sm:$0xf]
  %v111 = vld [vmem:[%s1 + $0x180] sm:$0xf]
  %v112 = vld [vmem:[%s1 + $0x184] sm:$0xf]
  %v113 = vld [vmem:[%s1 + $0x188] sm:$0xf]
  %v114 = vld [vmem:[%s1 + $0x18c] sm:$0xf]
  %v115 = vld [vmem:[%s1 + $0x190] sm:$0xf]
  %v116 = vld [vmem:[%s1 + $0x194] sm:$0xf]
  %v117 = vld [vmem:[%s1 + $0x198] sm:$0xf]
  %v118 = vld [vmem:[%s1 + $0x19c] sm:$0xf]
  %v119 = vld [vmem:[%s1 + $0x1a0] sm:$0xf]
  %v120 = vld [vmem:[%s1 + $0x1a4] sm:$0xf]
  %v121 = vld [vmem:[%s1 + $0x1a8] sm:$0xf]
  %v122 = vld [vmem:[%s1 + $0x1ac] sm:$0xf]
  %v123 = vld [vmem:[%s1 + $0x1b0] sm:$0xf]
  %v124 = vld [vmem:[%s1 + $0x1b4] sm:$0xf]
  %v125 = vld [vmem:[%s1 + $0x1b8] sm:$0xf]
  %v126 = vld [vmem:[%s1 + $0x1bc] sm:$0xf]
  %v127 = vld [vmem:[%s1 + $0x1c0] sm:$0xf]
  %v128 = vld [vmem:[%s1 + $0x1c4] sm:$0xf]
  %v129 = vld [vmem:[%s1 + $0x1c8] sm:$0xf]
  %v130 = vld [vmem:[%s1 + $0x1cc] sm:$0xf]
  %v131 = vld [vmem:[%s1 + $0x1d0] sm:$0xf]
  %v132 = vld [vmem:[%s1 + $0x1d4] sm:$0xf]
  %v133 = vld [vmem:[%s1 + $0x1d8] sm:$0xf]
  %v134 = vld [vmem:[%s1 + $0x1dc] sm:$0xf]
  %v135 = vld [vmem:[%s1 + $0x1e0] sm:$0xf]
  %v136 = vld [vmem:[%s1 + $0x1e4] sm:$0xf]
  %v137 = vld [vmem:[%s1 + $0x1e8] sm:$0xf]
  %v138 = vld [vmem:[%s1 + $0x1ec] sm:$0xf]
  %v139 = vld [vmem:[%s1 + $0x1f0] sm:$0xf]
  %v140 = vld [vmem:[%s1 + $0x1f4] sm:$0xf]
  %v141 = vld [vmem:[%s1 + $0x1f8] sm:$0xf]
  %v142 = vld [vmem:[%s1 + $0x1fc] sm:$0xf]
  %v143 = vld [vmem:[%s0] sm:$0xff]
  %v144 = vld [vmem:[%s0 + $0x8] sm:$0xff]
  %v145 = vld [vmem:[%s0 + $0x10] sm:$0xff]
  %v146 = vld [vmem:[%s0 + $0x18] sm:$0xff]
  %v147 = vld [vmem:[%s0 + $0x20] sm:$0xff]
  %v148 = vld [vmem:[%s0 + $0x28] sm:$0xff]
  %v149 = vld [vmem:[%s0 + $0x30] sm:$0xff]
  %v150 = vld [vmem:[%s0 + $0x38] sm:$0xff]
  %v151 = vld [vmem:[%s0 + $0x40] sm:$0xff]
  %v152 = vld [vmem:[%s0 + $0x48] sm:$0xff]
  %v153 = vld [vmem:[%s0 + $0x50] sm:$0xff]
  %v154 = vld [vmem:[%s0 + $0x58] sm:$0xff]
  %v155 = vld [vmem:[%s0 + $0x60] sm:$0xff]
  %v156 = vld [vmem:[%s0 + $0x68] sm:$0xff]
  %v157 = vld [vmem:[%s0 + $0x70] sm:$0xff]
  %v158 = vld [vmem:[%s0 + $0x78] sm:$0xff]
  %v159 = vld [vmem:[%s0 + $0x80] sm:$0xff]
  %v160 = vld [vmem:[%s0 + $0x88] sm:$0xff]
  %v161 = vld [vmem:[%s0 + $0x90] sm:$0xff]
  %v162 = vld [vmem:[%s0 + $0x98] sm:$0xff]
  %v163 = vld [vmem:[%s0 + $0xa0] sm:$0xff]
  %v164 = vld [vmem:[%s0 + $0xa8] sm:$0xff]
  %v165 = vld [vmem:[%s0 + $0xb0] sm:$0xff]
  %v166 = vld [vmem:[%s0 + $0xb8] sm:$0xff]
  %v167 = vld [vmem:[%s0 + $0xc0] sm:$0xff]
  %v168 = vld [vmem:[%s0 + $0xc8] sm:$0xff]
  %v169 = vld [vmem:[%s0 + $0xd0] sm:$0xff]
  %v170 = vld [vmem:[%s0 + $0xd8] sm:$0xff]
  %v171 = vld [vmem:[%s0 + $0xe0] sm:$0xff]
  %v172 = vld [vmem:[%s0 + $0xe8] sm:$0xff]
  %v173 = vld [vmem:[%s0 + $0xf0] sm:$0xff]
  %v174 = vld [vmem:[%s0 + $0xf8] sm:$0xff]
  %v175 = vld [vmem:[%s2] sm:$0xff]
  %v176 = vld [vmem:[%s2 + $0x8] sm:$0xff]
  %v177 = vld [vmem:[%s2 + $0x10] sm:$0xff]
  %v178 = vld [vmem:[%s2 + $0x18] sm:$0xff]
  %v179 = vld [vmem:[%s2 + $0x20] sm:$0xff]
  %v180 = vld [vmem:[%s2 + $0x28] sm:$0xff]
  %v181 = vld [vmem:[%s2 + $0x30] sm:$0xff]
  %v182 = vld [vmem:[%s2 + $0x38] sm:$0xff]
  %184 = vset.pattern.permute.xlu0 0
  %185 = vperm.xlu0 %184, %v175
  %v186 = vpop.permute.xlu0 %185
  %189 = vset.pattern.permute.xlu0 0
  %190 = vperm.xlu0 %189, %v176
  %v191 = vpop.permute.xlu0 %190
  %194 = vset.pattern.permute.xlu0 0
  %195 = vperm.xlu0 %194, %v177
  %v196 = vpop.permute.xlu0 %195
  %199 = vset.pattern.permute.xlu0 0
  %200 = vperm.xlu0 %199, %v178
  %v201 = vpop.permute.xlu0 %200
  %204 = vset.pattern.permute.xlu0 0
  %205 = vperm.xlu0 %204, %v179
  %v206 = vpop.permute.xlu0 %205
  %209 = vset.pattern.permute.xlu0 0
  %210 = vperm.xlu0 %209, %v180
  %v211 = vpop.permute.xlu0 %210
  %214 = vset.pattern.permute.xlu0 0
  %215 = vperm.xlu0 %214, %v181
  %v216 = vpop.permute.xlu0 %215
  %219 = vset.pattern.permute.xlu0 0
  %220 = vperm.xlu0 %219, %v182
  %v221 = vpop.permute.xlu0 %220
  %v255 = vunpack.c.l.b16 %v143
  %v256 = vunpack.c.h.b16 %v143
  %v257 = vunpack.c.l.b16 %v144
  %v258 = vunpack.c.h.b16 %v144
  %v259 = vunpack.c.l.b16 %v145
  %v260 = vunpack.c.h.b16 %v145
  %v261 = vunpack.c.l.b16 %v146
  %v262 = vunpack.c.h.b16 %v146
  %v263 = vunpack.c.l.b16 %v147
  %v264 = vunpack.c.h.b16 %v147
  %v265 = vunpack.c.l.b16 %v148
  %v266 = vunpack.c.h.b16 %v148
  %v267 = vunpack.c.l.b16 %v149
  %v268 = vunpack.c.h.b16 %v149
  %v269 = vunpack.c.l.b16 %v150
  %v270 = vunpack.c.h.b16 %v150
  %v271 = vunpack.c.l.b16 %v151
  %v272 = vunpack.c.h.b16 %v151
  %v273 = vunpack.c.l.b16 %v152
  %v274 = vunpack.c.h.b16 %v152
  %v275 = vunpack.c.l.b16 %v153
  %v276 = vunpack.c.h.b16 %v153
  %v277 = vunpack.c.l.b16 %v154
  %v278 = vunpack.c.h.b16 %v154
  %v279 = vunpack.c.l.b16 %v155
  %v280 = vunpack.c.h.b16 %v155
  %v281 = vunpack.c.l.b16 %v156
  %v282 = vunpack.c.h.b16 %v156
  %v283 = vunpack.c.l.b16 %v157
  %v284 = vunpack.c.h.b16 %v157
  %v285 = vunpack.c.l.b16 %v158
  %v286 = vunpack.c.h.b16 %v158
  %v287 = vunpack.c.l.b16 %v159
  %v288 = vunpack.c.h.b16 %v159
  %v289 = vunpack.c.l.b16 %v160
  %v290 = vunpack.c.h.b16 %v160
  %v291 = vunpack.c.l.b16 %v161
  %v292 = vunpack.c.h.b16 %v161
  %v293 = vunpack.c.l.b16 %v162
  %v294 = vunpack.c.h.b16 %v162
  %v295 = vunpack.c.l.b16 %v163
  %v296 = vunpack.c.h.b16 %v163
  %v297 = vunpack.c.l.b16 %v164
  %v298 = vunpack.c.h.b16 %v164
  %v299 = vunpack.c.l.b16 %v165
  %v300 = vunpack.c.h.b16 %v165
  %v301 = vunpack.c.l.b16 %v166
  %v302 = vunpack.c.h.b16 %v166
  %v303 = vunpack.c.l.b16 %v167
  %v304 = vunpack.c.h.b16 %v167
  %v305 = vunpack.c.l.b16 %v168
  %v306 = vunpack.c.h.b16 %v168
  %v307 = vunpack.c.l.b16 %v169
  %v308 = vunpack.c.h.b16 %v169
  %v309 = vunpack.c.l.b16 %v170
  %v310 = vunpack.c.h.b16 %v170
  %v311 = vunpack.c.l.b16 %v171
  %v312 = vunpack.c.h.b16 %v171
  %v313 = vunpack.c.l.b16 %v172
  %v314 = vunpack.c.h.b16 %v172
  %v315 = vunpack.c.l.b16 %v173
  %v316 = vunpack.c.h.b16 %v173
  %v317 = vunpack.c.l.b16 %v174
  %v318 = vunpack.c.h.b16 %v174
  %v319 = vpack.c.b16 %v263, %v255
  %v320 = vpack.c.b16 %v264, %v256
  %v321 = vpack.c.b16 %v265, %v257
  %v322 = vpack.c.b16 %v266, %v258
  %v323 = vpack.c.b16 %v267, %v259
  %v324 = vpack.c.b16 %v268, %v260
  %v325 = vpack.c.b16 %v269, %v261
  %v326 = vpack.c.b16 %v270, %v262
  %v327 = vpack.c.b16 %v279, %v271
  %v328 = vpack.c.b16 %v280, %v272
  %v329 = vpack.c.b16 %v281, %v273
  %v330 = vpack.c.b16 %v282, %v274
  %v331 = vpack.c.b16 %v283, %v275
  %v332 = vpack.c.b16 %v284, %v276
  %v333 = vpack.c.b16 %v285, %v277
  %v334 = vpack.c.b16 %v286, %v278
  %v335 = vpack.c.b16 %v295, %v287
  %v336 = vpack.c.b16 %v296, %v288
  %v337 = vpack.c.b16 %v297, %v289
  %v338 = vpack.c.b16 %v298, %v290
  %v339 = vpack.c.b16 %v299, %v291
  %v340 = vpack.c.b16 %v300, %v292
  %v341 = vpack.c.b16 %v301, %v293
  %v342 = vpack.c.b16 %v302, %v294
  %v343 = vpack.c.b16 %v311, %v303
  %v344 = vpack.c.b16 %v312, %v304
  %v345 = vpack.c.b16 %v313, %v305
  %v346 = vpack.c.b16 %v314, %v306
  %v347 = vpack.c.b16 %v315, %v307
  %v348 = vpack.c.b16 %v316, %v308
  %v349 = vpack.c.b16 %v317, %v309
  %v350 = vpack.c.b16 %v318, %v310
  %v511 = vunpack.c.l.b16 %v15
  %v512 = vunpack.c.l.b16 %v16
  %v513 = vunpack.c.l.b16 %v17
  %v514 = vunpack.c.l.b16 %v18
  %v515 = vunpack.c.l.b16 %v19
  %v516 = vunpack.c.l.b16 %v20
  %v517 = vunpack.c.l.b16 %v21
  %v518 = vunpack.c.l.b16 %v22
  %v519 = vunpack.c.l.b16 %v23
  %v520 = vunpack.c.l.b16 %v24
  %v521 = vunpack.c.l.b16 %v25
  %v522 = vunpack.c.l.b16 %v26
  %v523 = vunpack.c.l.b16 %v27
  %v524 = vunpack.c.l.b16 %v28
  %v525 = vunpack.c.l.b16 %v29
  %v526 = vunpack.c.l.b16 %v30
  %v527 = vunpack.c.l.b16 %v31
  %v528 = vunpack.c.l.b16 %v32
  %v529 = vunpack.c.l.b16 %v33
  %v530 = vunpack.c.l.b16 %v34
  %v531 = vunpack.c.l.b16 %v35
  %v532 = vunpack.c.l.b16 %v36
  %v533 = vunpack.c.l.b16 %v37
  %v534 = vunpack.c.l.b16 %v38
  %v535 = vunpack.c.l.b16 %v39
  %v536 = vunpack.c.l.b16 %v40
  %v537 = vunpack.c.l.b16 %v41
  %v538 = vunpack.c.l.b16 %v42
  %v539 = vunpack.c.l.b16 %v43
  %v540 = vunpack.c.l.b16 %v44
  %v541 = vunpack.c.l.b16 %v45
  %v542 = vunpack.c.l.b16 %v46
  %v543 = vunpack.c.l.b16 %v47
  %v544 = vunpack.c.l.b16 %v48
  %v545 = vunpack.c.l.b16 %v49
  %v546 = vunpack.c.l.b16 %v50
  %v547 = vunpack.c.l.b16 %v51
  %v548 = vunpack.c.l.b16 %v52
  %v549 = vunpack.c.l.b16 %v53
  %v550 = vunpack.c.l.b16 %v54
  %v551 = vunpack.c.l.b16 %v55
  %v552 = vunpack.c.l.b16 %v56
  %v553 = vunpack.c.l.b16 %v57
  %v554 = vunpack.c.l.b16 %v58
  %v555 = vunpack.c.l.b16 %v59
  %v556 = vunpack.c.l.b16 %v60
  %v557 = vunpack.c.l.b16 %v61
  %v558 = vunpack.c.l.b16 %v62
  %v559 = vunpack.c.l.b16 %v63
  %v560 = vunpack.c.l.b16 %v64
  %v561 = vunpack.c.l.b16 %v65
  %v562 = vunpack.c.l.b16 %v66
  %v563 = vunpack.c.l.b16 %v67
  %v564 = vunpack.c.l.b16 %v68
  %v565 = vunpack.c.l.b16 %v69
  %v566 = vunpack.c.l.b16 %v70
  %v567 = vunpack.c.l.b16 %v71
  %v568 = vunpack.c.l.b16 %v72
  %v569 = vunpack.c.l.b16 %v73
  %v570 = vunpack.c.l.b16 %v74
  %v571 = vunpack.c.l.b16 %v75
  %v572 = vunpack.c.l.b16 %v76
  %v573 = vunpack.c.l.b16 %v77
  %v574 = vunpack.c.l.b16 %v78
  %v575 = vunpack.c.l.b16 %v79
  %v576 = vunpack.c.l.b16 %v80
  %v577 = vunpack.c.l.b16 %v81
  %v578 = vunpack.c.l.b16 %v82
  %v579 = vunpack.c.l.b16 %v83
  %v580 = vunpack.c.l.b16 %v84
  %v581 = vunpack.c.l.b16 %v85
  %v582 = vunpack.c.l.b16 %v86
  %v583 = vunpack.c.l.b16 %v87
  %v584 = vunpack.c.l.b16 %v88
  %v585 = vunpack.c.l.b16 %v89
  %v586 = vunpack.c.l.b16 %v90
  %v587 = vunpack.c.l.b16 %v91
  %v588 = vunpack.c.l.b16 %v92
  %v589 = vunpack.c.l.b16 %v93
  %v590 = vunpack.c.l.b16 %v94
  %v591 = vunpack.c.l.b16 %v95
  %v592 = vunpack.c.l.b16 %v96
  %v593 = vunpack.c.l.b16 %v97
  %v594 = vunpack.c.l.b16 %v98
  %v595 = vunpack.c.l.b16 %v99
  %v596 = vunpack.c.l.b16 %v100
  %v597 = vunpack.c.l.b16 %v101
  %v598 = vunpack.c.l.b16 %v102
  %v599 = vunpack.c.l.b16 %v103
  %v600 = vunpack.c.l.b16 %v104
  %v601 = vunpack.c.l.b16 %v105
  %v602 = vunpack.c.l.b16 %v106
  %v603 = vunpack.c.l.b16 %v107
  %v604 = vunpack.c.l.b16 %v108
  %v605 = vunpack.c.l.b16 %v109
  %v606 = vunpack.c.l.b16 %v110
  %v607 = vunpack.c.l.b16 %v111
  %v608 = vunpack.c.l.b16 %v112
  %v609 = vunpack.c.l.b16 %v113
  %v610 = vunpack.c.l.b16 %v114
  %v611 = vunpack.c.l.b16 %v115
  %v612 = vunpack.c.l.b16 %v116
  %v613 = vunpack.c.l.b16 %v117
  %v614 = vunpack.c.l.b16 %v118
  %v615 = vunpack.c.l.b16 %v119
  %v616 = vunpack.c.l.b16 %v120
  %v617 = vunpack.c.l.b16 %v121
  %v618 = vunpack.c.l.b16 %v122
  %v619 = vunpack.c.l.b16 %v123
  %v620 = vunpack.c.l.b16 %v124
  %v621 = vunpack.c.l.b16 %v125
  %v622 = vunpack.c.l.b16 %v126
  %v623 = vunpack.c.l.b16 %v127
  %v624 = vunpack.c.l.b16 %v128
  %v625 = vunpack.c.l.b16 %v129
  %v626 = vunpack.c.l.b16 %v130
  %v627 = vunpack.c.l.b16 %v131
  %v628 = vunpack.c.l.b16 %v132
  %v629 = vunpack.c.l.b16 %v133
  %v630 = vunpack.c.l.b16 %v134
  %v631 = vunpack.c.l.b16 %v135
  %v632 = vunpack.c.l.b16 %v136
  %v633 = vunpack.c.l.b16 %v137
  %v634 = vunpack.c.l.b16 %v138
  %v635 = vunpack.c.l.b16 %v139
  %v636 = vunpack.c.l.b16 %v140
  %v637 = vunpack.c.l.b16 %v141
  %v638 = vunpack.c.l.b16 %v142
  %v639 = vpack.c.b16 %v512, %v511
  %v640 = vpack.c.b16 %v514, %v513
  %v641 = vpack.c.b16 %v516, %v515
  %v642 = vpack.c.b16 %v518, %v517
  %v643 = vpack.c.b16 %v520, %v519
  %v644 = vpack.c.b16 %v522, %v521
  %v645 = vpack.c.b16 %v524, %v523
  %v646 = vpack.c.b16 %v526, %v525
  %v647 = vpack.c.b16 %v528, %v527
  %v648 = vpack.c.b16 %v530, %v529
  %v649 = vpack.c.b16 %v532, %v531
  %v650 = vpack.c.b16 %v534, %v533
  %v651 = vpack.c.b16 %v536, %v535
  %v652 = vpack.c.b16 %v538, %v537
  %v653 = vpack.c.b16 %v540, %v539
  %v654 = vpack.c.b16 %v542, %v541
  %v655 = vpack.c.b16 %v544, %v543
  %v656 = vpack.c.b16 %v546, %v545
  %v657 = vpack.c.b16 %v548, %v547
  %v658 = vpack.c.b16 %v550, %v549
  %v659 = vpack.c.b16 %v552, %v551
  %v660 = vpack.c.b16 %v554, %v553
  %v661 = vpack.c.b16 %v556, %v555
  %v662 = vpack.c.b16 %v558, %v557
  %v663 = vpack.c.b16 %v560, %v559
  %v664 = vpack.c.b16 %v562, %v561
  %v665 = vpack.c.b16 %v564, %v563
  %v666 = vpack.c.b16 %v566, %v565
  %v667 = vpack.c.b16 %v568, %v567
  %v668 = vpack.c.b16 %v570, %v569
  %v669 = vpack.c.b16 %v572, %v571
  %v670 = vpack.c.b16 %v574, %v573
  %v671 = vpack.c.b16 %v576, %v575
  %v672 = vpack.c.b16 %v578, %v577
  %v673 = vpack.c.b16 %v580, %v579
  %v674 = vpack.c.b16 %v582, %v581
  %v675 = vpack.c.b16 %v584, %v583
  %v676 = vpack.c.b16 %v586, %v585
  %v677 = vpack.c.b16 %v588, %v587
  %v678 = vpack.c.b16 %v590, %v589
  %v679 = vpack.c.b16 %v592, %v591
  %v680 = vpack.c.b16 %v594, %v593
  %v681 = vpack.c.b16 %v596, %v595
  %v682 = vpack.c.b16 %v598, %v597
  %v683 = vpack.c.b16 %v600, %v599
  %v684 = vpack.c.b16 %v602, %v601
  %v685 = vpack.c.b16 %v604, %v603
  %v686 = vpack.c.b16 %v606, %v605
  %v687 = vpack.c.b16 %v608, %v607
  %v688 = vpack.c.b16 %v610, %v609
  %v689 = vpack.c.b16 %v612, %v611
  %v690 = vpack.c.b16 %v614, %v613
  %v691 = vpack.c.b16 %v616, %v615
  %v692 = vpack.c.b16 %v618, %v617
  %v693 = vpack.c.b16 %v620, %v619
  %v694 = vpack.c.b16 %v622, %v621
  %v695 = vpack.c.b16 %v624, %v623
  %v696 = vpack.c.b16 %v626, %v625
  %v697 = vpack.c.b16 %v628, %v627
  %v698 = vpack.c.b16 %v630, %v629
  %v699 = vpack.c.b16 %v632, %v631
  %v700 = vpack.c.b16 %v634, %v633
  %v701 = vpack.c.b16 %v636, %v635
  %v702 = vpack.c.b16 %v638, %v637
  %767 = vmatprep.subr.bf16.mxu0 0
  %768 = vmatpush1.bf16.msra.mxu0 %v646
  %769 = vmatprep.subr.bf16.mxu0 0
  %770 = vmatpush1.bf16.msra.mxu0 %v645
  %771 = vmatprep.subr.bf16.mxu0 0
  %772 = vmatpush1.bf16.msra.mxu0 %v644
  %773 = vmatprep.subr.bf16.mxu0 0
  %774 = vmatpush1.bf16.msra.mxu0 %v643
  %775 = vmatprep.subr.bf16.mxu0 0
  %776 = vmatpush1.bf16.msra.mxu0 %v642
  %777 = vmatprep.subr.bf16.mxu0 0
  %778 = vmatpush1.bf16.msra.mxu0 %v641
  %779 = vmatprep.subr.bf16.mxu0 0
  %780 = vmatpush1.bf16.msra.mxu0 %v640
  %781 = vmatprep.subr.bf16.mxu0 0
  %782 = vmatpush1.bf16.msra.mxu0 %v639
  %783 = vmatprep.subr.bf16.mxu0 0
  %784 = vmatpush2.bf16.msra.mxu0 %v654
  %785 = vmatprep.subr.bf16.mxu0 0
  %786 = vmatpush2.bf16.msra.mxu0 %v653
  %787 = vmatprep.subr.bf16.mxu0 0
  %788 = vmatpush2.bf16.msra.mxu0 %v652
  %789 = vmatprep.subr.bf16.mxu0 0
  %790 = vmatpush2.bf16.msra.mxu0 %v651
  %791 = vmatprep.subr.bf16.mxu0 0
  %792 = vmatpush2.bf16.msra.mxu0 %v650
  %793 = vmatprep.subr.bf16.mxu0 0
  %794 = vmatpush2.bf16.msra.mxu0 %v649
  %795 = vmatprep.subr.bf16.mxu0 0
  %796 = vmatpush2.bf16.msra.mxu0 %v648
  %797 = vmatprep.subr.bf16.mxu0 0
  %798 = vmatpush2.bf16.msra.mxu0 %v647
  %799 = vmatprep.mubr.bf16.mxu0 %v320
  %800 = vmatmul.mubr.bf16.gmra.mxu0 %v319
  %v801 = vpop.f32.mrf.mxu0
  %v802 = vadd.f32 %v186, %v801
  %v803 = vpop.f32.mrf.mxu0
  %v804 = vpop.f32.mrf.mxu0
  %v805 = vadd.f32 %v191, %v804
  %v806 = vpop.f32.mrf.mxu0
  %807 = vmatprep.mubr.bf16.mxu0 %v328
  %808 = vmatmul.mubr.bf16.gmra.mxu0 %v327
  %v809 = vpop.f32.mrf.mxu0
  %v810 = vadd.f32 %v196, %v809
  %v811 = vpop.f32.mrf.mxu0
  %v812 = vpop.f32.mrf.mxu0
  %v813 = vadd.f32 %v201, %v812
  %v814 = vpop.f32.mrf.mxu0
  %815 = vmatprep.mubr.bf16.mxu0 %v336
  %816 = vmatmul.mubr.bf16.gmra.mxu0 %v335
  %v817 = vpop.f32.mrf.mxu0
  %v818 = vadd.f32 %v206, %v817
  %v819 = vpop.f32.mrf.mxu0
  %v820 = vpop.f32.mrf.mxu0
  %v821 = vadd.f32 %v211, %v820
  %v822 = vpop.f32.mrf.mxu0
  %823 = vmatprep.mubr.bf16.mxu0 %v344
  %824 = vmatmul.mubr.bf16.gmra.mxu0 %v343
  %v825 = vpop.f32.mrf.mxu0
  %v826 = vadd.f32 %v216, %v825
  %v827 = vpop.f32.mrf.mxu0
  %v828 = vpop.f32.mrf.mxu0
  %v829 = vadd.f32 %v221, %v828
  %v830 = vpop.f32.mrf.mxu0
  %831 = vdwg.mxu0
  %832 = vmatprep.subr.bf16.mxu0 0
  %833 = vmatpush1.bf16.msra.mxu0 %v662
  %834 = vmatprep.subr.bf16.mxu0 0
  %835 = vmatpush1.bf16.msra.mxu0 %v661
  %836 = vmatprep.subr.bf16.mxu0 0
  %837 = vmatpush1.bf16.msra.mxu0 %v660
  %838 = vmatprep.subr.bf16.mxu0 0
  %839 = vmatpush1.bf16.msra.mxu0 %v659
  %840 = vmatprep.subr.bf16.mxu0 0
  %841 = vmatpush1.bf16.msra.mxu0 %v658
  %842 = vmatprep.subr.bf16.mxu0 0
  %843 = vmatpush1.bf16.msra.mxu0 %v657
  %844 = vmatprep.subr.bf16.mxu0 0
  %845 = vmatpush1.bf16.msra.mxu0 %v656
  %846 = vmatprep.subr.bf16.mxu0 0
  %847 = vmatpush1.bf16.msra.mxu0 %v655
  %848 = vmatprep.subr.bf16.mxu0 0
  %849 = vmatpush2.bf16.msra.mxu0 %v670
  %850 = vmatprep.subr.bf16.mxu0 0
  %851 = vmatpush2.bf16.msra.mxu0 %v669
  %852 = vmatprep.subr.bf16.mxu0 0
  %853 = vmatpush2.bf16.msra.mxu0 %v668
  %854 = vmatprep.subr.bf16.mxu0 0
  %855 = vmatpush2.bf16.msra.mxu0 %v667
  %856 = vmatprep.subr.bf16.mxu0 0
  %857 = vmatpush2.bf16.msra.mxu0 %v666
  %858 = vmatprep.subr.bf16.mxu0 0
  %859 = vmatpush2.bf16.msra.mxu0 %v665
  %860 = vmatprep.subr.bf16.mxu0 0
  %861 = vmatpush2.bf16.msra.mxu0 %v664
  %862 = vmatprep.subr.bf16.mxu0 0
  %863 = vmatpush2.bf16.msra.mxu0 %v663
  %864 = vmatprep.mubr.bf16.mxu0 %v322
  %865 = vmatmul.mubr.bf16.gmra.mxu0 %v321
  %v866 = vpop.f32.mrf.mxu0
  %v867 = vadd.f32 %v802, %v866
  %v868 = vpop.f32.mrf.mxu0
  %v869 = vpop.f32.mrf.mxu0
  %v870 = vadd.f32 %v805, %v869
  %v871 = vpop.f32.mrf.mxu0
  %872 = vmatprep.mubr.bf16.mxu0 %v330
  %873 = vmatmul.mubr.bf16.gmra.mxu0 %v329
  %v874 = vpop.f32.mrf.mxu0
  %v875 = vadd.f32 %v810, %v874
  %v876 = vpop.f32.mrf.mxu0
  %v877 = vpop.f32.mrf.mxu0
  %v878 = vadd.f32 %v813, %v877
  %v879 = vpop.f32.mrf.mxu0
  %880 = vmatprep.mubr.bf16.mxu0 %v338
  %881 = vmatmul.mubr.bf16.gmra.mxu0 %v337
  %v882 = vpop.f32.mrf.mxu0
  %v883 = vadd.f32 %v818, %v882
  %v884 = vpop.f32.mrf.mxu0
  %v885 = vpop.f32.mrf.mxu0
  %v886 = vadd.f32 %v821, %v885
  %v887 = vpop.f32.mrf.mxu0
  %888 = vmatprep.mubr.bf16.mxu0 %v346
  %889 = vmatmul.mubr.bf16.gmra.mxu0 %v345
  %v890 = vpop.f32.mrf.mxu0
  %v891 = vadd.f32 %v826, %v890
  %v892 = vpop.f32.mrf.mxu0
  %v893 = vpop.f32.mrf.mxu0
  %v894 = vadd.f32 %v829, %v893
  %v895 = vpop.f32.mrf.mxu0
  %896 = vdwg.mxu0
  %897 = vmatprep.subr.bf16.mxu0 0
  %898 = vmatpush1.bf16.msra.mxu0 %v678
  %899 = vmatprep.subr.bf16.mxu0 0
  %900 = vmatpush1.bf16.msra.mxu0 %v677
  %901 = vmatprep.subr.bf16.mxu0 0
  %902 = vmatpush1.bf16.msra.mxu0 %v676
  %903 = vmatprep.subr.bf16.mxu0 0
  %904 = vmatpush1.bf16.msra.mxu0 %v675
  %905 = vmatprep.subr.bf16.mxu0 0
  %906 = vmatpush1.bf16.msra.mxu0 %v674
  %907 = vmatprep.subr.bf16.mxu0 0
  %908 = vmatpush1.bf16.msra.mxu0 %v673
  %909 = vmatprep.subr.bf16.mxu0 0
  %910 = vmatpush1.bf16.msra.mxu0 %v672
  %911 = vmatprep.subr.bf16.mxu0 0
  %912 = vmatpush1.bf16.msra.mxu0 %v671
  %913 = vmatprep.subr.bf16.mxu0 0
  %914 = vmatpush2.bf16.msra.mxu0 %v686
  %915 = vmatprep.subr.bf16.mxu0 0
  %916 = vmatpush2.bf16.msra.mxu0 %v685
  %917 = vmatprep.subr.bf16.mxu0 0
  %918 = vmatpush2.bf16.msra.mxu0 %v684
  %919 = vmatprep.subr.bf16.mxu0 0
  %920 = vmatpush2.bf16.msra.mxu0 %v683
  %921 = vmatprep.subr.bf16.mxu0 0
  %922 = vmatpush2.bf16.msra.mxu0 %v682
  %923 = vmatprep.subr.bf16.mxu0 0
  %924 = vmatpush2.bf16.msra.mxu0 %v681
  %925 = vmatprep.subr.bf16.mxu0 0
  %926 = vmatpush2.bf16.msra.mxu0 %v680
  %927 = vmatprep.subr.bf16.mxu0 0
  %928 = vmatpush2.bf16.msra.mxu0 %v679
  %929 = vmatprep.mubr.bf16.mxu0 %v324
  %930 = vmatmul.mubr.bf16.gmra.mxu0 %v323
  %v931 = vpop.f32.mrf.mxu0
  %v932 = vadd.f32 %v867, %v931
  %v933 = vpop.f32.mrf.mxu0
  %v934 = vpop.f32.mrf.mxu0
  %v935 = vadd.f32 %v870, %v934
  %v936 = vpop.f32.mrf.mxu0
  %937 = vmatprep.mubr.bf16.mxu0 %v332
  %938 = vmatmul.mubr.bf16.gmra.mxu0 %v331
  %v939 = vpop.f32.mrf.mxu0
  %v940 = vadd.f32 %v875, %v939
  %v941 = vpop.f32.mrf.mxu0
  %v942 = vpop.f32.mrf.mxu0
  %v943 = vadd.f32 %v878, %v942
  %v944 = vpop.f32.mrf.mxu0
  %945 = vmatprep.mubr.bf16.mxu0 %v340
  %946 = vmatmul.mubr.bf16.gmra.mxu0 %v339
  %v947 = vpop.f32.mrf.mxu0
  %v948 = vadd.f32 %v883, %v947
  %v949 = vpop.f32.mrf.mxu0
  %v950 = vpop.f32.mrf.mxu0
  %v951 = vadd.f32 %v886, %v950
  %v952 = vpop.f32.mrf.mxu0
  %953 = vmatprep.mubr.bf16.mxu0 %v348
  %954 = vmatmul.mubr.bf16.gmra.mxu0 %v347
  %v955 = vpop.f32.mrf.mxu0
  %v956 = vadd.f32 %v891, %v955
  %v957 = vpop.f32.mrf.mxu0
  %v958 = vpop.f32.mrf.mxu0
  %v959 = vadd.f32 %v894, %v958
  %v960 = vpop.f32.mrf.mxu0
  %961 = vdwg.mxu0
  %962 = vmatprep.subr.bf16.mxu0 0
  %963 = vmatpush1.bf16.msra.mxu0 %v694
  %964 = vmatprep.subr.bf16.mxu0 0
  %965 = vmatpush1.bf16.msra.mxu0 %v693
  %966 = vmatprep.subr.bf16.mxu0 0
  %967 = vmatpush1.bf16.msra.mxu0 %v692
  %968 = vmatprep.subr.bf16.mxu0 0
  %969 = vmatpush1.bf16.msra.mxu0 %v691
  %970 = vmatprep.subr.bf16.mxu0 0
  %971 = vmatpush1.bf16.msra.mxu0 %v690
  %972 = vmatprep.subr.bf16.mxu0 0
  %973 = vmatpush1.bf16.msra.mxu0 %v689
  %974 = vmatprep.subr.bf16.mxu0 0
  %975 = vmatpush1.bf16.msra.mxu0 %v688
  %976 = vmatprep.subr.bf16.mxu0 0
  %977 = vmatpush1.bf16.msra.mxu0 %v687
  %978 = vmatprep.subr.bf16.mxu0 0
  %979 = vmatpush2.bf16.msra.mxu0 %v702
  %980 = vmatprep.subr.bf16.mxu0 0
  %981 = vmatpush2.bf16.msra.mxu0 %v701
  %982 = vmatprep.subr.bf16.mxu0 0
  %983 = vmatpush2.bf16.msra.mxu0 %v700
  %984 = vmatprep.subr.bf16.mxu0 0
  %985 = vmatpush2.bf16.msra.mxu0 %v699
  %986 = vmatprep.subr.bf16.mxu0 0
  %987 = vmatpush2.bf16.msra.mxu0 %v698
  %988 = vmatprep.subr.bf16.mxu0 0
  %989 = vmatpush2.bf16.msra.mxu0 %v697
  %990 = vmatprep.subr.bf16.mxu0 0
  %991 = vmatpush2.bf16.msra.mxu0 %v696
  %992 = vmatprep.subr.bf16.mxu0 0
  %993 = vmatpush2.bf16.msra.mxu0 %v695
  %994 = vmatprep.mubr.bf16.mxu0 %v326
  %995 = vmatmul.mubr.bf16.gmra.mxu0 %v325
  %v996 = vpop.f32.mrf.mxu0
  %v997 = vadd.f32 %v932, %v996
  %v998 = vpop.f32.mrf.mxu0
  %v999 = vpop.f32.mrf.mxu0
  %v1000 = vadd.f32 %v935, %v999
  %v1001 = vpop.f32.mrf.mxu0
  %1002 = vmatprep.mubr.bf16.mxu0 %v334
  %1003 = vmatmul.mubr.bf16.gmra.mxu0 %v333
  %v1004 = vpop.f32.mrf.mxu0
  %v1005 = vadd.f32 %v940, %v1004
  %v1006 = vpop.f32.mrf.mxu0
  %v1007 = vpop.f32.mrf.mxu0
  %v1008 = vadd.f32 %v943, %v1007
  %v1009 = vpop.f32.mrf.mxu0
  %1010 = vmatprep.mubr.bf16.mxu0 %v342
  %1011 = vmatmul.mubr.bf16.gmra.mxu0 %v341
  %v1012 = vpop.f32.mrf.mxu0
  %v1013 = vadd.f32 %v948, %v1012
  %v1014 = vpop.f32.mrf.mxu0
  %v1015 = vpop.f32.mrf.mxu0
  %v1016 = vadd.f32 %v951, %v1015
  %v1017 = vpop.f32.mrf.mxu0
  %1018 = vmatprep.mubr.bf16.mxu0 %v350
  %1019 = vmatmul.mubr.bf16.gmra.mxu0 %v349
  %v1020 = vpop.f32.mrf.mxu0
  %v1021 = vadd.f32 %v956, %v1020
  %v1022 = vpop.f32.mrf.mxu0
  %v1023 = vpop.f32.mrf.mxu0
  %v1024 = vadd.f32 %v959, %v1023
  %v1025 = vpop.f32.mrf.mxu0
  %1026 = vdwg.mxu0
  %v1027 = vmax.f32 %v997, 0.0
  %v1028 = vmax.f32 %v1000, 0.0
  %v1029 = vmax.f32 %v1005, 0.0
  %v1030 = vmax.f32 %v1008, 0.0
  %v1031 = vmax.f32 %v1013, 0.0
  %v1032 = vmax.f32 %v1016, 0.0
  %v1033 = vmax.f32 %v1021, 0.0
  %v1034 = vmax.f32 %v1024, 0.0
  %v1035 = vpack.c.bf16 %v1028, %v1027
  %v1036 = vpack.c.bf16 %v1030, %v1029
  %v1037 = vpack.c.bf16 %v1032, %v1031
  %v1038 = vpack.c.bf16 %v1034, %v1033
  %v1043 = vunpack.c.l.b16 %v1035
  %v1044 = vunpack.c.h.b16 %v1035
  %v1045 = vunpack.c.l.b16 %v1036
  %v1046 = vunpack.c.h.b16 %v1036
  %v1047 = vunpack.c.l.b16 %v1037
  %v1048 = vunpack.c.h.b16 %v1037
  %v1049 = vunpack.c.l.b16 %v1038
  %v1050 = vunpack.c.h.b16 %v1038
  %v1051 = vpack.c.b16 %v1043, %v1043
  %v1052 = vpack.c.b16 %v1044, %v1044
  %v1053 = vpack.c.b16 %v1045, %v1045
  %v1054 = vpack.c.b16 %v1046, %v1046
  %v1055 = vpack.c.b16 %v1047, %v1047
  %v1056 = vpack.c.b16 %v1048, %v1048
  %v1057 = vpack.c.b16 %v1049, %v1049
  %v1058 = vpack.c.b16 %v1050, %v1050
  %vm1067 = vcmask 60416
  %1068 = vst.msk [vmem:[%s3] sm:$0xf] %vm1067, %v1051
  %1069 = vst.msk [vmem:[%s3 + $0x4] sm:$0xf] %vm1067, %v1052
  %1070 = vst.msk [vmem:[%s3 + $0x8] sm:$0xf] %vm1067, %v1053
  %1071 = vst.msk [vmem:[%s3 + $0xc] sm:$0xf] %vm1067, %v1054
  %1072 = vst.msk [vmem:[%s3 + $0x10] sm:$0xf] %vm1067, %v1055
  %1073 = vst.msk [vmem:[%s3 + $0x14] sm:$0xf] %vm1067, %v1056
  %1074 = vst.msk [vmem:[%s3 + $0x18] sm:$0xf] %vm1067, %v1057
  %1075 = vst.msk [vmem:[%s3 + $0x1c] sm:$0xf] %vm1067, %v1058
  // Predicated region
  $region14: #{forward.12} parent=0 // pred_check
    _
  $region15: #{forward.12} parent=0 // pred_check_branch
    %1077 = sbr.rel (0) target = $region17
  $region16: #{forward.12} parent=0 // pred_region
    _
  $region17: #{forward.12} parent=0 // pred_fallthru
    _
  // Predicated region
  $region18: #{forward.12} parent=0 // pred_check
    _
  $region19: #{forward.12} parent=0 // pred_check_branch
    %1079 = sbr.rel (0) target = $region21
  $region20: #{forward.12} parent=0 // pred_region
    _
  $region21: #{forward.12} parent=0 // pred_fallthru
    _

// kernel: forward.13
$region0: #{forward.13}
  #allocation0 [shape = 'u32[]', space=smem, size = 0x4, offset = 0x4, fixed_abs, tag = 'smem constant byte address 0x4 - core index']
  #allocation1 [shape = 'u32[144,128]{1,0:T(1,128)}', space=vmem, size = 0x12000, scoped, tag = 'internal scratch']
  %s0 = inlined_call_operand.vmem [shape: bf16[256,2], index: 0, kind: input, shape index: {}]
  %s1 = inlined_call_operand.vmem [shape: bf16[20,256], index: 1, kind: input, shape index: {}]
  %s2 = inlined_call_operand.vmem [shape: f32[20,1], index: 2, kind: input, shape index: {}]
  %s3 = inlined_call_operand.vmem [shape: f32[10,2], index: 3, kind: input, shape index: {}]
  %s4 = inlined_call_operand.vmem [shape: bf16[256,10], index: 4, kind: input, shape index: {}]
  %s5 = inlined_call_operand.vmem [shape: f32[256,1], index: 5, kind: input, shape index: {}]
  %s6 = inlined_call_operand.vmem [shape: f32[10,2], index: 6, kind: output, shape index: {0}]
  %s7 = inlined_call_operand.vmem [shape: f32[10,2], index: 7, kind: output, shape index: {1}]
  %s8 = inlined_call_operand.vmem [shape: bf16[256,2], index: 8, kind: output, shape index: {2}]
  %9 = xla_tuple %s6, %s7, %s8
  %s10 = sld [smem:[#allocation0]]
  $region50: #{forward.13} parent=0
    _
  %s12 = ssub.s32 1, %s10
  %s13 = scalar_select 0, %s12, %s10
  // Predicated region
  $region2: #{forward.13} parent=0 // pred_check
    _
  $region3: #{forward.13} parent=0 // pred_check_branch
    %15 = sbr.rel (0) target = $region5
  $region4: #{forward.13} parent=0 // pred_region
    _
  $region5: #{forward.13} parent=0 // pred_fallthru
    _
  // Predicated region
  $region6: #{forward.13} parent=0 // pred_check
    _
  $region7: #{forward.13} parent=0 // pred_check_branch
    %17 = sbr.rel (0) target = $region9
  $region8: #{forward.13} parent=0 // pred_region
    _
  $region9: #{forward.13} parent=0 // pred_fallthru
    _
  // Predicated region
  $region10: #{forward.13} parent=0 // pred_check
    _
  $region11: #{forward.13} parent=0 // pred_check_branch
    %19 = sbr.rel (0) target = $region13
  $region12: #{forward.13} parent=0 // pred_region
    _
  $region13: #{forward.13} parent=0 // pred_fallthru
    _
  // Predicated region
  $region14: #{forward.13} parent=0 // pred_check
    _
  $region15: #{forward.13} parent=0 // pred_check_branch
    %21 = sbr.rel (0) target = $region17
  $region16: #{forward.13} parent=0 // pred_region
    _
  $region17: #{forward.13} parent=0 // pred_fallthru
    _
  // Predicated region
  $region18: #{forward.13} parent=0 // pred_check
    _
  $region19: #{forward.13} parent=0 // pred_check_branch
    %23 = sbr.rel (0) target = $region21
  $region20: #{forward.13} parent=0 // pred_region
    _
  $region21: #{forward.13} parent=0 // pred_fallthru
    _
  // Predicated region
  $region22: #{forward.13} parent=0 // pred_check
    _
  $region23: #{forward.13} parent=0 // pred_check_branch
    %25 = sbr.rel (0) target = $region25
  $region24: #{forward.13} parent=0 // pred_region
    _
  $region25: #{forward.13} parent=0 // pred_fallthru
    _
  %v27 = vld [vmem:[%s0] sm:$0xf]
  %v28 = vld [vmem:[%s0 + $0x4] sm:$0xf]
  %v29 = vld [vmem:[%s0 + $0x8] sm:$0xf]
  %v30 = vld [vmem:[%s0 + $0xc] sm:$0xf]
  %v31 = vld [vmem:[%s0 + $0x10] sm:$0xf]
  %v32 = vld [vmem:[%s0 + $0x14] sm:$0xf]
  %v33 = vld [vmem:[%s0 + $0x18] sm:$0xf]
  %v34 = vld [vmem:[%s0 + $0x1c] sm:$0xf]
  %v35 = vld [vmem:[%s0 + $0x20] sm:$0xf]
  %v36 = vld [vmem:[%s0 + $0x24] sm:$0xf]
  %v37 = vld [vmem:[%s0 + $0x28] sm:$0xf]
  %v38 = vld [vmem:[%s0 + $0x2c] sm:$0xf]
  %v39 = vld [vmem:[%s0 + $0x30] sm:$0xf]
  %v40 = vld [vmem:[%s0 + $0x34] sm:$0xf]
  %v41 = vld [vmem:[%s0 + $0x38] sm:$0xf]
  %v42 = vld [vmem:[%s0 + $0x3c] sm:$0xf]
  %v43 = vld [vmem:[%s0 + $0x40] sm:$0xf]
  %v44 = vld [vmem:[%s0 + $0x44] sm:$0xf]
  %v45 = vld [vmem:[%s0 + $0x48] sm:$0xf]
  %v46 = vld [vmem:[%s0 + $0x4c] sm:$0xf]
  %v47 = vld [vmem:[%s0 + $0x50] sm:$0xf]
  %v48 = vld [vmem:[%s0 + $0x54] sm:$0xf]
  %v49 = vld [vmem:[%s0 + $0x58] sm:$0xf]
  %v50 = vld [vmem:[%s0 + $0x5c] sm:$0xf]
  %v51 = vld [vmem:[%s0 + $0x60] sm:$0xf]
  %v52 = vld [vmem:[%s0 + $0x64] sm:$0xf]
  %v53 = vld [vmem:[%s0 + $0x68] sm:$0xf]
  %v54 = vld [vmem:[%s0 + $0x6c] sm:$0xf]
  %v55 = vld [vmem:[%s0 + $0x70] sm:$0xf]
  %v56 = vld [vmem:[%s0 + $0x74] sm:$0xf]
  %v57 = vld [vmem:[%s0 + $0x78] sm:$0xf]
  %v58 = vld [vmem:[%s0 + $0x7c] sm:$0xf]
  %v59 = vld [vmem:[%s1] sm:$0xff]
  %v60 = vld [vmem:[%s1 + $0x8] sm:$0xff]
  %v61 = vld [vmem:[%s1 + $0x10] sm:$0x33]
  %v62 = vld [vmem:[%s2] sm:$0xff]
  %v63 = vld [vmem:[%s2 + $0x8] sm:$0xff]
  %v64 = vld [vmem:[%s2 + $0x10] sm:$0xf]
  %66 = vset.pattern.permute.xlu0 0
  %67 = vperm.xlu0 %66, %v62
  %v68 = vpop.permute.xlu0 %67
  %71 = vset.pattern.permute.xlu0 0
  %72 = vperm.xlu0 %71, %v63
  %v73 = vpop.permute.xlu0 %72
  %76 = vset.pattern.permute.xlu0 0
  %77 = vperm.xlu0 %76, %v64
  %v78 = vpop.permute.xlu0 %77
  %v83 = vunpack.c.l.b16 %v59
  %v84 = vunpack.c.h.b16 %v59
  %v85 = vunpack.c.l.b16 %v60
  %v86 = vunpack.c.h.b16 %v60
  %v87 = vunpack.c.l.b16 %v61
  %v88 = vunpack.c.h.b16 %v61
  %v89 = vpack.c.b16 %v85, %v83
  %v90 = vpack.c.b16 %v86, %v84
  %v91 = vpack.c.b16 %v87, %v87
  %v92 = vpack.c.b16 %v88, %v88
  %v129 = vunpack.c.l.b16 %v27
  %v130 = vunpack.c.l.b16 %v28
  %v131 = vunpack.c.l.b16 %v29
  %v132 = vunpack.c.l.b16 %v30
  %v133 = vunpack.c.l.b16 %v31
  %v134 = vunpack.c.l.b16 %v32
  %v135 = vunpack.c.l.b16 %v33
  %v136 = vunpack.c.l.b16 %v34
  %v137 = vunpack.c.l.b16 %v35
  %v138 = vunpack.c.l.b16 %v36
  %v139 = vunpack.c.l.b16 %v37
  %v140 = vunpack.c.l.b16 %v38
  %v141 = vunpack.c.l.b16 %v39
  %v142 = vunpack.c.l.b16 %v40
  %v143 = vunpack.c.l.b16 %v41
  %v144 = vunpack.c.l.b16 %v42
  %v145 = vunpack.c.l.b16 %v43
  %v146 = vunpack.c.l.b16 %v44
  %v147 = vunpack.c.l.b16 %v45
  %v148 = vunpack.c.l.b16 %v46
  %v149 = vunpack.c.l.b16 %v47
  %v150 = vunpack.c.l.b16 %v48
  %v151 = vunpack.c.l.b16 %v49
  %v152 = vunpack.c.l.b16 %v50
  %v153 = vunpack.c.l.b16 %v51
  %v154 = vunpack.c.l.b16 %v52
  %v155 = vunpack.c.l.b16 %v53
  %v156 = vunpack.c.l.b16 %v54
  %v157 = vunpack.c.l.b16 %v55
  %v158 = vunpack.c.l.b16 %v56
  %v159 = vunpack.c.l.b16 %v57
  %v160 = vunpack.c.l.b16 %v58
  %v161 = vpack.c.b16 %v130, %v129
  %v162 = vpack.c.b16 %v132, %v131
  %v163 = vpack.c.b16 %v134, %v133
  %v164 = vpack.c.b16 %v136, %v135
  %v165 = vpack.c.b16 %v138, %v137
  %v166 = vpack.c.b16 %v140, %v139
  %v167 = vpack.c.b16 %v142, %v141
  %v168 = vpack.c.b16 %v144, %v143
  %v169 = vpack.c.b16 %v146, %v145
  %v170 = vpack.c.b16 %v148, %v147
  %v171 = vpack.c.b16 %v150, %v149
  %v172 = vpack.c.b16 %v152, %v151
  %v173 = vpack.c.b16 %v154, %v153
  %v174 = vpack.c.b16 %v156, %v155
  %v175 = vpack.c.b16 %v158, %v157
  %v176 = vpack.c.b16 %v160, %v159
  %193 = vmatprep.subr.bf16.mxu0 0
  %194 = vmatpush1.bf16.msra.mxu0 %v168
  %195 = vmatprep.subr.bf16.mxu0 0
  %196 = vmatpush1.bf16.msra.mxu0 %v167
  %197 = vmatprep.subr.bf16.mxu0 0
  %198 = vmatpush1.bf16.msra.mxu0 %v166
  %199 = vmatprep.subr.bf16.mxu0 0
  %200 = vmatpush1.bf16.msra.mxu0 %v165
  %201 = vmatprep.subr.bf16.mxu0 0
  %202 = vmatpush1.bf16.msra.mxu0 %v164
  %203 = vmatprep.subr.bf16.mxu0 0
  %204 = vmatpush1.bf16.msra.mxu0 %v163
  %205 = vmatprep.subr.bf16.mxu0 0
  %206 = vmatpush1.bf16.msra.mxu0 %v162
  %207 = vmatprep.subr.bf16.mxu0 0
  %208 = vmatpush1.bf16.msra.mxu0 %v161
  %209 = vmatprep.subr.bf16.mxu0 0
  %210 = vmatpush2.bf16.msra.mxu0 %v176
  %211 = vmatprep.subr.bf16.mxu0 0
  %212 = vmatpush2.bf16.msra.mxu0 %v175
  %213 = vmatprep.subr.bf16.mxu0 0
  %214 = vmatpush2.bf16.msra.mxu0 %v174
  %215 = vmatprep.subr.bf16.mxu0 0
  %216 = vmatpush2.bf16.msra.mxu0 %v173
  %217 = vmatprep.subr.bf16.mxu0 0
  %218 = vmatpush2.bf16.msra.mxu0 %v172
  %219 = vmatprep.subr.bf16.mxu0 0
  %220 = vmatpush2.bf16.msra.mxu0 %v171
  %221 = vmatprep.subr.bf16.mxu0 0
  %222 = vmatpush2.bf16.msra.mxu0 %v170
  %223 = vmatprep.subr.bf16.mxu0 0
  %224 = vmatpush2.bf16.msra.mxu0 %v169
  %225 = vmatprep.mubr.bf16.mxu0 %v90
  %226 = vmatmul.mubr.bf16.gmra.mxu0 %v89
  %v227 = vpop.f32.mrf.mxu0
  %v228 = vadd.f32 %v68, %v227
  %v229 = vpop.f32.mrf.mxu0
  %v230 = vpop.f32.mrf.mxu0
  %v231 = vadd.f32 %v73, %v230
  %v232 = vpop.f32.mrf.mxu0
  %233 = vmatprep.mubr.bf16.mxu0 %v92
  %234 = vmatmul.mubr.bf16.gmra.mxu0 %v91
  %v235 = vpop.f32.mrf.mxu0
  %v236 = vadd.f32 %v78, %v235
  %v237 = vpop.f32.mrf.mxu0
  %v238 = vpop.f32.mrf.mxu0
  %v239 = vpop.f32.mrf.mxu0
  %240 = vdwg.mxu0
  %v241 = vld [vmem:[%s3] sm:$0xff]
  %v242 = vld [vmem:[%s3 + $0x8] sm:$0x3]
  %v243 = vmul.f32 %v231, 0.5
  %v244 = vmul.f32 %v236, 0.5
  %v245 = vmul.f32 %v243, 1.442695
  %v246 = vpow.pop %v245
  %v247 = vmul.f32 %v244, 1.442695
  %v248 = vpow.pop %v247
  %vm251 = vcmask 1045504
  %v252 = vrot.slane %v246, 2
  %v253 = vrot.slane %v248, 2
  %v254 = vsel %vm251, %v252, %v253
  %v257 = vmul.f32 %v241, %v254
  %v258 = vmul.f32 %v242, %v253
  %v259 = vadd.f32 %v228, %v257
  %v260 = vadd.f32 %v231, %v258
  %v261 = vld [vmem:[%s4] sm:$0xf]
  %v262 = vld [vmem:[%s4 + $0x4] sm:$0xf]
  %v263 = vld [vmem:[%s4 + $0x8] sm:$0xf]
  %v264 = vld [vmem:[%s4 + $0xc] sm:$0xf]
  %v265 = vld [vmem:[%s4 + $0x10] sm:$0xf]
  %v266 = vld [vmem:[%s4 + $0x14] sm:$0xf]
  %v267 = vld [vmem:[%s4 + $0x18] sm:$0xf]
  %v268 = vld [vmem:[%s4 + $0x1c] sm:$0xf]
  %v269 = vld [vmem:[%s4 + $0x20] sm:$0xf]
  %v270 = vld [vmem:[%s4 + $0x24] sm:$0xf]
  %v271 = vld [vmem:[%s4 + $0x28] sm:$0xf]
  %v272 = vld [vmem:[%s4 + $0x2c] sm:$0xf]
  %v273 = vld [vmem:[%s4 + $0x30] sm:$0xf]
  %v274 = vld [vmem:[%s4 + $0x34] sm:$0xf]
  %v275 = vld [vmem:[%s4 + $0x38] sm:$0xf]
  %v276 = vld [vmem:[%s4 + $0x3c] sm:$0xf]
  %v277 = vld [vmem:[%s4 + $0x40] sm:$0xf]
  %v278 = vld [vmem:[%s4 + $0x44] sm:$0xf]
  %v279 = vld [vmem:[%s4 + $0x48] sm:$0xf]
  %v280 = vld [vmem:[%s4 + $0x4c] sm:$0xf]
  %v281 = vld [vmem:[%s4 + $0x50] sm:$0xf]
  %v282 = vld [vmem:[%s4 + $0x54] sm:$0xf]
  %v283 = vld [vmem:[%s4 + $0x58] sm:$0xf]
  %v284 = vld [vmem:[%s4 + $0x5c] sm:$0xf]
  %v285 = vld [vmem:[%s4 + $0x60] sm:$0xf]
  %v286 = vld [vmem:[%s4 + $0x64] sm:$0xf]
  %v287 = vld [vmem:[%s4 + $0x68] sm:$0xf]
  %v288 = vld [vmem:[%s4 + $0x6c] sm:$0xf]
  %v289 = vld [vmem:[%s4 + $0x70] sm:$0xf]
  %v290 = vld [vmem:[%s4 + $0x74] sm:$0xf]
  %v291 = vld [vmem:[%s4 + $0x78] sm:$0xf]
  %v292 = vld [vmem:[%s4 + $0x7c] sm:$0xf]
  %v293 = vpack.c.bf16 %v260, %v259
  %v294 = vld [vmem:[%s5] sm:$0xff]
  %v295 = vld [vmem:[%s5 + $0x8] sm:$0xff]
  %v296 = vld [vmem:[%s5 + $0x10] sm:$0xff]
  %v297 = vld [vmem:[%s5 + $0x18] sm:$0xff]
  %v298 = vld [vmem:[%s5 + $0x20] sm:$0xff]
  %v299 = vld [vmem:[%s5 + $0x28] sm:$0xff]
  %v300 = vld [vmem:[%s5 + $0x30] sm:$0xff]
  %v301 = vld [vmem:[%s5 + $0x38] sm:$0xff]
  %v302 = vld [vmem:[%s5 + $0x40] sm:$0xff]
  %v303 = vld [vmem:[%s5 + $0x48] sm:$0xff]
  %v304 = vld [vmem:[%s5 + $0x50] sm:$0xff]
  %v305 = vld [vmem:[%s5 + $0x58] sm:$0xff]
  %v306 = vld [vmem:[%s5 + $0x60] sm:$0xff]
  %v307 = vld [vmem:[%s5 + $0x68] sm:$0xff]
  %v308 = vld [vmem:[%s5 + $0x70] sm:$0xff]
  %v309 = vld [vmem:[%s5 + $0x78] sm:$0xff]
  %v310 = vld [vmem:[%s5 + $0x80] sm:$0xff]
  %v311 = vld [vmem:[%s5 + $0x88] sm:$0xff]
  %v312 = vld [vmem:[%s5 + $0x90] sm:$0xff]
  %v313 = vld [vmem:[%s5 + $0x98] sm:$0xff]
  %v314 = vld [vmem:[%s5 + $0xa0] sm:$0xff]
  %v315 = vld [vmem:[%s5 + $0xa8] sm:$0xff]
  %v316 = vld [vmem:[%s5 + $0xb0] sm:$0xff]
  %v317 = vld [vmem:[%s5 + $0xb8] sm:$0xff]
  %v318 = vld [vmem:[%s5 + $0xc0] sm:$0xff]
  %v319 = vld [vmem:[%s5 + $0xc8] sm:$0xff]
  %v320 = vld [vmem:[%s5 + $0xd0] sm:$0xff]
  %v321 = vld [vmem:[%s5 + $0xd8] sm:$0xff]
  %v322 = vld [vmem:[%s5 + $0xe0] sm:$0xff]
  %v323 = vld [vmem:[%s5 + $0xe8] sm:$0xff]
  %v324 = vld [vmem:[%s5 + $0xf0] sm:$0xff]
  %v325 = vld [vmem:[%s5 + $0xf8] sm:$0xff]
  %327 = vset.pattern.permute.xlu0 0
  %328 = vperm.xlu0 %327, %v294
  %v329 = vpop.permute.xlu0 %328
  %332 = vset.pattern.permute.xlu0 0
  %333 = vperm.xlu0 %332, %v295
  %v334 = vpop.permute.xlu0 %333
  %337 = vset.pattern.permute.xlu0 0
  %338 = vperm.xlu0 %337, %v296
  %v339 = vpop.permute.xlu0 %338
  %342 = vset.pattern.permute.xlu0 0
  %343 = vperm.xlu0 %342, %v297
  %v344 = vpop.permute.xlu0 %343
  %347 = vset.pattern.permute.xlu0 0
  %348 = vperm.xlu0 %347, %v298
  %v349 = vpop.permute.xlu0 %348
  %352 = vset.pattern.permute.xlu0 0
  %353 = vperm.xlu0 %352, %v299
  %v354 = vpop.permute.xlu0 %353
  %357 = vset.pattern.permute.xlu0 0
  %358 = vperm.xlu0 %357, %v300
  %v359 = vpop.permute.xlu0 %358
  %362 = vset.pattern.permute.xlu0 0
  %363 = vperm.xlu0 %362, %v301
  %v364 = vpop.permute.xlu0 %363
  %367 = vset.pattern.permute.xlu0 0
  %368 = vperm.xlu0 %367, %v302
  %v369 = vpop.permute.xlu0 %368
  %372 = vset.pattern.permute.xlu0 0
  %373 = vperm.xlu0 %372, %v303
  %v374 = vpop.permute.xlu0 %373
  %377 = vset.pattern.permute.xlu0 0
  %378 = vperm.xlu0 %377, %v304
  %v379 = vpop.permute.xlu0 %378
  %382 = vset.pattern.permute.xlu0 0
  %383 = vperm.xlu0 %382, %v305
  %v384 = vpop.permute.xlu0 %383
  %387 = vset.pattern.permute.xlu0 0
  %388 = vperm.xlu0 %387, %v306
  %v389 = vpop.permute.xlu0 %388
  %392 = vset.pattern.permute.xlu0 0
  %393 = vperm.xlu0 %392, %v307
  %v394 = vpop.permute.xlu0 %393
  %397 = vset.pattern.permute.xlu0 0
  %398 = vperm.xlu0 %397, %v308
  %v399 = vpop.permute.xlu0 %398
  %402 = vset.pattern.permute.xlu0 0
  %403 = vperm.xlu0 %402, %v309
  %v404 = vpop.permute.xlu0 %403
  %407 = vset.pattern.permute.xlu0 0
  %408 = vperm.xlu0 %407, %v310
  %v409 = vpop.permute.xlu0 %408
  %412 = vset.pattern.permute.xlu0 0
  %413 = vperm.xlu0 %412, %v311
  %v414 = vpop.permute.xlu0 %413
  %417 = vset.pattern.permute.xlu0 0
  %418 = vperm.xlu0 %417, %v312
  %v419 = vpop.permute.xlu0 %418
  %422 = vset.pattern.permute.xlu0 0
  %423 = vperm.xlu0 %422, %v313
  %v424 = vpop.permute.xlu0 %423
  %427 = vset.pattern.permute.xlu0 0
  %428 = vperm.xlu0 %427, %v314
  %v429 = vpop.permute.xlu0 %428
  %432 = vset.pattern.permute.xlu0 0
  %433 = vperm.xlu0 %432, %v315
  %v434 = vpop.permute.xlu0 %433
  %437 = vset.pattern.permute.xlu0 0
  %438 = vperm.xlu0 %437, %v316
  %v439 = vpop.permute.xlu0 %438
  %442 = vset.pattern.permute.xlu0 0
  %443 = vperm.xlu0 %442, %v317
  %v444 = vpop.permute.xlu0 %443
  %447 = vset.pattern.permute.xlu0 0
  %448 = vperm.xlu0 %447, %v318
  %v449 = vpop.permute.xlu0 %448
  %452 = vset.pattern.permute.xlu0 0
  %453 = vperm.xlu0 %452, %v319
  %v454 = vpop.permute.xlu0 %453
  %457 = vset.pattern.permute.xlu0 0
  %458 = vperm.xlu0 %457, %v320
  %v459 = vpop.permute.xlu0 %458
  %462 = vset.pattern.permute.xlu0 0
  %463 = vperm.xlu0 %462, %v321
  %v464 = vpop.permute.xlu0 %463
  %467 = vset.pattern.permute.xlu0 0
  %468 = vperm.xlu0 %467, %v322
  %v469 = vpop.permute.xlu0 %468
  %472 = vset.pattern.permute.xlu0 0
  %473 = vperm.xlu0 %472, %v323
  %v474 = vpop.permute.xlu0 %473
  %477 = vset.pattern.permute.xlu0 0
  %478 = vperm.xlu0 %477, %v324
  %v479 = vpop.permute.xlu0 %478
  %482 = vset.pattern.permute.xlu0 0
  %483 = vperm.xlu0 %482, %v325
  %v484 = vpop.permute.xlu0 %483
  %v518 = vunpack.c.l.b16 %v261
  %v519 = vunpack.c.l.b16 %v262
  %v520 = vunpack.c.l.b16 %v263
  %v521 = vunpack.c.l.b16 %v264
  %v522 = vunpack.c.l.b16 %v265
  %v523 = vunpack.c.l.b16 %v266
  %v524 = vunpack.c.l.b16 %v267
  %v525 = vunpack.c.l.b16 %v268
  %v526 = vunpack.c.l.b16 %v269
  %v527 = vunpack.c.l.b16 %v270
  %v528 = vunpack.c.l.b16 %v271
  %v529 = vunpack.c.l.b16 %v272
  %v530 = vunpack.c.l.b16 %v273
  %v531 = vunpack.c.l.b16 %v274
  %v532 = vunpack.c.l.b16 %v275
  %v533 = vunpack.c.l.b16 %v276
  %v534 = vunpack.c.l.b16 %v277
  %v535 = vunpack.c.l.b16 %v278
  %v536 = vunpack.c.l.b16 %v279
  %v537 = vunpack.c.l.b16 %v280
  %v538 = vunpack.c.l.b16 %v281
  %v539 = vunpack.c.l.b16 %v282
  %v540 = vunpack.c.l.b16 %v283
  %v541 = vunpack.c.l.b16 %v284
  %v542 = vunpack.c.l.b16 %v285
  %v543 = vunpack.c.l.b16 %v286
  %v544 = vunpack.c.l.b16 %v287
  %v545 = vunpack.c.l.b16 %v288
  %v546 = vunpack.c.l.b16 %v289
  %v547 = vunpack.c.l.b16 %v290
  %v548 = vunpack.c.l.b16 %v291
  %v549 = vunpack.c.l.b16 %v292
  %v550 = vpack.c.b16 %v519, %v518
  %v551 = vpack.c.b16 %v521, %v520
  %v552 = vpack.c.b16 %v523, %v522
  %v553 = vpack.c.b16 %v525, %v524
  %v554 = vpack.c.b16 %v527, %v526
  %v555 = vpack.c.b16 %v529, %v528
  %v556 = vpack.c.b16 %v531, %v530
  %v557 = vpack.c.b16 %v533, %v532
  %v558 = vpack.c.b16 %v535, %v534
  %v559 = vpack.c.b16 %v537, %v536
  %v560 = vpack.c.b16 %v539, %v538
  %v561 = vpack.c.b16 %v541, %v540
  %v562 = vpack.c.b16 %v543, %v542
  %v563 = vpack.c.b16 %v545, %v544
  %v564 = vpack.c.b16 %v547, %v546
  %v565 = vpack.c.b16 %v549, %v548
  %vm566 = vcmask 80896
  %v568 = vsel %vm566, %v550, 0
  %v571 = vsel %vm566, %v551, 0
  %v574 = vsel %vm566, %v552, 0
  %v577 = vsel %vm566, %v553, 0
  %v580 = vsel %vm566, %v554, 0
  %v583 = vsel %vm566, %v555, 0
  %v586 = vsel %vm566, %v556, 0
  %v589 = vsel %vm566, %v557, 0
  %v592 = vsel %vm566, %v558, 0
  %v595 = vsel %vm566, %v559, 0
  %v598 = vsel %vm566, %v560, 0
  %v601 = vsel %vm566, %v561, 0
  %v604 = vsel %vm566, %v562, 0
  %v607 = vsel %vm566, %v563, 0
  %v610 = vsel %vm566, %v564, 0
  %v613 = vsel %vm566, %v565, 0
  %vm615 = vcmask 1044480
  %v617 = vsel %vm615, %v293, 0
  %619 = vmatprep.subr.bf16.mxu0 0
  %620 = vmatpush1.bf16.msra.mxu0 0
  %621 = vmatprep.subr.bf16.mxu0 0
  %622 = vmatpush1.bf16.msra.mxu0 0
  %623 = vmatprep.subr.bf16.mxu0 0
  %624 = vmatpush1.bf16.msra.mxu0 0
  %625 = vmatprep.subr.bf16.mxu0 0
  %626 = vmatpush1.bf16.msra.mxu0 0
  %627 = vmatprep.subr.bf16.mxu0 0
  %628 = vmatpush1.bf16.msra.mxu0 0
  %629 = vmatprep.subr.bf16.mxu0 0
  %630 = vmatpush1.bf16.msra.mxu0 0
  %631 = vmatprep.subr.bf16.mxu0 0
  %632 = vmatpush1.bf16.msra.mxu0 0
  %633 = vmatprep.subr.bf16.mxu0 0
  %634 = vmatpush1.bf16.msra.mxu0 %v617
  %635 = vmatprep.subr.bf16.mxu0 0
  %636 = vmatpush2.bf16.msra.mxu0 0
  %637 = vmatprep.subr.bf16.mxu0 0
  %638 = vmatpush2.bf16.msra.mxu0 0
  %639 = vmatprep.subr.bf16.mxu0 0
  %640 = vmatpush2.bf16.msra.mxu0 0
  %641 = vmatprep.subr.bf16.mxu0 0
  %642 = vmatpush2.bf16.msra.mxu0 0
  %643 = vmatprep.subr.bf16.mxu0 0
  %644 = vmatpush2.bf16.msra.mxu0 0
  %645 = vmatprep.subr.bf16.mxu0 0
  %646 = vmatpush2.bf16.msra.mxu0 0
  %647 = vmatprep.subr.bf16.mxu0 0
  %648 = vmatpush2.bf16.msra.mxu0 0
  %649 = vmatprep.subr.bf16.mxu0 0
  %650 = vmatpush2.bf16.msra.mxu0 0
  %651 = vmatprep.mubr.bf16.mxu0 0
  %652 = vmatmul.mubr.bf16.gmra.mxu0 %v568
  %v653 = vpop.f32.mrf.mxu0
  %v654 = vadd.f32 %v329, %v653
  %v655 = vpop.f32.mrf.mxu0
  %v656 = vpop.f32.mrf.mxu0
  %v657 = vadd.f32 %v334, %v656
  %v658 = vpop.f32.mrf.mxu0
  %659 = vmatprep.mubr.bf16.mxu0 0
  %660 = vmatmul.mubr.bf16.gmra.mxu0 %v571
  %v661 = vpop.f32.mrf.mxu0
  %v662 = vadd.f32 %v339, %v661
  %v663 = vpop.f32.mrf.mxu0
  %v664 = vpop.f32.mrf.mxu0
  %v665 = vadd.f32 %v344, %v664
  %v666 = vpop.f32.mrf.mxu0
  %667 = vmatprep.mubr.bf16.mxu0 0
  %668 = vmatmul.mubr.bf16.gmra.mxu0 %v574
  %v669 = vpop.f32.mrf.mxu0
  %v670 = vadd.f32 %v349, %v669
  %v671 = vpop.f32.mrf.mxu0
  %v672 = vpop.f32.mrf.mxu0
  %v673 = vadd.f32 %v354, %v672
  %v674 = vpop.f32.mrf.mxu0
  %675 = vmatprep.mubr.bf16.mxu0 0
  %676 = vmatmul.mubr.bf16.gmra.mxu0 %v577
  %v677 = vpop.f32.mrf.mxu0
  %v678 = vadd.f32 %v359, %v677
  %v679 = vpop.f32.mrf.mxu0
  %v680 = vpop.f32.mrf.mxu0
  %v681 = vadd.f32 %v364, %v680
  %v682 = vpop.f32.mrf.mxu0
  %683 = vmatprep.mubr.bf16.mxu0 0
  %684 = vmatmul.mubr.bf16.gmra.mxu0 %v580
  %v685 = vpop.f32.mrf.mxu0
  %v686 = vadd.f32 %v369, %v685
  %v687 = vpop.f32.mrf.mxu0
  %v688 = vpop.f32.mrf.mxu0
  %v689 = vadd.f32 %v374, %v688
  %v690 = vpop.f32.mrf.mxu0
  %691 = vmatprep.mubr.bf16.mxu0 0
  %692 = vmatmul.mubr.bf16.gmra.mxu0 %v583
  %v693 = vpop.f32.mrf.mxu0
  %v694 = vadd.f32 %v379, %v693
  %v695 = vpop.f32.mrf.mxu0
  %v696 = vpop.f32.mrf.mxu0
  %v697 = vadd.f32 %v384, %v696
  %v698 = vpop.f32.mrf.mxu0
  %699 = vmatprep.mubr.bf16.mxu0 0
  %700 = vmatmul.mubr.bf16.gmra.mxu0 %v586
  %v701 = vpop.f32.mrf.mxu0
  %v702 = vadd.f32 %v389, %v701
  %v703 = vpop.f32.mrf.mxu0
  %v704 = vpop.f32.mrf.mxu0
  %v705 = vadd.f32 %v394, %v704
  %v706 = vpop.f32.mrf.mxu0
  %707 = vmatprep.mubr.bf16.mxu0 0
  %708 = vmatmul.mubr.bf16.gmra.mxu0 %v589
  %v709 = vpop.f32.mrf.mxu0
  %v710 = vadd.f32 %v399, %v709
  %v711 = vpop.f32.mrf.mxu0
  %v712 = vpop.f32.mrf.mxu0
  %v713 = vadd.f32 %v404, %v712
  %v714 = vpop.f32.mrf.mxu0
  %715 = vmatprep.mubr.bf16.mxu0 0
  %716 = vmatmul.mubr.bf16.gmra.mxu0 %v592
  %v717 = vpop.f32.mrf.mxu0
  %v718 = vadd.f32 %v409, %v717
  %v719 = vpop.f32.mrf.mxu0
  %v720 = vpop.f32.mrf.mxu0
  %v721 = vadd.f32 %v414, %v720
  %v722 = vpop.f32.mrf.mxu0
  %723 = vmatprep.mubr.bf16.mxu0 0
  %724 = vmatmul.mubr.bf16.gmra.mxu0 %v595
  %v725 = vpop.f32.mrf.mxu0
  %v726 = vadd.f32 %v419, %v725
  %v727 = vpop.f32.mrf.mxu0
  %v728 = vpop.f32.mrf.mxu0
  %v729 = vadd.f32 %v424, %v728
  %v730 = vpop.f32.mrf.mxu0
  %731 = vmatprep.mubr.bf16.mxu0 0
  %732 = vmatmul.mubr.bf16.gmra.mxu0 %v598
  %v733 = vpop.f32.mrf.mxu0
  %v734 = vadd.f32 %v429, %v733
  %v735 = vpop.f32.mrf.mxu0
  %v736 = vpop.f32.mrf.mxu0
  %v737 = vadd.f32 %v434, %v736
  %v738 = vpop.f32.mrf.mxu0
  %739 = vmatprep.mubr.bf16.mxu0 0
  %740 = vmatmul.mubr.bf16.gmra.mxu0 %v601
  %v741 = vpop.f32.mrf.mxu0
  %v742 = vadd.f32 %v439, %v741
  %v743 = vpop.f32.mrf.mxu0
  %v744 = vpop.f32.mrf.mxu0
  %v745 = vadd.f32 %v444, %v744
  %v746 = vpop.f32.mrf.mxu0
  %747 = vmatprep.mubr.bf16.mxu0 0
  %748 = vmatmul.mubr.bf16.gmra.mxu0 %v604
  %v749 = vpop.f32.mrf.mxu0
  %v750 = vadd.f32 %v449, %v749
  %v751 = vpop.f32.mrf.mxu0
  %v752 = vpop.f32.mrf.mxu0
  %v753 = vadd.f32 %v454, %v752
  %v754 = vpop.f32.mrf.mxu0
  %755 = vmatprep.mubr.bf16.mxu0 0
  %756 = vmatmul.mubr.bf16.gmra.mxu0 %v607
  %v757 = vpop.f32.mrf.mxu0
  %v758 = vadd.f32 %v459, %v757
  %v759 = vpop.f32.mrf.mxu0
  %v760 = vpop.f32.mrf.mxu0
  %v761 = vadd.f32 %v464, %v760
  %v762 = vpop.f32.mrf.mxu0
  %763 = vmatprep.mubr.bf16.mxu0 0
  %764 = vmatmul.mubr.bf16.gmra.mxu0 %v610
  %v765 = vpop.f32.mrf.mxu0
  %v766 = vadd.f32 %v469, %v765
  %v767 = vpop.f32.mrf.mxu0
  %v768 = vpop.f32.mrf.mxu0
  %v769 = vadd.f32 %v474, %v768
  %v770 = vpop.f32.mrf.mxu0
  %771 = vmatprep.mubr.bf16.mxu0 0
  %772 = vmatmul.mubr.bf16.gmra.mxu0 %v613
  %v773 = vpop.f32.mrf.mxu0
  %v774 = vadd.f32 %v479, %v773
  %v775 = vpop.f32.mrf.mxu0
  %v776 = vpop.f32.mrf.mxu0
  %v777 = vadd.f32 %v484, %v776
  %v778 = vpop.f32.mrf.mxu0
  %779 = vdwg.mxu0
  %vm780 = vcmask 15360
  %781 = vst.msk [vmem:[%s6] sm:$0xff] %vm780, %v228
  %vm782 = vcmask 9216
  %783 = vst.msk [vmem:[%s6 + $0x8] sm:$0x3] %vm782, %v231
  %vm784 = vcmask 15362
  %785 = vst.msk [vmem:[%s7 - $0x2] sm:$0xfc] %vm784, %v231
  %vm786 = vcmask 11264
  %787 = vst.msk [vmem:[%s7 + $0x6] sm:$0xf] %vm786, %v236
  %v788 = vpack.c.bf16 %v657, %v654
  %v789 = vpack.c.bf16 %v665, %v662
  %v790 = vpack.c.bf16 %v673, %v670
  %v791 = vpack.c.bf16 %v681, %v678
  %v792 = vpack.c.bf16 %v689, %v686
  %v793 = vpack.c.bf16 %v697, %v694
  %v794 = vpack.c.bf16 %v705, %v702
  %v795 = vpack.c.bf16 %v713, %v710
  %v796 = vpack.c.bf16 %v721, %v718
  %v797 = vpack.c.bf16 %v729, %v726
  %v798 = vpack.c.bf16 %v737, %v734
  %v799 = vpack.c.bf16 %v745, %v742
  %v800 = vpack.c.bf16 %v753, %v750
  %v801 = vpack.c.bf16 %v761, %v758
  %v802 = vpack.c.bf16 %v769, %v766
  %v803 = vpack.c.bf16 %v777, %v774
  %v820 = vunpack.c.l.b16 %v788
  %v821 = vunpack.c.h.b16 %v788
  %v822 = vunpack.c.l.b16 %v789
  %v823 = vunpack.c.h.b16 %v789
  %v824 = vunpack.c.l.b16 %v790
  %v825 = vunpack.c.h.b16 %v790
  %v826 = vunpack.c.l.b16 %v791
  %v827 = vunpack.c.h.b16 %v791
  %v828 = vunpack.c.l.b16 %v792
  %v829 = vunpack.c.h.b16 %v792
  %v830 = vunpack.c.l.b16 %v793
  %v831 = vunpack.c.h.b16 %v793
  %v832 = vunpack.c.l.b16 %v794
  %v833 = vunpack.c.h.b16 %v794
  %v834 = vunpack.c.l.b16 %v795
  %v835 = vunpack.c.h.b16 %v795
  %v836 = vunpack.c.l.b16 %v796
  %v837 = vunpack.c.h.b16 %v796
  %v838 = vunpack.c.l.b16 %v797
  %v839 = vunpack.c.h.b16 %v797
  %v840 = vunpack.c.l.b16 %v798
  %v841 = vunpack.c.h.b16 %v798
  %v842 = vunpack.c.l.b16 %v799
  %v843 = vunpack.c.h.b16 %v799
  %v844 = vunpack.c.l.b16 %v800
  %v845 = vunpack.c.h.b16 %v800
  %v846 = vunpack.c.l.b16 %v801
  %v847 = vunpack.c.h.b16 %v801
  %v848 = vunpack.c.l.b16 %v802
  %v849 = vunpack.c.h.b16 %v802
  %v850 = vunpack.c.l.b16 %v803
  %v851 = vunpack.c.h.b16 %v803
  %v852 = vpack.c.b16 %v820, %v820
  %v853 = vpack.c.b16 %v821, %v821
  %v854 = vpack.c.b16 %v822, %v822
  %v855 = vpack.c.b16 %v823, %v823
  %v856 = vpack.c.b16 %v824, %v824
  %v857 = vpack.c.b16 %v825, %v825
  %v858 = vpack.c.b16 %v826, %v826
  %v859 = vpack.c.b16 %v827, %v827
  %v860 = vpack.c.b16 %v828, %v828
  %v861 = vpack.c.b16 %v829, %v829
  %v862 = vpack.c.b16 %v830, %v830
  %v863 = vpack.c.b16 %v831, %v831
  %v864 = vpack.c.b16 %v832, %v832
  %v865 = vpack.c.b16 %v833, %v833
  %v866 = vpack.c.b16 %v834, %v834
  %v867 = vpack.c.b16 %v835, %v835
  %v868 = vpack.c.b16 %v836, %v836
  %v869 = vpack.c.b16 %v837, %v837
  %v870 = vpack.c.b16 %v838, %v838
  %v871 = vpack.c.b16 %v839, %v839
  %v872 = vpack.c.b16 %v840, %v840
  %v873 = vpack.c.b16 %v841, %v841
  %v874 = vpack.c.b16 %v842, %v842
  %v875 = vpack.c.b16 %v843, %v843
  %v876 = vpack.c.b16 %v844, %v844
  %v877 = vpack.c.b16 %v845, %v845
  %v878 = vpack.c.b16 %v846, %v846
  %v879 = vpack.c.b16 %v847, %v847
  %v880 = vpack.c.b16 %v848, %v848
  %v881 = vpack.c.b16 %v849, %v849
  %v882 = vpack.c.b16 %v850, %v850
  %v883 = vpack.c.b16 %v851, %v851
  %916 = vst.msk [vmem:[%s8] sm:$0xf] %vm786, %v852
  %917 = vst.msk [vmem:[%s8 + $0x4] sm:$0xf] %vm786, %v853
  %918 = vst.msk [vmem:[%s8 + $0x8] sm:$0xf] %vm786, %v854
  %919 = vst.msk [vmem:[%s8 + $0xc] sm:$0xf] %vm786, %v855
  %920 = vst.msk [vmem:[%s8 + $0x10] sm:$0xf] %vm786, %v856
  %921 = vst.msk [vmem:[%s8 + $0x14] sm:$0xf] %vm786, %v857
  %922 = vst.msk [vmem:[%s8 + $0x18] sm:$0xf] %vm786, %v858
  %923 = vst.msk [vmem:[%s8 + $0x1c] sm:$0xf] %vm786, %v859
  %924 = vst.msk [vmem:[%s8 + $0x20] sm:$0xf] %vm786, %v860
  %925 = vst.msk [vmem:[%s8 + $0x24] sm:$0xf] %vm786, %v861
  %926 = vst.msk [vmem:[%s8 + $0x28] sm:$0xf] %vm786, %v862
  %927 = vst.msk [vmem:[%s8 + $0x2c] sm:$0xf] %vm786, %v863
  %928 = vst.msk [vmem:[%s8 + $0x30] sm:$0xf] %vm786, %v864
  %929 = vst.msk [vmem:[%s8 + $0x34] sm:$0xf] %vm786, %v865
  %930 = vst.msk [vmem:[%s8 + $0x38] sm:$0xf] %vm786, %v866
  %931 = vst.msk [vmem:[%s8 + $0x3c] sm:$0xf] %vm786, %v867
  %932 = vst.msk [vmem:[%s8 + $0x40] sm:$0xf] %vm786, %v868
  %933 = vst.msk [vmem:[%s8 + $0x44] sm:$0xf] %vm786, %v869
  %934 = vst.msk [vmem:[%s8 + $0x48] sm:$0xf] %vm786, %v870
  %935 = vst.msk [vmem:[%s8 + $0x4c] sm:$0xf] %vm786, %v871
  %936 = vst.msk [vmem:[%s8 + $0x50] sm:$0xf] %vm786, %v872
  %937 = vst.msk [vmem:[%s8 + $0x54] sm:$0xf] %vm786, %v873
  %938 = vst.msk [vmem:[%s8 + $0x58] sm:$0xf] %vm786, %v874
  %939 = vst.msk [vmem:[%s8 + $0x5c] sm:$0xf] %vm786, %v875
  %940 = vst.msk [vmem:[%s8 + $0x60] sm:$0xf] %vm786, %v876
  %941 = vst.msk [vmem:[%s8 + $0x64] sm:$0xf] %vm786, %v877
  %942 = vst.msk [vmem:[%s8 + $0x68] sm:$0xf] %vm786, %v878
  %943 = vst.msk [vmem:[%s8 + $0x6c] sm:$0xf] %vm786, %v879
  %944 = vst.msk [vmem:[%s8 + $0x70] sm:$0xf] %vm786, %v880
  %945 = vst.msk [vmem:[%s8 + $0x74] sm:$0xf] %vm786, %v881
  %946 = vst.msk [vmem:[%s8 + $0x78] sm:$0xf] %vm786, %v882
  %947 = vst.msk [vmem:[%s8 + $0x7c] sm:$0xf] %vm786, %v883
  // Predicated region
  $region26: #{forward.13} parent=0 // pred_check
    _
  $region27: #{forward.13} parent=0 // pred_check_branch
    %949 = sbr.rel (0) target = $region29
  $region28: #{forward.13} parent=0 // pred_region
    _
  $region29: #{forward.13} parent=0 // pred_fallthru
    _
  // Predicated region
  $region30: #{forward.13} parent=0 // pred_check
    _
  $region31: #{forward.13} parent=0 // pred_check_branch
    %951 = sbr.rel (0) target = $region33
  $region32: #{forward.13} parent=0 // pred_region
    _
  $region33: #{forward.13} parent=0 // pred_fallthru
    _
  // Predicated region
  $region34: #{forward.13} parent=0 // pred_check
    _
  $region35: #{forward.13} parent=0 // pred_check_branch
    %953 = sbr.rel (0) target = $region37
  $region36: #{forward.13} parent=0 // pred_region
    _
  $region37: #{forward.13} parent=0 // pred_fallthru
    _
  // Predicated region
  $region38: #{forward.13} parent=0 // pred_check
    _
  $region39: #{forward.13} parent=0 // pred_check_branch
    %955 = sbr.rel (0) target = $region41
  $region40: #{forward.13} parent=0 // pred_region
    _
  $region41: #{forward.13} parent=0 // pred_fallthru
    _
  // Predicated region
  $region42: #{forward.13} parent=0 // pred_check
    _
  $region43: #{forward.13} parent=0 // pred_check_branch
    %957 = sbr.rel (0) target = $region45
  $region44: #{forward.13} parent=0 // pred_region
    _
  $region45: #{forward.13} parent=0 // pred_fallthru
    _
  // Predicated region
  $region46: #{forward.13} parent=0 // pred_check
    _
  $region47: #{forward.13} parent=0 // pred_check_branch
    %959 = sbr.rel (0) target = $region49
  $region48: #{forward.13} parent=0 // pred_region
    _
  $region49: #{forward.13} parent=0 // pred_fallthru
    _

// kernel: forward.14
$region0: #{forward.14}
  #allocation0 [shape = 'u32[]', space=smem, size = 0x4, offset = 0x4, fixed_abs, tag = 'smem constant byte address 0x4 - core index']
  #allocation1 [shape = 'u32[144,128]{1,0:T(1,128)}', space=vmem, size = 0x12000, scoped, tag = 'internal scratch']
  %s0 = inlined_call_operand.vmem [shape: bf16[256,256], index: 0, kind: input, shape index: {}]
  %s1 = inlined_call_operand.vmem [shape: bf16[256,18], index: 1, kind: input, shape index: {}]
  %s2 = inlined_call_operand.vmem [shape: f32[256,1], index: 2, kind: input, shape index: {}]
  %s3 = inlined_call_operand.vmem [shape: bf16[256,18], index: 3, kind: output, shape index: {}]
  %s4 = sld [smem:[#allocation0]]
  $region22: #{forward.14} parent=0
    _
  %s6 = ssub.s32 1, %s4
  %s7 = scalar_select 0, %s6, %s4
  // Predicated region
  $region2: #{forward.14} parent=0 // pred_check
    _
  $region3: #{forward.14} parent=0 // pred_check_branch
    %9 = sbr.rel (0) target = $region5
  $region4: #{forward.14} parent=0 // pred_region
    _
  $region5: #{forward.14} parent=0 // pred_fallthru
    _
  // Predicated region
  $region6: #{forward.14} parent=0 // pred_check
    _
  $region7: #{forward.14} parent=0 // pred_check_branch
    %11 = sbr.rel (0) target = $region9
  $region8: #{forward.14} parent=0 // pred_region
    _
  $region9: #{forward.14} parent=0 // pred_fallthru
    _
  // Predicated region
  $region10: #{forward.14} parent=0 // pred_check
    _
  $region11: #{forward.14} parent=0 // pred_check_branch
    %13 = sbr.rel (0) target = $region13
  $region12: #{forward.14} parent=0 // pred_region
    _
  $region13: #{forward.14} parent=0 // pred_fallthru
    _
  %v15 = vld [vmem:[%s1] sm:$0xf]
  %v16 = vld [vmem:[%s1 + $0x4] sm:$0xf]
  %v17 = vld [vmem:[%s1 + $0x8] sm:$0xf]
  %v18 = vld [vmem:[%s1 + $0xc] sm:$0xf]
  %v19 = vld [vmem:[%s1 + $0x10] sm:$0xf]
  %v20 = vld [vmem:[%s1 + $0x14] sm:$0xf]
  %v21 = vld [vmem:[%s1 + $0x18] sm:$0xf]
  %v22 = vld [vmem:[%s1 + $0x1c] sm:$0xf]
  %v23 = vld [vmem:[%s1 + $0x20] sm:$0xf]
  %v24 = vld [vmem:[%s1 + $0x24] sm:$0xf]
  %v25 = vld [vmem:[%s1 + $0x28] sm:$0xf]
  %v26 = vld [vmem:[%s1 + $0x2c] sm:$0xf]
  %v27 = vld [vmem:[%s1 + $0x30] sm:$0xf]
  %v28 = vld [vmem:[%s1 + $0x34] sm:$0xf]
  %v29 = vld [vmem:[%s1 + $0x38] sm:$0xf]
  %v30 = vld [vmem:[%s1 + $0x3c] sm:$0xf]
  %v31 = vld [vmem:[%s1 + $0x40] sm:$0xf]
  %v32 = vld [vmem:[%s1 + $0x44] sm:$0xf]
  %v33 = vld [vmem:[%s1 + $0x48] sm:$0xf]
  %v34 = vld [vmem:[%s1 + $0x4c] sm:$0xf]
  %v35 = vld [vmem:[%s1 + $0x50] sm:$0xf]
  %v36 = vld [vmem:[%s1 + $0x54] sm:$0xf]
  %v37 = vld [vmem:[%s1 + $0x58] sm:$0xf]
  %v38 = vld [vmem:[%s1 + $0x5c] sm:$0xf]
  %v39 = vld [vmem:[%s1 + $0x60] sm:$0xf]
  %v40 = vld [vmem:[%s1 + $0x64] sm:$0xf]
  %v41 = vld [vmem:[%s1 + $0x68] sm:$0xf]
  %v42 = vld [vmem:[%s1 + $0x6c] sm:$0xf]
  %v43 = vld [vmem:[%s1 + $0x70] sm:$0xf]
  %v44 = vld [vmem:[%s1 + $0x74] sm:$0xf]
  %v45 = vld [vmem:[%s1 + $0x78] sm:$0xf]
  %v46 = vld [vmem:[%s1 + $0x7c] sm:$0xf]
  %v47 = vld [vmem:[%s0] sm:$0xff]
  %v48 = vld [vmem:[%s0 + $0x8] sm:$0xff]
  %v49 = vld [vmem:[%s0 + $0x10] sm:$0xff]
  %v50 = vld [vmem:[%s0 + $0x18] sm:$0xff]
  %v51 = vld [vmem:[%s0 + $0x20] sm:$0xff]
  %v52 = vld [vmem:[%s0 + $0x28] sm:$0xff]
  %v53 = vld [vmem:[%s0 + $0x30] sm:$0xff]
  %v54 = vld [vmem:[%s0 + $0x38] sm:$0xff]
  %v55 = vld [vmem:[%s0 + $0x40] sm:$0xff]
  %v56 = vld [vmem:[%s0 + $0x48] sm:$0xff]
  %v57 = vld [vmem:[%s0 + $0x50] sm:$0xff]
  %v58 = vld [vmem:[%s0 + $0x58] sm:$0xff]
  %v59 = vld [vmem:[%s0 + $0x60] sm:$0xff]
  %v60 = vld [vmem:[%s0 + $0x68] sm:$0xff]
  %v61 = vld [vmem:[%s0 + $0x70] sm:$0xff]
  %v62 = vld [vmem:[%s0 + $0x78] sm:$0xff]
  %v63 = vld [vmem:[%s0 + $0x80] sm:$0xff]
  %v64 = vld [vmem:[%s0 + $0x88] sm:$0xff]
  %v65 = vld [vmem:[%s0 + $0x90] sm:$0xff]
  %v66 = vld [vmem:[%s0 + $0x98] sm:$0xff]
  %v67 = vld [vmem:[%s0 + $0xa0] sm:$0xff]
  %v68 = vld [vmem:[%s0 + $0xa8] sm:$0xff]
  %v69 = vld [vmem:[%s0 + $0xb0] sm:$0xff]
  %v70 = vld [vmem:[%s0 + $0xb8] sm:$0xff]
  %v71 = vld [vmem:[%s0 + $0xc0] sm:$0xff]
  %v72 = vld [vmem:[%s0 + $0xc8] sm:$0xff]
  %v73 = vld [vmem:[%s0 + $0xd0] sm:$0xff]
  %v74 = vld [vmem:[%s0 + $0xd8] sm:$0xff]
  %v75 = vld [vmem:[%s0 + $0xe0] sm:$0xff]
  %v76 = vld [vmem:[%s0 + $0xe8] sm:$0xff]
  %v77 = vld [vmem:[%s0 + $0xf0] sm:$0xff]
  %v78 = vld [vmem:[%s0 + $0xf8] sm:$0xff]
  %v79 = vld [vmem:[%s2] sm:$0xff]
  %v80 = vld [vmem:[%s2 + $0x8] sm:$0xff]
  %v81 = vld [vmem:[%s2 + $0x10] sm:$0xff]
  %v82 = vld [vmem:[%s2 + $0x18] sm:$0xff]
  %v83 = vld [vmem:[%s2 + $0x20] sm:$0xff]
  %v84 = vld [vmem:[%s2 + $0x28] sm:$0xff]
  %v85 = vld [vmem:[%s2 + $0x30] sm:$0xff]
  %v86 = vld [vmem:[%s2 + $0x38] sm:$0xff]
  %v87 = vld [vmem:[%s2 + $0x40] sm:$0xff]
  %v88 = vld [vmem:[%s2 + $0x48] sm:$0xff]
  %v89 = vld [vmem:[%s2 + $0x50] sm:$0xff]
  %v90 = vld [vmem:[%s2 + $0x58] sm:$0xff]
  %v91 = vld [vmem:[%s2 + $0x60] sm:$0xff]
  %v92 = vld [vmem:[%s2 + $0x68] sm:$0xff]
  %v93 = vld [vmem:[%s2 + $0x70] sm:$0xff]
  %v94 = vld [vmem:[%s2 + $0x78] sm:$0xff]
  %v95 = vld [vmem:[%s2 + $0x80] sm:$0xff]
  %v96 = vld [vmem:[%s2 + $0x88] sm:$0xff]
  %v97 = vld [vmem:[%s2 + $0x90] sm:$0xff]
  %v98 = vld [vmem:[%s2 + $0x98] sm:$0xff]
  %v99 = vld [vmem:[%s2 + $0xa0] sm:$0xff]
  %v100 = vld [vmem:[%s2 + $0xa8] sm:$0xff]
  %v101 = vld [vmem:[%s2 + $0xb0] sm:$0xff]
  %v102 = vld [vmem:[%s2 + $0xb8] sm:$0xff]
  %v103 = vld [vmem:[%s2 + $0xc0] sm:$0xff]
  %v104 = vld [vmem:[%s2 + $0xc8] sm:$0xff]
  %v105 = vld [vmem:[%s2 + $0xd0] sm:$0xff]
  %v106 = vld [vmem:[%s2 + $0xd8] sm:$0xff]
  %v107 = vld [vmem:[%s2 + $0xe0] sm:$0xff]
  %v108 = vld [vmem:[%s2 + $0xe8] sm:$0xff]
  %v109 = vld [vmem:[%s2 + $0xf0] sm:$0xff]
  %v110 = vld [vmem:[%s2 + $0xf8] sm:$0xff]
  %112 = vset.pattern.permute.xlu0 0
  %113 = vperm.xlu0 %112, %v79
  %v114 = vpop.permute.xlu0 %113
  %117 = vset.pattern.permute.xlu0 0
  %118 = vperm.xlu0 %117, %v80
  %v119 = vpop.permute.xlu0 %118
  %122 = vset.pattern.permute.xlu0 0
  %123 = vperm.xlu0 %122, %v81
  %v124 = vpop.permute.xlu0 %123
  %127 = vset.pattern.permute.xlu0 0
  %128 = vperm.xlu0 %127, %v82
  %v129 = vpop.permute.xlu0 %128
  %132 = vset.pattern.permute.xlu0 0
  %133 = vperm.xlu0 %132, %v83
  %v134 = vpop.permute.xlu0 %133
  %137 = vset.pattern.permute.xlu0 0
  %138 = vperm.xlu0 %137, %v84
  %v139 = vpop.permute.xlu0 %138
  %142 = vset.pattern.permute.xlu0 0
  %143 = vperm.xlu0 %142, %v85
  %v144 = vpop.permute.xlu0 %143
  %147 = vset.pattern.permute.xlu0 0
  %148 = vperm.xlu0 %147, %v86
  %v149 = vpop.permute.xlu0 %148
  %152 = vset.pattern.permute.xlu0 0
  %153 = vperm.xlu0 %152, %v87
  %v154 = vpop.permute.xlu0 %153
  %157 = vset.pattern.permute.xlu0 0
  %158 = vperm.xlu0 %157, %v88
  %v159 = vpop.permute.xlu0 %158
  %162 = vset.pattern.permute.xlu0 0
  %163 = vperm.xlu0 %162, %v89
  %v164 = vpop.permute.xlu0 %163
  %167 = vset.pattern.permute.xlu0 0
  %168 = vperm.xlu0 %167, %v90
  %v169 = vpop.permute.xlu0 %168
  %172 = vset.pattern.permute.xlu0 0
  %173 = vperm.xlu0 %172, %v91
  %v174 = vpop.permute.xlu0 %173
  %177 = vset.pattern.permute.xlu0 0
  %178 = vperm.xlu0 %177, %v92
  %v179 = vpop.permute.xlu0 %178
  %182 = vset.pattern.permute.xlu0 0
  %183 = vperm.xlu0 %182, %v93
  %v184 = vpop.permute.xlu0 %183
  %187 = vset.pattern.permute.xlu0 0
  %188 = vperm.xlu0 %187, %v94
  %v189 = vpop.permute.xlu0 %188
  %192 = vset.pattern.permute.xlu0 0
  %193 = vperm.xlu0 %192, %v95
  %v194 = vpop.permute.xlu0 %193
  %197 = vset.pattern.permute.xlu0 0
  %198 = vperm.xlu0 %197, %v96
  %v199 = vpop.permute.xlu0 %198
  %202 = vset.pattern.permute.xlu0 0
  %203 = vperm.xlu0 %202, %v97
  %v204 = vpop.permute.xlu0 %203
  %207 = vset.pattern.permute.xlu0 0
  %208 = vperm.xlu0 %207, %v98
  %v209 = vpop.permute.xlu0 %208
  %212 = vset.pattern.permute.xlu0 0
  %213 = vperm.xlu0 %212, %v99
  %v214 = vpop.permute.xlu0 %213
  %217 = vset.pattern.permute.xlu0 0
  %218 = vperm.xlu0 %217, %v100
  %v219 = vpop.permute.xlu0 %218
  %222 = vset.pattern.permute.xlu0 0
  %223 = vperm.xlu0 %222, %v101
  %v224 = vpop.permute.xlu0 %223
  %227 = vset.pattern.permute.xlu0 0
  %228 = vperm.xlu0 %227, %v102
  %v229 = vpop.permute.xlu0 %228
  %232 = vset.pattern.permute.xlu0 0
  %233 = vperm.xlu0 %232, %v103
  %v234 = vpop.permute.xlu0 %233
  %237 = vset.pattern.permute.xlu0 0
  %238 = vperm.xlu0 %237, %v104
  %v239 = vpop.permute.xlu0 %238
  %242 = vset.pattern.permute.xlu0 0
  %243 = vperm.xlu0 %242, %v105
  %v244 = vpop.permute.xlu0 %243
  %247 = vset.pattern.permute.xlu0 0
  %248 = vperm.xlu0 %247, %v106
  %v249 = vpop.permute.xlu0 %248
  %252 = vset.pattern.permute.xlu0 0
  %253 = vperm.xlu0 %252, %v107
  %v254 = vpop.permute.xlu0 %253
  %257 = vset.pattern.permute.xlu0 0
  %258 = vperm.xlu0 %257, %v108
  %v259 = vpop.permute.xlu0 %258
  %262 = vset.pattern.permute.xlu0 0
  %263 = vperm.xlu0 %262, %v109
  %v264 = vpop.permute.xlu0 %263
  %267 = vset.pattern.permute.xlu0 0
  %268 = vperm.xlu0 %267, %v110
  %v269 = vpop.permute.xlu0 %268
  %v303 = vunpack.c.l.b16 %v47
  %v304 = vunpack.c.h.b16 %v47
  %v305 = vunpack.c.l.b16 %v48
  %v306 = vunpack.c.h.b16 %v48
  %v307 = vunpack.c.l.b16 %v49
  %v308 = vunpack.c.h.b16 %v49
  %v309 = vunpack.c.l.b16 %v50
  %v310 = vunpack.c.h.b16 %v50
  %v311 = vunpack.c.l.b16 %v51
  %v312 = vunpack.c.h.b16 %v51
  %v313 = vunpack.c.l.b16 %v52
  %v314 = vunpack.c.h.b16 %v52
  %v315 = vunpack.c.l.b16 %v53
  %v316 = vunpack.c.h.b16 %v53
  %v317 = vunpack.c.l.b16 %v54
  %v318 = vunpack.c.h.b16 %v54
  %v319 = vunpack.c.l.b16 %v55
  %v320 = vunpack.c.h.b16 %v55
  %v321 = vunpack.c.l.b16 %v56
  %v322 = vunpack.c.h.b16 %v56
  %v323 = vunpack.c.l.b16 %v57
  %v324 = vunpack.c.h.b16 %v57
  %v325 = vunpack.c.l.b16 %v58
  %v326 = vunpack.c.h.b16 %v58
  %v327 = vunpack.c.l.b16 %v59
  %v328 = vunpack.c.h.b16 %v59
  %v329 = vunpack.c.l.b16 %v60
  %v330 = vunpack.c.h.b16 %v60
  %v331 = vunpack.c.l.b16 %v61
  %v332 = vunpack.c.h.b16 %v61
  %v333 = vunpack.c.l.b16 %v62
  %v334 = vunpack.c.h.b16 %v62
  %v335 = vunpack.c.l.b16 %v63
  %v336 = vunpack.c.h.b16 %v63
  %v337 = vunpack.c.l.b16 %v64
  %v338 = vunpack.c.h.b16 %v64
  %v339 = vunpack.c.l.b16 %v65
  %v340 = vunpack.c.h.b16 %v65
  %v341 = vunpack.c.l.b16 %v66
  %v342 = vunpack.c.h.b16 %v66
  %v343 = vunpack.c.l.b16 %v67
  %v344 = vunpack.c.h.b16 %v67
  %v345 = vunpack.c.l.b16 %v68
  %v346 = vunpack.c.h.b16 %v68
  %v347 = vunpack.c.l.b16 %v69
  %v348 = vunpack.c.h.b16 %v69
  %v349 = vunpack.c.l.b16 %v70
  %v350 = vunpack.c.h.b16 %v70
  %v351 = vunpack.c.l.b16 %v71
  %v352 = vunpack.c.h.b16 %v71
  %v353 = vunpack.c.l.b16 %v72
  %v354 = vunpack.c.h.b16 %v72
  %v355 = vunpack.c.l.b16 %v73
  %v356 = vunpack.c.h.b16 %v73
  %v357 = vunpack.c.l.b16 %v74
  %v358 = vunpack.c.h.b16 %v74
  %v359 = vunpack.c.l.b16 %v75
  %v360 = vunpack.c.h.b16 %v75
  %v361 = vunpack.c.l.b16 %v76
  %v362 = vunpack.c.h.b16 %v76
  %v363 = vunpack.c.l.b16 %v77
  %v364 = vunpack.c.h.b16 %v77
  %v365 = vunpack.c.l.b16 %v78
  %v366 = vunpack.c.h.b16 %v78
  %v367 = vpack.c.b16 %v305, %v303
  %v368 = vpack.c.b16 %v306, %v304
  %v369 = vpack.c.b16 %v309, %v307
  %v370 = vpack.c.b16 %v310, %v308
  %v371 = vpack.c.b16 %v313, %v311
  %v372 = vpack.c.b16 %v314, %v312
  %v373 = vpack.c.b16 %v317, %v315
  %v374 = vpack.c.b16 %v318, %v316
  %v375 = vpack.c.b16 %v321, %v319
  %v376 = vpack.c.b16 %v322, %v320
  %v377 = vpack.c.b16 %v325, %v323
  %v378 = vpack.c.b16 %v326, %v324
  %v379 = vpack.c.b16 %v329, %v327
  %v380 = vpack.c.b16 %v330, %v328
  %v381 = vpack.c.b16 %v333, %v331
  %v382 = vpack.c.b16 %v334, %v332
  %v383 = vpack.c.b16 %v337, %v335
  %v384 = vpack.c.b16 %v338, %v336
  %v385 = vpack.c.b16 %v341, %v339
  %v386 = vpack.c.b16 %v342, %v340
  %v387 = vpack.c.b16 %v345, %v343
  %v388 = vpack.c.b16 %v346, %v344
  %v389 = vpack.c.b16 %v349, %v347
  %v390 = vpack.c.b16 %v350, %v348
  %v391 = vpack.c.b16 %v353, %v351
  %v392 = vpack.c.b16 %v354, %v352
  %v393 = vpack.c.b16 %v357, %v355
  %v394 = vpack.c.b16 %v358, %v356
  %v395 = vpack.c.b16 %v361, %v359
  %v396 = vpack.c.b16 %v362, %v360
  %v397 = vpack.c.b16 %v365, %v363
  %v398 = vpack.c.b16 %v366, %v364
  %v463 = vunpack.c.l.b16 %v15
  %v464 = vunpack.c.l.b16 %v16
  %v465 = vunpack.c.l.b16 %v17
  %v466 = vunpack.c.l.b16 %v18
  %v467 = vunpack.c.l.b16 %v19
  %v468 = vunpack.c.l.b16 %v20
  %v469 = vunpack.c.l.b16 %v21
  %v470 = vunpack.c.l.b16 %v22
  %v471 = vunpack.c.l.b16 %v23
  %v472 = vunpack.c.l.b16 %v24
  %v473 = vunpack.c.l.b16 %v25
  %v474 = vunpack.c.l.b16 %v26
  %v475 = vunpack.c.l.b16 %v27
  %v476 = vunpack.c.l.b16 %v28
  %v477 = vunpack.c.l.b16 %v29
  %v478 = vunpack.c.l.b16 %v30
  %v479 = vunpack.c.l.b16 %v31
  %v480 = vunpack.c.l.b16 %v32
  %v481 = vunpack.c.l.b16 %v33
  %v482 = vunpack.c.l.b16 %v34
  %v483 = vunpack.c.l.b16 %v35
  %v484 = vunpack.c.l.b16 %v36
  %v485 = vunpack.c.l.b16 %v37
  %v486 = vunpack.c.l.b16 %v38
  %v487 = vunpack.c.l.b16 %v39
  %v488 = vunpack.c.l.b16 %v40
  %v489 = vunpack.c.l.b16 %v41
  %v490 = vunpack.c.l.b16 %v42
  %v491 = vunpack.c.l.b16 %v43
  %v492 = vunpack.c.l.b16 %v44
  %v493 = vunpack.c.l.b16 %v45
  %v494 = vunpack.c.l.b16 %v46
  %v495 = vpack.c.b16 %v464, %v463
  %v496 = vpack.c.b16 %v466, %v465
  %v497 = vpack.c.b16 %v468, %v467
  %v498 = vpack.c.b16 %v470, %v469
  %v499 = vpack.c.b16 %v472, %v471
  %v500 = vpack.c.b16 %v474, %v473
  %v501 = vpack.c.b16 %v476, %v475
  %v502 = vpack.c.b16 %v478, %v477
  %v503 = vpack.c.b16 %v480, %v479
  %v504 = vpack.c.b16 %v482, %v481
  %v505 = vpack.c.b16 %v484, %v483
  %v506 = vpack.c.b16 %v486, %v485
  %v507 = vpack.c.b16 %v488, %v487
  %v508 = vpack.c.b16 %v490, %v489
  %v509 = vpack.c.b16 %v492, %v491
  %v510 = vpack.c.b16 %v494, %v493
  %527 = vmatprep.subr.bf16.mxu0 0
  %528 = vmatpush1.bf16.msra.mxu0 %v502
  %529 = vmatprep.subr.bf16.mxu0 0
  %530 = vmatpush1.bf16.msra.mxu0 %v501
  %531 = vmatprep.subr.bf16.mxu0 0
  %532 = vmatpush1.bf16.msra.mxu0 %v500
  %533 = vmatprep.subr.bf16.mxu0 0
  %534 = vmatpush1.bf16.msra.mxu0 %v499
  %535 = vmatprep.subr.bf16.mxu0 0
  %536 = vmatpush1.bf16.msra.mxu0 %v498
  %537 = vmatprep.subr.bf16.mxu0 0
  %538 = vmatpush1.bf16.msra.mxu0 %v497
  %539 = vmatprep.subr.bf16.mxu0 0
  %540 = vmatpush1.bf16.msra.mxu0 %v496
  %541 = vmatprep.subr.bf16.mxu0 0
  %542 = vmatpush1.bf16.msra.mxu0 %v495
  %543 = vmatprep.subr.bf16.mxu0 0
  %544 = vmatpush2.bf16.msra.mxu0 %v510
  %545 = vmatprep.subr.bf16.mxu0 0
  %546 = vmatpush2.bf16.msra.mxu0 %v509
  %547 = vmatprep.subr.bf16.mxu0 0
  %548 = vmatpush2.bf16.msra.mxu0 %v508
  %549 = vmatprep.subr.bf16.mxu0 0
  %550 = vmatpush2.bf16.msra.mxu0 %v507
  %551 = vmatprep.subr.bf16.mxu0 0
  %552 = vmatpush2.bf16.msra.mxu0 %v506
  %553 = vmatprep.subr.bf16.mxu0 0
  %554 = vmatpush2.bf16.msra.mxu0 %v505
  %555 = vmatprep.subr.bf16.mxu0 0
  %556 = vmatpush2.bf16.msra.mxu0 %v504
  %557 = vmatprep.subr.bf16.mxu0 0
  %558 = vmatpush2.bf16.msra.mxu0 %v503
  %559 = vmatprep.mubr.bf16.mxu0 %v368
  %560 = vmatmul.mubr.bf16.gmra.mxu0 %v367
  %v561 = vpop.f32.mrf.mxu0
  %v562 = vadd.f32 %v114, %v561
  %v563 = vpop.f32.mrf.mxu0
  %v564 = vpop.f32.mrf.mxu0
  %v565 = vadd.f32 %v119, %v564
  %v566 = vpop.f32.mrf.mxu0
  %567 = vmatprep.mubr.bf16.mxu0 %v370
  %568 = vmatmul.mubr.bf16.gmra.mxu0 %v369
  %v569 = vpop.f32.mrf.mxu0
  %v570 = vadd.f32 %v124, %v569
  %v571 = vpop.f32.mrf.mxu0
  %v572 = vpop.f32.mrf.mxu0
  %v573 = vadd.f32 %v129, %v572
  %v574 = vpop.f32.mrf.mxu0
  %575 = vmatprep.mubr.bf16.mxu0 %v372
  %576 = vmatmul.mubr.bf16.gmra.mxu0 %v371
  %v577 = vpop.f32.mrf.mxu0
  %v578 = vadd.f32 %v134, %v577
  %v579 = vpop.f32.mrf.mxu0
  %v580 = vpop.f32.mrf.mxu0
  %v581 = vadd.f32 %v139, %v580
  %v582 = vpop.f32.mrf.mxu0
  %583 = vmatprep.mubr.bf16.mxu0 %v374
  %584 = vmatmul.mubr.bf16.gmra.mxu0 %v373
  %v585 = vpop.f32.mrf.mxu0
  %v586 = vadd.f32 %v144, %v585
  %v587 = vpop.f32.mrf.mxu0
  %v588 = vpop.f32.mrf.mxu0
  %v589 = vadd.f32 %v149, %v588
  %v590 = vpop.f32.mrf.mxu0
  %591 = vmatprep.mubr.bf16.mxu0 %v376
  %592 = vmatmul.mubr.bf16.gmra.mxu0 %v375
  %v593 = vpop.f32.mrf.mxu0
  %v594 = vadd.f32 %v154, %v593
  %v595 = vpop.f32.mrf.mxu0
  %v596 = vpop.f32.mrf.mxu0
  %v597 = vadd.f32 %v159, %v596
  %v598 = vpop.f32.mrf.mxu0
  %599 = vmatprep.mubr.bf16.mxu0 %v378
  %600 = vmatmul.mubr.bf16.gmra.mxu0 %v377
  %v601 = vpop.f32.mrf.mxu0
  %v602 = vadd.f32 %v164, %v601
  %v603 = vpop.f32.mrf.mxu0
  %v604 = vpop.f32.mrf.mxu0
  %v605 = vadd.f32 %v169, %v604
  %v606 = vpop.f32.mrf.mxu0
  %607 = vmatprep.mubr.bf16.mxu0 %v380
  %608 = vmatmul.mubr.bf16.gmra.mxu0 %v379
  %v609 = vpop.f32.mrf.mxu0
  %v610 = vadd.f32 %v174, %v609
  %v611 = vpop.f32.mrf.mxu0
  %v612 = vpop.f32.mrf.mxu0
  %v613 = vadd.f32 %v179, %v612
  %v614 = vpop.f32.mrf.mxu0
  %615 = vmatprep.mubr.bf16.mxu0 %v382
  %616 = vmatmul.mubr.bf16.gmra.mxu0 %v381
  %v617 = vpop.f32.mrf.mxu0
  %v618 = vadd.f32 %v184, %v617
  %v619 = vpop.f32.mrf.mxu0
  %v620 = vpop.f32.mrf.mxu0
  %v621 = vadd.f32 %v189, %v620
  %v622 = vpop.f32.mrf.mxu0
  %623 = vmatprep.mubr.bf16.mxu0 %v384
  %624 = vmatmul.mubr.bf16.gmra.mxu0 %v383
  %v625 = vpop.f32.mrf.mxu0
  %v626 = vadd.f32 %v194, %v625
  %v627 = vpop.f32.mrf.mxu0
  %v628 = vpop.f32.mrf.mxu0
  %v629 = vadd.f32 %v199, %v628
  %v630 = vpop.f32.mrf.mxu0
  %631 = vmatprep.mubr.bf16.mxu0 %v386
  %632 = vmatmul.mubr.bf16.gmra.mxu0 %v385
  %v633 = vpop.f32.mrf.mxu0
  %v634 = vadd.f32 %v204, %v633
  %v635 = vpop.f32.mrf.mxu0
  %v636 = vpop.f32.mrf.mxu0
  %v637 = vadd.f32 %v209, %v636
  %v638 = vpop.f32.mrf.mxu0
  %639 = vmatprep.mubr.bf16.mxu0 %v388
  %640 = vmatmul.mubr.bf16.gmra.mxu0 %v387
  %v641 = vpop.f32.mrf.mxu0
  %v642 = vadd.f32 %v214, %v641
  %v643 = vpop.f32.mrf.mxu0
  %v644 = vpop.f32.mrf.mxu0
  %v645 = vadd.f32 %v219, %v644
  %v646 = vpop.f32.mrf.mxu0
  %647 = vmatprep.mubr.bf16.mxu0 %v390
  %648 = vmatmul.mubr.bf16.gmra.mxu0 %v389
  %v649 = vpop.f32.mrf.mxu0
  %v650 = vadd.f32 %v224, %v649
  %v651 = vpop.f32.mrf.mxu0
  %v652 = vpop.f32.mrf.mxu0
  %v653 = vadd.f32 %v229, %v652
  %v654 = vpop.f32.mrf.mxu0
  %655 = vmatprep.mubr.bf16.mxu0 %v392
  %656 = vmatmul.mubr.bf16.gmra.mxu0 %v391
  %v657 = vpop.f32.mrf.mxu0
  %v658 = vadd.f32 %v234, %v657
  %v659 = vpop.f32.mrf.mxu0
  %v660 = vpop.f32.mrf.mxu0
  %v661 = vadd.f32 %v239, %v660
  %v662 = vpop.f32.mrf.mxu0
  %663 = vmatprep.mubr.bf16.mxu0 %v394
  %664 = vmatmul.mubr.bf16.gmra.mxu0 %v393
  %v665 = vpop.f32.mrf.mxu0
  %v666 = vadd.f32 %v244, %v665
  %v667 = vpop.f32.mrf.mxu0
  %v668 = vpop.f32.mrf.mxu0
  %v669 = vadd.f32 %v249, %v668
  %v670 = vpop.f32.mrf.mxu0
  %671 = vmatprep.mubr.bf16.mxu0 %v396
  %672 = vmatmul.mubr.bf16.gmra.mxu0 %v395
  %v673 = vpop.f32.mrf.mxu0
  %v674 = vadd.f32 %v254, %v673
  %v675 = vpop.f32.mrf.mxu0
  %v676 = vpop.f32.mrf.mxu0
  %v677 = vadd.f32 %v259, %v676
  %v678 = vpop.f32.mrf.mxu0
  %679 = vmatprep.mubr.bf16.mxu0 %v398
  %680 = vmatmul.mubr.bf16.gmra.mxu0 %v397
  %v681 = vpop.f32.mrf.mxu0
  %v682 = vadd.f32 %v264, %v681
  %v683 = vpop.f32.mrf.mxu0
  %v684 = vpop.f32.mrf.mxu0
  %v685 = vadd.f32 %v269, %v684
  %v686 = vpop.f32.mrf.mxu0
  %687 = vdwg.mxu0
  %v688 = vmax.f32 %v562, 0.0
  %v689 = vmax.f32 %v565, 0.0
  %v690 = vmax.f32 %v570, 0.0
  %v691 = vmax.f32 %v573, 0.0
  %v692 = vmax.f32 %v578, 0.0
  %v693 = vmax.f32 %v581, 0.0
  %v694 = vmax.f32 %v586, 0.0
  %v695 = vmax.f32 %v589, 0.0
  %v696 = vmax.f32 %v594, 0.0
  %v697 = vmax.f32 %v597, 0.0
  %v698 = vmax.f32 %v602, 0.0
  %v699 = vmax.f32 %v605, 0.0
  %v700 = vmax.f32 %v610, 0.0
  %v701 = vmax.f32 %v613, 0.0
  %v702 = vmax.f32 %v618, 0.0
  %v703 = vmax.f32 %v621, 0.0
  %v704 = vmax.f32 %v626, 0.0
  %v705 = vmax.f32 %v629, 0.0
  %v706 = vmax.f32 %v634, 0.0
  %v707 = vmax.f32 %v637, 0.0
  %v708 = vmax.f32 %v642, 0.0
  %v709 = vmax.f32 %v645, 0.0
  %v710 = vmax.f32 %v650, 0.0
  %v711 = vmax.f32 %v653, 0.0
  %v712 = vmax.f32 %v658, 0.0
  %v713 = vmax.f32 %v661, 0.0
  %v714 = vmax.f32 %v666, 0.0
  %v715 = vmax.f32 %v669, 0.0
  %v716 = vmax.f32 %v674, 0.0
  %v717 = vmax.f32 %v677, 0.0
  %v718 = vmax.f32 %v682, 0.0
  %v719 = vmax.f32 %v685, 0.0
  %v720 = vpack.c.bf16 %v689, %v688
  %v721 = vpack.c.bf16 %v691, %v690
  %v722 = vpack.c.bf16 %v693, %v692
  %v723 = vpack.c.bf16 %v695, %v694
  %v724 = vpack.c.bf16 %v697, %v696
  %v725 = vpack.c.bf16 %v699, %v698
  %v726 = vpack.c.bf16 %v701, %v700
  %v727 = vpack.c.bf16 %v703, %v702
  %v728 = vpack.c.bf16 %v705, %v704
  %v729 = vpack.c.bf16 %v707, %v706
  %v730 = vpack.c.bf16 %v709, %v708
  %v731 = vpack.c.bf16 %v711, %v710
  %v732 = vpack.c.bf16 %v713, %v712
  %v733 = vpack.c.bf16 %v715, %v714
  %v734 = vpack.c.bf16 %v717, %v716
  %v735 = vpack.c.bf16 %v719, %v718
  %v752 = vunpack.c.l.b16 %v720
  %v753 = vunpack.c.h.b16 %v720
  %v754 = vunpack.c.l.b16 %v721
  %v755 = vunpack.c.h.b16 %v721
  %v756 = vunpack.c.l.b16 %v722
  %v757 = vunpack.c.h.b16 %v722
  %v758 = vunpack.c.l.b16 %v723
  %v759 = vunpack.c.h.b16 %v723
  %v760 = vunpack.c.l.b16 %v724
  %v761 = vunpack.c.h.b16 %v724
  %v762 = vunpack.c.l.b16 %v725
  %v763 = vunpack.c.h.b16 %v725
  %v764 = vunpack.c.l.b16 %v726
  %v765 = vunpack.c.h.b16 %v726
  %v766 = vunpack.c.l.b16 %v727
  %v767 = vunpack.c.h.b16 %v727
  %v768 = vunpack.c.l.b16 %v728
  %v769 = vunpack.c.h.b16 %v728
  %v770 = vunpack.c.l.b16 %v729
  %v771 = vunpack.c.h.b16 %v729
  %v772 = vunpack.c.l.b16 %v730
  %v773 = vunpack.c.h.b16 %v730
  %v774 = vunpack.c.l.b16 %v731
  %v775 = vunpack.c.h.b16 %v731
  %v776 = vunpack.c.l.b16 %v732
  %v777 = vunpack.c.h.b16 %v732
  %v778 = vunpack.c.l.b16 %v733
  %v779 = vunpack.c.h.b16 %v733
  %v780 = vunpack.c.l.b16 %v734
  %v781 = vunpack.c.h.b16 %v734
  %v782 = vunpack.c.l.b16 %v735
  %v783 = vunpack.c.h.b16 %v735
  %v784 = vpack.c.b16 %v752, %v752
  %v785 = vpack.c.b16 %v753, %v753
  %v786 = vpack.c.b16 %v754, %v754
  %v787 = vpack.c.b16 %v755, %v755
  %v788 = vpack.c.b16 %v756, %v756
  %v789 = vpack.c.b16 %v757, %v757
  %v790 = vpack.c.b16 %v758, %v758
  %v791 = vpack.c.b16 %v759, %v759
  %v792 = vpack.c.b16 %v760, %v760
  %v793 = vpack.c.b16 %v761, %v761
  %v794 = vpack.c.b16 %v762, %v762
  %v795 = vpack.c.b16 %v763, %v763
  %v796 = vpack.c.b16 %v764, %v764
  %v797 = vpack.c.b16 %v765, %v765
  %v798 = vpack.c.b16 %v766, %v766
  %v799 = vpack.c.b16 %v767, %v767
  %v800 = vpack.c.b16 %v768, %v768
  %v801 = vpack.c.b16 %v769, %v769
  %v802 = vpack.c.b16 %v770, %v770
  %v803 = vpack.c.b16 %v771, %v771
  %v804 = vpack.c.b16 %v772, %v772
  %v805 = vpack.c.b16 %v773, %v773
  %v806 = vpack.c.b16 %v774, %v774
  %v807 = vpack.c.b16 %v775, %v775
  %v808 = vpack.c.b16 %v776, %v776
  %v809 = vpack.c.b16 %v777, %v777
  %v810 = vpack.c.b16 %v778, %v778
  %v811 = vpack.c.b16 %v779, %v779
  %v812 = vpack.c.b16 %v780, %v780
  %v813 = vpack.c.b16 %v781, %v781
  %v814 = vpack.c.b16 %v782, %v782
  %v815 = vpack.c.b16 %v783, %v783
  %vm848 = vcmask 142336
  %849 = vst.msk [vmem:[%s3] sm:$0xf] %vm848, %v784
  %850 = vst.msk [vmem:[%s3 + $0x4] sm:$0xf] %vm848, %v785
  %851 = vst.msk [vmem:[%s3 + $0x8] sm:$0xf] %vm848, %v786
  %852 = vst.msk [vmem:[%s3 + $0xc] sm:$0xf] %vm848, %v787
  %853 = vst.msk [vmem:[%s3 + $0x10] sm:$0xf] %vm848, %v788
  %854 = vst.msk [vmem:[%s3 + $0x14] sm:$0xf] %vm848, %v789
  %855 = vst.msk [vmem:[%s3 + $0x18] sm:$0xf] %vm848, %v790
  %856 = vst.msk [vmem:[%s3 + $0x1c] sm:$0xf] %vm848, %v791
  %857 = vst.msk [vmem:[%s3 + $0x20] sm:$0xf] %vm848, %v792
  %858 = vst.msk [vmem:[%s3 + $0x24] sm:$0xf] %vm848, %v793
  %859 = vst.msk [vmem:[%s3 + $0x28] sm:$0xf] %vm848, %v794
  %860 = vst.msk [vmem:[%s3 + $0x2c] sm:$0xf] %vm848, %v795
  %861 = vst.msk [vmem:[%s3 + $0x30] sm:$0xf] %vm848, %v796
  %862 = vst.msk [vmem:[%s3 + $0x34] sm:$0xf] %vm848, %v797
  %863 = vst.msk [vmem:[%s3 + $0x38] sm:$0xf] %vm848, %v798
  %864 = vst.msk [vmem:[%s3 + $0x3c] sm:$0xf] %vm848, %v799
  %865 = vst.msk [vmem:[%s3 + $0x40] sm:$0xf] %vm848, %v800
  %866 = vst.msk [vmem:[%s3 + $0x44] sm:$0xf] %vm848, %v801
  %867 = vst.msk [vmem:[%s3 + $0x48] sm:$0xf] %vm848, %v802
  %868 = vst.msk [vmem:[%s3 + $0x4c] sm:$0xf] %vm848, %v803
  %869 = vst.msk [vmem:[%s3 + $0x50] sm:$0xf] %vm848, %v804
  %870 = vst.msk [vmem:[%s3 + $0x54] sm:$0xf] %vm848, %v805
  %871 = vst.msk [vmem:[%s3 + $0x58] sm:$0xf] %vm848, %v806
  %872 = vst.msk [vmem:[%s3 + $0x5c] sm:$0xf] %vm848, %v807
  %873 = vst.msk [vmem:[%s3 + $0x60] sm:$0xf] %vm848, %v808
  %874 = vst.msk [vmem:[%s3 + $0x64] sm:$0xf] %vm848, %v809
  %875 = vst.msk [vmem:[%s3 + $0x68] sm:$0xf] %vm848, %v810
  %876 = vst.msk [vmem:[%s3 + $0x6c] sm:$0xf] %vm848, %v811
  %877 = vst.msk [vmem:[%s3 + $0x70] sm:$0xf] %vm848, %v812
  %878 = vst.msk [vmem:[%s3 + $0x74] sm:$0xf] %vm848, %v813
  %879 = vst.msk [vmem:[%s3 + $0x78] sm:$0xf] %vm848, %v814
  %880 = vst.msk [vmem:[%s3 + $0x7c] sm:$0xf] %vm848, %v815
  // Predicated region
  $region14: #{forward.14} parent=0 // pred_check
    _
  $region15: #{forward.14} parent=0 // pred_check_branch
    %882 = sbr.rel (0) target = $region17
  $region16: #{forward.14} parent=0 // pred_region
    _
  $region17: #{forward.14} parent=0 // pred_fallthru
    _
  // Predicated region
  $region18: #{forward.14} parent=0 // pred_check
    _
  $region19: #{forward.14} parent=0 // pred_check_branch
    %884 = sbr.rel (0) target = $region21
  $region20: #{forward.14} parent=0 // pred_region
    _
  $region21: #{forward.14} parent=0 // pred_fallthru
    _

// kernel: forward.15
$region0: #{forward.15}
  #allocation0 [shape = 'u32[]', space=smem, size = 0x4, offset = 0x4, fixed_abs, tag = 'smem constant byte address 0x4 - core index']
  #allocation1 [shape = 'u32[144,128]{1,0:T(1,128)}', space=vmem, size = 0x12000, scoped, tag = 'internal scratch']
  %s0 = inlined_call_operand.vmem [shape: bf16[128,256], index: 0, kind: input, shape index: {}]
  %s1 = inlined_call_operand.vmem [shape: bf16[256,98], index: 1, kind: input, shape index: {}]
  %s2 = inlined_call_operand.vmem [shape: f32[128,1], index: 2, kind: input, shape index: {}]
  %s3 = inlined_call_operand.vmem [shape: bf16[128,98], index: 3, kind: output, shape index: {}]
  %s4 = sld [smem:[#allocation0]]
  $region22: #{forward.15} parent=0
    _
  %s6 = ssub.s32 1, %s4
  %s7 = scalar_select 0, %s6, %s4
  // Predicated region
  $region2: #{forward.15} parent=0 // pred_check
    _
  $region3: #{forward.15} parent=0 // pred_check_branch
    %9 = sbr.rel (0) target = $region5
  $region4: #{forward.15} parent=0 // pred_region
    _
  $region5: #{forward.15} parent=0 // pred_fallthru
    _
  // Predicated region
  $region6: #{forward.15} parent=0 // pred_check
    _
  $region7: #{forward.15} parent=0 // pred_check_branch
    %11 = sbr.rel (0) target = $region9
  $region8: #{forward.15} parent=0 // pred_region
    _
  $region9: #{forward.15} parent=0 // pred_fallthru
    _
  // Predicated region
  $region10: #{forward.15} parent=0 // pred_check
    _
  $region11: #{forward.15} parent=0 // pred_check_branch
    %13 = sbr.rel (0) target = $region13
  $region12: #{forward.15} parent=0 // pred_region
    _
  $region13: #{forward.15} parent=0 // pred_fallthru
    _
  %v15 = vld [vmem:[%s1] sm:$0xf]
  %v16 = vld [vmem:[%s1 + $0x4] sm:$0xf]
  %v17 = vld [vmem:[%s1 + $0x8] sm:$0xf]
  %v18 = vld [vmem:[%s1 + $0xc] sm:$0xf]
  %v19 = vld [vmem:[%s1 + $0x10] sm:$0xf]
  %v20 = vld [vmem:[%s1 + $0x14] sm:$0xf]
  %v21 = vld [vmem:[%s1 + $0x18] sm:$0xf]
  %v22 = vld [vmem:[%s1 + $0x1c] sm:$0xf]
  %v23 = vld [vmem:[%s1 + $0x20] sm:$0xf]
  %v24 = vld [vmem:[%s1 + $0x24] sm:$0xf]
  %v25 = vld [vmem:[%s1 + $0x28] sm:$0xf]
  %v26 = vld [vmem:[%s1 + $0x2c] sm:$0xf]
  %v27 = vld [vmem:[%s1 + $0x30] sm:$0xf]
  %v28 = vld [vmem:[%s1 + $0x34] sm:$0xf]
  %v29 = vld [vmem:[%s1 + $0x38] sm:$0xf]
  %v30 = vld [vmem:[%s1 + $0x3c] sm:$0xf]
  %v31 = vld [vmem:[%s1 + $0x40] sm:$0xf]
  %v32 = vld [vmem:[%s1 + $0x44] sm:$0xf]
  %v33 = vld [vmem:[%s1 + $0x48] sm:$0xf]
  %v34 = vld [vmem:[%s1 + $0x4c] sm:$0xf]
  %v35 = vld [vmem:[%s1 + $0x50] sm:$0xf]
  %v36 = vld [vmem:[%s1 + $0x54] sm:$0xf]
  %v37 = vld [vmem:[%s1 + $0x58] sm:$0xf]
  %v38 = vld [vmem:[%s1 + $0x5c] sm:$0xf]
  %v39 = vld [vmem:[%s1 + $0x60] sm:$0xf]
  %v40 = vld [vmem:[%s1 + $0x64] sm:$0xf]
  %v41 = vld [vmem:[%s1 + $0x68] sm:$0xf]
  %v42 = vld [vmem:[%s1 + $0x6c] sm:$0xf]
  %v43 = vld [vmem:[%s1 + $0x70] sm:$0xf]
  %v44 = vld [vmem:[%s1 + $0x74] sm:$0xf]
  %v45 = vld [vmem:[%s1 + $0x78] sm:$0xf]
  %v46 = vld [vmem:[%s1 + $0x7c] sm:$0xf]
  %v47 = vld [vmem:[%s0] sm:$0xff]
  %v48 = vld [vmem:[%s0 + $0x8] sm:$0xff]
  %v49 = vld [vmem:[%s0 + $0x10] sm:$0xff]
  %v50 = vld [vmem:[%s0 + $0x18] sm:$0xff]
  %v51 = vld [vmem:[%s0 + $0x20] sm:$0xff]
  %v52 = vld [vmem:[%s0 + $0x28] sm:$0xff]
  %v53 = vld [vmem:[%s0 + $0x30] sm:$0xff]
  %v54 = vld [vmem:[%s0 + $0x38] sm:$0xff]
  %v55 = vld [vmem:[%s0 + $0x40] sm:$0xff]
  %v56 = vld [vmem:[%s0 + $0x48] sm:$0xff]
  %v57 = vld [vmem:[%s0 + $0x50] sm:$0xff]
  %v58 = vld [vmem:[%s0 + $0x58] sm:$0xff]
  %v59 = vld [vmem:[%s0 + $0x60] sm:$0xff]
  %v60 = vld [vmem:[%s0 + $0x68] sm:$0xff]
  %v61 = vld [vmem:[%s0 + $0x70] sm:$0xff]
  %v62 = vld [vmem:[%s0 + $0x78] sm:$0xff]
  %v63 = vld [vmem:[%s2] sm:$0xff]
  %v64 = vld [vmem:[%s2 + $0x8] sm:$0xff]
  %v65 = vld [vmem:[%s2 + $0x10] sm:$0xff]
  %v66 = vld [vmem:[%s2 + $0x18] sm:$0xff]
  %v67 = vld [vmem:[%s2 + $0x20] sm:$0xff]
  %v68 = vld [vmem:[%s2 + $0x28] sm:$0xff]
  %v69 = vld [vmem:[%s2 + $0x30] sm:$0xff]
  %v70 = vld [vmem:[%s2 + $0x38] sm:$0xff]
  %v71 = vld [vmem:[%s2 + $0x40] sm:$0xff]
  %v72 = vld [vmem:[%s2 + $0x48] sm:$0xff]
  %v73 = vld [vmem:[%s2 + $0x50] sm:$0xff]
  %v74 = vld [vmem:[%s2 + $0x58] sm:$0xff]
  %v75 = vld [vmem:[%s2 + $0x60] sm:$0xff]
  %v76 = vld [vmem:[%s2 + $0x68] sm:$0xff]
  %v77 = vld [vmem:[%s2 + $0x70] sm:$0xff]
  %v78 = vld [vmem:[%s2 + $0x78] sm:$0xff]
  %80 = vset.pattern.permute.xlu0 0
  %81 = vperm.xlu0 %80, %v63
  %v82 = vpop.permute.xlu0 %81
  %85 = vset.pattern.permute.xlu0 0
  %86 = vperm.xlu0 %85, %v64
  %v87 = vpop.permute.xlu0 %86
  %90 = vset.pattern.permute.xlu0 0
  %91 = vperm.xlu0 %90, %v65
  %v92 = vpop.permute.xlu0 %91
  %95 = vset.pattern.permute.xlu0 0
  %96 = vperm.xlu0 %95, %v66
  %v97 = vpop.permute.xlu0 %96
  %100 = vset.pattern.permute.xlu0 0
  %101 = vperm.xlu0 %100, %v67
  %v102 = vpop.permute.xlu0 %101
  %105 = vset.pattern.permute.xlu0 0
  %106 = vperm.xlu0 %105, %v68
  %v107 = vpop.permute.xlu0 %106
  %110 = vset.pattern.permute.xlu0 0
  %111 = vperm.xlu0 %110, %v69
  %v112 = vpop.permute.xlu0 %111
  %115 = vset.pattern.permute.xlu0 0
  %116 = vperm.xlu0 %115, %v70
  %v117 = vpop.permute.xlu0 %116
  %120 = vset.pattern.permute.xlu0 0
  %121 = vperm.xlu0 %120, %v71
  %v122 = vpop.permute.xlu0 %121
  %125 = vset.pattern.permute.xlu0 0
  %126 = vperm.xlu0 %125, %v72
  %v127 = vpop.permute.xlu0 %126
  %130 = vset.pattern.permute.xlu0 0
  %131 = vperm.xlu0 %130, %v73
  %v132 = vpop.permute.xlu0 %131
  %135 = vset.pattern.permute.xlu0 0
  %136 = vperm.xlu0 %135, %v74
  %v137 = vpop.permute.xlu0 %136
  %140 = vset.pattern.permute.xlu0 0
  %141 = vperm.xlu0 %140, %v75
  %v142 = vpop.permute.xlu0 %141
  %145 = vset.pattern.permute.xlu0 0
  %146 = vperm.xlu0 %145, %v76
  %v147 = vpop.permute.xlu0 %146
  %150 = vset.pattern.permute.xlu0 0
  %151 = vperm.xlu0 %150, %v77
  %v152 = vpop.permute.xlu0 %151
  %155 = vset.pattern.permute.xlu0 0
  %156 = vperm.xlu0 %155, %v78
  %v157 = vpop.permute.xlu0 %156
  %v175 = vunpack.c.l.b16 %v47
  %v176 = vunpack.c.h.b16 %v47
  %v177 = vunpack.c.l.b16 %v48
  %v178 = vunpack.c.h.b16 %v48
  %v179 = vunpack.c.l.b16 %v49
  %v180 = vunpack.c.h.b16 %v49
  %v181 = vunpack.c.l.b16 %v50
  %v182 = vunpack.c.h.b16 %v50
  %v183 = vunpack.c.l.b16 %v51
  %v184 = vunpack.c.h.b16 %v51
  %v185 = vunpack.c.l.b16 %v52
  %v186 = vunpack.c.h.b16 %v52
  %v187 = vunpack.c.l.b16 %v53
  %v188 = vunpack.c.h.b16 %v53
  %v189 = vunpack.c.l.b16 %v54
  %v190 = vunpack.c.h.b16 %v54
  %v191 = vunpack.c.l.b16 %v55
  %v192 = vunpack.c.h.b16 %v55
  %v193 = vunpack.c.l.b16 %v56
  %v194 = vunpack.c.h.b16 %v56
  %v195 = vunpack.c.l.b16 %v57
  %v196 = vunpack.c.h.b16 %v57
  %v197 = vunpack.c.l.b16 %v58
  %v198 = vunpack.c.h.b16 %v58
  %v199 = vunpack.c.l.b16 %v59
  %v200 = vunpack.c.h.b16 %v59
  %v201 = vunpack.c.l.b16 %v60
  %v202 = vunpack.c.h.b16 %v60
  %v203 = vunpack.c.l.b16 %v61
  %v204 = vunpack.c.h.b16 %v61
  %v205 = vunpack.c.l.b16 %v62
  %v206 = vunpack.c.h.b16 %v62
  %v207 = vpack.c.b16 %v177, %v175
  %v208 = vpack.c.b16 %v178, %v176
  %v209 = vpack.c.b16 %v181, %v179
  %v210 = vpack.c.b16 %v182, %v180
  %v211 = vpack.c.b16 %v185, %v183
  %v212 = vpack.c.b16 %v186, %v184
  %v213 = vpack.c.b16 %v189, %v187
  %v214 = vpack.c.b16 %v190, %v188
  %v215 = vpack.c.b16 %v193, %v191
  %v216 = vpack.c.b16 %v194, %v192
  %v217 = vpack.c.b16 %v197, %v195
  %v218 = vpack.c.b16 %v198, %v196
  %v219 = vpack.c.b16 %v201, %v199
  %v220 = vpack.c.b16 %v202, %v200
  %v221 = vpack.c.b16 %v205, %v203
  %v222 = vpack.c.b16 %v206, %v204
  %v271 = vunpack.c.l.b16 %v15
  %v272 = vunpack.c.l.b16 %v16
  %v273 = vunpack.c.l.b16 %v17
  %v274 = vunpack.c.l.b16 %v18
  %v275 = vunpack.c.l.b16 %v19
  %v276 = vunpack.c.l.b16 %v20
  %v277 = vunpack.c.l.b16 %v21
  %v278 = vunpack.c.l.b16 %v22
  %v279 = vunpack.c.l.b16 %v23
  %v280 = vunpack.c.l.b16 %v24
  %v281 = vunpack.c.l.b16 %v25
  %v282 = vunpack.c.l.b16 %v26
  %v283 = vunpack.c.l.b16 %v27
  %v284 = vunpack.c.l.b16 %v28
  %v285 = vunpack.c.l.b16 %v29
  %v286 = vunpack.c.l.b16 %v30
  %v287 = vunpack.c.l.b16 %v31
  %v288 = vunpack.c.l.b16 %v32
  %v289 = vunpack.c.l.b16 %v33
  %v290 = vunpack.c.l.b16 %v34
  %v291 = vunpack.c.l.b16 %v35
  %v292 = vunpack.c.l.b16 %v36
  %v293 = vunpack.c.l.b16 %v37
  %v294 = vunpack.c.l.b16 %v38
  %v295 = vunpack.c.l.b16 %v39
  %v296 = vunpack.c.l.b16 %v40
  %v297 = vunpack.c.l.b16 %v41
  %v298 = vunpack.c.l.b16 %v42
  %v299 = vunpack.c.l.b16 %v43
  %v300 = vunpack.c.l.b16 %v44
  %v301 = vunpack.c.l.b16 %v45
  %v302 = vunpack.c.l.b16 %v46
  %v303 = vpack.c.b16 %v272, %v271
  %v304 = vpack.c.b16 %v274, %v273
  %v305 = vpack.c.b16 %v276, %v275
  %v306 = vpack.c.b16 %v278, %v277
  %v307 = vpack.c.b16 %v280, %v279
  %v308 = vpack.c.b16 %v282, %v281
  %v309 = vpack.c.b16 %v284, %v283
  %v310 = vpack.c.b16 %v286, %v285
  %v311 = vpack.c.b16 %v288, %v287
  %v312 = vpack.c.b16 %v290, %v289
  %v313 = vpack.c.b16 %v292, %v291
  %v314 = vpack.c.b16 %v294, %v293
  %v315 = vpack.c.b16 %v296, %v295
  %v316 = vpack.c.b16 %v298, %v297
  %v317 = vpack.c.b16 %v300, %v299
  %v318 = vpack.c.b16 %v302, %v301
  %335 = vmatprep.subr.bf16.mxu0 0
  %336 = vmatpush1.bf16.msra.mxu0 %v310
  %337 = vmatprep.subr.bf16.mxu0 0
  %338 = vmatpush1.bf16.msra.mxu0 %v309
  %339 = vmatprep.subr.bf16.mxu0 0
  %340 = vmatpush1.bf16.msra.mxu0 %v308
  %341 = vmatprep.subr.bf16.mxu0 0
  %342 = vmatpush1.bf16.msra.mxu0 %v307
  %343 = vmatprep.subr.bf16.mxu0 0
  %344 = vmatpush1.bf16.msra.mxu0 %v306
  %345 = vmatprep.subr.bf16.mxu0 0
  %346 = vmatpush1.bf16.msra.mxu0 %v305
  %347 = vmatprep.subr.bf16.mxu0 0
  %348 = vmatpush1.bf16.msra.mxu0 %v304
  %349 = vmatprep.subr.bf16.mxu0 0
  %350 = vmatpush1.bf16.msra.mxu0 %v303
  %351 = vmatprep.subr.bf16.mxu0 0
  %352 = vmatpush2.bf16.msra.mxu0 %v318
  %353 = vmatprep.subr.bf16.mxu0 0
  %354 = vmatpush2.bf16.msra.mxu0 %v317
  %355 = vmatprep.subr.bf16.mxu0 0
  %356 = vmatpush2.bf16.msra.mxu0 %v316
  %357 = vmatprep.subr.bf16.mxu0 0
  %358 = vmatpush2.bf16.msra.mxu0 %v315
  %359 = vmatprep.subr.bf16.mxu0 0
  %360 = vmatpush2.bf16.msra.mxu0 %v314
  %361 = vmatprep.subr.bf16.mxu0 0
  %362 = vmatpush2.bf16.msra.mxu0 %v313
  %363 = vmatprep.subr.bf16.mxu0 0
  %364 = vmatpush2.bf16.msra.mxu0 %v312
  %365 = vmatprep.subr.bf16.mxu0 0
  %366 = vmatpush2.bf16.msra.mxu0 %v311
  %367 = vmatprep.mubr.bf16.mxu0 %v208
  %368 = vmatmul.mubr.bf16.gmra.mxu0 %v207
  %v369 = vpop.f32.mrf.mxu0
  %v370 = vadd.f32 %v82, %v369
  %v371 = vpop.f32.mrf.mxu0
  %v372 = vpop.f32.mrf.mxu0
  %v373 = vadd.f32 %v87, %v372
  %v374 = vpop.f32.mrf.mxu0
  %375 = vmatprep.mubr.bf16.mxu0 %v210
  %376 = vmatmul.mubr.bf16.gmra.mxu0 %v209
  %v377 = vpop.f32.mrf.mxu0
  %v378 = vadd.f32 %v92, %v377
  %v379 = vpop.f32.mrf.mxu0
  %v380 = vpop.f32.mrf.mxu0
  %v381 = vadd.f32 %v97, %v380
  %v382 = vpop.f32.mrf.mxu0
  %383 = vmatprep.mubr.bf16.mxu0 %v212
  %384 = vmatmul.mubr.bf16.gmra.mxu0 %v211
  %v385 = vpop.f32.mrf.mxu0
  %v386 = vadd.f32 %v102, %v385
  %v387 = vpop.f32.mrf.mxu0
  %v388 = vpop.f32.mrf.mxu0
  %v389 = vadd.f32 %v107, %v388
  %v390 = vpop.f32.mrf.mxu0
  %391 = vmatprep.mubr.bf16.mxu0 %v214
  %392 = vmatmul.mubr.bf16.gmra.mxu0 %v213
  %v393 = vpop.f32.mrf.mxu0
  %v394 = vadd.f32 %v112, %v393
  %v395 = vpop.f32.mrf.mxu0
  %v396 = vpop.f32.mrf.mxu0
  %v397 = vadd.f32 %v117, %v396
  %v398 = vpop.f32.mrf.mxu0
  %399 = vmatprep.mubr.bf16.mxu0 %v216
  %400 = vmatmul.mubr.bf16.gmra.mxu0 %v215
  %v401 = vpop.f32.mrf.mxu0
  %v402 = vadd.f32 %v122, %v401
  %v403 = vpop.f32.mrf.mxu0
  %v404 = vpop.f32.mrf.mxu0
  %v405 = vadd.f32 %v127, %v404
  %v406 = vpop.f32.mrf.mxu0
  %407 = vmatprep.mubr.bf16.mxu0 %v218
  %408 = vmatmul.mubr.bf16.gmra.mxu0 %v217
  %v409 = vpop.f32.mrf.mxu0
  %v410 = vadd.f32 %v132, %v409
  %v411 = vpop.f32.mrf.mxu0
  %v412 = vpop.f32.mrf.mxu0
  %v413 = vadd.f32 %v137, %v412
  %v414 = vpop.f32.mrf.mxu0
  %415 = vmatprep.mubr.bf16.mxu0 %v220
  %416 = vmatmul.mubr.bf16.gmra.mxu0 %v219
  %v417 = vpop.f32.mrf.mxu0
  %v418 = vadd.f32 %v142, %v417
  %v419 = vpop.f32.mrf.mxu0
  %v420 = vpop.f32.mrf.mxu0
  %v421 = vadd.f32 %v147, %v420
  %v422 = vpop.f32.mrf.mxu0
  %423 = vmatprep.mubr.bf16.mxu0 %v222
  %424 = vmatmul.mubr.bf16.gmra.mxu0 %v221
  %v425 = vpop.f32.mrf.mxu0
  %v426 = vadd.f32 %v152, %v425
  %v427 = vpop.f32.mrf.mxu0
  %v428 = vpop.f32.mrf.mxu0
  %v429 = vadd.f32 %v157, %v428
  %v430 = vpop.f32.mrf.mxu0
  %431 = vdwg.mxu0
  %v432 = vmax.f32 %v370, 0.0
  %v433 = vmax.f32 %v373, 0.0
  %v434 = vmax.f32 %v378, 0.0
  %v435 = vmax.f32 %v381, 0.0
  %v436 = vmax.f32 %v386, 0.0
  %v437 = vmax.f32 %v389, 0.0
  %v438 = vmax.f32 %v394, 0.0
  %v439 = vmax.f32 %v397, 0.0
  %v440 = vmax.f32 %v402, 0.0
  %v441 = vmax.f32 %v405, 0.0
  %v442 = vmax.f32 %v410, 0.0
  %v443 = vmax.f32 %v413, 0.0
  %v444 = vmax.f32 %v418, 0.0
  %v445 = vmax.f32 %v421, 0.0
  %v446 = vmax.f32 %v426, 0.0
  %v447 = vmax.f32 %v429, 0.0
  %v448 = vpack.c.bf16 %v433, %v432
  %v449 = vpack.c.bf16 %v435, %v434
  %v450 = vpack.c.bf16 %v437, %v436
  %v451 = vpack.c.bf16 %v439, %v438
  %v452 = vpack.c.bf16 %v441, %v440
  %v453 = vpack.c.bf16 %v443, %v442
  %v454 = vpack.c.bf16 %v445, %v444
  %v455 = vpack.c.bf16 %v447, %v446
  %v464 = vunpack.c.l.b16 %v448
  %v465 = vunpack.c.h.b16 %v448
  %v466 = vunpack.c.l.b16 %v449
  %v467 = vunpack.c.h.b16 %v449
  %v468 = vunpack.c.l.b16 %v450
  %v469 = vunpack.c.h.b16 %v450
  %v470 = vunpack.c.l.b16 %v451
  %v471 = vunpack.c.h.b16 %v451
  %v472 = vunpack.c.l.b16 %v452
  %v473 = vunpack.c.h.b16 %v452
  %v474 = vunpack.c.l.b16 %v453
  %v475 = vunpack.c.h.b16 %v453
  %v476 = vunpack.c.l.b16 %v454
  %v477 = vunpack.c.h.b16 %v454
  %v478 = vunpack.c.l.b16 %v455
  %v479 = vunpack.c.h.b16 %v455
  %v480 = vpack.c.b16 %v464, %v464
  %v481 = vpack.c.b16 %v465, %v465
  %v482 = vpack.c.b16 %v466, %v466
  %v483 = vpack.c.b16 %v467, %v467
  %v484 = vpack.c.b16 %v468, %v468
  %v485 = vpack.c.b16 %v469, %v469
  %v486 = vpack.c.b16 %v470, %v470
  %v487 = vpack.c.b16 %v471, %v471
  %v488 = vpack.c.b16 %v472, %v472
  %v489 = vpack.c.b16 %v473, %v473
  %v490 = vpack.c.b16 %v474, %v474
  %v491 = vpack.c.b16 %v475, %v475
  %v492 = vpack.c.b16 %v476, %v476
  %v493 = vpack.c.b16 %v477, %v477
  %v494 = vpack.c.b16 %v478, %v478
  %v495 = vpack.c.b16 %v479, %v479
  %vm512 = vcmask 797696
  %513 = vst.msk [vmem:[%s3] sm:$0xf] %vm512, %v480
  %514 = vst.msk [vmem:[%s3 + $0x4] sm:$0xf] %vm512, %v481
  %515 = vst.msk [vmem:[%s3 + $0x8] sm:$0xf] %vm512, %v482
  %516 = vst.msk [vmem:[%s3 + $0xc] sm:$0xf] %vm512, %v483
  %517 = vst.msk [vmem:[%s3 + $0x10] sm:$0xf] %vm512, %v484
  %518 = vst.msk [vmem:[%s3 + $0x14] sm:$0xf] %vm512, %v485
  %519 = vst.msk [vmem:[%s3 + $0x18] sm:$0xf] %vm512, %v486
  %520 = vst.msk [vmem:[%s3 + $0x1c] sm:$0xf] %vm512, %v487
  %521 = vst.msk [vmem:[%s3 + $0x20] sm:$0xf] %vm512, %v488
  %522 = vst.msk [vmem:[%s3 + $0x24] sm:$0xf] %vm512, %v489
  %523 = vst.msk [vmem:[%s3 + $0x28] sm:$0xf] %vm512, %v490
  %524 = vst.msk [vmem:[%s3 + $0x2c] sm:$0xf] %vm512, %v491
  %525 = vst.msk [vmem:[%s3 + $0x30] sm:$0xf] %vm512, %v492
  %526 = vst.msk [vmem:[%s3 + $0x34] sm:$0xf] %vm512, %v493
  %527 = vst.msk [vmem:[%s3 + $0x38] sm:$0xf] %vm512, %v494
  %528 = vst.msk [vmem:[%s3 + $0x3c] sm:$0xf] %vm512, %v495
  // Predicated region
  $region14: #{forward.15} parent=0 // pred_check
    _
  $region15: #{forward.15} parent=0 // pred_check_branch
    %530 = sbr.rel (0) target = $region17
  $region16: #{forward.15} parent=0 // pred_region
    _
  $region17: #{forward.15} parent=0 // pred_fallthru
    _
  // Predicated region
  $region18: #{forward.15} parent=0 // pred_check
    _
  $region19: #{forward.15} parent=0 // pred_check_branch
    %532 = sbr.rel (0) target = $region21
  $region20: #{forward.15} parent=0 // pred_region
    _
  $region21: #{forward.15} parent=0 // pred_fallthru
    _

// kernel: forward.16
$region0: #{forward.16}
  #allocation0 [shape = 'u32[]', space=smem, size = 0x4, offset = 0x4, fixed_abs, tag = 'smem constant byte address 0x4 - core index']
  #allocation1 [shape = 'u32[144,128]{1,0:T(1,128)}', space=vmem, size = 0x12000, scoped, tag = 'internal scratch']
  %s0 = inlined_call_operand.vmem [shape: bf16[128,128], index: 0, kind: input, shape index: {}]
  %s1 = inlined_call_operand.vmem [shape: bf16[128,450], index: 1, kind: input, shape index: {}]
  %s2 = inlined_call_operand.vmem [shape: f32[128,1], index: 2, kind: input, shape index: {}]
  %s3 = inlined_call_operand.vmem [shape: bf16[128,450], index: 3, kind: output, shape index: {}]
  %s4 = sld [smem:[#allocation0]]
  $region22: #{forward.16} parent=0
    _
  %s6 = ssub.s32 1, %s4
  %s7 = scalar_select 0, %s6, %s4
  // Predicated region
  $region2: #{forward.16} parent=0 // pred_check
    _
  $region3: #{forward.16} parent=0 // pred_check_branch
    %9 = sbr.rel (0) target = $region5
  $region4: #{forward.16} parent=0 // pred_region
    _
  $region5: #{forward.16} parent=0 // pred_fallthru
    _
  // Predicated region
  $region6: #{forward.16} parent=0 // pred_check
    _
  $region7: #{forward.16} parent=0 // pred_check_branch
    %11 = sbr.rel (0) target = $region9
  $region8: #{forward.16} parent=0 // pred_region
    _
  $region9: #{forward.16} parent=0 // pred_fallthru
    _
  // Predicated region
  $region10: #{forward.16} parent=0 // pred_check
    _
  $region11: #{forward.16} parent=0 // pred_check_branch
    %13 = sbr.rel (0) target = $region13
  $region12: #{forward.16} parent=0 // pred_region
    _
  $region13: #{forward.16} parent=0 // pred_fallthru
    _
  %v15 = vld [vmem:[%s1] sm:$0xff]
  %v16 = vld [vmem:[%s1 + $0x8] sm:$0xff]
  %v17 = vld [vmem:[%s1 + $0x10] sm:$0xff]
  %v18 = vld [vmem:[%s1 + $0x18] sm:$0xff]
  %v19 = vld [vmem:[%s1 + $0x20] sm:$0xff]
  %v20 = vld [vmem:[%s1 + $0x28] sm:$0xff]
  %v21 = vld [vmem:[%s1 + $0x30] sm:$0xff]
  %v22 = vld [vmem:[%s1 + $0x38] sm:$0xff]
  %v23 = vld [vmem:[%s1 + $0x40] sm:$0xff]
  %v24 = vld [vmem:[%s1 + $0x48] sm:$0xff]
  %v25 = vld [vmem:[%s1 + $0x50] sm:$0xff]
  %v26 = vld [vmem:[%s1 + $0x58] sm:$0xff]
  %v27 = vld [vmem:[%s1 + $0x60] sm:$0xff]
  %v28 = vld [vmem:[%s1 + $0x68] sm:$0xff]
  %v29 = vld [vmem:[%s1 + $0x70] sm:$0xff]
  %v30 = vld [vmem:[%s1 + $0x78] sm:$0xff]
  %v31 = vld [vmem:[%s1 + $0x80] sm:$0xff]
  %v32 = vld [vmem:[%s1 + $0x88] sm:$0xff]
  %v33 = vld [vmem:[%s1 + $0x90] sm:$0xff]
  %v34 = vld [vmem:[%s1 + $0x98] sm:$0xff]
  %v35 = vld [vmem:[%s1 + $0xa0] sm:$0xff]
  %v36 = vld [vmem:[%s1 + $0xa8] sm:$0xff]
  %v37 = vld [vmem:[%s1 + $0xb0] sm:$0xff]
  %v38 = vld [vmem:[%s1 + $0xb8] sm:$0xff]
  %v39 = vld [vmem:[%s1 + $0xc0] sm:$0xff]
  %v40 = vld [vmem:[%s1 + $0xc8] sm:$0xff]
  %v41 = vld [vmem:[%s1 + $0xd0] sm:$0xff]
  %v42 = vld [vmem:[%s1 + $0xd8] sm:$0xff]
  %v43 = vld [vmem:[%s1 + $0xe0] sm:$0xff]
  %v44 = vld [vmem:[%s1 + $0xe8] sm:$0xff]
  %v45 = vld [vmem:[%s1 + $0xf0] sm:$0xff]
  %v46 = vld [vmem:[%s1 + $0xf8] sm:$0xff]
  %v47 = vld [vmem:[%s0] sm:$0xf]
  %v48 = vld [vmem:[%s0 + $0x4] sm:$0xf]
  %v49 = vld [vmem:[%s0 + $0x8] sm:$0xf]
  %v50 = vld [vmem:[%s0 + $0xc] sm:$0xf]
  %v51 = vld [vmem:[%s0 + $0x10] sm:$0xf]
  %v52 = vld [vmem:[%s0 + $0x14] sm:$0xf]
  %v53 = vld [vmem:[%s0 + $0x18] sm:$0xf]
  %v54 = vld [vmem:[%s0 + $0x1c] sm:$0xf]
  %v55 = vld [vmem:[%s0 + $0x20] sm:$0xf]
  %v56 = vld [vmem:[%s0 + $0x24] sm:$0xf]
  %v57 = vld [vmem:[%s0 + $0x28] sm:$0xf]
  %v58 = vld [vmem:[%s0 + $0x2c] sm:$0xf]
  %v59 = vld [vmem:[%s0 + $0x30] sm:$0xf]
  %v60 = vld [vmem:[%s0 + $0x34] sm:$0xf]
  %v61 = vld [vmem:[%s0 + $0x38] sm:$0xf]
  %v62 = vld [vmem:[%s0 + $0x3c] sm:$0xf]
  %v63 = vld [vmem:[%s2] sm:$0xff]
  %v64 = vld [vmem:[%s2 + $0x8] sm:$0xff]
  %v65 = vld [vmem:[%s2 + $0x10] sm:$0xff]
  %v66 = vld [vmem:[%s2 + $0x18] sm:$0xff]
  %v67 = vld [vmem:[%s2 + $0x20] sm:$0xff]
  %v68 = vld [vmem:[%s2 + $0x28] sm:$0xff]
  %v69 = vld [vmem:[%s2 + $0x30] sm:$0xff]
  %v70 = vld [vmem:[%s2 + $0x38] sm:$0xff]
  %v71 = vld [vmem:[%s2 + $0x40] sm:$0xff]
  %v72 = vld [vmem:[%s2 + $0x48] sm:$0xff]
  %v73 = vld [vmem:[%s2 + $0x50] sm:$0xff]
  %v74 = vld [vmem:[%s2 + $0x58] sm:$0xff]
  %v75 = vld [vmem:[%s2 + $0x60] sm:$0xff]
  %v76 = vld [vmem:[%s2 + $0x68] sm:$0xff]
  %v77 = vld [vmem:[%s2 + $0x70] sm:$0xff]
  %v78 = vld [vmem:[%s2 + $0x78] sm:$0xff]
  %80 = vset.pattern.permute.xlu0 0
  %81 = vperm.xlu0 %80, %v63
  %v82 = vpop.permute.xlu0 %81
  %85 = vset.pattern.permute.xlu0 0
  %86 = vperm.xlu0 %85, %v64
  %v87 = vpop.permute.xlu0 %86
  %90 = vset.pattern.permute.xlu0 0
  %91 = vperm.xlu0 %90, %v65
  %v92 = vpop.permute.xlu0 %91
  %95 = vset.pattern.permute.xlu0 0
  %96 = vperm.xlu0 %95, %v66
  %v97 = vpop.permute.xlu0 %96
  %100 = vset.pattern.permute.xlu0 0
  %101 = vperm.xlu0 %100, %v67
  %v102 = vpop.permute.xlu0 %101
  %105 = vset.pattern.permute.xlu0 0
  %106 = vperm.xlu0 %105, %v68
  %v107 = vpop.permute.xlu0 %106
  %110 = vset.pattern.permute.xlu0 0
  %111 = vperm.xlu0 %110, %v69
  %v112 = vpop.permute.xlu0 %111
  %115 = vset.pattern.permute.xlu0 0
  %116 = vperm.xlu0 %115, %v70
  %v117 = vpop.permute.xlu0 %116
  %120 = vset.pattern.permute.xlu0 0
  %121 = vperm.xlu0 %120, %v71
  %v122 = vpop.permute.xlu0 %121
  %125 = vset.pattern.permute.xlu0 0
  %126 = vperm.xlu0 %125, %v72
  %v127 = vpop.permute.xlu0 %126
  %130 = vset.pattern.permute.xlu0 0
  %131 = vperm.xlu0 %130, %v73
  %v132 = vpop.permute.xlu0 %131
  %135 = vset.pattern.permute.xlu0 0
  %136 = vperm.xlu0 %135, %v74
  %v137 = vpop.permute.xlu0 %136
  %140 = vset.pattern.permute.xlu0 0
  %141 = vperm.xlu0 %140, %v75
  %v142 = vpop.permute.xlu0 %141
  %145 = vset.pattern.permute.xlu0 0
  %146 = vperm.xlu0 %145, %v76
  %v147 = vpop.permute.xlu0 %146
  %150 = vset.pattern.permute.xlu0 0
  %151 = vperm.xlu0 %150, %v77
  %v152 = vpop.permute.xlu0 %151
  %155 = vset.pattern.permute.xlu0 0
  %156 = vperm.xlu0 %155, %v78
  %v157 = vpop.permute.xlu0 %156
  %v175 = vunpack.c.l.b16 %v47
  %v176 = vunpack.c.l.b16 %v48
  %v177 = vunpack.c.l.b16 %v49
  %v178 = vunpack.c.l.b16 %v50
  %v179 = vunpack.c.l.b16 %v51
  %v180 = vunpack.c.l.b16 %v52
  %v181 = vunpack.c.l.b16 %v53
  %v182 = vunpack.c.l.b16 %v54
  %v183 = vunpack.c.l.b16 %v55
  %v184 = vunpack.c.l.b16 %v56
  %v185 = vunpack.c.l.b16 %v57
  %v186 = vunpack.c.l.b16 %v58
  %v187 = vunpack.c.l.b16 %v59
  %v188 = vunpack.c.l.b16 %v60
  %v189 = vunpack.c.l.b16 %v61
  %v190 = vunpack.c.l.b16 %v62
  %v191 = vpack.c.b16 %v176, %v175
  %v192 = vpack.c.b16 %v178, %v177
  %v193 = vpack.c.b16 %v180, %v179
  %v194 = vpack.c.b16 %v182, %v181
  %v195 = vpack.c.b16 %v184, %v183
  %v196 = vpack.c.b16 %v186, %v185
  %v197 = vpack.c.b16 %v188, %v187
  %v198 = vpack.c.b16 %v190, %v189
  %v239 = vunpack.c.l.b16 %v15
  %v240 = vunpack.c.h.b16 %v15
  %v241 = vunpack.c.l.b16 %v16
  %v242 = vunpack.c.h.b16 %v16
  %v243 = vunpack.c.l.b16 %v17
  %v244 = vunpack.c.h.b16 %v17
  %v245 = vunpack.c.l.b16 %v18
  %v246 = vunpack.c.h.b16 %v18
  %v247 = vunpack.c.l.b16 %v19
  %v248 = vunpack.c.h.b16 %v19
  %v249 = vunpack.c.l.b16 %v20
  %v250 = vunpack.c.h.b16 %v20
  %v251 = vunpack.c.l.b16 %v21
  %v252 = vunpack.c.h.b16 %v21
  %v253 = vunpack.c.l.b16 %v22
  %v254 = vunpack.c.h.b16 %v22
  %v255 = vunpack.c.l.b16 %v23
  %v256 = vunpack.c.h.b16 %v23
  %v257 = vunpack.c.l.b16 %v24
  %v258 = vunpack.c.h.b16 %v24
  %v259 = vunpack.c.l.b16 %v25
  %v260 = vunpack.c.h.b16 %v25
  %v261 = vunpack.c.l.b16 %v26
  %v262 = vunpack.c.h.b16 %v26
  %v263 = vunpack.c.l.b16 %v27
  %v264 = vunpack.c.h.b16 %v27
  %v265 = vunpack.c.l.b16 %v28
  %v266 = vunpack.c.h.b16 %v28
  %v267 = vunpack.c.l.b16 %v29
  %v268 = vunpack.c.h.b16 %v29
  %v269 = vunpack.c.l.b16 %v30
  %v270 = vunpack.c.h.b16 %v30
  %v271 = vunpack.c.l.b16 %v31
  %v272 = vunpack.c.h.b16 %v31
  %v273 = vunpack.c.l.b16 %v32
  %v274 = vunpack.c.h.b16 %v32
  %v275 = vunpack.c.l.b16 %v33
  %v276 = vunpack.c.h.b16 %v33
  %v277 = vunpack.c.l.b16 %v34
  %v278 = vunpack.c.h.b16 %v34
  %v279 = vunpack.c.l.b16 %v35
  %v280 = vunpack.c.h.b16 %v35
  %v281 = vunpack.c.l.b16 %v36
  %v282 = vunpack.c.h.b16 %v36
  %v283 = vunpack.c.l.b16 %v37
  %v284 = vunpack.c.h.b16 %v37
  %v285 = vunpack.c.l.b16 %v38
  %v286 = vunpack.c.h.b16 %v38
  %v287 = vunpack.c.l.b16 %v39
  %v288 = vunpack.c.h.b16 %v39
  %v289 = vunpack.c.l.b16 %v40
  %v290 = vunpack.c.h.b16 %v40
  %v291 = vunpack.c.l.b16 %v41
  %v292 = vunpack.c.h.b16 %v41
  %v293 = vunpack.c.l.b16 %v42
  %v294 = vunpack.c.h.b16 %v42
  %v295 = vunpack.c.l.b16 %v43
  %v296 = vunpack.c.h.b16 %v43
  %v297 = vunpack.c.l.b16 %v44
  %v298 = vunpack.c.h.b16 %v44
  %v299 = vunpack.c.l.b16 %v45
  %v300 = vunpack.c.h.b16 %v45
  %v301 = vunpack.c.l.b16 %v46
  %v302 = vunpack.c.h.b16 %v46
  %v303 = vpack.c.b16 %v243, %v239
  %v304 = vpack.c.b16 %v244, %v240
  %v305 = vpack.c.b16 %v245, %v241
  %v306 = vpack.c.b16 %v246, %v242
  %v307 = vpack.c.b16 %v251, %v247
  %v308 = vpack.c.b16 %v252, %v248
  %v309 = vpack.c.b16 %v253, %v249
  %v310 = vpack.c.b16 %v254, %v250
  %v311 = vpack.c.b16 %v259, %v255
  %v312 = vpack.c.b16 %v260, %v256
  %v313 = vpack.c.b16 %v261, %v257
  %v314 = vpack.c.b16 %v262, %v258
  %v315 = vpack.c.b16 %v267, %v263
  %v316 = vpack.c.b16 %v268, %v264
  %v317 = vpack.c.b16 %v269, %v265
  %v318 = vpack.c.b16 %v270, %v266
  %v319 = vpack.c.b16 %v275, %v271
  %v320 = vpack.c.b16 %v276, %v272
  %v321 = vpack.c.b16 %v277, %v273
  %v322 = vpack.c.b16 %v278, %v274
  %v323 = vpack.c.b16 %v283, %v279
  %v324 = vpack.c.b16 %v284, %v280
  %v325 = vpack.c.b16 %v285, %v281
  %v326 = vpack.c.b16 %v286, %v282
  %v327 = vpack.c.b16 %v291, %v287
  %v328 = vpack.c.b16 %v292, %v288
  %v329 = vpack.c.b16 %v293, %v289
  %v330 = vpack.c.b16 %v294, %v290
  %v331 = vpack.c.b16 %v299, %v295
  %v332 = vpack.c.b16 %v300, %v296
  %v333 = vpack.c.b16 %v301, %v297
  %v334 = vpack.c.b16 %v302, %v298
  %367 = vmatprep.subr.bf16.mxu0 %v332
  %368 = vmatpush1.bf16.msra.mxu0 %v331
  %369 = vmatprep.subr.bf16.mxu0 %v328
  %370 = vmatpush1.bf16.msra.mxu0 %v327
  %371 = vmatprep.subr.bf16.mxu0 %v324
  %372 = vmatpush1.bf16.msra.mxu0 %v323
  %373 = vmatprep.subr.bf16.mxu0 %v320
  %374 = vmatpush1.bf16.msra.mxu0 %v319
  %375 = vmatprep.subr.bf16.mxu0 %v316
  %376 = vmatpush1.bf16.msra.mxu0 %v315
  %377 = vmatprep.subr.bf16.mxu0 %v312
  %378 = vmatpush1.bf16.msra.mxu0 %v311
  %379 = vmatprep.subr.bf16.mxu0 %v308
  %380 = vmatpush1.bf16.msra.mxu0 %v307
  %381 = vmatprep.subr.bf16.mxu0 %v304
  %382 = vmatpush1.bf16.msra.mxu0 %v303
  %383 = vmatprep.subr.bf16.mxu0 0
  %384 = vmatpush2.bf16.msra.mxu0 0
  %385 = vmatprep.subr.bf16.mxu0 0
  %386 = vmatpush2.bf16.msra.mxu0 0
  %387 = vmatprep.subr.bf16.mxu0 0
  %388 = vmatpush2.bf16.msra.mxu0 0
  %389 = vmatprep.subr.bf16.mxu0 0
  %390 = vmatpush2.bf16.msra.mxu0 0
  %391 = vmatprep.subr.bf16.mxu0 0
  %392 = vmatpush2.bf16.msra.mxu0 0
  %393 = vmatprep.subr.bf16.mxu0 0
  %394 = vmatpush2.bf16.msra.mxu0 0
  %395 = vmatprep.subr.bf16.mxu0 0
  %396 = vmatpush2.bf16.msra.mxu0 0
  %397 = vmatprep.subr.bf16.mxu0 0
  %398 = vmatpush2.bf16.msra.mxu0 0
  %399 = vmatprep.mubr.bf16.mxu0 0
  %400 = vmatmul.mubr.bf16.gmra.mxu0 %v191
  %v401 = vpop.f32.mrf.mxu0
  %v402 = vadd.f32 %v82, %v401
  %v403 = vpop.f32.mrf.mxu0
  %v404 = vadd.f32 %v82, %v403
  %v405 = vpop.f32.mrf.mxu0
  %v406 = vadd.f32 %v87, %v405
  %v407 = vpop.f32.mrf.mxu0
  %v408 = vadd.f32 %v87, %v407
  %409 = vmatprep.mubr.bf16.mxu0 0
  %410 = vmatmul.mubr.bf16.gmra.mxu0 %v192
  %v411 = vpop.f32.mrf.mxu0
  %v412 = vadd.f32 %v92, %v411
  %v413 = vpop.f32.mrf.mxu0
  %v414 = vadd.f32 %v92, %v413
  %v415 = vpop.f32.mrf.mxu0
  %v416 = vadd.f32 %v97, %v415
  %v417 = vpop.f32.mrf.mxu0
  %v418 = vadd.f32 %v97, %v417
  %419 = vmatprep.mubr.bf16.mxu0 0
  %420 = vmatmul.mubr.bf16.gmra.mxu0 %v193
  %v421 = vpop.f32.mrf.mxu0
  %v422 = vadd.f32 %v102, %v421
  %v423 = vpop.f32.mrf.mxu0
  %v424 = vadd.f32 %v102, %v423
  %v425 = vpop.f32.mrf.mxu0
  %v426 = vadd.f32 %v107, %v425
  %v427 = vpop.f32.mrf.mxu0
  %v428 = vadd.f32 %v107, %v427
  %429 = vmatprep.mubr.bf16.mxu0 0
  %430 = vmatmul.mubr.bf16.gmra.mxu0 %v194
  %v431 = vpop.f32.mrf.mxu0
  %v432 = vadd.f32 %v112, %v431
  %v433 = vpop.f32.mrf.mxu0
  %v434 = vadd.f32 %v112, %v433
  %v435 = vpop.f32.mrf.mxu0
  %v436 = vadd.f32 %v117, %v435
  %v437 = vpop.f32.mrf.mxu0
  %v438 = vadd.f32 %v117, %v437
  %439 = vmatprep.mubr.bf16.mxu0 0
  %440 = vmatmul.mubr.bf16.gmra.mxu0 %v195
  %v441 = vpop.f32.mrf.mxu0
  %v442 = vadd.f32 %v122, %v441
  %v443 = vpop.f32.mrf.mxu0
  %v444 = vadd.f32 %v122, %v443
  %v445 = vpop.f32.mrf.mxu0
  %v446 = vadd.f32 %v127, %v445
  %v447 = vpop.f32.mrf.mxu0
  %v448 = vadd.f32 %v127, %v447
  %449 = vmatprep.mubr.bf16.mxu0 0
  %450 = vmatmul.mubr.bf16.gmra.mxu0 %v196
  %v451 = vpop.f32.mrf.mxu0
  %v452 = vadd.f32 %v132, %v451
  %v453 = vpop.f32.mrf.mxu0
  %v454 = vadd.f32 %v132, %v453
  %v455 = vpop.f32.mrf.mxu0
  %v456 = vadd.f32 %v137, %v455
  %v457 = vpop.f32.mrf.mxu0
  %v458 = vadd.f32 %v137, %v457
  %459 = vmatprep.mubr.bf16.mxu0 0
  %460 = vmatmul.mubr.bf16.gmra.mxu0 %v197
  %v461 = vpop.f32.mrf.mxu0
  %v462 = vadd.f32 %v142, %v461
  %v463 = vpop.f32.mrf.mxu0
  %v464 = vadd.f32 %v142, %v463
  %v465 = vpop.f32.mrf.mxu0
  %v466 = vadd.f32 %v147, %v465
  %v467 = vpop.f32.mrf.mxu0
  %v468 = vadd.f32 %v147, %v467
  %469 = vmatprep.mubr.bf16.mxu0 0
  %470 = vmatmul.mubr.bf16.gmra.mxu0 %v198
  %v471 = vpop.f32.mrf.mxu0
  %v472 = vadd.f32 %v152, %v471
  %v473 = vpop.f32.mrf.mxu0
  %v474 = vadd.f32 %v152, %v473
  %v475 = vpop.f32.mrf.mxu0
  %v476 = vadd.f32 %v157, %v475
  %v477 = vpop.f32.mrf.mxu0
  %v478 = vadd.f32 %v157, %v477
  %479 = vdwg.mxu0
  %480 = vmatprep.subr.bf16.mxu0 %v334
  %481 = vmatpush1.bf16.msra.mxu0 %v333
  %482 = vmatprep.subr.bf16.mxu0 %v330
  %483 = vmatpush1.bf16.msra.mxu0 %v329
  %484 = vmatprep.subr.bf16.mxu0 %v326
  %485 = vmatpush1.bf16.msra.mxu0 %v325
  %486 = vmatprep.subr.bf16.mxu0 %v322
  %487 = vmatpush1.bf16.msra.mxu0 %v321
  %488 = vmatprep.subr.bf16.mxu0 %v318
  %489 = vmatpush1.bf16.msra.mxu0 %v317
  %490 = vmatprep.subr.bf16.mxu0 %v314
  %491 = vmatpush1.bf16.msra.mxu0 %v313
  %492 = vmatprep.subr.bf16.mxu0 %v310
  %493 = vmatpush1.bf16.msra.mxu0 %v309
  %494 = vmatprep.subr.bf16.mxu0 %v306
  %495 = vmatpush1.bf16.msra.mxu0 %v305
  %496 = vmatprep.subr.bf16.mxu0 0
  %497 = vmatpush2.bf16.msra.mxu0 0
  %498 = vmatprep.subr.bf16.mxu0 0
  %499 = vmatpush2.bf16.msra.mxu0 0
  %500 = vmatprep.subr.bf16.mxu0 0
  %501 = vmatpush2.bf16.msra.mxu0 0
  %502 = vmatprep.subr.bf16.mxu0 0
  %503 = vmatpush2.bf16.msra.mxu0 0
  %504 = vmatprep.subr.bf16.mxu0 0
  %505 = vmatpush2.bf16.msra.mxu0 0
  %506 = vmatprep.subr.bf16.mxu0 0
  %507 = vmatpush2.bf16.msra.mxu0 0
  %508 = vmatprep.subr.bf16.mxu0 0
  %509 = vmatpush2.bf16.msra.mxu0 0
  %510 = vmatprep.subr.bf16.mxu0 0
  %511 = vmatpush2.bf16.msra.mxu0 0
  %512 = vmatprep.mubr.bf16.mxu0 0
  %513 = vmatmul.mubr.bf16.gmra.mxu0 %v191
  %v514 = vpop.f32.mrf.mxu0
  %v515 = vadd.f32 %v82, %v514
  %v516 = vpop.f32.mrf.mxu0
  %v517 = vadd.f32 %v82, %v516
  %v518 = vpop.f32.mrf.mxu0
  %v519 = vadd.f32 %v87, %v518
  %v520 = vpop.f32.mrf.mxu0
  %v521 = vadd.f32 %v87, %v520
  %522 = vmatprep.mubr.bf16.mxu0 0
  %523 = vmatmul.mubr.bf16.gmra.mxu0 %v192
  %v524 = vpop.f32.mrf.mxu0
  %v525 = vadd.f32 %v92, %v524
  %v526 = vpop.f32.mrf.mxu0
  %v527 = vadd.f32 %v92, %v526
  %v528 = vpop.f32.mrf.mxu0
  %v529 = vadd.f32 %v97, %v528
  %v530 = vpop.f32.mrf.mxu0
  %v531 = vadd.f32 %v97, %v530
  %532 = vmatprep.mubr.bf16.mxu0 0
  %533 = vmatmul.mubr.bf16.gmra.mxu0 %v193
  %v534 = vpop.f32.mrf.mxu0
  %v535 = vadd.f32 %v102, %v534
  %v536 = vpop.f32.mrf.mxu0
  %v537 = vadd.f32 %v102, %v536
  %v538 = vpop.f32.mrf.mxu0
  %v539 = vadd.f32 %v107, %v538
  %v540 = vpop.f32.mrf.mxu0
  %v541 = vadd.f32 %v107, %v540
  %542 = vmatprep.mubr.bf16.mxu0 0
  %543 = vmatmul.mubr.bf16.gmra.mxu0 %v194
  %v544 = vpop.f32.mrf.mxu0
  %v545 = vadd.f32 %v112, %v544
  %v546 = vpop.f32.mrf.mxu0
  %v547 = vadd.f32 %v112, %v546
  %v548 = vpop.f32.mrf.mxu0
  %v549 = vadd.f32 %v117, %v548
  %v550 = vpop.f32.mrf.mxu0
  %v551 = vadd.f32 %v117, %v550
  %552 = vmatprep.mubr.bf16.mxu0 0
  %553 = vmatmul.mubr.bf16.gmra.mxu0 %v195
  %v554 = vpop.f32.mrf.mxu0
  %v555 = vadd.f32 %v122, %v554
  %v556 = vpop.f32.mrf.mxu0
  %v557 = vadd.f32 %v122, %v556
  %v558 = vpop.f32.mrf.mxu0
  %v559 = vadd.f32 %v127, %v558
  %v560 = vpop.f32.mrf.mxu0
  %v561 = vadd.f32 %v127, %v560
  %562 = vmatprep.mubr.bf16.mxu0 0
  %563 = vmatmul.mubr.bf16.gmra.mxu0 %v196
  %v564 = vpop.f32.mrf.mxu0
  %v565 = vadd.f32 %v132, %v564
  %v566 = vpop.f32.mrf.mxu0
  %v567 = vadd.f32 %v132, %v566
  %v568 = vpop.f32.mrf.mxu0
  %v569 = vadd.f32 %v137, %v568
  %v570 = vpop.f32.mrf.mxu0
  %v571 = vadd.f32 %v137, %v570
  %572 = vmatprep.mubr.bf16.mxu0 0
  %573 = vmatmul.mubr.bf16.gmra.mxu0 %v197
  %v574 = vpop.f32.mrf.mxu0
  %v575 = vadd.f32 %v142, %v574
  %v576 = vpop.f32.mrf.mxu0
  %v577 = vadd.f32 %v142, %v576
  %v578 = vpop.f32.mrf.mxu0
  %v579 = vadd.f32 %v147, %v578
  %v580 = vpop.f32.mrf.mxu0
  %v581 = vadd.f32 %v147, %v580
  %582 = vmatprep.mubr.bf16.mxu0 0
  %583 = vmatmul.mubr.bf16.gmra.mxu0 %v198
  %v584 = vpop.f32.mrf.mxu0
  %v585 = vadd.f32 %v152, %v584
  %v586 = vpop.f32.mrf.mxu0
  %v587 = vadd.f32 %v152, %v586
  %v588 = vpop.f32.mrf.mxu0
  %v589 = vadd.f32 %v157, %v588
  %v590 = vpop.f32.mrf.mxu0
  %v591 = vadd.f32 %v157, %v590
  %592 = vdwg.mxu0
  %v593 = vmax.f32 %v402, 0.0
  %v594 = vmax.f32 %v404, 0.0
  %v595 = vmax.f32 %v515, 0.0
  %v596 = vmax.f32 %v517, 0.0
  %v597 = vmax.f32 %v406, 0.0
  %v598 = vmax.f32 %v408, 0.0
  %v599 = vmax.f32 %v519, 0.0
  %v600 = vmax.f32 %v521, 0.0
  %v601 = vmax.f32 %v412, 0.0
  %v602 = vmax.f32 %v414, 0.0
  %v603 = vmax.f32 %v525, 0.0
  %v604 = vmax.f32 %v527, 0.0
  %v605 = vmax.f32 %v416, 0.0
  %v606 = vmax.f32 %v418, 0.0
  %v607 = vmax.f32 %v529, 0.0
  %v608 = vmax.f32 %v531, 0.0
  %v609 = vmax.f32 %v422, 0.0
  %v610 = vmax.f32 %v424, 0.0
  %v611 = vmax.f32 %v535, 0.0
  %v612 = vmax.f32 %v537, 0.0
  %v613 = vmax.f32 %v426, 0.0
  %v614 = vmax.f32 %v428, 0.0
  %v615 = vmax.f32 %v539, 0.0
  %v616 = vmax.f32 %v541, 0.0
  %v617 = vmax.f32 %v432, 0.0
  %v618 = vmax.f32 %v434, 0.0
  %v619 = vmax.f32 %v545, 0.0
  %v620 = vmax.f32 %v547, 0.0
  %v621 = vmax.f32 %v436, 0.0
  %v622 = vmax.f32 %v438, 0.0
  %v623 = vmax.f32 %v549, 0.0
  %v624 = vmax.f32 %v551, 0.0
  %v625 = vmax.f32 %v442, 0.0
  %v626 = vmax.f32 %v444, 0.0
  %v627 = vmax.f32 %v555, 0.0
  %v628 = vmax.f32 %v557, 0.0
  %v629 = vmax.f32 %v446, 0.0
  %v630 = vmax.f32 %v448, 0.0
  %v631 = vmax.f32 %v559, 0.0
  %v632 = vmax.f32 %v561, 0.0
  %v633 = vmax.f32 %v452, 0.0
  %v634 = vmax.f32 %v454, 0.0
  %v635 = vmax.f32 %v565, 0.0
  %v636 = vmax.f32 %v567, 0.0
  %v637 = vmax.f32 %v456, 0.0
  %v638 = vmax.f32 %v458, 0.0
  %v639 = vmax.f32 %v569, 0.0
  %v640 = vmax.f32 %v571, 0.0
  %v641 = vmax.f32 %v462, 0.0
  %v642 = vmax.f32 %v464, 0.0
  %v643 = vmax.f32 %v575, 0.0
  %v644 = vmax.f32 %v577, 0.0
  %v645 = vmax.f32 %v466, 0.0
  %v646 = vmax.f32 %v468, 0.0
  %v647 = vmax.f32 %v579, 0.0
  %v648 = vmax.f32 %v581, 0.0
  %v649 = vmax.f32 %v472, 0.0
  %v650 = vmax.f32 %v474, 0.0
  %v651 = vmax.f32 %v585, 0.0
  %v652 = vmax.f32 %v587, 0.0
  %v653 = vmax.f32 %v476, 0.0
  %v654 = vmax.f32 %v478, 0.0
  %v655 = vmax.f32 %v589, 0.0
  %v656 = vmax.f32 %v591, 0.0
  %v657 = vpack.c.bf16 %v597, %v593
  %v658 = vpack.c.bf16 %v598, %v594
  %v659 = vpack.c.bf16 %v599, %v595
  %v660 = vpack.c.bf16 %v600, %v596
  %v661 = vpack.c.bf16 %v605, %v601
  %v662 = vpack.c.bf16 %v606, %v602
  %v663 = vpack.c.bf16 %v607, %v603
  %v664 = vpack.c.bf16 %v608, %v604
  %v665 = vpack.c.bf16 %v613, %v609
  %v666 = vpack.c.bf16 %v614, %v610
  %v667 = vpack.c.bf16 %v615, %v611
  %v668 = vpack.c.bf16 %v616, %v612
  %v669 = vpack.c.bf16 %v621, %v617
  %v670 = vpack.c.bf16 %v622, %v618
  %v671 = vpack.c.bf16 %v623, %v619
  %v672 = vpack.c.bf16 %v624, %v620
  %v673 = vpack.c.bf16 %v629, %v625
  %v674 = vpack.c.bf16 %v630, %v626
  %v675 = vpack.c.bf16 %v631, %v627
  %v676 = vpack.c.bf16 %v632, %v628
  %v677 = vpack.c.bf16 %v637, %v633
  %v678 = vpack.c.bf16 %v638, %v634
  %v679 = vpack.c.bf16 %v639, %v635
  %v680 = vpack.c.bf16 %v640, %v636
  %v681 = vpack.c.bf16 %v645, %v641
  %v682 = vpack.c.bf16 %v646, %v642
  %v683 = vpack.c.bf16 %v647, %v643
  %v684 = vpack.c.bf16 %v648, %v644
  %v685 = vpack.c.bf16 %v653, %v649
  %v686 = vpack.c.bf16 %v654, %v650
  %v687 = vpack.c.bf16 %v655, %v651
  %v688 = vpack.c.bf16 %v656, %v652
  %v721 = vunpack.c.l.b16 %v657
  %v722 = vunpack.c.l.b16 %v658
  %v723 = vunpack.c.l.b16 %v659
  %v724 = vunpack.c.l.b16 %v660
  %v725 = vunpack.c.h.b16 %v657
  %v726 = vunpack.c.h.b16 %v658
  %v727 = vunpack.c.h.b16 %v659
  %v728 = vunpack.c.h.b16 %v660
  %v729 = vunpack.c.l.b16 %v661
  %v730 = vunpack.c.l.b16 %v662
  %v731 = vunpack.c.l.b16 %v663
  %v732 = vunpack.c.l.b16 %v664
  %v733 = vunpack.c.h.b16 %v661
  %v734 = vunpack.c.h.b16 %v662
  %v735 = vunpack.c.h.b16 %v663
  %v736 = vunpack.c.h.b16 %v664
  %v737 = vunpack.c.l.b16 %v665
  %v738 = vunpack.c.l.b16 %v666
  %v739 = vunpack.c.l.b16 %v667
  %v740 = vunpack.c.l.b16 %v668
  %v741 = vunpack.c.h.b16 %v665
  %v742 = vunpack.c.h.b16 %v666
  %v743 = vunpack.c.h.b16 %v667
  %v744 = vunpack.c.h.b16 %v668
  %v745 = vunpack.c.l.b16 %v669
  %v746 = vunpack.c.l.b16 %v670
  %v747 = vunpack.c.l.b16 %v671
  %v748 = vunpack.c.l.b16 %v672
  %v749 = vunpack.c.h.b16 %v669
  %v750 = vunpack.c.h.b16 %v670
  %v751 = vunpack.c.h.b16 %v671
  %v752 = vunpack.c.h.b16 %v672
  %v753 = vunpack.c.l.b16 %v673
  %v754 = vunpack.c.l.b16 %v674
  %v755 = vunpack.c.l.b16 %v675
  %v756 = vunpack.c.l.b16 %v676
  %v757 = vunpack.c.h.b16 %v673
  %v758 = vunpack.c.h.b16 %v674
  %v759 = vunpack.c.h.b16 %v675
  %v760 = vunpack.c.h.b16 %v676
  %v761 = vunpack.c.l.b16 %v677
  %v762 = vunpack.c.l.b16 %v678
  %v763 = vunpack.c.l.b16 %v679
  %v764 = vunpack.c.l.b16 %v680
  %v765 = vunpack.c.h.b16 %v677
  %v766 = vunpack.c.h.b16 %v678
  %v767 = vunpack.c.h.b16 %v679
  %v768 = vunpack.c.h.b16 %v680
  %v769 = vunpack.c.l.b16 %v681
  %v770 = vunpack.c.l.b16 %v682
  %v771 = vunpack.c.l.b16 %v683
  %v772 = vunpack.c.l.b16 %v684
  %v773 = vunpack.c.h.b16 %v681
  %v774 = vunpack.c.h.b16 %v682
  %v775 = vunpack.c.h.b16 %v683
  %v776 = vunpack.c.h.b16 %v684
  %v777 = vunpack.c.l.b16 %v685
  %v778 = vunpack.c.l.b16 %v686
  %v779 = vunpack.c.l.b16 %v687
  %v780 = vunpack.c.l.b16 %v688
  %v781 = vunpack.c.h.b16 %v685
  %v782 = vunpack.c.h.b16 %v686
  %v783 = vunpack.c.h.b16 %v687
  %v784 = vunpack.c.h.b16 %v688
  %v785 = vpack.c.b16 %v722, %v721
  %v786 = vpack.c.b16 %v724, %v723
  %v787 = vpack.c.b16 %v726, %v725
  %v788 = vpack.c.b16 %v728, %v727
  %v789 = vpack.c.b16 %v730, %v729
  %v790 = vpack.c.b16 %v732, %v731
  %v791 = vpack.c.b16 %v734, %v733
  %v792 = vpack.c.b16 %v736, %v735
  %v793 = vpack.c.b16 %v738, %v737
  %v794 = vpack.c.b16 %v740, %v739
  %v795 = vpack.c.b16 %v742, %v741
  %v796 = vpack.c.b16 %v744, %v743
  %v797 = vpack.c.b16 %v746, %v745
  %v798 = vpack.c.b16 %v748, %v747
  %v799 = vpack.c.b16 %v750, %v749
  %v800 = vpack.c.b16 %v752, %v751
  %v801 = vpack.c.b16 %v754, %v753
  %v802 = vpack.c.b16 %v756, %v755
  %v803 = vpack.c.b16 %v758, %v757
  %v804 = vpack.c.b16 %v760, %v759
  %v805 = vpack.c.b16 %v762, %v761
  %v806 = vpack.c.b16 %v764, %v763
  %v807 = vpack.c.b16 %v766, %v765
  %v808 = vpack.c.b16 %v768, %v767
  %v809 = vpack.c.b16 %v770, %v769
  %v810 = vpack.c.b16 %v772, %v771
  %v811 = vpack.c.b16 %v774, %v773
  %v812 = vpack.c.b16 %v776, %v775
  %v813 = vpack.c.b16 %v778, %v777
  %v814 = vpack.c.b16 %v780, %v779
  %v815 = vpack.c.b16 %v782, %v781
  %v816 = vpack.c.b16 %v784, %v783
  %849 = vst [vmem:[%s3] sm:$0xff] %v785
  %vm850 = vcmask 1043456
  %vm851 = vcmask 539652
  %vm852 = vmor %vm851, %vm850
  %853 = vst.msk [vmem:[%s3 + $0x8] sm:$0xff] %vm852, %v786
  %854 = vst [vmem:[%s3 + $0x10] sm:$0xff] %v787
  %855 = vst.msk [vmem:[%s3 + $0x18] sm:$0xff] %vm852, %v788
  %856 = vst [vmem:[%s3 + $0x20] sm:$0xff] %v789
  %857 = vst.msk [vmem:[%s3 + $0x28] sm:$0xff] %vm852, %v790
  %858 = vst [vmem:[%s3 + $0x30] sm:$0xff] %v791
  %859 = vst.msk [vmem:[%s3 + $0x38] sm:$0xff] %vm852, %v792
  %860 = vst [vmem:[%s3 + $0x40] sm:$0xff] %v793
  %861 = vst.msk [vmem:[%s3 + $0x48] sm:$0xff] %vm852, %v794
  %862 = vst [vmem:[%s3 + $0x50] sm:$0xff] %v795
  %863 = vst.msk [vmem:[%s3 + $0x58] sm:$0xff] %vm852, %v796
  %864 = vst [vmem:[%s3 + $0x60] sm:$0xff] %v797
  %865 = vst.msk [vmem:[%s3 + $0x68] sm:$0xff] %vm852, %v798
  %866 = vst [vmem:[%s3 + $0x70] sm:$0xff] %v799
  %867 = vst.msk [vmem:[%s3 + $0x78] sm:$0xff] %vm852, %v800
  %868 = vst [vmem:[%s3 + $0x80] sm:$0xff] %v801
  %869 = vst.msk [vmem:[%s3 + $0x88] sm:$0xff] %vm852, %v802
  %870 = vst [vmem:[%s3 + $0x90] sm:$0xff] %v803
  %871 = vst.msk [vmem:[%s3 + $0x98] sm:$0xff] %vm852, %v804
  %872 = vst [vmem:[%s3 + $0xa0] sm:$0xff] %v805
  %873 = vst.msk [vmem:[%s3 + $0xa8] sm:$0xff] %vm852, %v806
  %874 = vst [vmem:[%s3 + $0xb0] sm:$0xff] %v807
  %875 = vst.msk [vmem:[%s3 + $0xb8] sm:$0xff] %vm852, %v808
  %876 = vst [vmem:[%s3 + $0xc0] sm:$0xff] %v809
  %877 = vst.msk [vmem:[%s3 + $0xc8] sm:$0xff] %vm852, %v810
  %878 = vst [vmem:[%s3 + $0xd0] sm:$0xff] %v811
  %879 = vst.msk [vmem:[%s3 + $0xd8] sm:$0xff] %vm852, %v812
  %880 = vst [vmem:[%s3 + $0xe0] sm:$0xff] %v813
  %881 = vst.msk [vmem:[%s3 + $0xe8] sm:$0xff] %vm852, %v814
  %882 = vst [vmem:[%s3 + $0xf0] sm:$0xff] %v815
  %883 = vst.msk [vmem:[%s3 + $0xf8] sm:$0xff] %vm852, %v816
  // Predicated region
  $region14: #{forward.16} parent=0 // pred_check
    _
  $region15: #{forward.16} parent=0 // pred_check_branch
    %885 = sbr.rel (0) target = $region17
  $region16: #{forward.16} parent=0 // pred_region
    _
  $region17: #{forward.16} parent=0 // pred_fallthru
    _
  // Predicated region
  $region18: #{forward.16} parent=0 // pred_check
    _
  $region19: #{forward.16} parent=0 // pred_check_branch
    %887 = sbr.rel (0) target = $region21
  $region20: #{forward.16} parent=0 // pred_region
    _
  $region21: #{forward.16} parent=0 // pred_fallthru
    _

// kernel: forward.17
$region0: #{forward.17}
  #allocation0 [shape = 'u32[]', space=smem, size = 0x4, offset = 0x4, fixed_abs, tag = 'smem constant byte address 0x4 - core index']
  #allocation1 [shape = 'u32[144,128]{1,0:T(1,128)}', space=vmem, size = 0x12000, scoped, tag = 'internal scratch']
  %s0 = inlined_call_operand.vmem [shape: bf16[4,128], index: 0, kind: input, shape index: {}]
  %s1 = inlined_call_operand.vmem [shape: bf16[128,2048], index: 1, kind: input, shape index: {}]
  %s2 = inlined_call_operand.vmem [shape: f32[4,1], index: 2, kind: input, shape index: {}]
  %s3 = inlined_call_operand.vmem [shape: f32[4,2048], index: 3, kind: output, shape index: {}]
  %s4 = sld [smem:[#allocation0]]
  $region22: #{forward.17} parent=0
    _
  %s6 = ssub.s32 1, %s4
  %s7 = scalar_select 0, %s6, %s4
  // Predicated region
  $region2: #{forward.17} parent=0 // pred_check
    _
  $region3: #{forward.17} parent=0 // pred_check_branch
    %9 = sbr.rel (0) target = $region5
  $region4: #{forward.17} parent=0 // pred_region
    _
  $region5: #{forward.17} parent=0 // pred_fallthru
    _
  // Predicated region
  $region6: #{forward.17} parent=0 // pred_check
    _
  $region7: #{forward.17} parent=0 // pred_check_branch
    %11 = sbr.rel (0) target = $region9
  $region8: #{forward.17} parent=0 // pred_region
    _
  $region9: #{forward.17} parent=0 // pred_fallthru
    _
  // Predicated region
  $region10: #{forward.17} parent=0 // pred_check
    _
  $region11: #{forward.17} parent=0 // pred_check_branch
    %13 = sbr.rel (0) target = $region13
  $region12: #{forward.17} parent=0 // pred_region
    _
  $region13: #{forward.17} parent=0 // pred_fallthru
    _
  %v15 = vld [vmem:[%s1] sm:$0xff]
  %v16 = vld [vmem:[%s1 + $0x8] sm:$0xff]
  %v17 = vld [vmem:[%s1 + $0x10] sm:$0xff]
  %v18 = vld [vmem:[%s1 + $0x18] sm:$0xff]
  %v19 = vld [vmem:[%s1 + $0x20] sm:$0xff]
  %v20 = vld [vmem:[%s1 + $0x28] sm:$0xff]
  %v21 = vld [vmem:[%s1 + $0x30] sm:$0xff]
  %v22 = vld [vmem:[%s1 + $0x38] sm:$0xff]
  %v23 = vld [vmem:[%s1 + $0x40] sm:$0xff]
  %v24 = vld [vmem:[%s1 + $0x48] sm:$0xff]
  %v25 = vld [vmem:[%s1 + $0x50] sm:$0xff]
  %v26 = vld [vmem:[%s1 + $0x58] sm:$0xff]
  %v27 = vld [vmem:[%s1 + $0x60] sm:$0xff]
  %v28 = vld [vmem:[%s1 + $0x68] sm:$0xff]
  %v29 = vld [vmem:[%s1 + $0x70] sm:$0xff]
  %v30 = vld [vmem:[%s1 + $0x78] sm:$0xff]
  %v31 = vld [vmem:[%s1 + $0x80] sm:$0xff]
  %v32 = vld [vmem:[%s1 + $0x88] sm:$0xff]
  %v33 = vld [vmem:[%s1 + $0x90] sm:$0xff]
  %v34 = vld [vmem:[%s1 + $0x98] sm:$0xff]
  %v35 = vld [vmem:[%s1 + $0xa0] sm:$0xff]
  %v36 = vld [vmem:[%s1 + $0xa8] sm:$0xff]
  %v37 = vld [vmem:[%s1 + $0xb0] sm:$0xff]
  %v38 = vld [vmem:[%s1 + $0xb8] sm:$0xff]
  %v39 = vld [vmem:[%s1 + $0xc0] sm:$0xff]
  %v40 = vld [vmem:[%s1 + $0xc8] sm:$0xff]
  %v41 = vld [vmem:[%s1 + $0xd0] sm:$0xff]
  %v42 = vld [vmem:[%s1 + $0xd8] sm:$0xff]
  %v43 = vld [vmem:[%s1 + $0xe0] sm:$0xff]
  %v44 = vld [vmem:[%s1 + $0xe8] sm:$0xff]
  %v45 = vld [vmem:[%s1 + $0xf0] sm:$0xff]
  %v46 = vld [vmem:[%s1 + $0xf8] sm:$0xff]
  %v47 = vld [vmem:[%s1 + $0x100] sm:$0xff]
  %v48 = vld [vmem:[%s1 + $0x108] sm:$0xff]
  %v49 = vld [vmem:[%s1 + $0x110] sm:$0xff]
  %v50 = vld [vmem:[%s1 + $0x118] sm:$0xff]
  %v51 = vld [vmem:[%s1 + $0x120] sm:$0xff]
  %v52 = vld [vmem:[%s1 + $0x128] sm:$0xff]
  %v53 = vld [vmem:[%s1 + $0x130] sm:$0xff]
  %v54 = vld [vmem:[%s1 + $0x138] sm:$0xff]
  %v55 = vld [vmem:[%s1 + $0x140] sm:$0xff]
  %v56 = vld [vmem:[%s1 + $0x148] sm:$0xff]
  %v57 = vld [vmem:[%s1 + $0x150] sm:$0xff]
  %v58 = vld [vmem:[%s1 + $0x158] sm:$0xff]
  %v59 = vld [vmem:[%s1 + $0x160] sm:$0xff]
  %v60 = vld [vmem:[%s1 + $0x168] sm:$0xff]
  %v61 = vld [vmem:[%s1 + $0x170] sm:$0xff]
  %v62 = vld [vmem:[%s1 + $0x178] sm:$0xff]
  %v63 = vld [vmem:[%s1 + $0x180] sm:$0xff]
  %v64 = vld [vmem:[%s1 + $0x188] sm:$0xff]
  %v65 = vld [vmem:[%s1 + $0x190] sm:$0xff]
  %v66 = vld [vmem:[%s1 + $0x198] sm:$0xff]
  %v67 = vld [vmem:[%s1 + $0x1a0] sm:$0xff]
  %v68 = vld [vmem:[%s1 + $0x1a8] sm:$0xff]
  %v69 = vld [vmem:[%s1 + $0x1b0] sm:$0xff]
  %v70 = vld [vmem:[%s1 + $0x1b8] sm:$0xff]
  %v71 = vld [vmem:[%s1 + $0x1c0] sm:$0xff]
  %v72 = vld [vmem:[%s1 + $0x1c8] sm:$0xff]
  %v73 = vld [vmem:[%s1 + $0x1d0] sm:$0xff]
  %v74 = vld [vmem:[%s1 + $0x1d8] sm:$0xff]
  %v75 = vld [vmem:[%s1 + $0x1e0] sm:$0xff]
  %v76 = vld [vmem:[%s1 + $0x1e8] sm:$0xff]
  %v77 = vld [vmem:[%s1 + $0x1f0] sm:$0xff]
  %v78 = vld [vmem:[%s1 + $0x1f8] sm:$0xff]
  %v79 = vld [vmem:[%s1 + $0x200] sm:$0xff]
  %v80 = vld [vmem:[%s1 + $0x208] sm:$0xff]
  %v81 = vld [vmem:[%s1 + $0x210] sm:$0xff]
  %v82 = vld [vmem:[%s1 + $0x218] sm:$0xff]
  %v83 = vld [vmem:[%s1 + $0x220] sm:$0xff]
  %v84 = vld [vmem:[%s1 + $0x228] sm:$0xff]
  %v85 = vld [vmem:[%s1 + $0x230] sm:$0xff]
  %v86 = vld [vmem:[%s1 + $0x238] sm:$0xff]
  %v87 = vld [vmem:[%s1 + $0x240] sm:$0xff]
  %v88 = vld [vmem:[%s1 + $0x248] sm:$0xff]
  %v89 = vld [vmem:[%s1 + $0x250] sm:$0xff]
  %v90 = vld [vmem:[%s1 + $0x258] sm:$0xff]
  %v91 = vld [vmem:[%s1 + $0x260] sm:$0xff]
  %v92 = vld [vmem:[%s1 + $0x268] sm:$0xff]
  %v93 = vld [vmem:[%s1 + $0x270] sm:$0xff]
  %v94 = vld [vmem:[%s1 + $0x278] sm:$0xff]
  %v95 = vld [vmem:[%s1 + $0x280] sm:$0xff]
  %v96 = vld [vmem:[%s1 + $0x288] sm:$0xff]
  %v97 = vld [vmem:[%s1 + $0x290] sm:$0xff]
  %v98 = vld [vmem:[%s1 + $0x298] sm:$0xff]
  %v99 = vld [vmem:[%s1 + $0x2a0] sm:$0xff]
  %v100 = vld [vmem:[%s1 + $0x2a8] sm:$0xff]
  %v101 = vld [vmem:[%s1 + $0x2b0] sm:$0xff]
  %v102 = vld [vmem:[%s1 + $0x2b8] sm:$0xff]
  %v103 = vld [vmem:[%s1 + $0x2c0] sm:$0xff]
  %v104 = vld [vmem:[%s1 + $0x2c8] sm:$0xff]
  %v105 = vld [vmem:[%s1 + $0x2d0] sm:$0xff]
  %v106 = vld [vmem:[%s1 + $0x2d8] sm:$0xff]
  %v107 = vld [vmem:[%s1 + $0x2e0] sm:$0xff]
  %v108 = vld [vmem:[%s1 + $0x2e8] sm:$0xff]
  %v109 = vld [vmem:[%s1 + $0x2f0] sm:$0xff]
  %v110 = vld [vmem:[%s1 + $0x2f8] sm:$0xff]
  %v111 = vld [vmem:[%s1 + $0x300] sm:$0xff]
  %v112 = vld [vmem:[%s1 + $0x308] sm:$0xff]
  %v113 = vld [vmem:[%s1 + $0x310] sm:$0xff]
  %v114 = vld [vmem:[%s1 + $0x318] sm:$0xff]
  %v115 = vld [vmem:[%s1 + $0x320] sm:$0xff]
  %v116 = vld [vmem:[%s1 + $0x328] sm:$0xff]
  %v117 = vld [vmem:[%s1 + $0x330] sm:$0xff]
  %v118 = vld [vmem:[%s1 + $0x338] sm:$0xff]
  %v119 = vld [vmem:[%s1 + $0x340] sm:$0xff]
  %v120 = vld [vmem:[%s1 + $0x348] sm:$0xff]
  %v121 = vld [vmem:[%s1 + $0x350] sm:$0xff]
  %v122 = vld [vmem:[%s1 + $0x358] sm:$0xff]
  %v123 = vld [vmem:[%s1 + $0x360] sm:$0xff]
  %v124 = vld [vmem:[%s1 + $0x368] sm:$0xff]
  %v125 = vld [vmem:[%s1 + $0x370] sm:$0xff]
  %v126 = vld [vmem:[%s1 + $0x378] sm:$0xff]
  %v127 = vld [vmem:[%s1 + $0x380] sm:$0xff]
  %v128 = vld [vmem:[%s1 + $0x388] sm:$0xff]
  %v129 = vld [vmem:[%s1 + $0x390] sm:$0xff]
  %v130 = vld [vmem:[%s1 + $0x398] sm:$0xff]
  %v131 = vld [vmem:[%s1 + $0x3a0] sm:$0xff]
  %v132 = vld [vmem:[%s1 + $0x3a8] sm:$0xff]
  %v133 = vld [vmem:[%s1 + $0x3b0] sm:$0xff]
  %v134 = vld [vmem:[%s1 + $0x3b8] sm:$0xff]
  %v135 = vld [vmem:[%s1 + $0x3c0] sm:$0xff]
  %v136 = vld [vmem:[%s1 + $0x3c8] sm:$0xff]
  %v137 = vld [vmem:[%s1 + $0x3d0] sm:$0xff]
  %v138 = vld [vmem:[%s1 + $0x3d8] sm:$0xff]
  %v139 = vld [vmem:[%s1 + $0x3e0] sm:$0xff]
  %v140 = vld [vmem:[%s1 + $0x3e8] sm:$0xff]
  %v141 = vld [vmem:[%s1 + $0x3f0] sm:$0xff]
  %v142 = vld [vmem:[%s1 + $0x3f8] sm:$0xff]
  %v143 = vld [vmem:[%s0] sm:$0x3]
  %v144 = vld [vmem:[%s2] sm:$0xf]
  %146 = vset.pattern.permute.xlu0 0
  %147 = vperm.xlu0 %146, %v144
  %v148 = vpop.permute.xlu0 %147
  %v278 = vunpack.c.l.b16 %v15
  %v279 = vunpack.c.h.b16 %v15
  %v280 = vunpack.c.l.b16 %v16
  %v281 = vunpack.c.h.b16 %v16
  %v282 = vunpack.c.l.b16 %v17
  %v283 = vunpack.c.h.b16 %v17
  %v284 = vunpack.c.l.b16 %v18
  %v285 = vunpack.c.h.b16 %v18
  %v286 = vunpack.c.l.b16 %v19
  %v287 = vunpack.c.h.b16 %v19
  %v288 = vunpack.c.l.b16 %v20
  %v289 = vunpack.c.h.b16 %v20
  %v290 = vunpack.c.l.b16 %v21
  %v291 = vunpack.c.h.b16 %v21
  %v292 = vunpack.c.l.b16 %v22
  %v293 = vunpack.c.h.b16 %v22
  %v294 = vunpack.c.l.b16 %v23
  %v295 = vunpack.c.h.b16 %v23
  %v296 = vunpack.c.l.b16 %v24
  %v297 = vunpack.c.h.b16 %v24
  %v298 = vunpack.c.l.b16 %v25
  %v299 = vunpack.c.h.b16 %v25
  %v300 = vunpack.c.l.b16 %v26
  %v301 = vunpack.c.h.b16 %v26
  %v302 = vunpack.c.l.b16 %v27
  %v303 = vunpack.c.h.b16 %v27
  %v304 = vunpack.c.l.b16 %v28
  %v305 = vunpack.c.h.b16 %v28
  %v306 = vunpack.c.l.b16 %v29
  %v307 = vunpack.c.h.b16 %v29
  %v308 = vunpack.c.l.b16 %v30
  %v309 = vunpack.c.h.b16 %v30
  %v310 = vunpack.c.l.b16 %v31
  %v311 = vunpack.c.h.b16 %v31
  %v312 = vunpack.c.l.b16 %v32
  %v313 = vunpack.c.h.b16 %v32
  %v314 = vunpack.c.l.b16 %v33
  %v315 = vunpack.c.h.b16 %v33
  %v316 = vunpack.c.l.b16 %v34
  %v317 = vunpack.c.h.b16 %v34
  %v318 = vunpack.c.l.b16 %v35
  %v319 = vunpack.c.h.b16 %v35
  %v320 = vunpack.c.l.b16 %v36
  %v321 = vunpack.c.h.b16 %v36
  %v322 = vunpack.c.l.b16 %v37
  %v323 = vunpack.c.h.b16 %v37
  %v324 = vunpack.c.l.b16 %v38
  %v325 = vunpack.c.h.b16 %v38
  %v326 = vunpack.c.l.b16 %v39
  %v327 = vunpack.c.h.b16 %v39
  %v328 = vunpack.c.l.b16 %v40
  %v329 = vunpack.c.h.b16 %v40
  %v330 = vunpack.c.l.b16 %v41
  %v331 = vunpack.c.h.b16 %v41
  %v332 = vunpack.c.l.b16 %v42
  %v333 = vunpack.c.h.b16 %v42
  %v334 = vunpack.c.l.b16 %v43
  %v335 = vunpack.c.h.b16 %v43
  %v336 = vunpack.c.l.b16 %v44
  %v337 = vunpack.c.h.b16 %v44
  %v338 = vunpack.c.l.b16 %v45
  %v339 = vunpack.c.h.b16 %v45
  %v340 = vunpack.c.l.b16 %v46
  %v341 = vunpack.c.h.b16 %v46
  %v342 = vunpack.c.l.b16 %v47
  %v343 = vunpack.c.h.b16 %v47
  %v344 = vunpack.c.l.b16 %v48
  %v345 = vunpack.c.h.b16 %v48
  %v346 = vunpack.c.l.b16 %v49
  %v347 = vunpack.c.h.b16 %v49
  %v348 = vunpack.c.l.b16 %v50
  %v349 = vunpack.c.h.b16 %v50
  %v350 = vunpack.c.l.b16 %v51
  %v351 = vunpack.c.h.b16 %v51
  %v352 = vunpack.c.l.b16 %v52
  %v353 = vunpack.c.h.b16 %v52
  %v354 = vunpack.c.l.b16 %v53
  %v355 = vunpack.c.h.b16 %v53
  %v356 = vunpack.c.l.b16 %v54
  %v357 = vunpack.c.h.b16 %v54
  %v358 = vunpack.c.l.b16 %v55
  %v359 = vunpack.c.h.b16 %v55
  %v360 = vunpack.c.l.b16 %v56
  %v361 = vunpack.c.h.b16 %v56
  %v362 = vunpack.c.l.b16 %v57
  %v363 = vunpack.c.h.b16 %v57
  %v364 = vunpack.c.l.b16 %v58
  %v365 = vunpack.c.h.b16 %v58
  %v366 = vunpack.c.l.b16 %v59
  %v367 = vunpack.c.h.b16 %v59
  %v368 = vunpack.c.l.b16 %v60
  %v369 = vunpack.c.h.b16 %v60
  %v370 = vunpack.c.l.b16 %v61
  %v371 = vunpack.c.h.b16 %v61
  %v372 = vunpack.c.l.b16 %v62
  %v373 = vunpack.c.h.b16 %v62
  %v374 = vunpack.c.l.b16 %v63
  %v375 = vunpack.c.h.b16 %v63
  %v376 = vunpack.c.l.b16 %v64
  %v377 = vunpack.c.h.b16 %v64
  %v378 = vunpack.c.l.b16 %v65
  %v379 = vunpack.c.h.b16 %v65
  %v380 = vunpack.c.l.b16 %v66
  %v381 = vunpack.c.h.b16 %v66
  %v382 = vunpack.c.l.b16 %v67
  %v383 = vunpack.c.h.b16 %v67
  %v384 = vunpack.c.l.b16 %v68
  %v385 = vunpack.c.h.b16 %v68
  %v386 = vunpack.c.l.b16 %v69
  %v387 = vunpack.c.h.b16 %v69
  %v388 = vunpack.c.l.b16 %v70
  %v389 = vunpack.c.h.b16 %v70
  %v390 = vunpack.c.l.b16 %v71
  %v391 = vunpack.c.h.b16 %v71
  %v392 = vunpack.c.l.b16 %v72
  %v393 = vunpack.c.h.b16 %v72
  %v394 = vunpack.c.l.b16 %v73
  %v395 = vunpack.c.h.b16 %v73
  %v396 = vunpack.c.l.b16 %v74
  %v397 = vunpack.c.h.b16 %v74
  %v398 = vunpack.c.l.b16 %v75
  %v399 = vunpack.c.h.b16 %v75
  %v400 = vunpack.c.l.b16 %v76
  %v401 = vunpack.c.h.b16 %v76
  %v402 = vunpack.c.l.b16 %v77
  %v403 = vunpack.c.h.b16 %v77
  %v404 = vunpack.c.l.b16 %v78
  %v405 = vunpack.c.h.b16 %v78
  %v406 = vunpack.c.l.b16 %v79
  %v407 = vunpack.c.h.b16 %v79
  %v408 = vunpack.c.l.b16 %v80
  %v409 = vunpack.c.h.b16 %v80
  %v410 = vunpack.c.l.b16 %v81
  %v411 = vunpack.c.h.b16 %v81
  %v412 = vunpack.c.l.b16 %v82
  %v413 = vunpack.c.h.b16 %v82
  %v414 = vunpack.c.l.b16 %v83
  %v415 = vunpack.c.h.b16 %v83
  %v416 = vunpack.c.l.b16 %v84
  %v417 = vunpack.c.h.b16 %v84
  %v418 = vunpack.c.l.b16 %v85
  %v419 = vunpack.c.h.b16 %v85
  %v420 = vunpack.c.l.b16 %v86
  %v421 = vunpack.c.h.b16 %v86
  %v422 = vunpack.c.l.b16 %v87
  %v423 = vunpack.c.h.b16 %v87
  %v424 = vunpack.c.l.b16 %v88
  %v425 = vunpack.c.h.b16 %v88
  %v426 = vunpack.c.l.b16 %v89
  %v427 = vunpack.c.h.b16 %v89
  %v428 = vunpack.c.l.b16 %v90
  %v429 = vunpack.c.h.b16 %v90
  %v430 = vunpack.c.l.b16 %v91
  %v431 = vunpack.c.h.b16 %v91
  %v432 = vunpack.c.l.b16 %v92
  %v433 = vunpack.c.h.b16 %v92
  %v434 = vunpack.c.l.b16 %v93
  %v435 = vunpack.c.h.b16 %v93
  %v436 = vunpack.c.l.b16 %v94
  %v437 = vunpack.c.h.b16 %v94
  %v438 = vunpack.c.l.b16 %v95
  %v439 = vunpack.c.h.b16 %v95
  %v440 = vunpack.c.l.b16 %v96
  %v441 = vunpack.c.h.b16 %v96
  %v442 = vunpack.c.l.b16 %v97
  %v443 = vunpack.c.h.b16 %v97
  %v444 = vunpack.c.l.b16 %v98
  %v445 = vunpack.c.h.b16 %v98
  %v446 = vunpack.c.l.b16 %v99
  %v447 = vunpack.c.h.b16 %v99
  %v448 = vunpack.c.l.b16 %v100
  %v449 = vunpack.c.h.b16 %v100
  %v450 = vunpack.c.l.b16 %v101
  %v451 = vunpack.c.h.b16 %v101
  %v452 = vunpack.c.l.b16 %v102
  %v453 = vunpack.c.h.b16 %v102
  %v454 = vunpack.c.l.b16 %v103
  %v455 = vunpack.c.h.b16 %v103
  %v456 = vunpack.c.l.b16 %v104
  %v457 = vunpack.c.h.b16 %v104
  %v458 = vunpack.c.l.b16 %v105
  %v459 = vunpack.c.h.b16 %v105
  %v460 = vunpack.c.l.b16 %v106
  %v461 = vunpack.c.h.b16 %v106
  %v462 = vunpack.c.l.b16 %v107
  %v463 = vunpack.c.h.b16 %v107
  %v464 = vunpack.c.l.b16 %v108
  %v465 = vunpack.c.h.b16 %v108
  %v466 = vunpack.c.l.b16 %v109
  %v467 = vunpack.c.h.b16 %v109
  %v468 = vunpack.c.l.b16 %v110
  %v469 = vunpack.c.h.b16 %v110
  %v470 = vunpack.c.l.b16 %v111
  %v471 = vunpack.c.h.b16 %v111
  %v472 = vunpack.c.l.b16 %v112
  %v473 = vunpack.c.h.b16 %v112
  %v474 = vunpack.c.l.b16 %v113
  %v475 = vunpack.c.h.b16 %v113
  %v476 = vunpack.c.l.b16 %v114
  %v477 = vunpack.c.h.b16 %v114
  %v478 = vunpack.c.l.b16 %v115
  %v479 = vunpack.c.h.b16 %v115
  %v480 = vunpack.c.l.b16 %v116
  %v481 = vunpack.c.h.b16 %v116
  %v482 = vunpack.c.l.b16 %v117
  %v483 = vunpack.c.h.b16 %v117
  %v484 = vunpack.c.l.b16 %v118
  %v485 = vunpack.c.h.b16 %v118
  %v486 = vunpack.c.l.b16 %v119
  %v487 = vunpack.c.h.b16 %v119
  %v488 = vunpack.c.l.b16 %v120
  %v489 = vunpack.c.h.b16 %v120
  %v490 = vunpack.c.l.b16 %v121
  %v491 = vunpack.c.h.b16 %v121
  %v492 = vunpack.c.l.b16 %v122
  %v493 = vunpack.c.h.b16 %v122
  %v494 = vunpack.c.l.b16 %v123
  %v495 = vunpack.c.h.b16 %v123
  %v496 = vunpack.c.l.b16 %v124
  %v497 = vunpack.c.h.b16 %v124
  %v498 = vunpack.c.l.b16 %v125
  %v499 = vunpack.c.h.b16 %v125
  %v500 = vunpack.c.l.b16 %v126
  %v501 = vunpack.c.h.b16 %v126
  %v502 = vunpack.c.l.b16 %v127
  %v503 = vunpack.c.h.b16 %v127
  %v504 = vunpack.c.l.b16 %v128
  %v505 = vunpack.c.h.b16 %v128
  %v506 = vunpack.c.l.b16 %v129
  %v507 = vunpack.c.h.b16 %v129
  %v508 = vunpack.c.l.b16 %v130
  %v509 = vunpack.c.h.b16 %v130
  %v510 = vunpack.c.l.b16 %v131
  %v511 = vunpack.c.h.b16 %v131
  %v512 = vunpack.c.l.b16 %v132
  %v513 = vunpack.c.h.b16 %v132
  %v514 = vunpack.c.l.b16 %v133
  %v515 = vunpack.c.h.b16 %v133
  %v516 = vunpack.c.l.b16 %v134
  %v517 = vunpack.c.h.b16 %v134
  %v518 = vunpack.c.l.b16 %v135
  %v519 = vunpack.c.h.b16 %v135
  %v520 = vunpack.c.l.b16 %v136
  %v521 = vunpack.c.h.b16 %v136
  %v522 = vunpack.c.l.b16 %v137
  %v523 = vunpack.c.h.b16 %v137
  %v524 = vunpack.c.l.b16 %v138
  %v525 = vunpack.c.h.b16 %v138
  %v526 = vunpack.c.l.b16 %v139
  %v527 = vunpack.c.h.b16 %v139
  %v528 = vunpack.c.l.b16 %v140
  %v529 = vunpack.c.h.b16 %v140
  %v530 = vunpack.c.l.b16 %v141
  %v531 = vunpack.c.h.b16 %v141
  %v532 = vunpack.c.l.b16 %v142
  %v533 = vunpack.c.h.b16 %v142
  %v534 = vpack.c.b16 %v294, %v278
  %v535 = vpack.c.b16 %v295, %v279
  %v536 = vpack.c.b16 %v296, %v280
  %v537 = vpack.c.b16 %v297, %v281
  %v538 = vpack.c.b16 %v298, %v282
  %v539 = vpack.c.b16 %v299, %v283
  %v540 = vpack.c.b16 %v300, %v284
  %v541 = vpack.c.b16 %v301, %v285
  %v542 = vpack.c.b16 %v302, %v286
  %v543 = vpack.c.b16 %v303, %v287
  %v544 = vpack.c.b16 %v304, %v288
  %v545 = vpack.c.b16 %v305, %v289
  %v546 = vpack.c.b16 %v306, %v290
  %v547 = vpack.c.b16 %v307, %v291
  %v548 = vpack.c.b16 %v308, %v292
  %v549 = vpack.c.b16 %v309, %v293
  %v550 = vpack.c.b16 %v326, %v310
  %v551 = vpack.c.b16 %v327, %v311
  %v552 = vpack.c.b16 %v328, %v312
  %v553 = vpack.c.b16 %v329, %v313
  %v554 = vpack.c.b16 %v330, %v314
  %v555 = vpack.c.b16 %v331, %v315
  %v556 = vpack.c.b16 %v332, %v316
  %v557 = vpack.c.b16 %v333, %v317
  %v558 = vpack.c.b16 %v334, %v318
  %v559 = vpack.c.b16 %v335, %v319
  %v560 = vpack.c.b16 %v336, %v320
  %v561 = vpack.c.b16 %v337, %v321
  %v562 = vpack.c.b16 %v338, %v322
  %v563 = vpack.c.b16 %v339, %v323
  %v564 = vpack.c.b16 %v340, %v324
  %v565 = vpack.c.b16 %v341, %v325
  %v566 = vpack.c.b16 %v358, %v342
  %v567 = vpack.c.b16 %v359, %v343
  %v568 = vpack.c.b16 %v360, %v344
  %v569 = vpack.c.b16 %v361, %v345
  %v570 = vpack.c.b16 %v362, %v346
  %v571 = vpack.c.b16 %v363, %v347
  %v572 = vpack.c.b16 %v364, %v348
  %v573 = vpack.c.b16 %v365, %v349
  %v574 = vpack.c.b16 %v366, %v350
  %v575 = vpack.c.b16 %v367, %v351
  %v576 = vpack.c.b16 %v368, %v352
  %v577 = vpack.c.b16 %v369, %v353
  %v578 = vpack.c.b16 %v370, %v354
  %v579 = vpack.c.b16 %v371, %v355
  %v580 = vpack.c.b16 %v372, %v356
  %v581 = vpack.c.b16 %v373, %v357
  %v582 = vpack.c.b16 %v390, %v374
  %v583 = vpack.c.b16 %v391, %v375
  %v584 = vpack.c.b16 %v392, %v376
  %v585 = vpack.c.b16 %v393, %v377
  %v586 = vpack.c.b16 %v394, %v378
  %v587 = vpack.c.b16 %v395, %v379
  %v588 = vpack.c.b16 %v396, %v380
  %v589 = vpack.c.b16 %v397, %v381
  %v590 = vpack.c.b16 %v398, %v382
  %v591 = vpack.c.b16 %v399, %v383
  %v592 = vpack.c.b16 %v400, %v384
  %v593 = vpack.c.b16 %v401, %v385
  %v594 = vpack.c.b16 %v402, %v386
  %v595 = vpack.c.b16 %v403, %v387
  %v596 = vpack.c.b16 %v404, %v388
  %v597 = vpack.c.b16 %v405, %v389
  %v598 = vpack.c.b16 %v422, %v406
  %v599 = vpack.c.b16 %v423, %v407
  %v600 = vpack.c.b16 %v424, %v408
  %v601 = vpack.c.b16 %v425, %v409
  %v602 = vpack.c.b16 %v426, %v410
  %v603 = vpack.c.b16 %v427, %v411
  %v604 = vpack.c.b16 %v428, %v412
  %v605 = vpack.c.b16 %v429, %v413
  %v606 = vpack.c.b16 %v430, %v414
  %v607 = vpack.c.b16 %v431, %v415
  %v608 = vpack.c.b16 %v432, %v416
  %v609 = vpack.c.b16 %v433, %v417
  %v610 = vpack.c.b16 %v434, %v418
  %v611 = vpack.c.b16 %v435, %v419
  %v612 = vpack.c.b16 %v436, %v420
  %v613 = vpack.c.b16 %v437, %v421
  %v614 = vpack.c.b16 %v454, %v438
  %v615 = vpack.c.b16 %v455, %v439
  %v616 = vpack.c.b16 %v456, %v440
  %v617 = vpack.c.b16 %v457, %v441
  %v618 = vpack.c.b16 %v458, %v442
  %v619 = vpack.c.b16 %v459, %v443
  %v620 = vpack.c.b16 %v460, %v444
  %v621 = vpack.c.b16 %v461, %v445
  %v622 = vpack.c.b16 %v462, %v446
  %v623 = vpack.c.b16 %v463, %v447
  %v624 = vpack.c.b16 %v464, %v448
  %v625 = vpack.c.b16 %v465, %v449
  %v626 = vpack.c.b16 %v466, %v450
  %v627 = vpack.c.b16 %v467, %v451
  %v628 = vpack.c.b16 %v468, %v452
  %v629 = vpack.c.b16 %v469, %v453
  %v630 = vpack.c.b16 %v486, %v470
  %v631 = vpack.c.b16 %v487, %v471
  %v632 = vpack.c.b16 %v488, %v472
  %v633 = vpack.c.b16 %v489, %v473
  %v634 = vpack.c.b16 %v490, %v474
  %v635 = vpack.c.b16 %v491, %v475
  %v636 = vpack.c.b16 %v492, %v476
  %v637 = vpack.c.b16 %v493, %v477
  %v638 = vpack.c.b16 %v494, %v478
  %v639 = vpack.c.b16 %v495, %v479
  %v640 = vpack.c.b16 %v496, %v480
  %v641 = vpack.c.b16 %v497, %v481
  %v642 = vpack.c.b16 %v498, %v482
  %v643 = vpack.c.b16 %v499, %v483
  %v644 = vpack.c.b16 %v500, %v484
  %v645 = vpack.c.b16 %v501, %v485
  %v646 = vpack.c.b16 %v518, %v502
  %v647 = vpack.c.b16 %v519, %v503
  %v648 = vpack.c.b16 %v520, %v504
  %v649 = vpack.c.b16 %v521, %v505
  %v650 = vpack.c.b16 %v522, %v506
  %v651 = vpack.c.b16 %v523, %v507
  %v652 = vpack.c.b16 %v524, %v508
  %v653 = vpack.c.b16 %v525, %v509
  %v654 = vpack.c.b16 %v526, %v510
  %v655 = vpack.c.b16 %v527, %v511
  %v656 = vpack.c.b16 %v528, %v512
  %v657 = vpack.c.b16 %v529, %v513
  %v658 = vpack.c.b16 %v530, %v514
  %v659 = vpack.c.b16 %v531, %v515
  %v660 = vpack.c.b16 %v532, %v516
  %v661 = vpack.c.b16 %v533, %v517
  %790 = vmatprep.subr.bf16.mxu0 %v647
  %791 = vmatpush1.bf16.msra.mxu0 %v646
  %792 = vmatprep.subr.bf16.mxu0 %v631
  %793 = vmatpush1.bf16.msra.mxu0 %v630
  %794 = vmatprep.subr.bf16.mxu0 %v615
  %795 = vmatpush1.bf16.msra.mxu0 %v614
  %796 = vmatprep.subr.bf16.mxu0 %v599
  %797 = vmatpush1.bf16.msra.mxu0 %v598
  %798 = vmatprep.subr.bf16.mxu0 %v583
  %799 = vmatpush1.bf16.msra.mxu0 %v582
  %800 = vmatprep.subr.bf16.mxu0 %v567
  %801 = vmatpush1.bf16.msra.mxu0 %v566
  %802 = vmatprep.subr.bf16.mxu0 %v551
  %803 = vmatpush1.bf16.msra.mxu0 %v550
  %804 = vmatprep.subr.bf16.mxu0 %v535
  %805 = vmatpush1.bf16.msra.mxu0 %v534
  %806 = vmatprep.subr.bf16.mxu0 0
  %807 = vmatpush2.bf16.msra.mxu0 0
  %808 = vmatprep.subr.bf16.mxu0 0
  %809 = vmatpush2.bf16.msra.mxu0 0
  %810 = vmatprep.subr.bf16.mxu0 0
  %811 = vmatpush2.bf16.msra.mxu0 0
  %812 = vmatprep.subr.bf16.mxu0 0
  %813 = vmatpush2.bf16.msra.mxu0 0
  %814 = vmatprep.subr.bf16.mxu0 0
  %815 = vmatpush2.bf16.msra.mxu0 0
  %816 = vmatprep.subr.bf16.mxu0 0
  %817 = vmatpush2.bf16.msra.mxu0 0
  %818 = vmatprep.subr.bf16.mxu0 0
  %819 = vmatpush2.bf16.msra.mxu0 0
  %820 = vmatprep.subr.bf16.mxu0 0
  %821 = vmatpush2.bf16.msra.mxu0 0
  %822 = vmatprep.mubr.bf16.mxu0 0
  %823 = vmatmul.mubr.bf16.gmra.mxu0 %v143
  %v824 = vpop.f32.mrf.mxu0
  %v825 = vadd.f32 %v148, %v824
  %v826 = vpop.f32.mrf.mxu0
  %v827 = vadd.f32 %v148, %v826
  %v828 = vpop.f32.mrf.mxu0
  %v829 = vpop.f32.mrf.mxu0
  %830 = vdwg.mxu0
  %831 = vmatprep.subr.bf16.mxu0 %v649
  %832 = vmatpush1.bf16.msra.mxu0 %v648
  %833 = vmatprep.subr.bf16.mxu0 %v633
  %834 = vmatpush1.bf16.msra.mxu0 %v632
  %835 = vmatprep.subr.bf16.mxu0 %v617
  %836 = vmatpush1.bf16.msra.mxu0 %v616
  %837 = vmatprep.subr.bf16.mxu0 %v601
  %838 = vmatpush1.bf16.msra.mxu0 %v600
  %839 = vmatprep.subr.bf16.mxu0 %v585
  %840 = vmatpush1.bf16.msra.mxu0 %v584
  %841 = vmatprep.subr.bf16.mxu0 %v569
  %842 = vmatpush1.bf16.msra.mxu0 %v568
  %843 = vmatprep.subr.bf16.mxu0 %v553
  %844 = vmatpush1.bf16.msra.mxu0 %v552
  %845 = vmatprep.subr.bf16.mxu0 %v537
  %846 = vmatpush1.bf16.msra.mxu0 %v536
  %847 = vmatprep.subr.bf16.mxu0 0
  %848 = vmatpush2.bf16.msra.mxu0 0
  %849 = vmatprep.subr.bf16.mxu0 0
  %850 = vmatpush2.bf16.msra.mxu0 0
  %851 = vmatprep.subr.bf16.mxu0 0
  %852 = vmatpush2.bf16.msra.mxu0 0
  %853 = vmatprep.subr.bf16.mxu0 0
  %854 = vmatpush2.bf16.msra.mxu0 0
  %855 = vmatprep.subr.bf16.mxu0 0
  %856 = vmatpush2.bf16.msra.mxu0 0
  %857 = vmatprep.subr.bf16.mxu0 0
  %858 = vmatpush2.bf16.msra.mxu0 0
  %859 = vmatprep.subr.bf16.mxu0 0
  %860 = vmatpush2.bf16.msra.mxu0 0
  %861 = vmatprep.subr.bf16.mxu0 0
  %862 = vmatpush2.bf16.msra.mxu0 0
  %863 = vmatprep.mubr.bf16.mxu0 0
  %864 = vmatmul.mubr.bf16.gmra.mxu0 %v143
  %v865 = vpop.f32.mrf.mxu0
  %v866 = vadd.f32 %v148, %v865
  %v867 = vpop.f32.mrf.mxu0
  %v868 = vadd.f32 %v148, %v867
  %v869 = vpop.f32.mrf.mxu0
  %v870 = vpop.f32.mrf.mxu0
  %871 = vdwg.mxu0
  %872 = vmatprep.subr.bf16.mxu0 %v651
  %873 = vmatpush1.bf16.msra.mxu0 %v650
  %874 = vmatprep.subr.bf16.mxu0 %v635
  %875 = vmatpush1.bf16.msra.mxu0 %v634
  %876 = vmatprep.subr.bf16.mxu0 %v619
  %877 = vmatpush1.bf16.msra.mxu0 %v618
  %878 = vmatprep.subr.bf16.mxu0 %v603
  %879 = vmatpush1.bf16.msra.mxu0 %v602
  %880 = vmatprep.subr.bf16.mxu0 %v587
  %881 = vmatpush1.bf16.msra.mxu0 %v586
  %882 = vmatprep.subr.bf16.mxu0 %v571
  %883 = vmatpush1.bf16.msra.mxu0 %v570
  %884 = vmatprep.subr.bf16.mxu0 %v555
  %885 = vmatpush1.bf16.msra.mxu0 %v554
  %886 = vmatprep.subr.bf16.mxu0 %v539
  %887 = vmatpush1.bf16.msra.mxu0 %v538
  %888 = vmatprep.subr.bf16.mxu0 0
  %889 = vmatpush2.bf16.msra.mxu0 0
  %890 = vmatprep.subr.bf16.mxu0 0
  %891 = vmatpush2.bf16.msra.mxu0 0
  %892 = vmatprep.subr.bf16.mxu0 0
  %893 = vmatpush2.bf16.msra.mxu0 0
  %894 = vmatprep.subr.bf16.mxu0 0
  %895 = vmatpush2.bf16.msra.mxu0 0
  %896 = vmatprep.subr.bf16.mxu0 0
  %897 = vmatpush2.bf16.msra.mxu0 0
  %898 = vmatprep.subr.bf16.mxu0 0
  %899 = vmatpush2.bf16.msra.mxu0 0
  %900 = vmatprep.subr.bf16.mxu0 0
  %901 = vmatpush2.bf16.msra.mxu0 0
  %902 = vmatprep.subr.bf16.mxu0 0
  %903 = vmatpush2.bf16.msra.mxu0 0
  %904 = vmatprep.mubr.bf16.mxu0 0
  %905 = vmatmul.mubr.bf16.gmra.mxu0 %v143
  %v906 = vpop.f32.mrf.mxu0
  %v907 = vadd.f32 %v148, %v906
  %v908 = vpop.f32.mrf.mxu0
  %v909 = vadd.f32 %v148, %v908
  %v910 = vpop.f32.mrf.mxu0
  %v911 = vpop.f32.mrf.mxu0
  %912 = vdwg.mxu0
  %913 = vmatprep.subr.bf16.mxu0 %v653
  %914 = vmatpush1.bf16.msra.mxu0 %v652
  %915 = vmatprep.subr.bf16.mxu0 %v637
  %916 = vmatpush1.bf16.msra.mxu0 %v636
  %917 = vmatprep.subr.bf16.mxu0 %v621
  %918 = vmatpush1.bf16.msra.mxu0 %v620
  %919 = vmatprep.subr.bf16.mxu0 %v605
  %920 = vmatpush1.bf16.msra.mxu0 %v604
  %921 = vmatprep.subr.bf16.mxu0 %v589
  %922 = vmatpush1.bf16.msra.mxu0 %v588
  %923 = vmatprep.subr.bf16.mxu0 %v573
  %924 = vmatpush1.bf16.msra.mxu0 %v572
  %925 = vmatprep.subr.bf16.mxu0 %v557
  %926 = vmatpush1.bf16.msra.mxu0 %v556
  %927 = vmatprep.subr.bf16.mxu0 %v541
  %928 = vmatpush1.bf16.msra.mxu0 %v540
  %929 = vmatprep.subr.bf16.mxu0 0
  %930 = vmatpush2.bf16.msra.mxu0 0
  %931 = vmatprep.subr.bf16.mxu0 0
  %932 = vmatpush2.bf16.msra.mxu0 0
  %933 = vmatprep.subr.bf16.mxu0 0
  %934 = vmatpush2.bf16.msra.mxu0 0
  %935 = vmatprep.subr.bf16.mxu0 0
  %936 = vmatpush2.bf16.msra.mxu0 0
  %937 = vmatprep.subr.bf16.mxu0 0
  %938 = vmatpush2.bf16.msra.mxu0 0
  %939 = vmatprep.subr.bf16.mxu0 0
  %940 = vmatpush2.bf16.msra.mxu0 0
  %941 = vmatprep.subr.bf16.mxu0 0
  %942 = vmatpush2.bf16.msra.mxu0 0
  %943 = vmatprep.subr.bf16.mxu0 0
  %944 = vmatpush2.bf16.msra.mxu0 0
  %945 = vmatprep.mubr.bf16.mxu0 0
  %946 = vmatmul.mubr.bf16.gmra.mxu0 %v143
  %v947 = vpop.f32.mrf.mxu0
  %v948 = vadd.f32 %v148, %v947
  %v949 = vpop.f32.mrf.mxu0
  %v950 = vadd.f32 %v148, %v949
  %v951 = vpop.f32.mrf.mxu0
  %v952 = vpop.f32.mrf.mxu0
  %953 = vdwg.mxu0
  %954 = vmatprep.subr.bf16.mxu0 %v655
  %955 = vmatpush1.bf16.msra.mxu0 %v654
  %956 = vmatprep.subr.bf16.mxu0 %v639
  %957 = vmatpush1.bf16.msra.mxu0 %v638
  %958 = vmatprep.subr.bf16.mxu0 %v623
  %959 = vmatpush1.bf16.msra.mxu0 %v622
  %960 = vmatprep.subr.bf16.mxu0 %v607
  %961 = vmatpush1.bf16.msra.mxu0 %v606
  %962 = vmatprep.subr.bf16.mxu0 %v591
  %963 = vmatpush1.bf16.msra.mxu0 %v590
  %964 = vmatprep.subr.bf16.mxu0 %v575
  %965 = vmatpush1.bf16.msra.mxu0 %v574
  %966 = vmatprep.subr.bf16.mxu0 %v559
  %967 = vmatpush1.bf16.msra.mxu0 %v558
  %968 = vmatprep.subr.bf16.mxu0 %v543
  %969 = vmatpush1.bf16.msra.mxu0 %v542
  %970 = vmatprep.subr.bf16.mxu0 0
  %971 = vmatpush2.bf16.msra.mxu0 0
  %972 = vmatprep.subr.bf16.mxu0 0
  %973 = vmatpush2.bf16.msra.mxu0 0
  %974 = vmatprep.subr.bf16.mxu0 0
  %975 = vmatpush2.bf16.msra.mxu0 0
  %976 = vmatprep.subr.bf16.mxu0 0
  %977 = vmatpush2.bf16.msra.mxu0 0
  %978 = vmatprep.subr.bf16.mxu0 0
  %979 = vmatpush2.bf16.msra.mxu0 0
  %980 = vmatprep.subr.bf16.mxu0 0
  %981 = vmatpush2.bf16.msra.mxu0 0
  %982 = vmatprep.subr.bf16.mxu0 0
  %983 = vmatpush2.bf16.msra.mxu0 0
  %984 = vmatprep.subr.bf16.mxu0 0
  %985 = vmatpush2.bf16.msra.mxu0 0
  %986 = vmatprep.mubr.bf16.mxu0 0
  %987 = vmatmul.mubr.bf16.gmra.mxu0 %v143
  %v988 = vpop.f32.mrf.mxu0
  %v989 = vadd.f32 %v148, %v988
  %v990 = vpop.f32.mrf.mxu0
  %v991 = vadd.f32 %v148, %v990
  %v992 = vpop.f32.mrf.mxu0
  %v993 = vpop.f32.mrf.mxu0
  %994 = vdwg.mxu0
  %995 = vmatprep.subr.bf16.mxu0 %v657
  %996 = vmatpush1.bf16.msra.mxu0 %v656
  %997 = vmatprep.subr.bf16.mxu0 %v641
  %998 = vmatpush1.bf16.msra.mxu0 %v640
  %999 = vmatprep.subr.bf16.mxu0 %v625
  %1000 = vmatpush1.bf16.msra.mxu0 %v624
  %1001 = vmatprep.subr.bf16.mxu0 %v609
  %1002 = vmatpush1.bf16.msra.mxu0 %v608
  %1003 = vmatprep.subr.bf16.mxu0 %v593
  %1004 = vmatpush1.bf16.msra.mxu0 %v592
  %1005 = vmatprep.subr.bf16.mxu0 %v577
  %1006 = vmatpush1.bf16.msra.mxu0 %v576
  %1007 = vmatprep.subr.bf16.mxu0 %v561
  %1008 = vmatpush1.bf16.msra.mxu0 %v560
  %1009 = vmatprep.subr.bf16.mxu0 %v545
  %1010 = vmatpush1.bf16.msra.mxu0 %v544
  %1011 = vmatprep.subr.bf16.mxu0 0
  %1012 = vmatpush2.bf16.msra.mxu0 0
  %1013 = vmatprep.subr.bf16.mxu0 0
  %1014 = vmatpush2.bf16.msra.mxu0 0
  %1015 = vmatprep.subr.bf16.mxu0 0
  %1016 = vmatpush2.bf16.msra.mxu0 0
  %1017 = vmatprep.subr.bf16.mxu0 0
  %1018 = vmatpush2.bf16.msra.mxu0 0
  %1019 = vmatprep.subr.bf16.mxu0 0
  %1020 = vmatpush2.bf16.msra.mxu0 0
  %1021 = vmatprep.subr.bf16.mxu0 0
  %1022 = vmatpush2.bf16.msra.mxu0 0
  %1023 = vmatprep.subr.bf16.mxu0 0
  %1024 = vmatpush2.bf16.msra.mxu0 0
  %1025 = vmatprep.subr.bf16.mxu0 0
  %1026 = vmatpush2.bf16.msra.mxu0 0
  %1027 = vmatprep.mubr.bf16.mxu0 0
  %1028 = vmatmul.mubr.bf16.gmra.mxu0 %v143
  %v1029 = vpop.f32.mrf.mxu0
  %v1030 = vadd.f32 %v148, %v1029
  %v1031 = vpop.f32.mrf.mxu0
  %v1032 = vadd.f32 %v148, %v1031
  %v1033 = vpop.f32.mrf.mxu0
  %v1034 = vpop.f32.mrf.mxu0
  %1035 = vdwg.mxu0
  %1036 = vmatprep.subr.bf16.mxu0 %v659
  %1037 = vmatpush1.bf16.msra.mxu0 %v658
  %1038 = vmatprep.subr.bf16.mxu0 %v643
  %1039 = vmatpush1.bf16.msra.mxu0 %v642
  %1040 = vmatprep.subr.bf16.mxu0 %v627
  %1041 = vmatpush1.bf16.msra.mxu0 %v626
  %1042 = vmatprep.subr.bf16.mxu0 %v611
  %1043 = vmatpush1.bf16.msra.mxu0 %v610
  %1044 = vmatprep.subr.bf16.mxu0 %v595
  %1045 = vmatpush1.bf16.msra.mxu0 %v594
  %1046 = vmatprep.subr.bf16.mxu0 %v579
  %1047 = vmatpush1.bf16.msra.mxu0 %v578
  %1048 = vmatprep.subr.bf16.mxu0 %v563
  %1049 = vmatpush1.bf16.msra.mxu0 %v562
  %1050 = vmatprep.subr.bf16.mxu0 %v547
  %1051 = vmatpush1.bf16.msra.mxu0 %v546
  %1052 = vmatprep.subr.bf16.mxu0 0
  %1053 = vmatpush2.bf16.msra.mxu0 0
  %1054 = vmatprep.subr.bf16.mxu0 0
  %1055 = vmatpush2.bf16.msra.mxu0 0
  %1056 = vmatprep.subr.bf16.mxu0 0
  %1057 = vmatpush2.bf16.msra.mxu0 0
  %1058 = vmatprep.subr.bf16.mxu0 0
  %1059 = vmatpush2.bf16.msra.mxu0 0
  %1060 = vmatprep.subr.bf16.mxu0 0
  %1061 = vmatpush2.bf16.msra.mxu0 0
  %1062 = vmatprep.subr.bf16.mxu0 0
  %1063 = vmatpush2.bf16.msra.mxu0 0
  %1064 = vmatprep.subr.bf16.mxu0 0
  %1065 = vmatpush2.bf16.msra.mxu0 0
  %1066 = vmatprep.subr.bf16.mxu0 0
  %1067 = vmatpush2.bf16.msra.mxu0 0
  %1068 = vmatprep.mubr.bf16.mxu0 0
  %1069 = vmatmul.mubr.bf16.gmra.mxu0 %v143
  %v1070 = vpop.f32.mrf.mxu0
  %v1071 = vadd.f32 %v148, %v1070
  %v1072 = vpop.f32.mrf.mxu0
  %v1073 = vadd.f32 %v148, %v1072
  %v1074 = vpop.f32.mrf.mxu0
  %v1075 = vpop.f32.mrf.mxu0
  %1076 = vdwg.mxu0
  %1077 = vmatprep.subr.bf16.mxu0 %v661
  %1078 = vmatpush1.bf16.msra.mxu0 %v660
  %1079 = vmatprep.subr.bf16.mxu0 %v645
  %1080 = vmatpush1.bf16.msra.mxu0 %v644
  %1081 = vmatprep.subr.bf16.mxu0 %v629
  %1082 = vmatpush1.bf16.msra.mxu0 %v628
  %1083 = vmatprep.subr.bf16.mxu0 %v613
  %1084 = vmatpush1.bf16.msra.mxu0 %v612
  %1085 = vmatprep.subr.bf16.mxu0 %v597
  %1086 = vmatpush1.bf16.msra.mxu0 %v596
  %1087 = vmatprep.subr.bf16.mxu0 %v581
  %1088 = vmatpush1.bf16.msra.mxu0 %v580
  %1089 = vmatprep.subr.bf16.mxu0 %v565
  %1090 = vmatpush1.bf16.msra.mxu0 %v564
  %1091 = vmatprep.subr.bf16.mxu0 %v549
  %1092 = vmatpush1.bf16.msra.mxu0 %v548
  %1093 = vmatprep.subr.bf16.mxu0 0
  %1094 = vmatpush2.bf16.msra.mxu0 0
  %1095 = vmatprep.subr.bf16.mxu0 0
  %1096 = vmatpush2.bf16.msra.mxu0 0
  %1097 = vmatprep.subr.bf16.mxu0 0
  %1098 = vmatpush2.bf16.msra.mxu0 0
  %1099 = vmatprep.subr.bf16.mxu0 0
  %1100 = vmatpush2.bf16.msra.mxu0 0
  %1101 = vmatprep.subr.bf16.mxu0 0
  %1102 = vmatpush2.bf16.msra.mxu0 0
  %1103 = vmatprep.subr.bf16.mxu0 0
  %1104 = vmatpush2.bf16.msra.mxu0 0
  %1105 = vmatprep.subr.bf16.mxu0 0
  %1106 = vmatpush2.bf16.msra.mxu0 0
  %1107 = vmatprep.subr.bf16.mxu0 0
  %1108 = vmatpush2.bf16.msra.mxu0 0
  %1109 = vmatprep.mubr.bf16.mxu0 0
  %1110 = vmatmul.mubr.bf16.gmra.mxu0 %v143
  %v1111 = vpop.f32.mrf.mxu0
  %v1112 = vadd.f32 %v148, %v1111
  %v1113 = vpop.f32.mrf.mxu0
  %v1114 = vadd.f32 %v148, %v1113
  %v1115 = vpop.f32.mrf.mxu0
  %v1116 = vpop.f32.mrf.mxu0
  %1117 = vdwg.mxu0
  %v1118 = vmax.f32 %v825, 0.0
  %v1119 = vmax.f32 %v827, 0.0
  %v1120 = vmax.f32 %v866, 0.0
  %v1121 = vmax.f32 %v868, 0.0
  %v1122 = vmax.f32 %v907, 0.0
  %v1123 = vmax.f32 %v909, 0.0
  %v1124 = vmax.f32 %v948, 0.0
  %v1125 = vmax.f32 %v950, 0.0
  %v1126 = vmax.f32 %v989, 0.0
  %v1127 = vmax.f32 %v991, 0.0
  %v1128 = vmax.f32 %v1030, 0.0
  %v1129 = vmax.f32 %v1032, 0.0
  %v1130 = vmax.f32 %v1071, 0.0
  %v1131 = vmax.f32 %v1073, 0.0
  %v1132 = vmax.f32 %v1112, 0.0
  %v1133 = vmax.f32 %v1114, 0.0
  %v1150 = vcombine.low %v1118, %v1119
  %v1151 = vcombine.low %v1120, %v1121
  %v1152 = vcombine.low %v1122, %v1123
  %v1153 = vcombine.low %v1124, %v1125
  %v1154 = vcombine.low %v1126, %v1127
  %v1155 = vcombine.low %v1128, %v1129
  %v1156 = vcombine.low %v1130, %v1131
  %v1157 = vcombine.low %v1132, %v1133
  %1166 = vst [vmem:[%s3] sm:$0xff] %v1150
  %1167 = vst [vmem:[%s3 + $0x8] sm:$0xff] %v1151
  %1168 = vst [vmem:[%s3 + $0x10] sm:$0xff] %v1152
  %1169 = vst [vmem:[%s3 + $0x18] sm:$0xff] %v1153
  %1170 = vst [vmem:[%s3 + $0x20] sm:$0xff] %v1154
  %1171 = vst [vmem:[%s3 + $0x28] sm:$0xff] %v1155
  %1172 = vst [vmem:[%s3 + $0x30] sm:$0xff] %v1156
  %1173 = vst [vmem:[%s3 + $0x38] sm:$0xff] %v1157
  // Predicated region
  $region14: #{forward.17} parent=0 // pred_check
    _
  $region15: #{forward.17} parent=0 // pred_check_branch
    %1175 = sbr.rel (0) target = $region17
  $region16: #{forward.17} parent=0 // pred_region
    _
  $region17: #{forward.17} parent=0 // pred_fallthru
    _
  // Predicated region
  $region18: #{forward.17} parent=0 // pred_check
    _
  $region19: #{forward.17} parent=0 // pred_check_branch
    %1177 = sbr.rel (0) target = $region21
  $region20: #{forward.17} parent=0 // pred_region
    _
  $region21: #{forward.17} parent=0 // pred_fallthru
    _

</llo_original>
